<compile_context>
chip_gen: v6e
topology: v6e:2x2x1
jax: 0.10.0
libtpu: 0.0.40
codegen_flags: <defaults>
</compile_context>

<pallas_src>
import jax
import jax.numpy as jnp
from jax.experimental import pallas as pl
from jax.experimental.pallas import tpu as pltpu

# Static network dimensions.
K = 9                     # conv kernel width (1, 9)
C1 = 32                   # conv1 out channels
C2 = 64                   # conv2 out channels
W_IN = 100                # input width (=> 1216 = 64*19 fc input)
W1O = W_IN - K + 1        # 92  conv1 output positions
WP1 = W1O // 2            # 46  after pool
WPA = WP1 // 2            # 23  pooled positions per parity (even / odd)
W2O = WP1 - K + 1         # 38  conv2 output positions
WP2 = W2O // 2            # 19  after pool
N_FEAT = C2 * WP2         # 1216
NUM_CLASSES = 12
NC_PAD = 128              # lane-dense padded logits width


def _round_up(n, m):
    return (n + m - 1) // m * m


# ---------------------------------------------------------------------------
# Pallas kernels
# ---------------------------------------------------------------------------
def conv_stack_kernel(p_ref, w1_ref, b1_ref, w2e_ref, w2o_ref, b2_ref, o_ref):
    """Fused conv1+pool+conv2+pool for one tile of tb samples.

    p_ref : (4*rt, 9) bf16   conv1 im2col patches; rows [r*rt,(r+1)*rt) hold the
            patches whose conv1 output position == r (mod 4), samples of this
            tile back to back (23 rows each) plus zero pad rows up to rt.
    w1_ref: (9, 32) bf16;  b1_ref: (1, 32) f32
    w2e_ref: (160, 64) bf16  conv2 taps k=0,2,4,6,8 stacked (row m*32 + c_in)
    w2o_ref: (128, 64) bf16  conv2 taps k=1,3,5,7 stacked
    b2_ref: (1, 64) f32
    o_ref : (tb*23, 64) bf16 pooled conv2 output; per sample only rows [0,19)
            are valid (the wrapper drops the rest).
    """
    rt = p_ref.shape[0] // 4
    n_out = o_ref.shape[0]                      # tb * 23

    # conv1 at all four position-parities in a single MXU pass.
    h = jnp.dot(p_ref[...], w1_ref[...], preferred_element_type=jnp.float32)
    b1 = b1_ref[...]
    # pool1: positions (4i, 4i+1) -> A (even pooled pos), (4i+2, 4i+3) -> B (odd).
    a = jnp.maximum(jnp.maximum(h[0 * rt:1 * rt], h[1 * rt:2 * rt]) + b1, 0.0)
    b = jnp.maximum(jnp.maximum(h[2 * rt:3 * rt], h[3 * rt:4 * rt]) + b1, 0.0)

    # conv2 windows: A[j+m], B[j+m].  Fixed-length shifted views of the strip;
    # the pad rows guarantee m + n_out <= rt, and cross-sample contamination can
    # only reach the per-sample rows j >= 19, which are invalid by construction.
    aw = [a[m:m + n_out, :] for m in range(5)]
    bw = [b[m:m + n_out, :] for m in range(5)]

    # Lane-concatenate the shifted windows so conv2 becomes 4 deep dots
    # (K=160 / K=128) instead of 18 shallow K=32 dots.
    ea = jnp.concatenate(aw, axis=1).astype(jnp.bfloat16)        # (n_out, 160)
    eb = jnp.concatenate(bw, axis=1).astype(jnp.bfloat16)        # (n_out, 160)
    ob = jnp.concatenate(bw[:4], axis=1).astype(jnp.bfloat16)    # (n_out, 128)
    oa = jnp.concatenate(aw[1:], axis=1).astype(jnp.bfloat16)    # (n_out, 128)

    w2e = w2e_ref[...]
    w2o = w2o_ref[...]
    # conv2 output at even positions c[2j] and odd positions c[2j+1]:
    acc_e = (jnp.dot(ea, w2e, preferred_element_type=jnp.float32)
             + jnp.dot(ob, w2o, preferred_element_type=jnp.float32))
    acc_o = (jnp.dot(eb, w2e, preferred_element_type=jnp.float32)
             + jnp.dot(oa, w2o, preferred_element_type=jnp.float32))

    # pool2 + bias + ReLU (pool(relu(c+b)) == relu(max(c_even, c_odd)+b)).
    o_ref[...] = jnp.maximum(jnp.maximum(acc_e, acc_o) + b2_ref[...],
                             0.0).astype(o_ref.dtype)


def conv_stack(p_in, w1, b1, w2e, w2o, b2, *, tb, rt):
    nb = p_in.shape[0] // (4 * rt)
    n_out = tb * WPA
    return pl.pallas_call(
        conv_stack_kernel,
        out_shape=jax.ShapeDtypeStruct((nb * n_out, C2), jnp.bfloat16),
        grid=(nb,),
        in_specs=[
            pl.BlockSpec((4 * rt, K), lambda i: (i, 0)),
            pl.BlockSpec(w1.shape, lambda i: (0, 0)),
            pl.BlockSpec(b1.shape, lambda i: (0, 0)),
            pl.BlockSpec(w2e.shape, lambda i: (0, 0)),
            pl.BlockSpec(w2o.shape, lambda i: (0, 0)),
            pl.BlockSpec(b2.shape, lambda i: (0, 0)),
        ],
        out_specs=pl.BlockSpec((n_out, C2), lambda i: (i, 0)),
        compiler_params=pltpu.CompilerParams(
            dimension_semantics=("parallel",),
            vmem_limit_bytes=32 * 1024 * 1024),
    )(p_in, w1, b1, w2e, w2o, b2)


def mlp_kernel(x_ref, w1_ref, b1_ref, w2_ref, b2_ref, w3_ref, b3_ref, o_ref):
    """fc head on one batch tile; bf16 weights stay resident across grid steps."""
    h = jnp.dot(x_ref[...], w1_ref[...],
                preferred_element_type=jnp.float32) + b1_ref[...]
    h = jnp.maximum(h, 0.0).astype(jnp.bfloat16)
    h = jnp.dot(h, w2_ref[...],
                preferred_element_type=jnp.float32) + b2_ref[...]
    h = jnp.maximum(h, 0.0).astype(jnp.bfloat16)
    o_ref[...] = (jnp.dot(h, w3_ref[...], preferred_element_type=jnp.float32)
                  + b3_ref[...])


def mlp(x, w1, b1, w2, b2, w3, b3, *, tile_m):
    rows, feat = x.shape
    n_out = w3.shape[1]
    return pl.pallas_call(
        mlp_kernel,
        out_shape=jax.ShapeDtypeStruct((rows, n_out), jnp.float32),
        grid=(rows // tile_m,),
        in_specs=[
            pl.BlockSpec((tile_m, feat), lambda i: (i, 0)),
            pl.BlockSpec(w1.shape, lambda i: (0, 0)),
            pl.BlockSpec(b1.shape, lambda i: (0, 0)),
            pl.BlockSpec(w2.shape, lambda i: (0, 0)),
            pl.BlockSpec(b2.shape, lambda i: (0, 0)),
            pl.BlockSpec(w3.shape, lambda i: (0, 0)),
            pl.BlockSpec(b3.shape, lambda i: (0, 0)),
        ],
        out_specs=pl.BlockSpec((tile_m, n_out), lambda i: (i, 0)),
        compiler_params=pltpu.CompilerParams(
            dimension_semantics=("parallel",),
            vmem_limit_bytes=32 * 1024 * 1024),
    )(x, w1, b1, w2, b2, w3, b3)


# ---------------------------------------------------------------------------
# Parameters (deterministic, PyTorch-shaped; uniform(+-1/sqrt(fan_in)))
# ---------------------------------------------------------------------------
def init_params(key):
    ks = jax.random.split(key, 10)

    def u(k, shape, fan_in):
        bound = 1.0 / float(fan_in) ** 0.5
        return jax.random.uniform(k, shape, jnp.float32, -bound, bound)

    return dict(
        w1_t=u(ks[0], (C1, 1, 1, K), 1 * 1 * K),     # Conv2d(1, 32, (1,9)).weight
        b1=u(ks[1], (C1,), 1 * 1 * K),
        w2_t=u(ks[2], (C2, C1, 1, K), C1 * K),       # Conv2d(32, 64, (1,9)).weight
        b2=u(ks[3], (C2,), C1 * K),
        wf1=u(ks[4], (1024, N_FEAT), N_FEAT), bf1=u(ks[5], (1024,), N_FEAT),
        wf2=u(ks[6], (512, 1024), 1024),      bf2=u(ks[7], (512,), 1024),
        wf3=u(ks[8], (NUM_CLASSES, 512), 512), bf3=u(ks[9], (NUM_CLASSES,), 512),
    )


def prepare_params(params):
    """One-time kernel-ready weight layout (hoisted out of forward)."""
    w1m = params["w1_t"].reshape(C1, K).T.astype(jnp.bfloat16)          # (9, 32)
    b1 = params["b1"].reshape(1, C1).astype(jnp.float32)
    # conv2 weight as (K, C1, C2), then split into even / odd taps.
    w2_kc = jnp.transpose(params["w2_t"][:, :, 0, :], (2, 1, 0))        # (9, 32, 64)
    w2e = w2_kc[0::2].reshape(5 * C1, C2).astype(jnp.bfloat16)          # (160, 64)
    w2o = w2_kc[1::2].reshape(4 * C1, C2).astype(jnp.bfloat16)          # (128, 64)
    b2 = params["b2"].reshape(1, C2).astype(jnp.float32)

    # torch.flatten on NCHW is channel-major (index = c*19 + w); our features
    # are w-major (index = w*64 + c): permute fc1's weight rows once here.
    wf1 = (params["wf1"].T.reshape(C2, WP2, -1).transpose(1, 0, 2)
           .reshape(N_FEAT, -1).astype(jnp.bfloat16))                   # (1216, 1024)
    bf1 = params["bf1"].reshape(1, -1).astype(jnp.float32)
    wf2 = params["wf2"].T.astype(jnp.bfloat16)                          # (1024, 512)
    bf2 = params["bf2"].reshape(1, -1).astype(jnp.float32)
    nc = params["wf3"].shape[0]
    wf3 = jnp.pad(params["wf3"].T, ((0, 0), (0, NC_PAD - nc))).astype(jnp.bfloat16)
    bf3 = jnp.pad(params["bf3"].reshape(1, -1),
                  ((0, 0), (0, NC_PAD - nc))).astype(jnp.float32)
    return dict(w1=w1m, b1=b1, w2e=w2e, w2o=w2o, b2=b2,
                wf1=wf1, bf1=bf1, wf2=wf2, bf2=bf2, wf3=wf3, bf3=bf3)


# ---------------------------------------------------------------------------
# Forward pass (Pallas kernels + tiny plain-JAX glue)
# ---------------------------------------------------------------------------
def forward(prep, x):
    B = x.shape[0]
    assert x.shape[1:] == (1, 1, W_IN), x.shape

    # Conv batch tile (samples per grid step); keep it a multiple of 16 and
    # ensure >= 2 grid steps when the batch allows (v7x megacore).
    if B >= 128:
        tb = 64
    elif B >= 48:
        tb = 32
    else:
        tb = 16
    if tb > 16 and _round_up(B, tb) < 2 * tb:
        tb //= 2
    B8 = _round_up(B, tb)
    nb = B8 // tb
    rt = _round_up(tb * WPA + 8, 16)          # per-parity strip rows (incl. pad)

    x2 = x.reshape(B, W_IN).astype(jnp.float32)
    if B8 != B:
        x2 = jnp.pad(x2, ((0, B8 - B), (0, 0)))

    # conv1 im2col, split by output-position parity mod 4 so both max-pools are
    # element-wise in the kernel; one contiguous stacked input per grid step.
    patches = jnp.stack([x2[:, k:k + W1O] for k in range(K)], axis=-1)  # (B8, 92, 9)
    par = jnp.stack([patches[:, r::4, :] for r in range(4)], axis=0)    # (4, B8, 23, 9)
    par = par.reshape(4, nb, tb * WPA, K)
    par = jnp.pad(par, ((0, 0), (0, 0), (0, rt - tb * WPA), (0, 0)))    # (4, nb, rt, 9)
    p_in = par.transpose(1, 0, 2, 3).reshape(nb * 4 * rt, K).astype(jnp.bfloat16)

    conv_out = conv_stack(p_in, prep["w1"], prep["b1"], prep["w2e"], prep["w2o"],
                          prep["b2"], tb=tb, rt=rt)                     # (B8*23, 64)

    # Keep the 19 valid pooled positions per sample; flatten w-major (w*64 + c).
    feat = conv_out.reshape(B8, WPA, C2)[:, :WP2, :].reshape(B8, N_FEAT)

    # MLP tiling: adaptive tile_m, >= 2 steps when possible (v7x), no over-padding.
    if B8 <= 16:
        n_steps = 1
    else:
        n_steps = max(2, (B8 + 255) // 256)
    tile_m = _round_up(-(-B8 // n_steps), 16)
    BM = tile_m * n_steps
    if BM != B8:
        feat = jnp.pad(feat, ((0, BM - B8), (0, 0)))

    logits = mlp(feat, prep["wf1"], prep["bf1"], prep["wf2"], prep["bf2"],
                 prep["wf3"], prep["bf3"], tile_m=tile_m)               # (BM, 128)
    return logits[:B, :NUM_CLASSES]


# Pure-JAX reference with the same bf16-operand / f32-accumulate math
# (validates the kernels, including the torch flatten order).
def forward_ref(params, x):
    B, _, _, W0 = x.shape
    f32 = jnp.float32
    x2 = x.reshape(B, W0)
    p1 = jnp.stack([x2[:, k:k + W1O] for k in range(K)], axis=-1).astype(jnp.bfloat16)
    w1m = params["w1_t"].reshape(C1, K).T.astype(jnp.bfloat16)
    c1 = jnp.einsum("bwk,ko->bwo", p1, w1m, preferred_element_type=f32)
    h1 = jnp.maximum(jnp.maximum(c1[:, 0::2, :], c1[:, 1::2, :]) + params["b1"], 0.0)
    h1 = h1.astype(jnp.bfloat16)                                         # (B, 46, 32)
    p2 = jnp.concatenate([h1[:, k:k + W2O, :] for k in range(K)], axis=-1)
    w2m = (jnp.transpose(params["w2_t"][:, :, 0, :], (2, 1, 0))
           .reshape(K * C1, C2).astype(jnp.bfloat16))
    c2 = jnp.einsum("bwf,fo->bwo", p2, w2m, preferred_element_type=f32)
    h2 = jnp.maximum(jnp.maximum(c2[:, 0::2, :], c2[:, 1::2, :]) + params["b2"], 0.0)
    feat = jnp.transpose(h2, (0, 2, 1)).reshape(B, -1).astype(jnp.bfloat16)  # c*19+w
    h = jnp.dot(feat, params["wf1"].T.astype(jnp.bfloat16),
                preferred_element_type=f32) + params["bf1"]
    h = jnp.maximum(h, 0.0).astype(jnp.bfloat16)
    h = jnp.dot(h, params["wf2"].T.astype(jnp.bfloat16),
                preferred_element_type=f32) + params["bf2"]
    h = jnp.maximum(h, 0.0).astype(jnp.bfloat16)
    return jnp.dot(h, params["wf3"].T.astype(jnp.bfloat16),
                   preferred_element_type=f32) + params["bf3"]


if __name__ == "__main__":
    key = jax.random.PRNGKey(0)
    kp, kx = jax.random.split(key)
    params = init_params(kp)
    prep = prepare_params(params)

    B = 2
    x = jax.random.normal(kx, (B, 1, 1, W_IN), dtype=jnp.float32)  # NCHW input

    out = jax.jit(forward)(prep, x)
    out = jax.block_until_ready(out)
    assert out.shape == (B, NUM_CLASSES), out.shape

    ref = forward_ref(params, x)
    max_diff = float(jnp.max(jnp.abs(out - ref)))
    assert jnp.allclose(out, ref, rtol=2e-2, atol=2e-2), f"max abs diff {max_diff}"

    print("KERNEL_OK")
</pallas_src>

<mosaic_0001>
module attributes {stable_mosaic.version = 11 : i64} {
  func.func @conv_stack_kernel(%arg0: i32, %arg1: memref<1536x9xbf16, #tpu.memory_space<vmem>>, %arg2: memref<9x32xbf16, #tpu.memory_space<vmem>>, %arg3: memref<1x32xf32, #tpu.memory_space<vmem>>, %arg4: memref<160x64xbf16, #tpu.memory_space<vmem>>, %arg5: memref<128x64xbf16, #tpu.memory_space<vmem>>, %arg6: memref<1x64xf32, #tpu.memory_space<vmem>>, %arg7: memref<368x64xbf16, #tpu.memory_space<vmem>>) attributes {dimension_semantics = [#tpu.dimension_semantics<parallel>], iteration_bounds = array<i64: 1>, scalar_prefetch = 0 : i64, scratch_operands = 0 : i64, tpu.core_type = #tpu.core_type<tc>, window_params = [{transform_indices = @transform_0, window_bounds = array<i64: 1536, 9>}, {pipeline_mode = #tpu.pipeline_mode<synchronous>, transform_indices = @transform_1, window_bounds = array<i64: 9, 32>}, {pipeline_mode = #tpu.pipeline_mode<synchronous>, transform_indices = @transform_2, window_bounds = array<i64: 1, 32>}, {pipeline_mode = #tpu.pipeline_mode<synchronous>, transform_indices = @transform_3, window_bounds = array<i64: 160, 64>}, {pipeline_mode = #tpu.pipeline_mode<synchronous>, transform_indices = @transform_4, window_bounds = array<i64: 128, 64>}, {pipeline_mode = #tpu.pipeline_mode<synchronous>, transform_indices = @transform_5, window_bounds = array<i64: 1, 64>}, {transform_indices = @transform_6, window_bounds = array<i64: 368, 64>}]} {
    %c0 = arith.constant 0 : index
    %c0_0 = arith.constant 0 : index
    %0 = vector.load %arg1[%c0, %c0_0] : memref<1536x9xbf16, #tpu.memory_space<vmem>>, vector<1536x9xbf16>
    %c0_1 = arith.constant 0 : index
    %c0_2 = arith.constant 0 : index
    %1 = vector.load %arg2[%c0_1, %c0_2] : memref<9x32xbf16, #tpu.memory_space<vmem>>, vector<9x32xbf16>
    %cst = arith.constant dense<0.000000e+00> : vector<1536x32xf32>
    %2 = tpu.matmul %0, %1, %cst {dimension_numbers = #tpu.dot_dimension_numbers<[1], [0], [0], [1], [0, 0, 1, 1], [], []>} : vector<1536x9xbf16>, vector<9x32xbf16>, vector<1536x32xf32> -> vector<1536x32xf32>
    %c0_3 = arith.constant 0 : index
    %c0_4 = arith.constant 0 : index
    %3 = vector.load %arg3[%c0_3, %c0_4] : memref<1x32xf32, #tpu.memory_space<vmem>>, vector<1x32xf32>
    %4 = vector.extract_strided_slice %2 {offsets = [0, 0], sizes = [384, 32], strides = [1, 1]} : vector<1536x32xf32> to vector<384x32xf32>
    %5 = vector.extract_strided_slice %2 {offsets = [384, 0], sizes = [384, 32], strides = [1, 1]} : vector<1536x32xf32> to vector<384x32xf32>
    %6 = arith.maximumf %4, %5 : vector<384x32xf32>
    %7 = vector.broadcast %3 : vector<1x32xf32> to vector<384x32xf32>
    %8 = arith.addf %6, %7 : vector<384x32xf32>
    %cst_5 = arith.constant 0.000000e+00 : f32
    %9 = vector.broadcast %cst_5 : f32 to vector<384x32xf32>
    %10 = arith.maximumf %8, %9 : vector<384x32xf32>
    %11 = vector.extract_strided_slice %2 {offsets = [768, 0], sizes = [384, 32], strides = [1, 1]} : vector<1536x32xf32> to vector<384x32xf32>
    %12 = vector.extract_strided_slice %2 {offsets = [1152, 0], sizes = [384, 32], strides = [1, 1]} : vector<1536x32xf32> to vector<384x32xf32>
    %13 = arith.maximumf %11, %12 : vector<384x32xf32>
    %14 = vector.broadcast %3 : vector<1x32xf32> to vector<384x32xf32>
    %15 = arith.addf %13, %14 : vector<384x32xf32>
    %cst_6 = arith.constant 0.000000e+00 : f32
    %16 = vector.broadcast %cst_6 : f32 to vector<384x32xf32>
    %17 = arith.maximumf %15, %16 : vector<384x32xf32>
    %18 = vector.extract_strided_slice %10 {offsets = [0, 0], sizes = [368, 32], strides = [1, 1]} : vector<384x32xf32> to vector<368x32xf32>
    %19 = vector.extract_strided_slice %10 {offsets = [1, 0], sizes = [368, 32], strides = [1, 1]} : vector<384x32xf32> to vector<368x32xf32>
    %20 = vector.extract_strided_slice %10 {offsets = [2, 0], sizes = [368, 32], strides = [1, 1]} : vector<384x32xf32> to vector<368x32xf32>
    %21 = vector.extract_strided_slice %10 {offsets = [3, 0], sizes = [368, 32], strides = [1, 1]} : vector<384x32xf32> to vector<368x32xf32>
    %22 = vector.extract_strided_slice %10 {offsets = [4, 0], sizes = [368, 32], strides = [1, 1]} : vector<384x32xf32> to vector<368x32xf32>
    %23 = vector.extract_strided_slice %17 {offsets = [0, 0], sizes = [368, 32], strides = [1, 1]} : vector<384x32xf32> to vector<368x32xf32>
    %24 = vector.extract_strided_slice %17 {offsets = [1, 0], sizes = [368, 32], strides = [1, 1]} : vector<384x32xf32> to vector<368x32xf32>
    %25 = vector.extract_strided_slice %17 {offsets = [2, 0], sizes = [368, 32], strides = [1, 1]} : vector<384x32xf32> to vector<368x32xf32>
    %26 = vector.extract_strided_slice %17 {offsets = [3, 0], sizes = [368, 32], strides = [1, 1]} : vector<384x32xf32> to vector<368x32xf32>
    %27 = vector.extract_strided_slice %17 {offsets = [4, 0], sizes = [368, 32], strides = [1, 1]} : vector<384x32xf32> to vector<368x32xf32>
    %28 = tpu.concatenate %18, %19, %20, %21, %22 in 1 : vector<368x32xf32>, vector<368x32xf32>, vector<368x32xf32>, vector<368x32xf32>, vector<368x32xf32> -> vector<368x160xf32>
    %29 = arith.truncf %28 : vector<368x160xf32> to vector<368x160xbf16>
    %30 = tpu.concatenate %23, %24, %25, %26, %27 in 1 : vector<368x32xf32>, vector<368x32xf32>, vector<368x32xf32>, vector<368x32xf32>, vector<368x32xf32> -> vector<368x160xf32>
    %31 = arith.truncf %30 : vector<368x160xf32> to vector<368x160xbf16>
    %32 = tpu.concatenate %23, %24, %25, %26 in 1 : vector<368x32xf32>, vector<368x32xf32>, vector<368x32xf32>, vector<368x32xf32> -> vector<368x128xf32>
    %33 = arith.truncf %32 : vector<368x128xf32> to vector<368x128xbf16>
    %34 = tpu.concatenate %19, %20, %21, %22 in 1 : vector<368x32xf32>, vector<368x32xf32>, vector<368x32xf32>, vector<368x32xf32> -> vector<368x128xf32>
    %35 = arith.truncf %34 : vector<368x128xf32> to vector<368x128xbf16>
    %c0_7 = arith.constant 0 : index
    %c0_8 = arith.constant 0 : index
    %36 = vector.load %arg4[%c0_7, %c0_8] : memref<160x64xbf16, #tpu.memory_space<vmem>>, vector<160x64xbf16>
    %c0_9 = arith.constant 0 : index
    %c0_10 = arith.constant 0 : index
    %37 = vector.load %arg5[%c0_9, %c0_10] : memref<128x64xbf16, #tpu.memory_space<vmem>>, vector<128x64xbf16>
    %cst_11 = arith.constant dense<0.000000e+00> : vector<368x64xf32>
    %38 = tpu.matmul %29, %36, %cst_11 {dimension_numbers = #tpu.dot_dimension_numbers<[1], [0], [0], [1], [0, 0, 1, 1], [], []>} : vector<368x160xbf16>, vector<160x64xbf16>, vector<368x64xf32> -> vector<368x64xf32>
    %cst_12 = arith.constant dense<0.000000e+00> : vector<368x64xf32>
    %39 = tpu.matmul %33, %37, %cst_12 {dimension_numbers = #tpu.dot_dimension_numbers<[1], [0], [0], [1], [0, 0, 1, 1], [], []>} : vector<368x128xbf16>, vector<128x64xbf16>, vector<368x64xf32> -> vector<368x64xf32>
    %40 = arith.addf %38, %39 : vector<368x64xf32>
    %cst_13 = arith.constant dense<0.000000e+00> : vector<368x64xf32>
    %41 = tpu.matmul %31, %36, %cst_13 {dimension_numbers = #tpu.dot_dimension_numbers<[1], [0], [0], [1], [0, 0, 1, 1], [], []>} : vector<368x160xbf16>, vector<160x64xbf16>, vector<368x64xf32> -> vector<368x64xf32>
    %cst_14 = arith.constant dense<0.000000e+00> : vector<368x64xf32>
    %42 = tpu.matmul %35, %37, %cst_14 {dimension_numbers = #tpu.dot_dimension_numbers<[1], [0], [0], [1], [0, 0, 1, 1], [], []>} : vector<368x128xbf16>, vector<128x64xbf16>, vector<368x64xf32> -> vector<368x64xf32>
    %43 = arith.addf %41, %42 : vector<368x64xf32>
    %44 = arith.maximumf %40, %43 : vector<368x64xf32>
    %c0_15 = arith.constant 0 : index
    %c0_16 = arith.constant 0 : index
    %45 = vector.load %arg6[%c0_15, %c0_16] : memref<1x64xf32, #tpu.memory_space<vmem>>, vector<1x64xf32>
    %46 = vector.broadcast %45 : vector<1x64xf32> to vector<368x64xf32>
    %47 = arith.addf %44, %46 : vector<368x64xf32>
    %cst_17 = arith.constant 0.000000e+00 : f32
    %48 = vector.broadcast %cst_17 : f32 to vector<368x64xf32>
    %49 = arith.maximumf %47, %48 : vector<368x64xf32>
    %50 = arith.truncf %49 : vector<368x64xf32> to vector<368x64xbf16>
    %c0_18 = arith.constant 0 : index
    %c0_19 = arith.constant 0 : index
    %51 = vector.load %arg7[%c0_18, %c0_19] : memref<368x64xbf16, #tpu.memory_space<vmem>>, vector<368x64xbf16>
    tpu.vector_store %arg7[%c0_18, %c0_19], %50 {strides = array<i32>} : memref<368x64xbf16, #tpu.memory_space<vmem>>, vector<368x64xbf16>,
    return
  }
  func.func @transform_0(%arg0: i32) -> (i32, i32) {
    %c0_i32 = arith.constant 0 : i32
    %c0_i32_0 = arith.constant 0 : i32
    return %arg0, %c0_i32 : i32, i32
  }
  func.func @transform_1(%arg0: i32) -> (i32, i32) {
    %c0_i32 = arith.constant 0 : i32
    %c0_i32_0 = arith.constant 0 : i32
    %c0_i32_1 = arith.constant 0 : i32
    return %c0_i32, %c0_i32_0 : i32, i32
  }
  func.func @transform_2(%arg0: i32) -> (i32, i32) {
    %c0_i32 = arith.constant 0 : i32
    %c0_i32_0 = arith.constant 0 : i32
    %c0_i32_1 = arith.constant 0 : i32
    return %c0_i32, %c0_i32_0 : i32, i32
  }
  func.func @transform_3(%arg0: i32) -> (i32, i32) {
    %c0_i32 = arith.constant 0 : i32
    %c0_i32_0 = arith.constant 0 : i32
    %c0_i32_1 = arith.constant 0 : i32
    return %c0_i32, %c0_i32_0 : i32, i32
  }
  func.func @transform_4(%arg0: i32) -> (i32, i32) {
    %c0_i32 = arith.constant 0 : i32
    %c0_i32_0 = arith.constant 0 : i32
    %c0_i32_1 = arith.constant 0 : i32
    return %c0_i32, %c0_i32_0 : i32, i32
  }
  func.func @transform_5(%arg0: i32) -> (i32, i32) {
    %c0_i32 = arith.constant 0 : i32
    %c0_i32_0 = arith.constant 0 : i32
    %c0_i32_1 = arith.constant 0 : i32
    return %c0_i32, %c0_i32_0 : i32, i32
  }
  func.func @transform_6(%arg0: i32) -> (i32, i32) {
    %c0_i32 = arith.constant 0 : i32
    %c0_i32_0 = arith.constant 0 : i32
    return %arg0, %c0_i32 : i32, i32
  }
}

module attributes {stable_mosaic.version = 11 : i64} {
  func.func @mlp_kernel(%arg0: i32, %arg1: memref<16x1216xbf16, #tpu.memory_space<vmem>>, %arg2: memref<1216x1024xbf16, #tpu.memory_space<vmem>>, %arg3: memref<1x1024xf32, #tpu.memory_space<vmem>>, %arg4: memref<1024x512xbf16, #tpu.memory_space<vmem>>, %arg5: memref<1x512xf32, #tpu.memory_space<vmem>>, %arg6: memref<512x128xbf16, #tpu.memory_space<vmem>>, %arg7: memref<1x128xf32, #tpu.memory_space<vmem>>, %arg8: memref<16x128xf32, #tpu.memory_space<vmem>>) attributes {dimension_semantics = [#tpu.dimension_semantics<parallel>], iteration_bounds = array<i64: 1>, scalar_prefetch = 0 : i64, scratch_operands = 0 : i64, tpu.core_type = #tpu.core_type<tc>, window_params = [{transform_indices = @transform_0, window_bounds = array<i64: 16, 1216>}, {pipeline_mode = #tpu.pipeline_mode<synchronous>, transform_indices = @transform_1, window_bounds = array<i64: 1216, 1024>}, {pipeline_mode = #tpu.pipeline_mode<synchronous>, transform_indices = @transform_2, window_bounds = array<i64: 1, 1024>}, {pipeline_mode = #tpu.pipeline_mode<synchronous>, transform_indices = @transform_3, window_bounds = array<i64: 1024, 512>}, {pipeline_mode = #tpu.pipeline_mode<synchronous>, transform_indices = @transform_4, window_bounds = array<i64: 1, 512>}, {pipeline_mode = #tpu.pipeline_mode<synchronous>, transform_indices = @transform_5, window_bounds = array<i64: 512, 128>}, {pipeline_mode = #tpu.pipeline_mode<synchronous>, transform_indices = @transform_6, window_bounds = array<i64: 1, 128>}, {transform_indices = @transform_7, window_bounds = array<i64: 16, 128>}]} {
    %c0 = arith.constant 0 : index
    %c0_0 = arith.constant 0 : index
    %0 = vector.load %arg1[%c0, %c0_0] : memref<16x1216xbf16, #tpu.memory_space<vmem>>, vector<16x1216xbf16>
    %c0_1 = arith.constant 0 : index
    %c0_2 = arith.constant 0 : index
    %1 = vector.load %arg2[%c0_1, %c0_2] : memref<1216x1024xbf16, #tpu.memory_space<vmem>>, vector<1216x1024xbf16>
    %cst = arith.constant dense<0.000000e+00> : vector<16x1024xf32>
    %2 = tpu.matmul %0, %1, %cst {dimension_numbers = #tpu.dot_dimension_numbers<[1], [0], [0], [1], [0, 0, 1, 1], [], []>} : vector<16x1216xbf16>, vector<1216x1024xbf16>, vector<16x1024xf32> -> vector<16x1024xf32>
    %c0_3 = arith.constant 0 : index
    %c0_4 = arith.constant 0 : index
    %3 = vector.load %arg3[%c0_3, %c0_4] : memref<1x1024xf32, #tpu.memory_space<vmem>>, vector<1x1024xf32>
    %4 = vector.broadcast %3 : vector<1x1024xf32> to vector<16x1024xf32>
    %5 = arith.addf %2, %4 : vector<16x1024xf32>
    %cst_5 = arith.constant 0.000000e+00 : f32
    %6 = vector.broadcast %cst_5 : f32 to vector<16x1024xf32>
    %7 = arith.maximumf %5, %6 : vector<16x1024xf32>
    %8 = arith.truncf %7 : vector<16x1024xf32> to vector<16x1024xbf16>
    %c0_6 = arith.constant 0 : index
    %c0_7 = arith.constant 0 : index
    %9 = vector.load %arg4[%c0_6, %c0_7] : memref<1024x512xbf16, #tpu.memory_space<vmem>>, vector<1024x512xbf16>
    %cst_8 = arith.constant dense<0.000000e+00> : vector<16x512xf32>
    %10 = tpu.matmul %8, %9, %cst_8 {dimension_numbers = #tpu.dot_dimension_numbers<[1], [0], [0], [1], [0, 0, 1, 1], [], []>} : vector<16x1024xbf16>, vector<1024x512xbf16>, vector<16x512xf32> -> vector<16x512xf32>
    %c0_9 = arith.constant 0 : index
    %c0_10 = arith.constant 0 : index
    %11 = vector.load %arg5[%c0_9, %c0_10] : memref<1x512xf32, #tpu.memory_space<vmem>>, vector<1x512xf32>
    %12 = vector.broadcast %11 : vector<1x512xf32> to vector<16x512xf32>
    %13 = arith.addf %10, %12 : vector<16x512xf32>
    %cst_11 = arith.constant 0.000000e+00 : f32
    %14 = vector.broadcast %cst_11 : f32 to vector<16x512xf32>
    %15 = arith.maximumf %13, %14 : vector<16x512xf32>
    %16 = arith.truncf %15 : vector<16x512xf32> to vector<16x512xbf16>
    %c0_12 = arith.constant 0 : index
    %c0_13 = arith.constant 0 : index
    %17 = vector.load %arg6[%c0_12, %c0_13] : memref<512x128xbf16, #tpu.memory_space<vmem>>, vector<512x128xbf16>
    %cst_14 = arith.constant dense<0.000000e+00> : vector<16x128xf32>
    %18 = tpu.matmul %16, %17, %cst_14 {dimension_numbers = #tpu.dot_dimension_numbers<[1], [0], [0], [1], [0, 0, 1, 1], [], []>} : vector<16x512xbf16>, vector<512x128xbf16>, vector<16x128xf32> -> vector<16x128xf32>
    %c0_15 = arith.constant 0 : index
    %c0_16 = arith.constant 0 : index
    %19 = vector.load %arg7[%c0_15, %c0_16] : memref<1x128xf32, #tpu.memory_space<vmem>>, vector<1x128xf32>
    %20 = vector.broadcast %19 : vector<1x128xf32> to vector<16x128xf32>
    %21 = arith.addf %18, %20 : vector<16x128xf32>
    %c0_17 = arith.constant 0 : index
    %c0_18 = arith.constant 0 : index
    %22 = vector.load %arg8[%c0_17, %c0_18] : memref<16x128xf32, #tpu.memory_space<vmem>>, vector<16x128xf32>
    tpu.vector_store %arg8[%c0_17, %c0_18], %21 {strides = array<i32>} : memref<16x128xf32, #tpu.memory_space<vmem>>, vector<16x128xf32>,
    return
  }
  func.func @transform_0(%arg0: i32) -> (i32, i32) {
    %c0_i32 = arith.constant 0 : i32
    %c0_i32_0 = arith.constant 0 : i32
    return %arg0, %c0_i32 : i32, i32
  }
  func.func @transform_1(%arg0: i32) -> (i32, i32) {
    %c0_i32 = arith.constant 0 : i32
    %c0_i32_0 = arith.constant 0 : i32
    %c0_i32_1 = arith.constant 0 : i32
    return %c0_i32, %c0_i32_0 : i32, i32
  }
  func.func @transform_2(%arg0: i32) -> (i32, i32) {
    %c0_i32 = arith.constant 0 : i32
    %c0_i32_0 = arith.constant 0 : i32
    %c0_i32_1 = arith.constant 0 : i32
    return %c0_i32, %c0_i32_0 : i32, i32
  }
  func.func @transform_3(%arg0: i32) -> (i32, i32) {
    %c0_i32 = arith.constant 0 : i32
    %c0_i32_0 = arith.constant 0 : i32
    %c0_i32_1 = arith.constant 0 : i32
    return %c0_i32, %c0_i32_0 : i32, i32
  }
  func.func @transform_4(%arg0: i32) -> (i32, i32) {
    %c0_i32 = arith.constant 0 : i32
    %c0_i32_0 = arith.constant 0 : i32
    %c0_i32_1 = arith.constant 0 : i32
    return %c0_i32, %c0_i32_0 : i32, i32
  }
  func.func @transform_5(%arg0: i32) -> (i32, i32) {
    %c0_i32 = arith.constant 0 : i32
    %c0_i32_0 = arith.constant 0 : i32
    %c0_i32_1 = arith.constant 0 : i32
    return %c0_i32, %c0_i32_0 : i32, i32
  }
  func.func @transform_6(%arg0: i32) -> (i32, i32) {
    %c0_i32 = arith.constant 0 : i32
    %c0_i32_0 = arith.constant 0 : i32
    %c0_i32_1 = arith.constant 0 : i32
    return %c0_i32, %c0_i32_0 : i32, i32
  }
  func.func @transform_7(%arg0: i32) -> (i32, i32) {
    %c0_i32 = arith.constant 0 : i32
    %c0_i32_0 = arith.constant 0 : i32
    return %arg0, %c0_i32 : i32, i32
  }
}

</mosaic_0001>

<llo_original>
// kernel: forward.2
$region0: #{forward.2}
  #allocation0 [shape = 'u32[]', space=smem, size = 0x4, offset = 0x4, fixed_abs, tag = 'smem constant byte address 0x4 - core index']
  #allocation1 [shape = 'u32[144,128]{1,0:T(1,128)}', space=vmem, size = 0x12000, scoped, tag = 'internal scratch']
  %s0 = inlined_call_operand.vmem [shape: bf16[1536,9], index: 0, kind: input, shape index: {}]
  %s1 = inlined_call_operand.hbm [shape: bf16[9,32], index: 1, kind: input, shape index: {}]
  %s2 = inlined_call_operand.hbm [shape: f32[1,32], index: 2, kind: input, shape index: {}]
  %s3 = inlined_call_operand.vmem [shape: bf16[160,64], index: 3, kind: input, shape index: {}]
  %s4 = inlined_call_operand.vmem [shape: bf16[128,64], index: 4, kind: input, shape index: {}]
  %s5 = inlined_call_operand.hbm [shape: f32[1,64], index: 5, kind: input, shape index: {}]
  %s6 = inlined_call_operand.vmem [shape: bf16[368,64], index: 6, kind: output, shape index: {}]
  %s7 = sld [smem:[#allocation0]]
  $region46: #{forward.2} parent=0
    _
  %s9 = ssub.s32 1, %s7
  %s10 = scalar_select 0, %s9, %s7
  $region1: #{forward.2} parent=0
    #allocation2 [shape = 'u8[4096]{0}', space=vmem, size = 0x1000, scoped, tag = 'input window, operand 1, single buffered']
    #allocation3 [shape = 's32[1]{0}', space=sflag, size = 0x4, scoped, tag = 'scoped memory for forward.2']
    #allocation4 [shape = 'u8[512]{0}', space=vmem, size = 0x400, scoped, tag = 'input window, operand 2, single buffered']
    #allocation5 [shape = 's32[1]{0}', space=sflag, size = 0x4, scoped, tag = 'scoped memory for forward.2']
    #allocation6 [shape = 'u8[512]{0}', space=vmem, size = 0x400, scoped, tag = 'input window, operand 5, single buffered']
    %11 = vsyncpa [#allocation3], 0
    %12 = vsyncpa [#allocation5], 0
    // Predicated region
    $region2: #{forward.2} parent=1 // pred_check
      _
    $region3: #{forward.2} parent=1 // pred_check_branch
      %14 = sbr.rel (0) target = $region5
    $region4: #{forward.2} parent=1 // pred_region
      _
    $region5: #{forward.2} parent=1 // pred_fallthru
      _
    // Predicated region
    $region6: #{forward.2} parent=1 // pred_check
      _
    $region7: #{forward.2} parent=1 // pred_check_branch
      %16 = sbr.rel (0) target = $region9
    $region8: #{forward.2} parent=1 // pred_region
      %s18 = ssub.s32 128, 128
      %19 = vsyncadd [#allocation3], %s18
      %s20 = sshll.u32 [#allocation2], 4
      %s21 = int_to_ptr.vmem [resolvable:$true] %s20
      %26 = dma.hbm_to_vmem [thread:$0]  %s1, 128, %s21, [#allocation3], 64, 64, 4
    $region9: #{forward.2} parent=1 // pred_fallthru
      _
    // Predicated region
    $region10: #{forward.2} parent=1 // pred_check
      _
    $region11: #{forward.2} parent=1 // pred_check_branch
      %28 = sbr.rel (0) target = $region13
    $region12: #{forward.2} parent=1 // pred_region
      %s30 = ssub.s32 16, 16
      %31 = vsyncadd [#allocation5], %s30
      %s33 = sshll.u32 [#allocation4], 4
      %s34 = int_to_ptr.vmem [resolvable:$true] %s33
      %36 = dma.hbm_to_vmem [thread:$0]  %s2, 16, %s34, [#allocation5]
    $region13: #{forward.2} parent=1 // pred_fallthru
      _
    // Predicated region
    $region14: #{forward.2} parent=1 // pred_check
      _
    $region15: #{forward.2} parent=1 // pred_check_branch
      %38 = sbr.rel (0) target = $region17
    $region16: #{forward.2} parent=1 // pred_region
      _
    $region17: #{forward.2} parent=1 // pred_fallthru
      _
    // Predicated region
    $region18: #{forward.2} parent=1 // pred_check
      _
    $region19: #{forward.2} parent=1 // pred_check_branch
      %40 = sbr.rel (0) target = $region21
    $region20: #{forward.2} parent=1 // pred_region
      _
    $region21: #{forward.2} parent=1 // pred_fallthru
      _
    // Predicated region
    $region22: #{forward.2} parent=1 // pred_check
      _
    $region23: #{forward.2} parent=1 // pred_check_branch
      %42 = sbr.rel (0) target = $region25
    $region24: #{forward.2} parent=1 // pred_region
      %s44 = ssub.s32 16, 16
      %45 = vsyncadd [#allocation5], %s44
      %s47 = sshll.u32 [#allocation6], 4
      %s48 = int_to_ptr.vmem [resolvable:$true] %s47
      %50 = dma.hbm_to_vmem [thread:$0]  %s5, 16, %s48, [#allocation5]
    $region25: #{forward.2} parent=1 // pred_fallthru
      _
    // Predicated region
    $region26: #{forward.2} parent=1 // pred_check
      _
    $region27: #{forward.2} parent=1 // pred_check_branch
      %52 = sbr.rel (0) target = $region29
    $region28: #{forward.2} parent=1 // pred_region
      %53 = dma.done [#allocation3], 128
    $region29: #{forward.2} parent=1 // pred_fallthru
      _
    // Predicated region
    $region30: #{forward.2} parent=1 // pred_check
      _
    $region31: #{forward.2} parent=1 // pred_check_branch
      %55 = sbr.rel (0) target = $region33
    $region32: #{forward.2} parent=1 // pred_region
      %56 = dma.done [#allocation5], 16
    $region33: #{forward.2} parent=1 // pred_fallthru
      _
    // Predicated region
    $region34: #{forward.2} parent=1 // pred_check
      _
    $region35: #{forward.2} parent=1 // pred_check_branch
      %58 = sbr.rel (0) target = $region37
    $region36: #{forward.2} parent=1 // pred_region
      %59 = dma.done [#allocation5], 16
    $region37: #{forward.2} parent=1 // pred_fallthru
      _
    %v61 = vld [vmem:[%s0] sm:$0xf]
    %v62 = vld [vmem:[%s0 + $0x4] sm:$0xf]
    %v63 = vld [vmem:[%s0 + $0x8] sm:$0xf]
    %v64 = vld [vmem:[%s0 + $0xc] sm:$0xf]
    %v65 = vld [vmem:[%s0 + $0x10] sm:$0xf]
    %v66 = vld [vmem:[%s0 + $0x14] sm:$0xf]
    %v67 = vld [vmem:[%s0 + $0x18] sm:$0xf]
    %v68 = vld [vmem:[%s0 + $0x1c] sm:$0xf]
    %v69 = vld [vmem:[%s0 + $0x20] sm:$0xf]
    %v70 = vld [vmem:[%s0 + $0x24] sm:$0xf]
    %v71 = vld [vmem:[%s0 + $0x28] sm:$0xf]
    %v72 = vld [vmem:[%s0 + $0x2c] sm:$0xf]
    %v73 = vld [vmem:[%s0 + $0x30] sm:$0xf]
    %v74 = vld [vmem:[%s0 + $0x34] sm:$0xf]
    %v75 = vld [vmem:[%s0 + $0x38] sm:$0xf]
    %v76 = vld [vmem:[%s0 + $0x3c] sm:$0xf]
    %v77 = vld [vmem:[%s0 + $0x40] sm:$0xf]
    %v78 = vld [vmem:[%s0 + $0x44] sm:$0xf]
    %v79 = vld [vmem:[%s0 + $0x48] sm:$0xf]
    %v80 = vld [vmem:[%s0 + $0x4c] sm:$0xf]
    %v81 = vld [vmem:[%s0 + $0x50] sm:$0xf]
    %v82 = vld [vmem:[%s0 + $0x54] sm:$0xf]
    %v83 = vld [vmem:[%s0 + $0x58] sm:$0xf]
    %v84 = vld [vmem:[%s0 + $0x5c] sm:$0xf]
    %v85 = vld [vmem:[%s0 + $0x60] sm:$0xf]
    %v86 = vld [vmem:[%s0 + $0x64] sm:$0xf]
    %v87 = vld [vmem:[%s0 + $0x68] sm:$0xf]
    %v88 = vld [vmem:[%s0 + $0x6c] sm:$0xf]
    %v89 = vld [vmem:[%s0 + $0x70] sm:$0xf]
    %v90 = vld [vmem:[%s0 + $0x74] sm:$0xf]
    %v91 = vld [vmem:[%s0 + $0x78] sm:$0xf]
    %v92 = vld [vmem:[%s0 + $0x7c] sm:$0xf]
    %v93 = vld [vmem:[%s0 + $0x80] sm:$0xf]
    %v94 = vld [vmem:[%s0 + $0x84] sm:$0xf]
    %v95 = vld [vmem:[%s0 + $0x88] sm:$0xf]
    %v96 = vld [vmem:[%s0 + $0x8c] sm:$0xf]
    %v97 = vld [vmem:[%s0 + $0x90] sm:$0xf]
    %v98 = vld [vmem:[%s0 + $0x94] sm:$0xf]
    %v99 = vld [vmem:[%s0 + $0x98] sm:$0xf]
    %v100 = vld [vmem:[%s0 + $0x9c] sm:$0xf]
    %v101 = vld [vmem:[%s0 + $0xa0] sm:$0xf]
    %v102 = vld [vmem:[%s0 + $0xa4] sm:$0xf]
    %v103 = vld [vmem:[%s0 + $0xa8] sm:$0xf]
    %v104 = vld [vmem:[%s0 + $0xac] sm:$0xf]
    %v105 = vld [vmem:[%s0 + $0xb0] sm:$0xf]
    %v106 = vld [vmem:[%s0 + $0xb4] sm:$0xf]
    %v107 = vld [vmem:[%s0 + $0xb8] sm:$0xf]
    %v108 = vld [vmem:[%s0 + $0xbc] sm:$0xf]
    %v109 = vld [vmem:[%s0 + $0xc0] sm:$0xf]
    %v110 = vld [vmem:[%s0 + $0xc4] sm:$0xf]
    %v111 = vld [vmem:[%s0 + $0xc8] sm:$0xf]
    %v112 = vld [vmem:[%s0 + $0xcc] sm:$0xf]
    %v113 = vld [vmem:[%s0 + $0xd0] sm:$0xf]
    %v114 = vld [vmem:[%s0 + $0xd4] sm:$0xf]
    %v115 = vld [vmem:[%s0 + $0xd8] sm:$0xf]
    %v116 = vld [vmem:[%s0 + $0xdc] sm:$0xf]
    %v117 = vld [vmem:[%s0 + $0xe0] sm:$0xf]
    %v118 = vld [vmem:[%s0 + $0xe4] sm:$0xf]
    %v119 = vld [vmem:[%s0 + $0xe8] sm:$0xf]
    %v120 = vld [vmem:[%s0 + $0xec] sm:$0xf]
    %v121 = vld [vmem:[%s0 + $0xf0] sm:$0xf]
    %v122 = vld [vmem:[%s0 + $0xf4] sm:$0xf]
    %v123 = vld [vmem:[%s0 + $0xf8] sm:$0xf]
    %v124 = vld [vmem:[%s0 + $0xfc] sm:$0xf]
    %v125 = vld [vmem:[%s0 + $0x100] sm:$0xf]
    %v126 = vld [vmem:[%s0 + $0x104] sm:$0xf]
    %v127 = vld [vmem:[%s0 + $0x108] sm:$0xf]
    %v128 = vld [vmem:[%s0 + $0x10c] sm:$0xf]
    %v129 = vld [vmem:[%s0 + $0x110] sm:$0xf]
    %v130 = vld [vmem:[%s0 + $0x114] sm:$0xf]
    %v131 = vld [vmem:[%s0 + $0x118] sm:$0xf]
    %v132 = vld [vmem:[%s0 + $0x11c] sm:$0xf]
    %v133 = vld [vmem:[%s0 + $0x120] sm:$0xf]
    %v134 = vld [vmem:[%s0 + $0x124] sm:$0xf]
    %v135 = vld [vmem:[%s0 + $0x128] sm:$0xf]
    %v136 = vld [vmem:[%s0 + $0x12c] sm:$0xf]
    %v137 = vld [vmem:[%s0 + $0x130] sm:$0xf]
    %v138 = vld [vmem:[%s0 + $0x134] sm:$0xf]
    %v139 = vld [vmem:[%s0 + $0x138] sm:$0xf]
    %v140 = vld [vmem:[%s0 + $0x13c] sm:$0xf]
    %v141 = vld [vmem:[%s0 + $0x140] sm:$0xf]
    %v142 = vld [vmem:[%s0 + $0x144] sm:$0xf]
    %v143 = vld [vmem:[%s0 + $0x148] sm:$0xf]
    %v144 = vld [vmem:[%s0 + $0x14c] sm:$0xf]
    %v145 = vld [vmem:[%s0 + $0x150] sm:$0xf]
    %v146 = vld [vmem:[%s0 + $0x154] sm:$0xf]
    %v147 = vld [vmem:[%s0 + $0x158] sm:$0xf]
    %v148 = vld [vmem:[%s0 + $0x15c] sm:$0xf]
    %v149 = vld [vmem:[%s0 + $0x160] sm:$0xf]
    %v150 = vld [vmem:[%s0 + $0x164] sm:$0xf]
    %v151 = vld [vmem:[%s0 + $0x168] sm:$0xf]
    %v152 = vld [vmem:[%s0 + $0x16c] sm:$0xf]
    %v153 = vld [vmem:[%s0 + $0x170] sm:$0xf]
    %v154 = vld [vmem:[%s0 + $0x174] sm:$0xf]
    %v155 = vld [vmem:[%s0 + $0x178] sm:$0xf]
    %v156 = vld [vmem:[%s0 + $0x17c] sm:$0xf]
    %v157 = vld [vmem:[%s0 + $0x180] sm:$0xf]
    %v158 = vld [vmem:[%s0 + $0x184] sm:$0xf]
    %v159 = vld [vmem:[%s0 + $0x188] sm:$0xf]
    %v160 = vld [vmem:[%s0 + $0x18c] sm:$0xf]
    %v161 = vld [vmem:[%s0 + $0x190] sm:$0xf]
    %v162 = vld [vmem:[%s0 + $0x194] sm:$0xf]
    %v163 = vld [vmem:[%s0 + $0x198] sm:$0xf]
    %v164 = vld [vmem:[%s0 + $0x19c] sm:$0xf]
    %v165 = vld [vmem:[%s0 + $0x1a0] sm:$0xf]
    %v166 = vld [vmem:[%s0 + $0x1a4] sm:$0xf]
    %v167 = vld [vmem:[%s0 + $0x1a8] sm:$0xf]
    %v168 = vld [vmem:[%s0 + $0x1ac] sm:$0xf]
    %v169 = vld [vmem:[%s0 + $0x1b0] sm:$0xf]
    %v170 = vld [vmem:[%s0 + $0x1b4] sm:$0xf]
    %v171 = vld [vmem:[%s0 + $0x1b8] sm:$0xf]
    %v172 = vld [vmem:[%s0 + $0x1bc] sm:$0xf]
    %v173 = vld [vmem:[%s0 + $0x1c0] sm:$0xf]
    %v174 = vld [vmem:[%s0 + $0x1c4] sm:$0xf]
    %v175 = vld [vmem:[%s0 + $0x1c8] sm:$0xf]
    %v176 = vld [vmem:[%s0 + $0x1cc] sm:$0xf]
    %v177 = vld [vmem:[%s0 + $0x1d0] sm:$0xf]
    %v178 = vld [vmem:[%s0 + $0x1d4] sm:$0xf]
    %v179 = vld [vmem:[%s0 + $0x1d8] sm:$0xf]
    %v180 = vld [vmem:[%s0 + $0x1dc] sm:$0xf]
    %v181 = vld [vmem:[%s0 + $0x1e0] sm:$0xf]
    %v182 = vld [vmem:[%s0 + $0x1e4] sm:$0xf]
    %v183 = vld [vmem:[%s0 + $0x1e8] sm:$0xf]
    %v184 = vld [vmem:[%s0 + $0x1ec] sm:$0xf]
    %v185 = vld [vmem:[%s0 + $0x1f0] sm:$0xf]
    %v186 = vld [vmem:[%s0 + $0x1f4] sm:$0xf]
    %v187 = vld [vmem:[%s0 + $0x1f8] sm:$0xf]
    %v188 = vld [vmem:[%s0 + $0x1fc] sm:$0xf]
    %v189 = vld [vmem:[%s0 + $0x200] sm:$0xf]
    %v190 = vld [vmem:[%s0 + $0x204] sm:$0xf]
    %v191 = vld [vmem:[%s0 + $0x208] sm:$0xf]
    %v192 = vld [vmem:[%s0 + $0x20c] sm:$0xf]
    %v193 = vld [vmem:[%s0 + $0x210] sm:$0xf]
    %v194 = vld [vmem:[%s0 + $0x214] sm:$0xf]
    %v195 = vld [vmem:[%s0 + $0x218] sm:$0xf]
    %v196 = vld [vmem:[%s0 + $0x21c] sm:$0xf]
    %v197 = vld [vmem:[%s0 + $0x220] sm:$0xf]
    %v198 = vld [vmem:[%s0 + $0x224] sm:$0xf]
    %v199 = vld [vmem:[%s0 + $0x228] sm:$0xf]
    %v200 = vld [vmem:[%s0 + $0x22c] sm:$0xf]
    %v201 = vld [vmem:[%s0 + $0x230] sm:$0xf]
    %v202 = vld [vmem:[%s0 + $0x234] sm:$0xf]
    %v203 = vld [vmem:[%s0 + $0x238] sm:$0xf]
    %v204 = vld [vmem:[%s0 + $0x23c] sm:$0xf]
    %v205 = vld [vmem:[%s0 + $0x240] sm:$0xf]
    %v206 = vld [vmem:[%s0 + $0x244] sm:$0xf]
    %v207 = vld [vmem:[%s0 + $0x248] sm:$0xf]
    %v208 = vld [vmem:[%s0 + $0x24c] sm:$0xf]
    %v209 = vld [vmem:[%s0 + $0x250] sm:$0xf]
    %v210 = vld [vmem:[%s0 + $0x254] sm:$0xf]
    %v211 = vld [vmem:[%s0 + $0x258] sm:$0xf]
    %v212 = vld [vmem:[%s0 + $0x25c] sm:$0xf]
    %v213 = vld [vmem:[%s0 + $0x260] sm:$0xf]
    %v214 = vld [vmem:[%s0 + $0x264] sm:$0xf]
    %v215 = vld [vmem:[%s0 + $0x268] sm:$0xf]
    %v216 = vld [vmem:[%s0 + $0x26c] sm:$0xf]
    %v217 = vld [vmem:[%s0 + $0x270] sm:$0xf]
    %v218 = vld [vmem:[%s0 + $0x274] sm:$0xf]
    %v219 = vld [vmem:[%s0 + $0x278] sm:$0xf]
    %v220 = vld [vmem:[%s0 + $0x27c] sm:$0xf]
    %v221 = vld [vmem:[%s0 + $0x280] sm:$0xf]
    %v222 = vld [vmem:[%s0 + $0x284] sm:$0xf]
    %v223 = vld [vmem:[%s0 + $0x288] sm:$0xf]
    %v224 = vld [vmem:[%s0 + $0x28c] sm:$0xf]
    %v225 = vld [vmem:[%s0 + $0x290] sm:$0xf]
    %v226 = vld [vmem:[%s0 + $0x294] sm:$0xf]
    %v227 = vld [vmem:[%s0 + $0x298] sm:$0xf]
    %v228 = vld [vmem:[%s0 + $0x29c] sm:$0xf]
    %v229 = vld [vmem:[%s0 + $0x2a0] sm:$0xf]
    %v230 = vld [vmem:[%s0 + $0x2a4] sm:$0xf]
    %v231 = vld [vmem:[%s0 + $0x2a8] sm:$0xf]
    %v232 = vld [vmem:[%s0 + $0x2ac] sm:$0xf]
    %v233 = vld [vmem:[%s0 + $0x2b0] sm:$0xf]
    %v234 = vld [vmem:[%s0 + $0x2b4] sm:$0xf]
    %v235 = vld [vmem:[%s0 + $0x2b8] sm:$0xf]
    %v236 = vld [vmem:[%s0 + $0x2bc] sm:$0xf]
    %v237 = vld [vmem:[%s0 + $0x2c0] sm:$0xf]
    %v238 = vld [vmem:[%s0 + $0x2c4] sm:$0xf]
    %v239 = vld [vmem:[%s0 + $0x2c8] sm:$0xf]
    %v240 = vld [vmem:[%s0 + $0x2cc] sm:$0xf]
    %v241 = vld [vmem:[%s0 + $0x2d0] sm:$0xf]
    %v242 = vld [vmem:[%s0 + $0x2d4] sm:$0xf]
    %v243 = vld [vmem:[%s0 + $0x2d8] sm:$0xf]
    %v244 = vld [vmem:[%s0 + $0x2dc] sm:$0xf]
    %v245 = vld [vmem:[%s0 + $0x2e0] sm:$0xf]
    %v246 = vld [vmem:[%s0 + $0x2e4] sm:$0xf]
    %v247 = vld [vmem:[%s0 + $0x2e8] sm:$0xf]
    %v248 = vld [vmem:[%s0 + $0x2ec] sm:$0xf]
    %v249 = vld [vmem:[%s0 + $0x2f0] sm:$0xf]
    %v250 = vld [vmem:[%s0 + $0x2f4] sm:$0xf]
    %v251 = vld [vmem:[%s0 + $0x2f8] sm:$0xf]
    %v252 = vld [vmem:[%s0 + $0x2fc] sm:$0xf]
    %v253 = vld [vmem:[#allocation2] sm:$0xf]
    %v254 = vld [vmem:[#allocation2 + $0x4] sm:$0x1]
    %v447 = vunpack.c.l.b16 %v61
    %v448 = vunpack.c.l.b16 %v62
    %v449 = vunpack.c.l.b16 %v63
    %v450 = vunpack.c.l.b16 %v64
    %v451 = vunpack.c.l.b16 %v65
    %v452 = vunpack.c.l.b16 %v66
    %v453 = vunpack.c.l.b16 %v67
    %v454 = vunpack.c.l.b16 %v68
    %v455 = vunpack.c.l.b16 %v69
    %v456 = vunpack.c.l.b16 %v70
    %v457 = vunpack.c.l.b16 %v71
    %v458 = vunpack.c.l.b16 %v72
    %v459 = vunpack.c.l.b16 %v73
    %v460 = vunpack.c.l.b16 %v74
    %v461 = vunpack.c.l.b16 %v75
    %v462 = vunpack.c.l.b16 %v76
    %v463 = vunpack.c.l.b16 %v77
    %v464 = vunpack.c.l.b16 %v78
    %v465 = vunpack.c.l.b16 %v79
    %v466 = vunpack.c.l.b16 %v80
    %v467 = vunpack.c.l.b16 %v81
    %v468 = vunpack.c.l.b16 %v82
    %v469 = vunpack.c.l.b16 %v83
    %v470 = vunpack.c.l.b16 %v84
    %v471 = vunpack.c.l.b16 %v85
    %v472 = vunpack.c.l.b16 %v86
    %v473 = vunpack.c.l.b16 %v87
    %v474 = vunpack.c.l.b16 %v88
    %v475 = vunpack.c.l.b16 %v89
    %v476 = vunpack.c.l.b16 %v90
    %v477 = vunpack.c.l.b16 %v91
    %v478 = vunpack.c.l.b16 %v92
    %v479 = vunpack.c.l.b16 %v93
    %v480 = vunpack.c.l.b16 %v94
    %v481 = vunpack.c.l.b16 %v95
    %v482 = vunpack.c.l.b16 %v96
    %v483 = vunpack.c.l.b16 %v97
    %v484 = vunpack.c.l.b16 %v98
    %v485 = vunpack.c.l.b16 %v99
    %v486 = vunpack.c.l.b16 %v100
    %v487 = vunpack.c.l.b16 %v101
    %v488 = vunpack.c.l.b16 %v102
    %v489 = vunpack.c.l.b16 %v103
    %v490 = vunpack.c.l.b16 %v104
    %v491 = vunpack.c.l.b16 %v105
    %v492 = vunpack.c.l.b16 %v106
    %v493 = vunpack.c.l.b16 %v107
    %v494 = vunpack.c.l.b16 %v108
    %v495 = vunpack.c.l.b16 %v109
    %v496 = vunpack.c.l.b16 %v110
    %v497 = vunpack.c.l.b16 %v111
    %v498 = vunpack.c.l.b16 %v112
    %v499 = vunpack.c.l.b16 %v113
    %v500 = vunpack.c.l.b16 %v114
    %v501 = vunpack.c.l.b16 %v115
    %v502 = vunpack.c.l.b16 %v116
    %v503 = vunpack.c.l.b16 %v117
    %v504 = vunpack.c.l.b16 %v118
    %v505 = vunpack.c.l.b16 %v119
    %v506 = vunpack.c.l.b16 %v120
    %v507 = vunpack.c.l.b16 %v121
    %v508 = vunpack.c.l.b16 %v122
    %v509 = vunpack.c.l.b16 %v123
    %v510 = vunpack.c.l.b16 %v124
    %v511 = vunpack.c.l.b16 %v125
    %v512 = vunpack.c.l.b16 %v126
    %v513 = vunpack.c.l.b16 %v127
    %v514 = vunpack.c.l.b16 %v128
    %v515 = vunpack.c.l.b16 %v129
    %v516 = vunpack.c.l.b16 %v130
    %v517 = vunpack.c.l.b16 %v131
    %v518 = vunpack.c.l.b16 %v132
    %v519 = vunpack.c.l.b16 %v133
    %v520 = vunpack.c.l.b16 %v134
    %v521 = vunpack.c.l.b16 %v135
    %v522 = vunpack.c.l.b16 %v136
    %v523 = vunpack.c.l.b16 %v137
    %v524 = vunpack.c.l.b16 %v138
    %v525 = vunpack.c.l.b16 %v139
    %v526 = vunpack.c.l.b16 %v140
    %v527 = vunpack.c.l.b16 %v141
    %v528 = vunpack.c.l.b16 %v142
    %v529 = vunpack.c.l.b16 %v143
    %v530 = vunpack.c.l.b16 %v144
    %v531 = vunpack.c.l.b16 %v145
    %v532 = vunpack.c.l.b16 %v146
    %v533 = vunpack.c.l.b16 %v147
    %v534 = vunpack.c.l.b16 %v148
    %v535 = vunpack.c.l.b16 %v149
    %v536 = vunpack.c.l.b16 %v150
    %v537 = vunpack.c.l.b16 %v151
    %v538 = vunpack.c.l.b16 %v152
    %v539 = vunpack.c.l.b16 %v153
    %v540 = vunpack.c.l.b16 %v154
    %v541 = vunpack.c.l.b16 %v155
    %v542 = vunpack.c.l.b16 %v156
    %v543 = vunpack.c.l.b16 %v157
    %v544 = vunpack.c.l.b16 %v158
    %v545 = vunpack.c.l.b16 %v159
    %v546 = vunpack.c.l.b16 %v160
    %v547 = vunpack.c.l.b16 %v161
    %v548 = vunpack.c.l.b16 %v162
    %v549 = vunpack.c.l.b16 %v163
    %v550 = vunpack.c.l.b16 %v164
    %v551 = vunpack.c.l.b16 %v165
    %v552 = vunpack.c.l.b16 %v166
    %v553 = vunpack.c.l.b16 %v167
    %v554 = vunpack.c.l.b16 %v168
    %v555 = vunpack.c.l.b16 %v169
    %v556 = vunpack.c.l.b16 %v170
    %v557 = vunpack.c.l.b16 %v171
    %v558 = vunpack.c.l.b16 %v172
    %v559 = vunpack.c.l.b16 %v173
    %v560 = vunpack.c.l.b16 %v174
    %v561 = vunpack.c.l.b16 %v175
    %v562 = vunpack.c.l.b16 %v176
    %v563 = vunpack.c.l.b16 %v177
    %v564 = vunpack.c.l.b16 %v178
    %v565 = vunpack.c.l.b16 %v179
    %v566 = vunpack.c.l.b16 %v180
    %v567 = vunpack.c.l.b16 %v181
    %v568 = vunpack.c.l.b16 %v182
    %v569 = vunpack.c.l.b16 %v183
    %v570 = vunpack.c.l.b16 %v184
    %v571 = vunpack.c.l.b16 %v185
    %v572 = vunpack.c.l.b16 %v186
    %v573 = vunpack.c.l.b16 %v187
    %v574 = vunpack.c.l.b16 %v188
    %v575 = vunpack.c.l.b16 %v189
    %v576 = vunpack.c.l.b16 %v190
    %v577 = vunpack.c.l.b16 %v191
    %v578 = vunpack.c.l.b16 %v192
    %v579 = vunpack.c.l.b16 %v193
    %v580 = vunpack.c.l.b16 %v194
    %v581 = vunpack.c.l.b16 %v195
    %v582 = vunpack.c.l.b16 %v196
    %v583 = vunpack.c.l.b16 %v197
    %v584 = vunpack.c.l.b16 %v198
    %v585 = vunpack.c.l.b16 %v199
    %v586 = vunpack.c.l.b16 %v200
    %v587 = vunpack.c.l.b16 %v201
    %v588 = vunpack.c.l.b16 %v202
    %v589 = vunpack.c.l.b16 %v203
    %v590 = vunpack.c.l.b16 %v204
    %v591 = vunpack.c.l.b16 %v205
    %v592 = vunpack.c.l.b16 %v206
    %v593 = vunpack.c.l.b16 %v207
    %v594 = vunpack.c.l.b16 %v208
    %v595 = vunpack.c.l.b16 %v209
    %v596 = vunpack.c.l.b16 %v210
    %v597 = vunpack.c.l.b16 %v211
    %v598 = vunpack.c.l.b16 %v212
    %v599 = vunpack.c.l.b16 %v213
    %v600 = vunpack.c.l.b16 %v214
    %v601 = vunpack.c.l.b16 %v215
    %v602 = vunpack.c.l.b16 %v216
    %v603 = vunpack.c.l.b16 %v217
    %v604 = vunpack.c.l.b16 %v218
    %v605 = vunpack.c.l.b16 %v219
    %v606 = vunpack.c.l.b16 %v220
    %v607 = vunpack.c.l.b16 %v221
    %v608 = vunpack.c.l.b16 %v222
    %v609 = vunpack.c.l.b16 %v223
    %v610 = vunpack.c.l.b16 %v224
    %v611 = vunpack.c.l.b16 %v225
    %v612 = vunpack.c.l.b16 %v226
    %v613 = vunpack.c.l.b16 %v227
    %v614 = vunpack.c.l.b16 %v228
    %v615 = vunpack.c.l.b16 %v229
    %v616 = vunpack.c.l.b16 %v230
    %v617 = vunpack.c.l.b16 %v231
    %v618 = vunpack.c.l.b16 %v232
    %v619 = vunpack.c.l.b16 %v233
    %v620 = vunpack.c.l.b16 %v234
    %v621 = vunpack.c.l.b16 %v235
    %v622 = vunpack.c.l.b16 %v236
    %v623 = vunpack.c.l.b16 %v237
    %v624 = vunpack.c.l.b16 %v238
    %v625 = vunpack.c.l.b16 %v239
    %v626 = vunpack.c.l.b16 %v240
    %v627 = vunpack.c.l.b16 %v241
    %v628 = vunpack.c.l.b16 %v242
    %v629 = vunpack.c.l.b16 %v243
    %v630 = vunpack.c.l.b16 %v244
    %v631 = vunpack.c.l.b16 %v245
    %v632 = vunpack.c.l.b16 %v246
    %v633 = vunpack.c.l.b16 %v247
    %v634 = vunpack.c.l.b16 %v248
    %v635 = vunpack.c.l.b16 %v249
    %v636 = vunpack.c.l.b16 %v250
    %v637 = vunpack.c.l.b16 %v251
    %v638 = vunpack.c.l.b16 %v252
    %v639 = vpack.c.b16 %v448, %v447
    %v640 = vpack.c.b16 %v450, %v449
    %v641 = vpack.c.b16 %v452, %v451
    %v642 = vpack.c.b16 %v454, %v453
    %v643 = vpack.c.b16 %v456, %v455
    %v644 = vpack.c.b16 %v458, %v457
    %v645 = vpack.c.b16 %v460, %v459
    %v646 = vpack.c.b16 %v462, %v461
    %v647 = vpack.c.b16 %v464, %v463
    %v648 = vpack.c.b16 %v466, %v465
    %v649 = vpack.c.b16 %v468, %v467
    %v650 = vpack.c.b16 %v470, %v469
    %v651 = vpack.c.b16 %v472, %v471
    %v652 = vpack.c.b16 %v474, %v473
    %v653 = vpack.c.b16 %v476, %v475
    %v654 = vpack.c.b16 %v478, %v477
    %v655 = vpack.c.b16 %v480, %v479
    %v656 = vpack.c.b16 %v482, %v481
    %v657 = vpack.c.b16 %v484, %v483
    %v658 = vpack.c.b16 %v486, %v485
    %v659 = vpack.c.b16 %v488, %v487
    %v660 = vpack.c.b16 %v490, %v489
    %v661 = vpack.c.b16 %v492, %v491
    %v662 = vpack.c.b16 %v494, %v493
    %v663 = vpack.c.b16 %v496, %v495
    %v664 = vpack.c.b16 %v498, %v497
    %v665 = vpack.c.b16 %v500, %v499
    %v666 = vpack.c.b16 %v502, %v501
    %v667 = vpack.c.b16 %v504, %v503
    %v668 = vpack.c.b16 %v506, %v505
    %v669 = vpack.c.b16 %v508, %v507
    %v670 = vpack.c.b16 %v510, %v509
    %v671 = vpack.c.b16 %v512, %v511
    %v672 = vpack.c.b16 %v514, %v513
    %v673 = vpack.c.b16 %v516, %v515
    %v674 = vpack.c.b16 %v518, %v517
    %v675 = vpack.c.b16 %v520, %v519
    %v676 = vpack.c.b16 %v522, %v521
    %v677 = vpack.c.b16 %v524, %v523
    %v678 = vpack.c.b16 %v526, %v525
    %v679 = vpack.c.b16 %v528, %v527
    %v680 = vpack.c.b16 %v530, %v529
    %v681 = vpack.c.b16 %v532, %v531
    %v682 = vpack.c.b16 %v534, %v533
    %v683 = vpack.c.b16 %v536, %v535
    %v684 = vpack.c.b16 %v538, %v537
    %v685 = vpack.c.b16 %v540, %v539
    %v686 = vpack.c.b16 %v542, %v541
    %v687 = vpack.c.b16 %v544, %v543
    %v688 = vpack.c.b16 %v546, %v545
    %v689 = vpack.c.b16 %v548, %v547
    %v690 = vpack.c.b16 %v550, %v549
    %v691 = vpack.c.b16 %v552, %v551
    %v692 = vpack.c.b16 %v554, %v553
    %v693 = vpack.c.b16 %v556, %v555
    %v694 = vpack.c.b16 %v558, %v557
    %v695 = vpack.c.b16 %v560, %v559
    %v696 = vpack.c.b16 %v562, %v561
    %v697 = vpack.c.b16 %v564, %v563
    %v698 = vpack.c.b16 %v566, %v565
    %v699 = vpack.c.b16 %v568, %v567
    %v700 = vpack.c.b16 %v570, %v569
    %v701 = vpack.c.b16 %v572, %v571
    %v702 = vpack.c.b16 %v574, %v573
    %v703 = vpack.c.b16 %v576, %v575
    %v704 = vpack.c.b16 %v578, %v577
    %v705 = vpack.c.b16 %v580, %v579
    %v706 = vpack.c.b16 %v582, %v581
    %v707 = vpack.c.b16 %v584, %v583
    %v708 = vpack.c.b16 %v586, %v585
    %v709 = vpack.c.b16 %v588, %v587
    %v710 = vpack.c.b16 %v590, %v589
    %v711 = vpack.c.b16 %v592, %v591
    %v712 = vpack.c.b16 %v594, %v593
    %v713 = vpack.c.b16 %v596, %v595
    %v714 = vpack.c.b16 %v598, %v597
    %v715 = vpack.c.b16 %v600, %v599
    %v716 = vpack.c.b16 %v602, %v601
    %v717 = vpack.c.b16 %v604, %v603
    %v718 = vpack.c.b16 %v606, %v605
    %v719 = vpack.c.b16 %v608, %v607
    %v720 = vpack.c.b16 %v610, %v609
    %v721 = vpack.c.b16 %v612, %v611
    %v722 = vpack.c.b16 %v614, %v613
    %v723 = vpack.c.b16 %v616, %v615
    %v724 = vpack.c.b16 %v618, %v617
    %v725 = vpack.c.b16 %v620, %v619
    %v726 = vpack.c.b16 %v622, %v621
    %v727 = vpack.c.b16 %v624, %v623
    %v728 = vpack.c.b16 %v626, %v625
    %v729 = vpack.c.b16 %v628, %v627
    %v730 = vpack.c.b16 %v630, %v629
    %v731 = vpack.c.b16 %v632, %v631
    %v732 = vpack.c.b16 %v634, %v633
    %v733 = vpack.c.b16 %v636, %v635
    %v734 = vpack.c.b16 %v638, %v637
    %v737 = vunpack.c.l.b16 %v253
    %v738 = vunpack.c.l.b16 %v254
    %v739 = vpack.c.b16 %v738, %v737
    %vm740 = vcmask 72704
    %v742 = vsel %vm740, %v639, 0
    %v745 = vsel %vm740, %v640, 0
    %v748 = vsel %vm740, %v641, 0
    %v751 = vsel %vm740, %v642, 0
    %v754 = vsel %vm740, %v643, 0
    %v757 = vsel %vm740, %v644, 0
    %v760 = vsel %vm740, %v645, 0
    %v763 = vsel %vm740, %v646, 0
    %v766 = vsel %vm740, %v647, 0
    %v769 = vsel %vm740, %v648, 0
    %v772 = vsel %vm740, %v649, 0
    %v775 = vsel %vm740, %v650, 0
    %v778 = vsel %vm740, %v651, 0
    %v781 = vsel %vm740, %v652, 0
    %v784 = vsel %vm740, %v653, 0
    %v787 = vsel %vm740, %v654, 0
    %v790 = vsel %vm740, %v655, 0
    %v793 = vsel %vm740, %v656, 0
    %v796 = vsel %vm740, %v657, 0
    %v799 = vsel %vm740, %v658, 0
    %v802 = vsel %vm740, %v659, 0
    %v805 = vsel %vm740, %v660, 0
    %v808 = vsel %vm740, %v661, 0
    %v811 = vsel %vm740, %v662, 0
    %v814 = vsel %vm740, %v663, 0
    %v817 = vsel %vm740, %v664, 0
    %v820 = vsel %vm740, %v665, 0
    %v823 = vsel %vm740, %v666, 0
    %v826 = vsel %vm740, %v667, 0
    %v829 = vsel %vm740, %v668, 0
    %v832 = vsel %vm740, %v669, 0
    %v835 = vsel %vm740, %v670, 0
    %v838 = vsel %vm740, %v671, 0
    %v841 = vsel %vm740, %v672, 0
    %v844 = vsel %vm740, %v673, 0
    %v847 = vsel %vm740, %v674, 0
    %v850 = vsel %vm740, %v675, 0
    %v853 = vsel %vm740, %v676, 0
    %v856 = vsel %vm740, %v677, 0
    %v859 = vsel %vm740, %v678, 0
    %v862 = vsel %vm740, %v679, 0
    %v865 = vsel %vm740, %v680, 0
    %v868 = vsel %vm740, %v681, 0
    %v871 = vsel %vm740, %v682, 0
    %v874 = vsel %vm740, %v683, 0
    %v877 = vsel %vm740, %v684, 0
    %v880 = vsel %vm740, %v685, 0
    %v883 = vsel %vm740, %v686, 0
    %v886 = vsel %vm740, %v687, 0
    %v889 = vsel %vm740, %v688, 0
    %v892 = vsel %vm740, %v689, 0
    %v895 = vsel %vm740, %v690, 0
    %v898 = vsel %vm740, %v691, 0
    %v901 = vsel %vm740, %v692, 0
    %v904 = vsel %vm740, %v693, 0
    %v907 = vsel %vm740, %v694, 0
    %v910 = vsel %vm740, %v695, 0
    %v913 = vsel %vm740, %v696, 0
    %v916 = vsel %vm740, %v697, 0
    %v919 = vsel %vm740, %v698, 0
    %v922 = vsel %vm740, %v699, 0
    %v925 = vsel %vm740, %v700, 0
    %v928 = vsel %vm740, %v701, 0
    %v931 = vsel %vm740, %v702, 0
    %v934 = vsel %vm740, %v703, 0
    %v937 = vsel %vm740, %v704, 0
    %v940 = vsel %vm740, %v705, 0
    %v943 = vsel %vm740, %v706, 0
    %v946 = vsel %vm740, %v707, 0
    %v949 = vsel %vm740, %v708, 0
    %v952 = vsel %vm740, %v709, 0
    %v955 = vsel %vm740, %v710, 0
    %v958 = vsel %vm740, %v711, 0
    %v961 = vsel %vm740, %v712, 0
    %v964 = vsel %vm740, %v713, 0
    %v967 = vsel %vm740, %v714, 0
    %v970 = vsel %vm740, %v715, 0
    %v973 = vsel %vm740, %v716, 0
    %v976 = vsel %vm740, %v717, 0
    %v979 = vsel %vm740, %v718, 0
    %v982 = vsel %vm740, %v719, 0
    %v985 = vsel %vm740, %v720, 0
    %v988 = vsel %vm740, %v721, 0
    %v991 = vsel %vm740, %v722, 0
    %v994 = vsel %vm740, %v723, 0
    %v997 = vsel %vm740, %v724, 0
    %v1000 = vsel %vm740, %v725, 0
    %v1003 = vsel %vm740, %v726, 0
    %v1006 = vsel %vm740, %v727, 0
    %v1009 = vsel %vm740, %v728, 0
    %v1012 = vsel %vm740, %v729, 0
    %v1015 = vsel %vm740, %v730, 0
    %v1018 = vsel %vm740, %v731, 0
    %v1021 = vsel %vm740, %v732, 0
    %v1024 = vsel %vm740, %v733, 0
    %v1027 = vsel %vm740, %v734, 0
    %vm1029 = vcmask 1043456
    %vm1030 = vcmask 1044480
    %v1031 = vsel %vm1029, 4294967295, 65535
    %v1032 = vsel %vm1030, %v1031, 0
    %v1034 = vand.u32 %v739, %v1032
    %1036 = vmatprep.subr.bf16.mxu0 0
    %1037 = vmatpush1.bf16.msra.mxu0 0
    %1038 = vmatprep.subr.bf16.mxu0 0
    %1039 = vmatpush1.bf16.msra.mxu0 0
    %1040 = vmatprep.subr.bf16.mxu0 0
    %1041 = vmatpush1.bf16.msra.mxu0 0
    %1042 = vmatprep.subr.bf16.mxu0 0
    %1043 = vmatpush1.bf16.msra.mxu0 0
    %1044 = vmatprep.subr.bf16.mxu0 0
    %1045 = vmatpush1.bf16.msra.mxu0 0
    %1046 = vmatprep.subr.bf16.mxu0 0
    %1047 = vmatpush1.bf16.msra.mxu0 0
    %1048 = vmatprep.subr.bf16.mxu0 0
    %1049 = vmatpush1.bf16.msra.mxu0 0
    %1050 = vmatprep.subr.bf16.mxu0 0
    %1051 = vmatpush1.bf16.msra.mxu0 %v1034
    %1052 = vmatprep.subr.bf16.mxu0 0
    %1053 = vmatpush2.bf16.msra.mxu0 0
    %1054 = vmatprep.subr.bf16.mxu0 0
    %1055 = vmatpush2.bf16.msra.mxu0 0
    %1056 = vmatprep.subr.bf16.mxu0 0
    %1057 = vmatpush2.bf16.msra.mxu0 0
    %1058 = vmatprep.subr.bf16.mxu0 0
    %1059 = vmatpush2.bf16.msra.mxu0 0
    %1060 = vmatprep.subr.bf16.mxu0 0
    %1061 = vmatpush2.bf16.msra.mxu0 0
    %1062 = vmatprep.subr.bf16.mxu0 0
    %1063 = vmatpush2.bf16.msra.mxu0 0
    %1064 = vmatprep.subr.bf16.mxu0 0
    %1065 = vmatpush2.bf16.msra.mxu0 0
    %1066 = vmatprep.subr.bf16.mxu0 0
    %1067 = vmatpush2.bf16.msra.mxu0 0
    %1068 = vmatprep.mubr.bf16.mxu0 0
    %1069 = vmatmul.mubr.bf16.gmra.mxu0 %v742
    %v1070 = vpop.f32.mrf.mxu0
    %v1071 = vadd.f32 0.0, %v1070
    %v1072 = vpop.f32.mrf.mxu0
    %v1073 = vpop.f32.mrf.mxu0
    %v1074 = vadd.f32 0.0, %v1073
    %v1075 = vpop.f32.mrf.mxu0
    %1076 = vmatprep.mubr.bf16.mxu0 0
    %1077 = vmatmul.mubr.bf16.gmra.mxu0 %v745
    %v1078 = vpop.f32.mrf.mxu0
    %v1079 = vadd.f32 0.0, %v1078
    %v1080 = vpop.f32.mrf.mxu0
    %v1081 = vpop.f32.mrf.mxu0
    %v1082 = vadd.f32 0.0, %v1081
    %v1083 = vpop.f32.mrf.mxu0
    %1084 = vmatprep.mubr.bf16.mxu0 0
    %1085 = vmatmul.mubr.bf16.gmra.mxu0 %v748
    %v1086 = vpop.f32.mrf.mxu0
    %v1087 = vadd.f32 0.0, %v1086
    %v1088 = vpop.f32.mrf.mxu0
    %v1089 = vpop.f32.mrf.mxu0
    %v1090 = vadd.f32 0.0, %v1089
    %v1091 = vpop.f32.mrf.mxu0
    %1092 = vmatprep.mubr.bf16.mxu0 0
    %1093 = vmatmul.mubr.bf16.gmra.mxu0 %v751
    %v1094 = vpop.f32.mrf.mxu0
    %v1095 = vadd.f32 0.0, %v1094
    %v1096 = vpop.f32.mrf.mxu0
    %v1097 = vpop.f32.mrf.mxu0
    %v1098 = vadd.f32 0.0, %v1097
    %v1099 = vpop.f32.mrf.mxu0
    %1100 = vmatprep.mubr.bf16.mxu0 0
    %1101 = vmatmul.mubr.bf16.gmra.mxu0 %v754
    %v1102 = vpop.f32.mrf.mxu0
    %v1103 = vadd.f32 0.0, %v1102
    %v1104 = vpop.f32.mrf.mxu0
    %v1105 = vpop.f32.mrf.mxu0
    %v1106 = vadd.f32 0.0, %v1105
    %v1107 = vpop.f32.mrf.mxu0
    %1108 = vmatprep.mubr.bf16.mxu0 0
    %1109 = vmatmul.mubr.bf16.gmra.mxu0 %v757
    %v1110 = vpop.f32.mrf.mxu0
    %v1111 = vadd.f32 0.0, %v1110
    %v1112 = vpop.f32.mrf.mxu0
    %v1113 = vpop.f32.mrf.mxu0
    %v1114 = vadd.f32 0.0, %v1113
    %v1115 = vpop.f32.mrf.mxu0
    %1116 = vmatprep.mubr.bf16.mxu0 0
    %1117 = vmatmul.mubr.bf16.gmra.mxu0 %v760
    %v1118 = vpop.f32.mrf.mxu0
    %v1119 = vadd.f32 0.0, %v1118
    %v1120 = vpop.f32.mrf.mxu0
    %v1121 = vpop.f32.mrf.mxu0
    %v1122 = vadd.f32 0.0, %v1121
    %v1123 = vpop.f32.mrf.mxu0
    %1124 = vmatprep.mubr.bf16.mxu0 0
    %1125 = vmatmul.mubr.bf16.gmra.mxu0 %v763
    %v1126 = vpop.f32.mrf.mxu0
    %v1127 = vadd.f32 0.0, %v1126
    %v1128 = vpop.f32.mrf.mxu0
    %v1129 = vpop.f32.mrf.mxu0
    %v1130 = vadd.f32 0.0, %v1129
    %v1131 = vpop.f32.mrf.mxu0
    %1132 = vmatprep.mubr.bf16.mxu0 0
    %1133 = vmatmul.mubr.bf16.gmra.mxu0 %v766
    %v1134 = vpop.f32.mrf.mxu0
    %v1135 = vadd.f32 0.0, %v1134
    %v1136 = vpop.f32.mrf.mxu0
    %v1137 = vpop.f32.mrf.mxu0
    %v1138 = vadd.f32 0.0, %v1137
    %v1139 = vpop.f32.mrf.mxu0
    %1140 = vmatprep.mubr.bf16.mxu0 0
    %1141 = vmatmul.mubr.bf16.gmra.mxu0 %v769
    %v1142 = vpop.f32.mrf.mxu0
    %v1143 = vadd.f32 0.0, %v1142
    %v1144 = vpop.f32.mrf.mxu0
    %v1145 = vpop.f32.mrf.mxu0
    %v1146 = vadd.f32 0.0, %v1145
    %v1147 = vpop.f32.mrf.mxu0
    %1148 = vmatprep.mubr.bf16.mxu0 0
    %1149 = vmatmul.mubr.bf16.gmra.mxu0 %v772
    %v1150 = vpop.f32.mrf.mxu0
    %v1151 = vadd.f32 0.0, %v1150
    %v1152 = vpop.f32.mrf.mxu0
    %v1153 = vpop.f32.mrf.mxu0
    %v1154 = vadd.f32 0.0, %v1153
    %v1155 = vpop.f32.mrf.mxu0
    %1156 = vmatprep.mubr.bf16.mxu0 0
    %1157 = vmatmul.mubr.bf16.gmra.mxu0 %v775
    %v1158 = vpop.f32.mrf.mxu0
    %v1159 = vadd.f32 0.0, %v1158
    %v1160 = vpop.f32.mrf.mxu0
    %v1161 = vpop.f32.mrf.mxu0
    %v1162 = vadd.f32 0.0, %v1161
    %v1163 = vpop.f32.mrf.mxu0
    %1164 = vmatprep.mubr.bf16.mxu0 0
    %1165 = vmatmul.mubr.bf16.gmra.mxu0 %v778
    %v1166 = vpop.f32.mrf.mxu0
    %v1167 = vadd.f32 0.0, %v1166
    %v1168 = vpop.f32.mrf.mxu0
    %v1169 = vpop.f32.mrf.mxu0
    %v1170 = vadd.f32 0.0, %v1169
    %v1171 = vpop.f32.mrf.mxu0
    %1172 = vmatprep.mubr.bf16.mxu0 0
    %1173 = vmatmul.mubr.bf16.gmra.mxu0 %v781
    %v1174 = vpop.f32.mrf.mxu0
    %v1175 = vadd.f32 0.0, %v1174
    %v1176 = vpop.f32.mrf.mxu0
    %v1177 = vpop.f32.mrf.mxu0
    %v1178 = vadd.f32 0.0, %v1177
    %v1179 = vpop.f32.mrf.mxu0
    %1180 = vmatprep.mubr.bf16.mxu0 0
    %1181 = vmatmul.mubr.bf16.gmra.mxu0 %v784
    %v1182 = vpop.f32.mrf.mxu0
    %v1183 = vadd.f32 0.0, %v1182
    %v1184 = vpop.f32.mrf.mxu0
    %v1185 = vpop.f32.mrf.mxu0
    %v1186 = vadd.f32 0.0, %v1185
    %v1187 = vpop.f32.mrf.mxu0
    %1188 = vmatprep.mubr.bf16.mxu0 0
    %1189 = vmatmul.mubr.bf16.gmra.mxu0 %v787
    %v1190 = vpop.f32.mrf.mxu0
    %v1191 = vadd.f32 0.0, %v1190
    %v1192 = vpop.f32.mrf.mxu0
    %v1193 = vpop.f32.mrf.mxu0
    %v1194 = vadd.f32 0.0, %v1193
    %v1195 = vpop.f32.mrf.mxu0
    %1196 = vmatprep.mubr.bf16.mxu0 0
    %1197 = vmatmul.mubr.bf16.gmra.mxu0 %v790
    %v1198 = vpop.f32.mrf.mxu0
    %v1199 = vadd.f32 0.0, %v1198
    %v1200 = vpop.f32.mrf.mxu0
    %v1201 = vpop.f32.mrf.mxu0
    %v1202 = vadd.f32 0.0, %v1201
    %v1203 = vpop.f32.mrf.mxu0
    %1204 = vmatprep.mubr.bf16.mxu0 0
    %1205 = vmatmul.mubr.bf16.gmra.mxu0 %v793
    %v1206 = vpop.f32.mrf.mxu0
    %v1207 = vadd.f32 0.0, %v1206
    %v1208 = vpop.f32.mrf.mxu0
    %v1209 = vpop.f32.mrf.mxu0
    %v1210 = vadd.f32 0.0, %v1209
    %v1211 = vpop.f32.mrf.mxu0
    %1212 = vmatprep.mubr.bf16.mxu0 0
    %1213 = vmatmul.mubr.bf16.gmra.mxu0 %v796
    %v1214 = vpop.f32.mrf.mxu0
    %v1215 = vadd.f32 0.0, %v1214
    %v1216 = vpop.f32.mrf.mxu0
    %v1217 = vpop.f32.mrf.mxu0
    %v1218 = vadd.f32 0.0, %v1217
    %v1219 = vpop.f32.mrf.mxu0
    %1220 = vmatprep.mubr.bf16.mxu0 0
    %1221 = vmatmul.mubr.bf16.gmra.mxu0 %v799
    %v1222 = vpop.f32.mrf.mxu0
    %v1223 = vadd.f32 0.0, %v1222
    %v1224 = vpop.f32.mrf.mxu0
    %v1225 = vpop.f32.mrf.mxu0
    %v1226 = vadd.f32 0.0, %v1225
    %v1227 = vpop.f32.mrf.mxu0
    %1228 = vmatprep.mubr.bf16.mxu0 0
    %1229 = vmatmul.mubr.bf16.gmra.mxu0 %v802
    %v1230 = vpop.f32.mrf.mxu0
    %v1231 = vadd.f32 0.0, %v1230
    %v1232 = vpop.f32.mrf.mxu0
    %v1233 = vpop.f32.mrf.mxu0
    %v1234 = vadd.f32 0.0, %v1233
    %v1235 = vpop.f32.mrf.mxu0
    %1236 = vmatprep.mubr.bf16.mxu0 0
    %1237 = vmatmul.mubr.bf16.gmra.mxu0 %v805
    %v1238 = vpop.f32.mrf.mxu0
    %v1239 = vadd.f32 0.0, %v1238
    %v1240 = vpop.f32.mrf.mxu0
    %v1241 = vpop.f32.mrf.mxu0
    %v1242 = vadd.f32 0.0, %v1241
    %v1243 = vpop.f32.mrf.mxu0
    %1244 = vmatprep.mubr.bf16.mxu0 0
    %1245 = vmatmul.mubr.bf16.gmra.mxu0 %v808
    %v1246 = vpop.f32.mrf.mxu0
    %v1247 = vadd.f32 0.0, %v1246
    %v1248 = vpop.f32.mrf.mxu0
    %v1249 = vpop.f32.mrf.mxu0
    %v1250 = vadd.f32 0.0, %v1249
    %v1251 = vpop.f32.mrf.mxu0
    %1252 = vmatprep.mubr.bf16.mxu0 0
    %1253 = vmatmul.mubr.bf16.gmra.mxu0 %v811
    %v1254 = vpop.f32.mrf.mxu0
    %v1255 = vadd.f32 0.0, %v1254
    %v1256 = vpop.f32.mrf.mxu0
    %v1257 = vpop.f32.mrf.mxu0
    %v1258 = vpop.f32.mrf.mxu0
    %1259 = vmatprep.mubr.bf16.mxu0 0
    %1260 = vmatmul.mubr.bf16.gmra.mxu0 %v814
    %v1261 = vpop.f32.mrf.mxu0
    %v1262 = vadd.f32 0.0, %v1261
    %v1263 = vpop.f32.mrf.mxu0
    %v1264 = vpop.f32.mrf.mxu0
    %v1265 = vadd.f32 0.0, %v1264
    %v1266 = vpop.f32.mrf.mxu0
    %1267 = vmatprep.mubr.bf16.mxu0 0
    %1268 = vmatmul.mubr.bf16.gmra.mxu0 %v817
    %v1269 = vpop.f32.mrf.mxu0
    %v1270 = vadd.f32 0.0, %v1269
    %v1271 = vpop.f32.mrf.mxu0
    %v1272 = vpop.f32.mrf.mxu0
    %v1273 = vadd.f32 0.0, %v1272
    %v1274 = vpop.f32.mrf.mxu0
    %1275 = vmatprep.mubr.bf16.mxu0 0
    %1276 = vmatmul.mubr.bf16.gmra.mxu0 %v820
    %v1277 = vpop.f32.mrf.mxu0
    %v1278 = vadd.f32 0.0, %v1277
    %v1279 = vpop.f32.mrf.mxu0
    %v1280 = vpop.f32.mrf.mxu0
    %v1281 = vadd.f32 0.0, %v1280
    %v1282 = vpop.f32.mrf.mxu0
    %1283 = vmatprep.mubr.bf16.mxu0 0
    %1284 = vmatmul.mubr.bf16.gmra.mxu0 %v823
    %v1285 = vpop.f32.mrf.mxu0
    %v1286 = vadd.f32 0.0, %v1285
    %v1287 = vpop.f32.mrf.mxu0
    %v1288 = vpop.f32.mrf.mxu0
    %v1289 = vadd.f32 0.0, %v1288
    %v1290 = vpop.f32.mrf.mxu0
    %1291 = vmatprep.mubr.bf16.mxu0 0
    %1292 = vmatmul.mubr.bf16.gmra.mxu0 %v826
    %v1293 = vpop.f32.mrf.mxu0
    %v1294 = vadd.f32 0.0, %v1293
    %v1295 = vpop.f32.mrf.mxu0
    %v1296 = vpop.f32.mrf.mxu0
    %v1297 = vadd.f32 0.0, %v1296
    %v1298 = vpop.f32.mrf.mxu0
    %1299 = vmatprep.mubr.bf16.mxu0 0
    %1300 = vmatmul.mubr.bf16.gmra.mxu0 %v829
    %v1301 = vpop.f32.mrf.mxu0
    %v1302 = vadd.f32 0.0, %v1301
    %v1303 = vpop.f32.mrf.mxu0
    %v1304 = vpop.f32.mrf.mxu0
    %v1305 = vadd.f32 0.0, %v1304
    %v1306 = vpop.f32.mrf.mxu0
    %1307 = vmatprep.mubr.bf16.mxu0 0
    %1308 = vmatmul.mubr.bf16.gmra.mxu0 %v832
    %v1309 = vpop.f32.mrf.mxu0
    %v1310 = vadd.f32 0.0, %v1309
    %v1311 = vpop.f32.mrf.mxu0
    %v1312 = vpop.f32.mrf.mxu0
    %v1313 = vadd.f32 0.0, %v1312
    %v1314 = vpop.f32.mrf.mxu0
    %1315 = vmatprep.mubr.bf16.mxu0 0
    %1316 = vmatmul.mubr.bf16.gmra.mxu0 %v835
    %v1317 = vpop.f32.mrf.mxu0
    %v1318 = vadd.f32 0.0, %v1317
    %v1319 = vpop.f32.mrf.mxu0
    %v1320 = vpop.f32.mrf.mxu0
    %v1321 = vadd.f32 0.0, %v1320
    %v1322 = vpop.f32.mrf.mxu0
    %1323 = vmatprep.mubr.bf16.mxu0 0
    %1324 = vmatmul.mubr.bf16.gmra.mxu0 %v838
    %v1325 = vpop.f32.mrf.mxu0
    %v1326 = vadd.f32 0.0, %v1325
    %v1327 = vpop.f32.mrf.mxu0
    %v1328 = vpop.f32.mrf.mxu0
    %v1329 = vadd.f32 0.0, %v1328
    %v1330 = vpop.f32.mrf.mxu0
    %1331 = vmatprep.mubr.bf16.mxu0 0
    %1332 = vmatmul.mubr.bf16.gmra.mxu0 %v841
    %v1333 = vpop.f32.mrf.mxu0
    %v1334 = vadd.f32 0.0, %v1333
    %v1335 = vpop.f32.mrf.mxu0
    %v1336 = vpop.f32.mrf.mxu0
    %v1337 = vadd.f32 0.0, %v1336
    %v1338 = vpop.f32.mrf.mxu0
    %1339 = vmatprep.mubr.bf16.mxu0 0
    %1340 = vmatmul.mubr.bf16.gmra.mxu0 %v844
    %v1341 = vpop.f32.mrf.mxu0
    %v1342 = vadd.f32 0.0, %v1341
    %v1343 = vpop.f32.mrf.mxu0
    %v1344 = vpop.f32.mrf.mxu0
    %v1345 = vadd.f32 0.0, %v1344
    %v1346 = vpop.f32.mrf.mxu0
    %1347 = vmatprep.mubr.bf16.mxu0 0
    %1348 = vmatmul.mubr.bf16.gmra.mxu0 %v847
    %v1349 = vpop.f32.mrf.mxu0
    %v1350 = vadd.f32 0.0, %v1349
    %v1351 = vpop.f32.mrf.mxu0
    %v1352 = vpop.f32.mrf.mxu0
    %v1353 = vadd.f32 0.0, %v1352
    %v1354 = vpop.f32.mrf.mxu0
    %1355 = vmatprep.mubr.bf16.mxu0 0
    %1356 = vmatmul.mubr.bf16.gmra.mxu0 %v850
    %v1357 = vpop.f32.mrf.mxu0
    %v1358 = vadd.f32 0.0, %v1357
    %v1359 = vpop.f32.mrf.mxu0
    %v1360 = vpop.f32.mrf.mxu0
    %v1361 = vadd.f32 0.0, %v1360
    %v1362 = vpop.f32.mrf.mxu0
    %1363 = vmatprep.mubr.bf16.mxu0 0
    %1364 = vmatmul.mubr.bf16.gmra.mxu0 %v853
    %v1365 = vpop.f32.mrf.mxu0
    %v1366 = vadd.f32 0.0, %v1365
    %v1367 = vpop.f32.mrf.mxu0
    %v1368 = vpop.f32.mrf.mxu0
    %v1369 = vadd.f32 0.0, %v1368
    %v1370 = vpop.f32.mrf.mxu0
    %1371 = vmatprep.mubr.bf16.mxu0 0
    %1372 = vmatmul.mubr.bf16.gmra.mxu0 %v856
    %v1373 = vpop.f32.mrf.mxu0
    %v1374 = vadd.f32 0.0, %v1373
    %v1375 = vpop.f32.mrf.mxu0
    %v1376 = vpop.f32.mrf.mxu0
    %v1377 = vadd.f32 0.0, %v1376
    %v1378 = vpop.f32.mrf.mxu0
    %1379 = vmatprep.mubr.bf16.mxu0 0
    %1380 = vmatmul.mubr.bf16.gmra.mxu0 %v859
    %v1381 = vpop.f32.mrf.mxu0
    %v1382 = vadd.f32 0.0, %v1381
    %v1383 = vpop.f32.mrf.mxu0
    %v1384 = vpop.f32.mrf.mxu0
    %v1385 = vadd.f32 0.0, %v1384
    %v1386 = vpop.f32.mrf.mxu0
    %1387 = vmatprep.mubr.bf16.mxu0 0
    %1388 = vmatmul.mubr.bf16.gmra.mxu0 %v862
    %v1389 = vpop.f32.mrf.mxu0
    %v1390 = vadd.f32 0.0, %v1389
    %v1391 = vpop.f32.mrf.mxu0
    %v1392 = vpop.f32.mrf.mxu0
    %v1393 = vadd.f32 0.0, %v1392
    %v1394 = vpop.f32.mrf.mxu0
    %1395 = vmatprep.mubr.bf16.mxu0 0
    %1396 = vmatmul.mubr.bf16.gmra.mxu0 %v865
    %v1397 = vpop.f32.mrf.mxu0
    %v1398 = vadd.f32 0.0, %v1397
    %v1399 = vpop.f32.mrf.mxu0
    %v1400 = vpop.f32.mrf.mxu0
    %v1401 = vadd.f32 0.0, %v1400
    %v1402 = vpop.f32.mrf.mxu0
    %1403 = vmatprep.mubr.bf16.mxu0 0
    %1404 = vmatmul.mubr.bf16.gmra.mxu0 %v868
    %v1405 = vpop.f32.mrf.mxu0
    %v1406 = vadd.f32 0.0, %v1405
    %v1407 = vpop.f32.mrf.mxu0
    %v1408 = vpop.f32.mrf.mxu0
    %v1409 = vadd.f32 0.0, %v1408
    %v1410 = vpop.f32.mrf.mxu0
    %1411 = vmatprep.mubr.bf16.mxu0 0
    %1412 = vmatmul.mubr.bf16.gmra.mxu0 %v871
    %v1413 = vpop.f32.mrf.mxu0
    %v1414 = vadd.f32 0.0, %v1413
    %v1415 = vpop.f32.mrf.mxu0
    %v1416 = vpop.f32.mrf.mxu0
    %v1417 = vadd.f32 0.0, %v1416
    %v1418 = vpop.f32.mrf.mxu0
    %1419 = vmatprep.mubr.bf16.mxu0 0
    %1420 = vmatmul.mubr.bf16.gmra.mxu0 %v874
    %v1421 = vpop.f32.mrf.mxu0
    %v1422 = vadd.f32 0.0, %v1421
    %v1423 = vpop.f32.mrf.mxu0
    %v1424 = vpop.f32.mrf.mxu0
    %v1425 = vadd.f32 0.0, %v1424
    %v1426 = vpop.f32.mrf.mxu0
    %1427 = vmatprep.mubr.bf16.mxu0 0
    %1428 = vmatmul.mubr.bf16.gmra.mxu0 %v877
    %v1429 = vpop.f32.mrf.mxu0
    %v1430 = vadd.f32 0.0, %v1429
    %v1431 = vpop.f32.mrf.mxu0
    %v1432 = vpop.f32.mrf.mxu0
    %v1433 = vadd.f32 0.0, %v1432
    %v1434 = vpop.f32.mrf.mxu0
    %1435 = vmatprep.mubr.bf16.mxu0 0
    %1436 = vmatmul.mubr.bf16.gmra.mxu0 %v880
    %v1437 = vpop.f32.mrf.mxu0
    %v1438 = vadd.f32 0.0, %v1437
    %v1439 = vpop.f32.mrf.mxu0
    %v1440 = vpop.f32.mrf.mxu0
    %v1441 = vadd.f32 0.0, %v1440
    %v1442 = vpop.f32.mrf.mxu0
    %1443 = vmatprep.mubr.bf16.mxu0 0
    %1444 = vmatmul.mubr.bf16.gmra.mxu0 %v883
    %v1445 = vpop.f32.mrf.mxu0
    %v1446 = vadd.f32 0.0, %v1445
    %v1447 = vpop.f32.mrf.mxu0
    %v1448 = vpop.f32.mrf.mxu0
    %v1449 = vpop.f32.mrf.mxu0
    %1450 = vmatprep.mubr.bf16.mxu0 0
    %1451 = vmatmul.mubr.bf16.gmra.mxu0 %v886
    %v1452 = vpop.f32.mrf.mxu0
    %v1453 = vadd.f32 0.0, %v1452
    %v1454 = vpop.f32.mrf.mxu0
    %v1455 = vpop.f32.mrf.mxu0
    %v1456 = vadd.f32 0.0, %v1455
    %v1457 = vpop.f32.mrf.mxu0
    %1458 = vmatprep.mubr.bf16.mxu0 0
    %1459 = vmatmul.mubr.bf16.gmra.mxu0 %v889
    %v1460 = vpop.f32.mrf.mxu0
    %v1461 = vadd.f32 0.0, %v1460
    %v1462 = vpop.f32.mrf.mxu0
    %v1463 = vpop.f32.mrf.mxu0
    %v1464 = vadd.f32 0.0, %v1463
    %v1465 = vpop.f32.mrf.mxu0
    %1466 = vmatprep.mubr.bf16.mxu0 0
    %1467 = vmatmul.mubr.bf16.gmra.mxu0 %v892
    %v1468 = vpop.f32.mrf.mxu0
    %v1469 = vadd.f32 0.0, %v1468
    %v1470 = vpop.f32.mrf.mxu0
    %v1471 = vpop.f32.mrf.mxu0
    %v1472 = vadd.f32 0.0, %v1471
    %v1473 = vpop.f32.mrf.mxu0
    %1474 = vmatprep.mubr.bf16.mxu0 0
    %1475 = vmatmul.mubr.bf16.gmra.mxu0 %v895
    %v1476 = vpop.f32.mrf.mxu0
    %v1477 = vadd.f32 0.0, %v1476
    %v1478 = vpop.f32.mrf.mxu0
    %v1479 = vpop.f32.mrf.mxu0
    %v1480 = vadd.f32 0.0, %v1479
    %v1481 = vpop.f32.mrf.mxu0
    %1482 = vmatprep.mubr.bf16.mxu0 0
    %1483 = vmatmul.mubr.bf16.gmra.mxu0 %v898
    %v1484 = vpop.f32.mrf.mxu0
    %v1485 = vadd.f32 0.0, %v1484
    %v1486 = vpop.f32.mrf.mxu0
    %v1487 = vpop.f32.mrf.mxu0
    %v1488 = vadd.f32 0.0, %v1487
    %v1489 = vpop.f32.mrf.mxu0
    %1490 = vmatprep.mubr.bf16.mxu0 0
    %1491 = vmatmul.mubr.bf16.gmra.mxu0 %v901
    %v1492 = vpop.f32.mrf.mxu0
    %v1493 = vadd.f32 0.0, %v1492
    %v1494 = vpop.f32.mrf.mxu0
    %v1495 = vpop.f32.mrf.mxu0
    %v1496 = vadd.f32 0.0, %v1495
    %v1497 = vpop.f32.mrf.mxu0
    %1498 = vmatprep.mubr.bf16.mxu0 0
    %1499 = vmatmul.mubr.bf16.gmra.mxu0 %v904
    %v1500 = vpop.f32.mrf.mxu0
    %v1501 = vadd.f32 0.0, %v1500
    %v1502 = vpop.f32.mrf.mxu0
    %v1503 = vpop.f32.mrf.mxu0
    %v1504 = vadd.f32 0.0, %v1503
    %v1505 = vpop.f32.mrf.mxu0
    %1506 = vmatprep.mubr.bf16.mxu0 0
    %1507 = vmatmul.mubr.bf16.gmra.mxu0 %v907
    %v1508 = vpop.f32.mrf.mxu0
    %v1509 = vadd.f32 0.0, %v1508
    %v1510 = vpop.f32.mrf.mxu0
    %v1511 = vpop.f32.mrf.mxu0
    %v1512 = vadd.f32 0.0, %v1511
    %v1513 = vpop.f32.mrf.mxu0
    %1514 = vmatprep.mubr.bf16.mxu0 0
    %1515 = vmatmul.mubr.bf16.gmra.mxu0 %v910
    %v1516 = vpop.f32.mrf.mxu0
    %v1517 = vadd.f32 0.0, %v1516
    %v1518 = vpop.f32.mrf.mxu0
    %v1519 = vpop.f32.mrf.mxu0
    %v1520 = vadd.f32 0.0, %v1519
    %v1521 = vpop.f32.mrf.mxu0
    %1522 = vmatprep.mubr.bf16.mxu0 0
    %1523 = vmatmul.mubr.bf16.gmra.mxu0 %v913
    %v1524 = vpop.f32.mrf.mxu0
    %v1525 = vadd.f32 0.0, %v1524
    %v1526 = vpop.f32.mrf.mxu0
    %v1527 = vpop.f32.mrf.mxu0
    %v1528 = vadd.f32 0.0, %v1527
    %v1529 = vpop.f32.mrf.mxu0
    %1530 = vmatprep.mubr.bf16.mxu0 0
    %1531 = vmatmul.mubr.bf16.gmra.mxu0 %v916
    %v1532 = vpop.f32.mrf.mxu0
    %v1533 = vadd.f32 0.0, %v1532
    %v1534 = vpop.f32.mrf.mxu0
    %v1535 = vpop.f32.mrf.mxu0
    %v1536 = vadd.f32 0.0, %v1535
    %v1537 = vpop.f32.mrf.mxu0
    %1538 = vmatprep.mubr.bf16.mxu0 0
    %1539 = vmatmul.mubr.bf16.gmra.mxu0 %v919
    %v1540 = vpop.f32.mrf.mxu0
    %v1541 = vadd.f32 0.0, %v1540
    %v1542 = vpop.f32.mrf.mxu0
    %v1543 = vpop.f32.mrf.mxu0
    %v1544 = vadd.f32 0.0, %v1543
    %v1545 = vpop.f32.mrf.mxu0
    %1546 = vmatprep.mubr.bf16.mxu0 0
    %1547 = vmatmul.mubr.bf16.gmra.mxu0 %v922
    %v1548 = vpop.f32.mrf.mxu0
    %v1549 = vadd.f32 0.0, %v1548
    %v1550 = vpop.f32.mrf.mxu0
    %v1551 = vpop.f32.mrf.mxu0
    %v1552 = vadd.f32 0.0, %v1551
    %v1553 = vpop.f32.mrf.mxu0
    %1554 = vmatprep.mubr.bf16.mxu0 0
    %1555 = vmatmul.mubr.bf16.gmra.mxu0 %v925
    %v1556 = vpop.f32.mrf.mxu0
    %v1557 = vadd.f32 0.0, %v1556
    %v1558 = vpop.f32.mrf.mxu0
    %v1559 = vpop.f32.mrf.mxu0
    %v1560 = vadd.f32 0.0, %v1559
    %v1561 = vpop.f32.mrf.mxu0
    %1562 = vmatprep.mubr.bf16.mxu0 0
    %1563 = vmatmul.mubr.bf16.gmra.mxu0 %v928
    %v1564 = vpop.f32.mrf.mxu0
    %v1565 = vadd.f32 0.0, %v1564
    %v1566 = vpop.f32.mrf.mxu0
    %v1567 = vpop.f32.mrf.mxu0
    %v1568 = vadd.f32 0.0, %v1567
    %v1569 = vpop.f32.mrf.mxu0
    %1570 = vmatprep.mubr.bf16.mxu0 0
    %1571 = vmatmul.mubr.bf16.gmra.mxu0 %v931
    %v1572 = vpop.f32.mrf.mxu0
    %v1573 = vadd.f32 0.0, %v1572
    %v1574 = vpop.f32.mrf.mxu0
    %v1575 = vpop.f32.mrf.mxu0
    %v1576 = vadd.f32 0.0, %v1575
    %v1577 = vpop.f32.mrf.mxu0
    %1578 = vmatprep.mubr.bf16.mxu0 0
    %1579 = vmatmul.mubr.bf16.gmra.mxu0 %v934
    %v1580 = vpop.f32.mrf.mxu0
    %v1581 = vadd.f32 0.0, %v1580
    %v1582 = vpop.f32.mrf.mxu0
    %v1583 = vpop.f32.mrf.mxu0
    %v1584 = vadd.f32 0.0, %v1583
    %v1585 = vpop.f32.mrf.mxu0
    %1586 = vmatprep.mubr.bf16.mxu0 0
    %1587 = vmatmul.mubr.bf16.gmra.mxu0 %v937
    %v1588 = vpop.f32.mrf.mxu0
    %v1589 = vadd.f32 0.0, %v1588
    %v1590 = vpop.f32.mrf.mxu0
    %v1591 = vpop.f32.mrf.mxu0
    %v1592 = vadd.f32 0.0, %v1591
    %v1593 = vpop.f32.mrf.mxu0
    %1594 = vmatprep.mubr.bf16.mxu0 0
    %1595 = vmatmul.mubr.bf16.gmra.mxu0 %v940
    %v1596 = vpop.f32.mrf.mxu0
    %v1597 = vadd.f32 0.0, %v1596
    %v1598 = vpop.f32.mrf.mxu0
    %v1599 = vpop.f32.mrf.mxu0
    %v1600 = vadd.f32 0.0, %v1599
    %v1601 = vpop.f32.mrf.mxu0
    %1602 = vmatprep.mubr.bf16.mxu0 0
    %1603 = vmatmul.mubr.bf16.gmra.mxu0 %v943
    %v1604 = vpop.f32.mrf.mxu0
    %v1605 = vadd.f32 0.0, %v1604
    %v1606 = vpop.f32.mrf.mxu0
    %v1607 = vpop.f32.mrf.mxu0
    %v1608 = vadd.f32 0.0, %v1607
    %v1609 = vpop.f32.mrf.mxu0
    %1610 = vmatprep.mubr.bf16.mxu0 0
    %1611 = vmatmul.mubr.bf16.gmra.mxu0 %v946
    %v1612 = vpop.f32.mrf.mxu0
    %v1613 = vadd.f32 0.0, %v1612
    %v1614 = vpop.f32.mrf.mxu0
    %v1615 = vpop.f32.mrf.mxu0
    %v1616 = vadd.f32 0.0, %v1615
    %v1617 = vpop.f32.mrf.mxu0
    %1618 = vmatprep.mubr.bf16.mxu0 0
    %1619 = vmatmul.mubr.bf16.gmra.mxu0 %v949
    %v1620 = vpop.f32.mrf.mxu0
    %v1621 = vadd.f32 0.0, %v1620
    %v1622 = vpop.f32.mrf.mxu0
    %v1623 = vpop.f32.mrf.mxu0
    %v1624 = vadd.f32 0.0, %v1623
    %v1625 = vpop.f32.mrf.mxu0
    %1626 = vmatprep.mubr.bf16.mxu0 0
    %1627 = vmatmul.mubr.bf16.gmra.mxu0 %v952
    %v1628 = vpop.f32.mrf.mxu0
    %v1629 = vadd.f32 0.0, %v1628
    %v1630 = vpop.f32.mrf.mxu0
    %v1631 = vpop.f32.mrf.mxu0
    %v1632 = vadd.f32 0.0, %v1631
    %v1633 = vpop.f32.mrf.mxu0
    %1634 = vmatprep.mubr.bf16.mxu0 0
    %1635 = vmatmul.mubr.bf16.gmra.mxu0 %v955
    %v1636 = vpop.f32.mrf.mxu0
    %v1637 = vadd.f32 0.0, %v1636
    %v1638 = vpop.f32.mrf.mxu0
    %v1639 = vpop.f32.mrf.mxu0
    %v1640 = vpop.f32.mrf.mxu0
    %1641 = vmatprep.mubr.bf16.mxu0 0
    %1642 = vmatmul.mubr.bf16.gmra.mxu0 %v958
    %v1643 = vpop.f32.mrf.mxu0
    %v1644 = vadd.f32 0.0, %v1643
    %v1645 = vpop.f32.mrf.mxu0
    %v1646 = vpop.f32.mrf.mxu0
    %v1647 = vadd.f32 0.0, %v1646
    %v1648 = vpop.f32.mrf.mxu0
    %1649 = vmatprep.mubr.bf16.mxu0 0
    %1650 = vmatmul.mubr.bf16.gmra.mxu0 %v961
    %v1651 = vpop.f32.mrf.mxu0
    %v1652 = vadd.f32 0.0, %v1651
    %v1653 = vpop.f32.mrf.mxu0
    %v1654 = vpop.f32.mrf.mxu0
    %v1655 = vadd.f32 0.0, %v1654
    %v1656 = vpop.f32.mrf.mxu0
    %1657 = vmatprep.mubr.bf16.mxu0 0
    %1658 = vmatmul.mubr.bf16.gmra.mxu0 %v964
    %v1659 = vpop.f32.mrf.mxu0
    %v1660 = vadd.f32 0.0, %v1659
    %v1661 = vpop.f32.mrf.mxu0
    %v1662 = vpop.f32.mrf.mxu0
    %v1663 = vadd.f32 0.0, %v1662
    %v1664 = vpop.f32.mrf.mxu0
    %1665 = vmatprep.mubr.bf16.mxu0 0
    %1666 = vmatmul.mubr.bf16.gmra.mxu0 %v967
    %v1667 = vpop.f32.mrf.mxu0
    %v1668 = vadd.f32 0.0, %v1667
    %v1669 = vpop.f32.mrf.mxu0
    %v1670 = vpop.f32.mrf.mxu0
    %v1671 = vadd.f32 0.0, %v1670
    %v1672 = vpop.f32.mrf.mxu0
    %1673 = vmatprep.mubr.bf16.mxu0 0
    %1674 = vmatmul.mubr.bf16.gmra.mxu0 %v970
    %v1675 = vpop.f32.mrf.mxu0
    %v1676 = vadd.f32 0.0, %v1675
    %v1677 = vpop.f32.mrf.mxu0
    %v1678 = vpop.f32.mrf.mxu0
    %v1679 = vadd.f32 0.0, %v1678
    %v1680 = vpop.f32.mrf.mxu0
    %1681 = vmatprep.mubr.bf16.mxu0 0
    %1682 = vmatmul.mubr.bf16.gmra.mxu0 %v973
    %v1683 = vpop.f32.mrf.mxu0
    %v1684 = vadd.f32 0.0, %v1683
    %v1685 = vpop.f32.mrf.mxu0
    %v1686 = vpop.f32.mrf.mxu0
    %v1687 = vadd.f32 0.0, %v1686
    %v1688 = vpop.f32.mrf.mxu0
    %1689 = vmatprep.mubr.bf16.mxu0 0
    %1690 = vmatmul.mubr.bf16.gmra.mxu0 %v976
    %v1691 = vpop.f32.mrf.mxu0
    %v1692 = vadd.f32 0.0, %v1691
    %v1693 = vpop.f32.mrf.mxu0
    %v1694 = vpop.f32.mrf.mxu0
    %v1695 = vadd.f32 0.0, %v1694
    %v1696 = vpop.f32.mrf.mxu0
    %1697 = vmatprep.mubr.bf16.mxu0 0
    %1698 = vmatmul.mubr.bf16.gmra.mxu0 %v979
    %v1699 = vpop.f32.mrf.mxu0
    %v1700 = vadd.f32 0.0, %v1699
    %v1701 = vpop.f32.mrf.mxu0
    %v1702 = vpop.f32.mrf.mxu0
    %v1703 = vadd.f32 0.0, %v1702
    %v1704 = vpop.f32.mrf.mxu0
    %1705 = vmatprep.mubr.bf16.mxu0 0
    %1706 = vmatmul.mubr.bf16.gmra.mxu0 %v982
    %v1707 = vpop.f32.mrf.mxu0
    %v1708 = vadd.f32 0.0, %v1707
    %v1709 = vpop.f32.mrf.mxu0
    %v1710 = vpop.f32.mrf.mxu0
    %v1711 = vadd.f32 0.0, %v1710
    %v1712 = vpop.f32.mrf.mxu0
    %1713 = vmatprep.mubr.bf16.mxu0 0
    %1714 = vmatmul.mubr.bf16.gmra.mxu0 %v985
    %v1715 = vpop.f32.mrf.mxu0
    %v1716 = vadd.f32 0.0, %v1715
    %v1717 = vpop.f32.mrf.mxu0
    %v1718 = vpop.f32.mrf.mxu0
    %v1719 = vadd.f32 0.0, %v1718
    %v1720 = vpop.f32.mrf.mxu0
    %1721 = vmatprep.mubr.bf16.mxu0 0
    %1722 = vmatmul.mubr.bf16.gmra.mxu0 %v988
    %v1723 = vpop.f32.mrf.mxu0
    %v1724 = vadd.f32 0.0, %v1723
    %v1725 = vpop.f32.mrf.mxu0
    %v1726 = vpop.f32.mrf.mxu0
    %v1727 = vadd.f32 0.0, %v1726
    %v1728 = vpop.f32.mrf.mxu0
    %1729 = vmatprep.mubr.bf16.mxu0 0
    %1730 = vmatmul.mubr.bf16.gmra.mxu0 %v991
    %v1731 = vpop.f32.mrf.mxu0
    %v1732 = vadd.f32 0.0, %v1731
    %v1733 = vpop.f32.mrf.mxu0
    %v1734 = vpop.f32.mrf.mxu0
    %v1735 = vadd.f32 0.0, %v1734
    %v1736 = vpop.f32.mrf.mxu0
    %1737 = vmatprep.mubr.bf16.mxu0 0
    %1738 = vmatmul.mubr.bf16.gmra.mxu0 %v994
    %v1739 = vpop.f32.mrf.mxu0
    %v1740 = vadd.f32 0.0, %v1739
    %v1741 = vpop.f32.mrf.mxu0
    %v1742 = vpop.f32.mrf.mxu0
    %v1743 = vadd.f32 0.0, %v1742
    %v1744 = vpop.f32.mrf.mxu0
    %1745 = vmatprep.mubr.bf16.mxu0 0
    %1746 = vmatmul.mubr.bf16.gmra.mxu0 %v997
    %v1747 = vpop.f32.mrf.mxu0
    %v1748 = vadd.f32 0.0, %v1747
    %v1749 = vpop.f32.mrf.mxu0
    %v1750 = vpop.f32.mrf.mxu0
    %v1751 = vadd.f32 0.0, %v1750
    %v1752 = vpop.f32.mrf.mxu0
    %1753 = vmatprep.mubr.bf16.mxu0 0
    %1754 = vmatmul.mubr.bf16.gmra.mxu0 %v1000
    %v1755 = vpop.f32.mrf.mxu0
    %v1756 = vadd.f32 0.0, %v1755
    %v1757 = vpop.f32.mrf.mxu0
    %v1758 = vpop.f32.mrf.mxu0
    %v1759 = vadd.f32 0.0, %v1758
    %v1760 = vpop.f32.mrf.mxu0
    %1761 = vmatprep.mubr.bf16.mxu0 0
    %1762 = vmatmul.mubr.bf16.gmra.mxu0 %v1003
    %v1763 = vpop.f32.mrf.mxu0
    %v1764 = vadd.f32 0.0, %v1763
    %v1765 = vpop.f32.mrf.mxu0
    %v1766 = vpop.f32.mrf.mxu0
    %v1767 = vadd.f32 0.0, %v1766
    %v1768 = vpop.f32.mrf.mxu0
    %1769 = vmatprep.mubr.bf16.mxu0 0
    %1770 = vmatmul.mubr.bf16.gmra.mxu0 %v1006
    %v1771 = vpop.f32.mrf.mxu0
    %v1772 = vadd.f32 0.0, %v1771
    %v1773 = vpop.f32.mrf.mxu0
    %v1774 = vpop.f32.mrf.mxu0
    %v1775 = vadd.f32 0.0, %v1774
    %v1776 = vpop.f32.mrf.mxu0
    %1777 = vmatprep.mubr.bf16.mxu0 0
    %1778 = vmatmul.mubr.bf16.gmra.mxu0 %v1009
    %v1779 = vpop.f32.mrf.mxu0
    %v1780 = vadd.f32 0.0, %v1779
    %v1781 = vpop.f32.mrf.mxu0
    %v1782 = vpop.f32.mrf.mxu0
    %v1783 = vadd.f32 0.0, %v1782
    %v1784 = vpop.f32.mrf.mxu0
    %1785 = vmatprep.mubr.bf16.mxu0 0
    %1786 = vmatmul.mubr.bf16.gmra.mxu0 %v1012
    %v1787 = vpop.f32.mrf.mxu0
    %v1788 = vadd.f32 0.0, %v1787
    %v1789 = vpop.f32.mrf.mxu0
    %v1790 = vpop.f32.mrf.mxu0
    %v1791 = vadd.f32 0.0, %v1790
    %v1792 = vpop.f32.mrf.mxu0
    %1793 = vmatprep.mubr.bf16.mxu0 0
    %1794 = vmatmul.mubr.bf16.gmra.mxu0 %v1015
    %v1795 = vpop.f32.mrf.mxu0
    %v1796 = vadd.f32 0.0, %v1795
    %v1797 = vpop.f32.mrf.mxu0
    %v1798 = vpop.f32.mrf.mxu0
    %v1799 = vadd.f32 0.0, %v1798
    %v1800 = vpop.f32.mrf.mxu0
    %1801 = vmatprep.mubr.bf16.mxu0 0
    %1802 = vmatmul.mubr.bf16.gmra.mxu0 %v1018
    %v1803 = vpop.f32.mrf.mxu0
    %v1804 = vadd.f32 0.0, %v1803
    %v1805 = vpop.f32.mrf.mxu0
    %v1806 = vpop.f32.mrf.mxu0
    %v1807 = vadd.f32 0.0, %v1806
    %v1808 = vpop.f32.mrf.mxu0
    %1809 = vmatprep.mubr.bf16.mxu0 0
    %1810 = vmatmul.mubr.bf16.gmra.mxu0 %v1021
    %v1811 = vpop.f32.mrf.mxu0
    %v1812 = vadd.f32 0.0, %v1811
    %v1813 = vpop.f32.mrf.mxu0
    %v1814 = vpop.f32.mrf.mxu0
    %v1815 = vadd.f32 0.0, %v1814
    %v1816 = vpop.f32.mrf.mxu0
    %1817 = vmatprep.mubr.bf16.mxu0 0
    %1818 = vmatmul.mubr.bf16.gmra.mxu0 %v1024
    %v1819 = vpop.f32.mrf.mxu0
    %v1820 = vadd.f32 0.0, %v1819
    %v1821 = vpop.f32.mrf.mxu0
    %v1822 = vpop.f32.mrf.mxu0
    %v1823 = vadd.f32 0.0, %v1822
    %v1824 = vpop.f32.mrf.mxu0
    %1825 = vmatprep.mubr.bf16.mxu0 0
    %1826 = vmatmul.mubr.bf16.gmra.mxu0 %v1027
    %v1827 = vpop.f32.mrf.mxu0
    %v1828 = vadd.f32 0.0, %v1827
    %v1829 = vpop.f32.mrf.mxu0
    %v1830 = vpop.f32.mrf.mxu0
    %v1831 = vpop.f32.mrf.mxu0
    %1832 = vdwg.mxu0
    %v1833 = vld [vmem:[#allocation4] sm:$0x1]
    %v1834 = vmax.f32 %v1071, %v1262
    %v1835 = vmax.f32 %v1074, %v1265
    %v1836 = vmax.f32 %v1079, %v1270
    %v1837 = vmax.f32 %v1082, %v1273
    %v1838 = vmax.f32 %v1087, %v1278
    %v1839 = vmax.f32 %v1090, %v1281
    %v1840 = vmax.f32 %v1095, %v1286
    %v1841 = vmax.f32 %v1098, %v1289
    %v1842 = vmax.f32 %v1103, %v1294
    %v1843 = vmax.f32 %v1106, %v1297
    %v1844 = vmax.f32 %v1111, %v1302
    %v1845 = vmax.f32 %v1114, %v1305
    %v1846 = vmax.f32 %v1119, %v1310
    %v1847 = vmax.f32 %v1122, %v1313
    %v1848 = vmax.f32 %v1127, %v1318
    %v1849 = vmax.f32 %v1130, %v1321
    %v1850 = vmax.f32 %v1135, %v1326
    %v1851 = vmax.f32 %v1138, %v1329
    %v1852 = vmax.f32 %v1143, %v1334
    %v1853 = vmax.f32 %v1146, %v1337
    %v1854 = vmax.f32 %v1151, %v1342
    %v1855 = vmax.f32 %v1154, %v1345
    %v1856 = vmax.f32 %v1159, %v1350
    %v1857 = vmax.f32 %v1162, %v1353
    %v1858 = vmax.f32 %v1167, %v1358
    %v1859 = vmax.f32 %v1170, %v1361
    %v1860 = vmax.f32 %v1175, %v1366
    %v1861 = vmax.f32 %v1178, %v1369
    %v1862 = vmax.f32 %v1183, %v1374
    %v1863 = vmax.f32 %v1186, %v1377
    %v1864 = vmax.f32 %v1191, %v1382
    %v1865 = vmax.f32 %v1194, %v1385
    %v1866 = vmax.f32 %v1199, %v1390
    %v1867 = vmax.f32 %v1202, %v1393
    %v1868 = vmax.f32 %v1207, %v1398
    %v1869 = vmax.f32 %v1210, %v1401
    %v1870 = vmax.f32 %v1215, %v1406
    %v1871 = vmax.f32 %v1218, %v1409
    %v1872 = vmax.f32 %v1223, %v1414
    %v1873 = vmax.f32 %v1226, %v1417
    %v1874 = vmax.f32 %v1231, %v1422
    %v1875 = vmax.f32 %v1234, %v1425
    %v1876 = vmax.f32 %v1239, %v1430
    %v1877 = vmax.f32 %v1242, %v1433
    %v1878 = vmax.f32 %v1247, %v1438
    %v1879 = vmax.f32 %v1250, %v1441
    %v1880 = vmax.f32 %v1255, %v1446
    %v1882 = vlaneseq
    %v1883 = vshrl.u32 %v1882, 7
    %v1884 = vsub.s32 0, %v1883
    %v1885 = vrot.slane %v1833, %v1884
    %v1887 = vadd.f32 %v1834, %v1885
    %v1888 = vadd.f32 %v1835, %v1885
    %v1889 = vadd.f32 %v1836, %v1885
    %v1890 = vadd.f32 %v1837, %v1885
    %v1891 = vadd.f32 %v1838, %v1885
    %v1892 = vadd.f32 %v1839, %v1885
    %v1893 = vadd.f32 %v1840, %v1885
    %v1894 = vadd.f32 %v1841, %v1885
    %v1895 = vadd.f32 %v1842, %v1885
    %v1896 = vadd.f32 %v1843, %v1885
    %v1897 = vadd.f32 %v1844, %v1885
    %v1898 = vadd.f32 %v1845, %v1885
    %v1899 = vadd.f32 %v1846, %v1885
    %v1900 = vadd.f32 %v1847, %v1885
    %v1901 = vadd.f32 %v1848, %v1885
    %v1902 = vadd.f32 %v1849, %v1885
    %v1903 = vadd.f32 %v1850, %v1885
    %v1904 = vadd.f32 %v1851, %v1885
    %v1905 = vadd.f32 %v1852, %v1885
    %v1906 = vadd.f32 %v1853, %v1885
    %v1907 = vadd.f32 %v1854, %v1885
    %v1908 = vadd.f32 %v1855, %v1885
    %v1909 = vadd.f32 %v1856, %v1885
    %v1910 = vadd.f32 %v1857, %v1885
    %v1911 = vadd.f32 %v1858, %v1885
    %v1912 = vadd.f32 %v1859, %v1885
    %v1913 = vadd.f32 %v1860, %v1885
    %v1914 = vadd.f32 %v1861, %v1885
    %v1915 = vadd.f32 %v1862, %v1885
    %v1916 = vadd.f32 %v1863, %v1885
    %v1917 = vadd.f32 %v1864, %v1885
    %v1918 = vadd.f32 %v1865, %v1885
    %v1919 = vadd.f32 %v1866, %v1885
    %v1920 = vadd.f32 %v1867, %v1885
    %v1921 = vadd.f32 %v1868, %v1885
    %v1922 = vadd.f32 %v1869, %v1885
    %v1923 = vadd.f32 %v1870, %v1885
    %v1924 = vadd.f32 %v1871, %v1885
    %v1925 = vadd.f32 %v1872, %v1885
    %v1926 = vadd.f32 %v1873, %v1885
    %v1927 = vadd.f32 %v1874, %v1885
    %v1928 = vadd.f32 %v1875, %v1885
    %v1929 = vadd.f32 %v1876, %v1885
    %v1930 = vadd.f32 %v1877, %v1885
    %v1931 = vadd.f32 %v1878, %v1885
    %v1932 = vadd.f32 %v1879, %v1885
    %v1933 = vadd.f32 %v1880, %v1885
    %v1934 = vmax.f32 %v1887, 0.0
    %v1935 = vmax.f32 %v1888, 0.0
    %v1936 = vmax.f32 %v1889, 0.0
    %v1937 = vmax.f32 %v1890, 0.0
    %v1938 = vmax.f32 %v1891, 0.0
    %v1939 = vmax.f32 %v1892, 0.0
    %v1940 = vmax.f32 %v1893, 0.0
    %v1941 = vmax.f32 %v1894, 0.0
    %v1942 = vmax.f32 %v1895, 0.0
    %v1943 = vmax.f32 %v1896, 0.0
    %v1944 = vmax.f32 %v1897, 0.0
    %v1945 = vmax.f32 %v1898, 0.0
    %v1946 = vmax.f32 %v1899, 0.0
    %v1947 = vmax.f32 %v1900, 0.0
    %v1948 = vmax.f32 %v1901, 0.0
    %v1949 = vmax.f32 %v1902, 0.0
    %v1950 = vmax.f32 %v1903, 0.0
    %v1951 = vmax.f32 %v1904, 0.0
    %v1952 = vmax.f32 %v1905, 0.0
    %v1953 = vmax.f32 %v1906, 0.0
    %v1954 = vmax.f32 %v1907, 0.0
    %v1955 = vmax.f32 %v1908, 0.0
    %v1956 = vmax.f32 %v1909, 0.0
    %v1957 = vmax.f32 %v1910, 0.0
    %v1958 = vmax.f32 %v1911, 0.0
    %v1959 = vmax.f32 %v1912, 0.0
    %v1960 = vmax.f32 %v1913, 0.0
    %v1961 = vmax.f32 %v1914, 0.0
    %v1962 = vmax.f32 %v1915, 0.0
    %v1963 = vmax.f32 %v1916, 0.0
    %v1964 = vmax.f32 %v1917, 0.0
    %v1965 = vmax.f32 %v1918, 0.0
    %v1966 = vmax.f32 %v1919, 0.0
    %v1967 = vmax.f32 %v1920, 0.0
    %v1968 = vmax.f32 %v1921, 0.0
    %v1969 = vmax.f32 %v1922, 0.0
    %v1970 = vmax.f32 %v1923, 0.0
    %v1971 = vmax.f32 %v1924, 0.0
    %v1972 = vmax.f32 %v1925, 0.0
    %v1973 = vmax.f32 %v1926, 0.0
    %v1974 = vmax.f32 %v1927, 0.0
    %v1975 = vmax.f32 %v1928, 0.0
    %v1976 = vmax.f32 %v1929, 0.0
    %v1977 = vmax.f32 %v1930, 0.0
    %v1978 = vmax.f32 %v1931, 0.0
    %v1979 = vmax.f32 %v1932, 0.0
    %v1980 = vmax.f32 %v1933, 0.0
    %v1981 = vmax.f32 %v1453, %v1644
    %v1982 = vmax.f32 %v1456, %v1647
    %v1983 = vmax.f32 %v1461, %v1652
    %v1984 = vmax.f32 %v1464, %v1655
    %v1985 = vmax.f32 %v1469, %v1660
    %v1986 = vmax.f32 %v1472, %v1663
    %v1987 = vmax.f32 %v1477, %v1668
    %v1988 = vmax.f32 %v1480, %v1671
    %v1989 = vmax.f32 %v1485, %v1676
    %v1990 = vmax.f32 %v1488, %v1679
    %v1991 = vmax.f32 %v1493, %v1684
    %v1992 = vmax.f32 %v1496, %v1687
    %v1993 = vmax.f32 %v1501, %v1692
    %v1994 = vmax.f32 %v1504, %v1695
    %v1995 = vmax.f32 %v1509, %v1700
    %v1996 = vmax.f32 %v1512, %v1703
    %v1997 = vmax.f32 %v1517, %v1708
    %v1998 = vmax.f32 %v1520, %v1711
    %v1999 = vmax.f32 %v1525, %v1716
    %v2000 = vmax.f32 %v1528, %v1719
    %v2001 = vmax.f32 %v1533, %v1724
    %v2002 = vmax.f32 %v1536, %v1727
    %v2003 = vmax.f32 %v1541, %v1732
    %v2004 = vmax.f32 %v1544, %v1735
    %v2005 = vmax.f32 %v1549, %v1740
    %v2006 = vmax.f32 %v1552, %v1743
    %v2007 = vmax.f32 %v1557, %v1748
    %v2008 = vmax.f32 %v1560, %v1751
    %v2009 = vmax.f32 %v1565, %v1756
    %v2010 = vmax.f32 %v1568, %v1759
    %v2011 = vmax.f32 %v1573, %v1764
    %v2012 = vmax.f32 %v1576, %v1767
    %v2013 = vmax.f32 %v1581, %v1772
    %v2014 = vmax.f32 %v1584, %v1775
    %v2015 = vmax.f32 %v1589, %v1780
    %v2016 = vmax.f32 %v1592, %v1783
    %v2017 = vmax.f32 %v1597, %v1788
    %v2018 = vmax.f32 %v1600, %v1791
    %v2019 = vmax.f32 %v1605, %v1796
    %v2020 = vmax.f32 %v1608, %v1799
    %v2021 = vmax.f32 %v1613, %v1804
    %v2022 = vmax.f32 %v1616, %v1807
    %v2023 = vmax.f32 %v1621, %v1812
    %v2024 = vmax.f32 %v1624, %v1815
    %v2025 = vmax.f32 %v1629, %v1820
    %v2026 = vmax.f32 %v1632, %v1823
    %v2027 = vmax.f32 %v1637, %v1828
    %v2028 = vadd.f32 %v1981, %v1885
    %v2029 = vadd.f32 %v1982, %v1885
    %v2030 = vadd.f32 %v1983, %v1885
    %v2031 = vadd.f32 %v1984, %v1885
    %v2032 = vadd.f32 %v1985, %v1885
    %v2033 = vadd.f32 %v1986, %v1885
    %v2034 = vadd.f32 %v1987, %v1885
    %v2035 = vadd.f32 %v1988, %v1885
    %v2036 = vadd.f32 %v1989, %v1885
    %v2037 = vadd.f32 %v1990, %v1885
    %v2038 = vadd.f32 %v1991, %v1885
    %v2039 = vadd.f32 %v1992, %v1885
    %v2040 = vadd.f32 %v1993, %v1885
    %v2041 = vadd.f32 %v1994, %v1885
    %v2042 = vadd.f32 %v1995, %v1885
    %v2043 = vadd.f32 %v1996, %v1885
    %v2044 = vadd.f32 %v1997, %v1885
    %v2045 = vadd.f32 %v1998, %v1885
    %v2046 = vadd.f32 %v1999, %v1885
    %v2047 = vadd.f32 %v2000, %v1885
    %v2048 = vadd.f32 %v2001, %v1885
    %v2049 = vadd.f32 %v2002, %v1885
    %v2050 = vadd.f32 %v2003, %v1885
    %v2051 = vadd.f32 %v2004, %v1885
    %v2052 = vadd.f32 %v2005, %v1885
    %v2053 = vadd.f32 %v2006, %v1885
    %v2054 = vadd.f32 %v2007, %v1885
    %v2055 = vadd.f32 %v2008, %v1885
    %v2056 = vadd.f32 %v2009, %v1885
    %v2057 = vadd.f32 %v2010, %v1885
    %v2058 = vadd.f32 %v2011, %v1885
    %v2059 = vadd.f32 %v2012, %v1885
    %v2060 = vadd.f32 %v2013, %v1885
    %v2061 = vadd.f32 %v2014, %v1885
    %v2062 = vadd.f32 %v2015, %v1885
    %v2063 = vadd.f32 %v2016, %v1885
    %v2064 = vadd.f32 %v2017, %v1885
    %v2065 = vadd.f32 %v2018, %v1885
    %v2066 = vadd.f32 %v2019, %v1885
    %v2067 = vadd.f32 %v2020, %v1885
    %v2068 = vadd.f32 %v2021, %v1885
    %v2069 = vadd.f32 %v2022, %v1885
    %v2070 = vadd.f32 %v2023, %v1885
    %v2071 = vadd.f32 %v2024, %v1885
    %v2072 = vadd.f32 %v2025, %v1885
    %v2073 = vadd.f32 %v2026, %v1885
    %v2074 = vadd.f32 %v2027, %v1885
    %v2075 = vmax.f32 %v2028, 0.0
    %v2076 = vmax.f32 %v2029, 0.0
    %v2077 = vmax.f32 %v2030, 0.0
    %v2078 = vmax.f32 %v2031, 0.0
    %v2079 = vmax.f32 %v2032, 0.0
    %v2080 = vmax.f32 %v2033, 0.0
    %v2081 = vmax.f32 %v2034, 0.0
    %v2082 = vmax.f32 %v2035, 0.0
    %v2083 = vmax.f32 %v2036, 0.0
    %v2084 = vmax.f32 %v2037, 0.0
    %v2085 = vmax.f32 %v2038, 0.0
    %v2086 = vmax.f32 %v2039, 0.0
    %v2087 = vmax.f32 %v2040, 0.0
    %v2088 = vmax.f32 %v2041, 0.0
    %v2089 = vmax.f32 %v2042, 0.0
    %v2090 = vmax.f32 %v2043, 0.0
    %v2091 = vmax.f32 %v2044, 0.0
    %v2092 = vmax.f32 %v2045, 0.0
    %v2093 = vmax.f32 %v2046, 0.0
    %v2094 = vmax.f32 %v2047, 0.0
    %v2095 = vmax.f32 %v2048, 0.0
    %v2096 = vmax.f32 %v2049, 0.0
    %v2097 = vmax.f32 %v2050, 0.0
    %v2098 = vmax.f32 %v2051, 0.0
    %v2099 = vmax.f32 %v2052, 0.0
    %v2100 = vmax.f32 %v2053, 0.0
    %v2101 = vmax.f32 %v2054, 0.0
    %v2102 = vmax.f32 %v2055, 0.0
    %v2103 = vmax.f32 %v2056, 0.0
    %v2104 = vmax.f32 %v2057, 0.0
    %v2105 = vmax.f32 %v2058, 0.0
    %v2106 = vmax.f32 %v2059, 0.0
    %v2107 = vmax.f32 %v2060, 0.0
    %v2108 = vmax.f32 %v2061, 0.0
    %v2109 = vmax.f32 %v2062, 0.0
    %v2110 = vmax.f32 %v2063, 0.0
    %v2111 = vmax.f32 %v2064, 0.0
    %v2112 = vmax.f32 %v2065, 0.0
    %v2113 = vmax.f32 %v2066, 0.0
    %v2114 = vmax.f32 %v2067, 0.0
    %v2115 = vmax.f32 %v2068, 0.0
    %v2116 = vmax.f32 %v2069, 0.0
    %v2117 = vmax.f32 %v2070, 0.0
    %v2118 = vmax.f32 %v2071, 0.0
    %v2119 = vmax.f32 %v2072, 0.0
    %v2120 = vmax.f32 %v2073, 0.0
    %v2121 = vmax.f32 %v2074, 0.0
    %vm2169 = vcmask 1046528
    %v2170 = vrot.slane %v1934, 1
    %v2171 = vrot.slane %v1935, 1
    %v2172 = vsel %vm2169, %v2170, %v2171
    %v2173 = vrot.slane %v1936, 1
    %v2174 = vsel %vm2169, %v2171, %v2173
    %v2175 = vrot.slane %v1937, 1
    %v2176 = vsel %vm2169, %v2173, %v2175
    %v2177 = vrot.slane %v1938, 1
    %v2178 = vsel %vm2169, %v2175, %v2177
    %v2179 = vrot.slane %v1939, 1
    %v2180 = vsel %vm2169, %v2177, %v2179
    %v2181 = vrot.slane %v1940, 1
    %v2182 = vsel %vm2169, %v2179, %v2181
    %v2183 = vrot.slane %v1941, 1
    %v2184 = vsel %vm2169, %v2181, %v2183
    %v2185 = vrot.slane %v1942, 1
    %v2186 = vsel %vm2169, %v2183, %v2185
    %v2187 = vrot.slane %v1943, 1
    %v2188 = vsel %vm2169, %v2185, %v2187
    %v2189 = vrot.slane %v1944, 1
    %v2190 = vsel %vm2169, %v2187, %v2189
    %v2191 = vrot.slane %v1945, 1
    %v2192 = vsel %vm2169, %v2189, %v2191
    %v2193 = vrot.slane %v1946, 1
    %v2194 = vsel %vm2169, %v2191, %v2193
    %v2195 = vrot.slane %v1947, 1
    %v2196 = vsel %vm2169, %v2193, %v2195
    %v2197 = vrot.slane %v1948, 1
    %v2198 = vsel %vm2169, %v2195, %v2197
    %v2199 = vrot.slane %v1949, 1
    %v2200 = vsel %vm2169, %v2197, %v2199
    %v2201 = vrot.slane %v1950, 1
    %v2202 = vsel %vm2169, %v2199, %v2201
    %v2203 = vrot.slane %v1951, 1
    %v2204 = vsel %vm2169, %v2201, %v2203
    %v2205 = vrot.slane %v1952, 1
    %v2206 = vsel %vm2169, %v2203, %v2205
    %v2207 = vrot.slane %v1953, 1
    %v2208 = vsel %vm2169, %v2205, %v2207
    %v2209 = vrot.slane %v1954, 1
    %v2210 = vsel %vm2169, %v2207, %v2209
    %v2211 = vrot.slane %v1955, 1
    %v2212 = vsel %vm2169, %v2209, %v2211
    %v2213 = vrot.slane %v1956, 1
    %v2214 = vsel %vm2169, %v2211, %v2213
    %v2215 = vrot.slane %v1957, 1
    %v2216 = vsel %vm2169, %v2213, %v2215
    %v2217 = vrot.slane %v1958, 1
    %v2218 = vsel %vm2169, %v2215, %v2217
    %v2219 = vrot.slane %v1959, 1
    %v2220 = vsel %vm2169, %v2217, %v2219
    %v2221 = vrot.slane %v1960, 1
    %v2222 = vsel %vm2169, %v2219, %v2221
    %v2223 = vrot.slane %v1961, 1
    %v2224 = vsel %vm2169, %v2221, %v2223
    %v2225 = vrot.slane %v1962, 1
    %v2226 = vsel %vm2169, %v2223, %v2225
    %v2227 = vrot.slane %v1963, 1
    %v2228 = vsel %vm2169, %v2225, %v2227
    %v2229 = vrot.slane %v1964, 1
    %v2230 = vsel %vm2169, %v2227, %v2229
    %v2231 = vrot.slane %v1965, 1
    %v2232 = vsel %vm2169, %v2229, %v2231
    %v2233 = vrot.slane %v1966, 1
    %v2234 = vsel %vm2169, %v2231, %v2233
    %v2235 = vrot.slane %v1967, 1
    %v2236 = vsel %vm2169, %v2233, %v2235
    %v2237 = vrot.slane %v1968, 1
    %v2238 = vsel %vm2169, %v2235, %v2237
    %v2239 = vrot.slane %v1969, 1
    %v2240 = vsel %vm2169, %v2237, %v2239
    %v2241 = vrot.slane %v1970, 1
    %v2242 = vsel %vm2169, %v2239, %v2241
    %v2243 = vrot.slane %v1971, 1
    %v2244 = vsel %vm2169, %v2241, %v2243
    %v2245 = vrot.slane %v1972, 1
    %v2246 = vsel %vm2169, %v2243, %v2245
    %v2247 = vrot.slane %v1973, 1
    %v2248 = vsel %vm2169, %v2245, %v2247
    %v2249 = vrot.slane %v1974, 1
    %v2250 = vsel %vm2169, %v2247, %v2249
    %v2251 = vrot.slane %v1975, 1
    %v2252 = vsel %vm2169, %v2249, %v2251
    %v2253 = vrot.slane %v1976, 1
    %v2254 = vsel %vm2169, %v2251, %v2253
    %v2255 = vrot.slane %v1977, 1
    %v2256 = vsel %vm2169, %v2253, %v2255
    %v2257 = vrot.slane %v1978, 1
    %v2258 = vsel %vm2169, %v2255, %v2257
    %v2259 = vrot.slane %v1979, 1
    %v2260 = vsel %vm2169, %v2257, %v2259
    %v2261 = vrot.slane %v1980, 1
    %v2262 = vsel %vm2169, %v2259, %v2261
    %2263 = vrot.lane.b32.xlu0 %v2172, 32
    %v2264 = vpop.permute.xlu0 %2263
    %2265 = vrot.lane.b32.xlu0 %v2174, 32
    %v2266 = vpop.permute.xlu0 %2265
    %2267 = vrot.lane.b32.xlu0 %v2176, 32
    %v2268 = vpop.permute.xlu0 %2267
    %2269 = vrot.lane.b32.xlu0 %v2178, 32
    %v2270 = vpop.permute.xlu0 %2269
    %2271 = vrot.lane.b32.xlu0 %v2180, 32
    %v2272 = vpop.permute.xlu0 %2271
    %2273 = vrot.lane.b32.xlu0 %v2182, 32
    %v2274 = vpop.permute.xlu0 %2273
    %2275 = vrot.lane.b32.xlu0 %v2184, 32
    %v2276 = vpop.permute.xlu0 %2275
    %2277 = vrot.lane.b32.xlu0 %v2186, 32
    %v2278 = vpop.permute.xlu0 %2277
    %2279 = vrot.lane.b32.xlu0 %v2188, 32
    %v2280 = vpop.permute.xlu0 %2279
    %2281 = vrot.lane.b32.xlu0 %v2190, 32
    %v2282 = vpop.permute.xlu0 %2281
    %2283 = vrot.lane.b32.xlu0 %v2192, 32
    %v2284 = vpop.permute.xlu0 %2283
    %2285 = vrot.lane.b32.xlu0 %v2194, 32
    %v2286 = vpop.permute.xlu0 %2285
    %2287 = vrot.lane.b32.xlu0 %v2196, 32
    %v2288 = vpop.permute.xlu0 %2287
    %2289 = vrot.lane.b32.xlu0 %v2198, 32
    %v2290 = vpop.permute.xlu0 %2289
    %2291 = vrot.lane.b32.xlu0 %v2200, 32
    %v2292 = vpop.permute.xlu0 %2291
    %2293 = vrot.lane.b32.xlu0 %v2202, 32
    %v2294 = vpop.permute.xlu0 %2293
    %2295 = vrot.lane.b32.xlu0 %v2204, 32
    %v2296 = vpop.permute.xlu0 %2295
    %2297 = vrot.lane.b32.xlu0 %v2206, 32
    %v2298 = vpop.permute.xlu0 %2297
    %2299 = vrot.lane.b32.xlu0 %v2208, 32
    %v2300 = vpop.permute.xlu0 %2299
    %2301 = vrot.lane.b32.xlu0 %v2210, 32
    %v2302 = vpop.permute.xlu0 %2301
    %2303 = vrot.lane.b32.xlu0 %v2212, 32
    %v2304 = vpop.permute.xlu0 %2303
    %2305 = vrot.lane.b32.xlu0 %v2214, 32
    %v2306 = vpop.permute.xlu0 %2305
    %2307 = vrot.lane.b32.xlu0 %v2216, 32
    %v2308 = vpop.permute.xlu0 %2307
    %2309 = vrot.lane.b32.xlu0 %v2218, 32
    %v2310 = vpop.permute.xlu0 %2309
    %2311 = vrot.lane.b32.xlu0 %v2220, 32
    %v2312 = vpop.permute.xlu0 %2311
    %2313 = vrot.lane.b32.xlu0 %v2222, 32
    %v2314 = vpop.permute.xlu0 %2313
    %2315 = vrot.lane.b32.xlu0 %v2224, 32
    %v2316 = vpop.permute.xlu0 %2315
    %2317 = vrot.lane.b32.xlu0 %v2226, 32
    %v2318 = vpop.permute.xlu0 %2317
    %2319 = vrot.lane.b32.xlu0 %v2228, 32
    %v2320 = vpop.permute.xlu0 %2319
    %2321 = vrot.lane.b32.xlu0 %v2230, 32
    %v2322 = vpop.permute.xlu0 %2321
    %2323 = vrot.lane.b32.xlu0 %v2232, 32
    %v2324 = vpop.permute.xlu0 %2323
    %2325 = vrot.lane.b32.xlu0 %v2234, 32
    %v2326 = vpop.permute.xlu0 %2325
    %2327 = vrot.lane.b32.xlu0 %v2236, 32
    %v2328 = vpop.permute.xlu0 %2327
    %2329 = vrot.lane.b32.xlu0 %v2238, 32
    %v2330 = vpop.permute.xlu0 %2329
    %2331 = vrot.lane.b32.xlu0 %v2240, 32
    %v2332 = vpop.permute.xlu0 %2331
    %2333 = vrot.lane.b32.xlu0 %v2242, 32
    %v2334 = vpop.permute.xlu0 %2333
    %2335 = vrot.lane.b32.xlu0 %v2244, 32
    %v2336 = vpop.permute.xlu0 %2335
    %2337 = vrot.lane.b32.xlu0 %v2246, 32
    %v2338 = vpop.permute.xlu0 %2337
    %2339 = vrot.lane.b32.xlu0 %v2248, 32
    %v2340 = vpop.permute.xlu0 %2339
    %2341 = vrot.lane.b32.xlu0 %v2250, 32
    %v2342 = vpop.permute.xlu0 %2341
    %2343 = vrot.lane.b32.xlu0 %v2252, 32
    %v2344 = vpop.permute.xlu0 %2343
    %2345 = vrot.lane.b32.xlu0 %v2254, 32
    %v2346 = vpop.permute.xlu0 %2345
    %2347 = vrot.lane.b32.xlu0 %v2256, 32
    %v2348 = vpop.permute.xlu0 %2347
    %2349 = vrot.lane.b32.xlu0 %v2258, 32
    %v2350 = vpop.permute.xlu0 %2349
    %2351 = vrot.lane.b32.xlu0 %v2260, 32
    %v2352 = vpop.permute.xlu0 %2351
    %2353 = vrot.lane.b32.xlu0 %v2262, 32
    %v2354 = vpop.permute.xlu0 %2353
    %vm2401 = vcmask 1045504
    %v2402 = vrot.slane %v1934, 2
    %v2403 = vrot.slane %v1935, 2
    %v2404 = vsel %vm2401, %v2402, %v2403
    %v2405 = vrot.slane %v1936, 2
    %v2406 = vsel %vm2401, %v2403, %v2405
    %v2407 = vrot.slane %v1937, 2
    %v2408 = vsel %vm2401, %v2405, %v2407
    %v2409 = vrot.slane %v1938, 2
    %v2410 = vsel %vm2401, %v2407, %v2409
    %v2411 = vrot.slane %v1939, 2
    %v2412 = vsel %vm2401, %v2409, %v2411
    %v2413 = vrot.slane %v1940, 2
    %v2414 = vsel %vm2401, %v2411, %v2413
    %v2415 = vrot.slane %v1941, 2
    %v2416 = vsel %vm2401, %v2413, %v2415
    %v2417 = vrot.slane %v1942, 2
    %v2418 = vsel %vm2401, %v2415, %v2417
    %v2419 = vrot.slane %v1943, 2
    %v2420 = vsel %vm2401, %v2417, %v2419
    %v2421 = vrot.slane %v1944, 2
    %v2422 = vsel %vm2401, %v2419, %v2421
    %v2423 = vrot.slane %v1945, 2
    %v2424 = vsel %vm2401, %v2421, %v2423
    %v2425 = vrot.slane %v1946, 2
    %v2426 = vsel %vm2401, %v2423, %v2425
    %v2427 = vrot.slane %v1947, 2
    %v2428 = vsel %vm2401, %v2425, %v2427
    %v2429 = vrot.slane %v1948, 2
    %v2430 = vsel %vm2401, %v2427, %v2429
    %v2431 = vrot.slane %v1949, 2
    %v2432 = vsel %vm2401, %v2429, %v2431
    %v2433 = vrot.slane %v1950, 2
    %v2434 = vsel %vm2401, %v2431, %v2433
    %v2435 = vrot.slane %v1951, 2
    %v2436 = vsel %vm2401, %v2433, %v2435
    %v2437 = vrot.slane %v1952, 2
    %v2438 = vsel %vm2401, %v2435, %v2437
    %v2439 = vrot.slane %v1953, 2
    %v2440 = vsel %vm2401, %v2437, %v2439
    %v2441 = vrot.slane %v1954, 2
    %v2442 = vsel %vm2401, %v2439, %v2441
    %v2443 = vrot.slane %v1955, 2
    %v2444 = vsel %vm2401, %v2441, %v2443
    %v2445 = vrot.slane %v1956, 2
    %v2446 = vsel %vm2401, %v2443, %v2445
    %v2447 = vrot.slane %v1957, 2
    %v2448 = vsel %vm2401, %v2445, %v2447
    %v2449 = vrot.slane %v1958, 2
    %v2450 = vsel %vm2401, %v2447, %v2449
    %v2451 = vrot.slane %v1959, 2
    %v2452 = vsel %vm2401, %v2449, %v2451
    %v2453 = vrot.slane %v1960, 2
    %v2454 = vsel %vm2401, %v2451, %v2453
    %v2455 = vrot.slane %v1961, 2
    %v2456 = vsel %vm2401, %v2453, %v2455
    %v2457 = vrot.slane %v1962, 2
    %v2458 = vsel %vm2401, %v2455, %v2457
    %v2459 = vrot.slane %v1963, 2
    %v2460 = vsel %vm2401, %v2457, %v2459
    %v2461 = vrot.slane %v1964, 2
    %v2462 = vsel %vm2401, %v2459, %v2461
    %v2463 = vrot.slane %v1965, 2
    %v2464 = vsel %vm2401, %v2461, %v2463
    %v2465 = vrot.slane %v1966, 2
    %v2466 = vsel %vm2401, %v2463, %v2465
    %v2467 = vrot.slane %v1967, 2
    %v2468 = vsel %vm2401, %v2465, %v2467
    %v2469 = vrot.slane %v1968, 2
    %v2470 = vsel %vm2401, %v2467, %v2469
    %v2471 = vrot.slane %v1969, 2
    %v2472 = vsel %vm2401, %v2469, %v2471
    %v2473 = vrot.slane %v1970, 2
    %v2474 = vsel %vm2401, %v2471, %v2473
    %v2475 = vrot.slane %v1971, 2
    %v2476 = vsel %vm2401, %v2473, %v2475
    %v2477 = vrot.slane %v1972, 2
    %v2478 = vsel %vm2401, %v2475, %v2477
    %v2479 = vrot.slane %v1973, 2
    %v2480 = vsel %vm2401, %v2477, %v2479
    %v2481 = vrot.slane %v1974, 2
    %v2482 = vsel %vm2401, %v2479, %v2481
    %v2483 = vrot.slane %v1975, 2
    %v2484 = vsel %vm2401, %v2481, %v2483
    %v2485 = vrot.slane %v1976, 2
    %v2486 = vsel %vm2401, %v2483, %v2485
    %v2487 = vrot.slane %v1977, 2
    %v2488 = vsel %vm2401, %v2485, %v2487
    %v2489 = vrot.slane %v1978, 2
    %v2490 = vsel %vm2401, %v2487, %v2489
    %v2491 = vrot.slane %v1979, 2
    %v2492 = vsel %vm2401, %v2489, %v2491
    %v2493 = vrot.slane %v1980, 2
    %v2494 = vsel %vm2401, %v2491, %v2493
    %2495 = vrot.lane.b32.xlu0 %v2404, 64
    %v2496 = vpop.permute.xlu0 %2495
    %2497 = vrot.lane.b32.xlu0 %v2406, 64
    %v2498 = vpop.permute.xlu0 %2497
    %2499 = vrot.lane.b32.xlu0 %v2408, 64
    %v2500 = vpop.permute.xlu0 %2499
    %2501 = vrot.lane.b32.xlu0 %v2410, 64
    %v2502 = vpop.permute.xlu0 %2501
    %2503 = vrot.lane.b32.xlu0 %v2412, 64
    %v2504 = vpop.permute.xlu0 %2503
    %2505 = vrot.lane.b32.xlu0 %v2414, 64
    %v2506 = vpop.permute.xlu0 %2505
    %2507 = vrot.lane.b32.xlu0 %v2416, 64
    %v2508 = vpop.permute.xlu0 %2507
    %2509 = vrot.lane.b32.xlu0 %v2418, 64
    %v2510 = vpop.permute.xlu0 %2509
    %2511 = vrot.lane.b32.xlu0 %v2420, 64
    %v2512 = vpop.permute.xlu0 %2511
    %2513 = vrot.lane.b32.xlu0 %v2422, 64
    %v2514 = vpop.permute.xlu0 %2513
    %2515 = vrot.lane.b32.xlu0 %v2424, 64
    %v2516 = vpop.permute.xlu0 %2515
    %2517 = vrot.lane.b32.xlu0 %v2426, 64
    %v2518 = vpop.permute.xlu0 %2517
    %2519 = vrot.lane.b32.xlu0 %v2428, 64
    %v2520 = vpop.permute.xlu0 %2519
    %2521 = vrot.lane.b32.xlu0 %v2430, 64
    %v2522 = vpop.permute.xlu0 %2521
    %2523 = vrot.lane.b32.xlu0 %v2432, 64
    %v2524 = vpop.permute.xlu0 %2523
    %2525 = vrot.lane.b32.xlu0 %v2434, 64
    %v2526 = vpop.permute.xlu0 %2525
    %2527 = vrot.lane.b32.xlu0 %v2436, 64
    %v2528 = vpop.permute.xlu0 %2527
    %2529 = vrot.lane.b32.xlu0 %v2438, 64
    %v2530 = vpop.permute.xlu0 %2529
    %2531 = vrot.lane.b32.xlu0 %v2440, 64
    %v2532 = vpop.permute.xlu0 %2531
    %2533 = vrot.lane.b32.xlu0 %v2442, 64
    %v2534 = vpop.permute.xlu0 %2533
    %2535 = vrot.lane.b32.xlu0 %v2444, 64
    %v2536 = vpop.permute.xlu0 %2535
    %2537 = vrot.lane.b32.xlu0 %v2446, 64
    %v2538 = vpop.permute.xlu0 %2537
    %2539 = vrot.lane.b32.xlu0 %v2448, 64
    %v2540 = vpop.permute.xlu0 %2539
    %2541 = vrot.lane.b32.xlu0 %v2450, 64
    %v2542 = vpop.permute.xlu0 %2541
    %2543 = vrot.lane.b32.xlu0 %v2452, 64
    %v2544 = vpop.permute.xlu0 %2543
    %2545 = vrot.lane.b32.xlu0 %v2454, 64
    %v2546 = vpop.permute.xlu0 %2545
    %2547 = vrot.lane.b32.xlu0 %v2456, 64
    %v2548 = vpop.permute.xlu0 %2547
    %2549 = vrot.lane.b32.xlu0 %v2458, 64
    %v2550 = vpop.permute.xlu0 %2549
    %2551 = vrot.lane.b32.xlu0 %v2460, 64
    %v2552 = vpop.permute.xlu0 %2551
    %2553 = vrot.lane.b32.xlu0 %v2462, 64
    %v2554 = vpop.permute.xlu0 %2553
    %2555 = vrot.lane.b32.xlu0 %v2464, 64
    %v2556 = vpop.permute.xlu0 %2555
    %2557 = vrot.lane.b32.xlu0 %v2466, 64
    %v2558 = vpop.permute.xlu0 %2557
    %2559 = vrot.lane.b32.xlu0 %v2468, 64
    %v2560 = vpop.permute.xlu0 %2559
    %2561 = vrot.lane.b32.xlu0 %v2470, 64
    %v2562 = vpop.permute.xlu0 %2561
    %2563 = vrot.lane.b32.xlu0 %v2472, 64
    %v2564 = vpop.permute.xlu0 %2563
    %2565 = vrot.lane.b32.xlu0 %v2474, 64
    %v2566 = vpop.permute.xlu0 %2565
    %2567 = vrot.lane.b32.xlu0 %v2476, 64
    %v2568 = vpop.permute.xlu0 %2567
    %2569 = vrot.lane.b32.xlu0 %v2478, 64
    %v2570 = vpop.permute.xlu0 %2569
    %2571 = vrot.lane.b32.xlu0 %v2480, 64
    %v2572 = vpop.permute.xlu0 %2571
    %2573 = vrot.lane.b32.xlu0 %v2482, 64
    %v2574 = vpop.permute.xlu0 %2573
    %2575 = vrot.lane.b32.xlu0 %v2484, 64
    %v2576 = vpop.permute.xlu0 %2575
    %2577 = vrot.lane.b32.xlu0 %v2486, 64
    %v2578 = vpop.permute.xlu0 %2577
    %2579 = vrot.lane.b32.xlu0 %v2488, 64
    %v2580 = vpop.permute.xlu0 %2579
    %2581 = vrot.lane.b32.xlu0 %v2490, 64
    %v2582 = vpop.permute.xlu0 %2581
    %2583 = vrot.lane.b32.xlu0 %v2492, 64
    %v2584 = vpop.permute.xlu0 %2583
    %2585 = vrot.lane.b32.xlu0 %v2494, 64
    %v2586 = vpop.permute.xlu0 %2585
    %v2633 = vrot.slane %v1934, 3
    %v2634 = vrot.slane %v1935, 3
    %v2635 = vsel %vm1030, %v2633, %v2634
    %v2636 = vrot.slane %v1936, 3
    %v2637 = vsel %vm1030, %v2634, %v2636
    %v2638 = vrot.slane %v1937, 3
    %v2639 = vsel %vm1030, %v2636, %v2638
    %v2640 = vrot.slane %v1938, 3
    %v2641 = vsel %vm1030, %v2638, %v2640
    %v2642 = vrot.slane %v1939, 3
    %v2643 = vsel %vm1030, %v2640, %v2642
    %v2644 = vrot.slane %v1940, 3
    %v2645 = vsel %vm1030, %v2642, %v2644
    %v2646 = vrot.slane %v1941, 3
    %v2647 = vsel %vm1030, %v2644, %v2646
    %v2648 = vrot.slane %v1942, 3
    %v2649 = vsel %vm1030, %v2646, %v2648
    %v2650 = vrot.slane %v1943, 3
    %v2651 = vsel %vm1030, %v2648, %v2650
    %v2652 = vrot.slane %v1944, 3
    %v2653 = vsel %vm1030, %v2650, %v2652
    %v2654 = vrot.slane %v1945, 3
    %v2655 = vsel %vm1030, %v2652, %v2654
    %v2656 = vrot.slane %v1946, 3
    %v2657 = vsel %vm1030, %v2654, %v2656
    %v2658 = vrot.slane %v1947, 3
    %v2659 = vsel %vm1030, %v2656, %v2658
    %v2660 = vrot.slane %v1948, 3
    %v2661 = vsel %vm1030, %v2658, %v2660
    %v2662 = vrot.slane %v1949, 3
    %v2663 = vsel %vm1030, %v2660, %v2662
    %v2664 = vrot.slane %v1950, 3
    %v2665 = vsel %vm1030, %v2662, %v2664
    %v2666 = vrot.slane %v1951, 3
    %v2667 = vsel %vm1030, %v2664, %v2666
    %v2668 = vrot.slane %v1952, 3
    %v2669 = vsel %vm1030, %v2666, %v2668
    %v2670 = vrot.slane %v1953, 3
    %v2671 = vsel %vm1030, %v2668, %v2670
    %v2672 = vrot.slane %v1954, 3
    %v2673 = vsel %vm1030, %v2670, %v2672
    %v2674 = vrot.slane %v1955, 3
    %v2675 = vsel %vm1030, %v2672, %v2674
    %v2676 = vrot.slane %v1956, 3
    %v2677 = vsel %vm1030, %v2674, %v2676
    %v2678 = vrot.slane %v1957, 3
    %v2679 = vsel %vm1030, %v2676, %v2678
    %v2680 = vrot.slane %v1958, 3
    %v2681 = vsel %vm1030, %v2678, %v2680
    %v2682 = vrot.slane %v1959, 3
    %v2683 = vsel %vm1030, %v2680, %v2682
    %v2684 = vrot.slane %v1960, 3
    %v2685 = vsel %vm1030, %v2682, %v2684
    %v2686 = vrot.slane %v1961, 3
    %v2687 = vsel %vm1030, %v2684, %v2686
    %v2688 = vrot.slane %v1962, 3
    %v2689 = vsel %vm1030, %v2686, %v2688
    %v2690 = vrot.slane %v1963, 3
    %v2691 = vsel %vm1030, %v2688, %v2690
    %v2692 = vrot.slane %v1964, 3
    %v2693 = vsel %vm1030, %v2690, %v2692
    %v2694 = vrot.slane %v1965, 3
    %v2695 = vsel %vm1030, %v2692, %v2694
    %v2696 = vrot.slane %v1966, 3
    %v2697 = vsel %vm1030, %v2694, %v2696
    %v2698 = vrot.slane %v1967, 3
    %v2699 = vsel %vm1030, %v2696, %v2698
    %v2700 = vrot.slane %v1968, 3
    %v2701 = vsel %vm1030, %v2698, %v2700
    %v2702 = vrot.slane %v1969, 3
    %v2703 = vsel %vm1030, %v2700, %v2702
    %v2704 = vrot.slane %v1970, 3
    %v2705 = vsel %vm1030, %v2702, %v2704
    %v2706 = vrot.slane %v1971, 3
    %v2707 = vsel %vm1030, %v2704, %v2706
    %v2708 = vrot.slane %v1972, 3
    %v2709 = vsel %vm1030, %v2706, %v2708
    %v2710 = vrot.slane %v1973, 3
    %v2711 = vsel %vm1030, %v2708, %v2710
    %v2712 = vrot.slane %v1974, 3
    %v2713 = vsel %vm1030, %v2710, %v2712
    %v2714 = vrot.slane %v1975, 3
    %v2715 = vsel %vm1030, %v2712, %v2714
    %v2716 = vrot.slane %v1976, 3
    %v2717 = vsel %vm1030, %v2714, %v2716
    %v2718 = vrot.slane %v1977, 3
    %v2719 = vsel %vm1030, %v2716, %v2718
    %v2720 = vrot.slane %v1978, 3
    %v2721 = vsel %vm1030, %v2718, %v2720
    %v2722 = vrot.slane %v1979, 3
    %v2723 = vsel %vm1030, %v2720, %v2722
    %v2724 = vrot.slane %v1980, 3
    %v2725 = vsel %vm1030, %v2722, %v2724
    %2726 = vrot.lane.b32.xlu0 %v2635, 96
    %v2727 = vpop.permute.xlu0 %2726
    %2728 = vrot.lane.b32.xlu0 %v2637, 96
    %v2729 = vpop.permute.xlu0 %2728
    %2730 = vrot.lane.b32.xlu0 %v2639, 96
    %v2731 = vpop.permute.xlu0 %2730
    %2732 = vrot.lane.b32.xlu0 %v2641, 96
    %v2733 = vpop.permute.xlu0 %2732
    %2734 = vrot.lane.b32.xlu0 %v2643, 96
    %v2735 = vpop.permute.xlu0 %2734
    %2736 = vrot.lane.b32.xlu0 %v2645, 96
    %v2737 = vpop.permute.xlu0 %2736
    %2738 = vrot.lane.b32.xlu0 %v2647, 96
    %v2739 = vpop.permute.xlu0 %2738
    %2740 = vrot.lane.b32.xlu0 %v2649, 96
    %v2741 = vpop.permute.xlu0 %2740
    %2742 = vrot.lane.b32.xlu0 %v2651, 96
    %v2743 = vpop.permute.xlu0 %2742
    %2744 = vrot.lane.b32.xlu0 %v2653, 96
    %v2745 = vpop.permute.xlu0 %2744
    %2746 = vrot.lane.b32.xlu0 %v2655, 96
    %v2747 = vpop.permute.xlu0 %2746
    %2748 = vrot.lane.b32.xlu0 %v2657, 96
    %v2749 = vpop.permute.xlu0 %2748
    %2750 = vrot.lane.b32.xlu0 %v2659, 96
    %v2751 = vpop.permute.xlu0 %2750
    %2752 = vrot.lane.b32.xlu0 %v2661, 96
    %v2753 = vpop.permute.xlu0 %2752
    %2754 = vrot.lane.b32.xlu0 %v2663, 96
    %v2755 = vpop.permute.xlu0 %2754
    %2756 = vrot.lane.b32.xlu0 %v2665, 96
    %v2757 = vpop.permute.xlu0 %2756
    %2758 = vrot.lane.b32.xlu0 %v2667, 96
    %v2759 = vpop.permute.xlu0 %2758
    %2760 = vrot.lane.b32.xlu0 %v2669, 96
    %v2761 = vpop.permute.xlu0 %2760
    %2762 = vrot.lane.b32.xlu0 %v2671, 96
    %v2763 = vpop.permute.xlu0 %2762
    %2764 = vrot.lane.b32.xlu0 %v2673, 96
    %v2765 = vpop.permute.xlu0 %2764
    %2766 = vrot.lane.b32.xlu0 %v2675, 96
    %v2767 = vpop.permute.xlu0 %2766
    %2768 = vrot.lane.b32.xlu0 %v2677, 96
    %v2769 = vpop.permute.xlu0 %2768
    %2770 = vrot.lane.b32.xlu0 %v2679, 96
    %v2771 = vpop.permute.xlu0 %2770
    %2772 = vrot.lane.b32.xlu0 %v2681, 96
    %v2773 = vpop.permute.xlu0 %2772
    %2774 = vrot.lane.b32.xlu0 %v2683, 96
    %v2775 = vpop.permute.xlu0 %2774
    %2776 = vrot.lane.b32.xlu0 %v2685, 96
    %v2777 = vpop.permute.xlu0 %2776
    %2778 = vrot.lane.b32.xlu0 %v2687, 96
    %v2779 = vpop.permute.xlu0 %2778
    %2780 = vrot.lane.b32.xlu0 %v2689, 96
    %v2781 = vpop.permute.xlu0 %2780
    %2782 = vrot.lane.b32.xlu0 %v2691, 96
    %v2783 = vpop.permute.xlu0 %2782
    %2784 = vrot.lane.b32.xlu0 %v2693, 96
    %v2785 = vpop.permute.xlu0 %2784
    %2786 = vrot.lane.b32.xlu0 %v2695, 96
    %v2787 = vpop.permute.xlu0 %2786
    %2788 = vrot.lane.b32.xlu0 %v2697, 96
    %v2789 = vpop.permute.xlu0 %2788
    %2790 = vrot.lane.b32.xlu0 %v2699, 96
    %v2791 = vpop.permute.xlu0 %2790
    %2792 = vrot.lane.b32.xlu0 %v2701, 96
    %v2793 = vpop.permute.xlu0 %2792
    %2794 = vrot.lane.b32.xlu0 %v2703, 96
    %v2795 = vpop.permute.xlu0 %2794
    %2796 = vrot.lane.b32.xlu0 %v2705, 96
    %v2797 = vpop.permute.xlu0 %2796
    %2798 = vrot.lane.b32.xlu0 %v2707, 96
    %v2799 = vpop.permute.xlu0 %2798
    %2800 = vrot.lane.b32.xlu0 %v2709, 96
    %v2801 = vpop.permute.xlu0 %2800
    %2802 = vrot.lane.b32.xlu0 %v2711, 96
    %v2803 = vpop.permute.xlu0 %2802
    %2804 = vrot.lane.b32.xlu0 %v2713, 96
    %v2805 = vpop.permute.xlu0 %2804
    %2806 = vrot.lane.b32.xlu0 %v2715, 96
    %v2807 = vpop.permute.xlu0 %2806
    %2808 = vrot.lane.b32.xlu0 %v2717, 96
    %v2809 = vpop.permute.xlu0 %2808
    %2810 = vrot.lane.b32.xlu0 %v2719, 96
    %v2811 = vpop.permute.xlu0 %2810
    %2812 = vrot.lane.b32.xlu0 %v2721, 96
    %v2813 = vpop.permute.xlu0 %2812
    %2814 = vrot.lane.b32.xlu0 %v2723, 96
    %v2815 = vpop.permute.xlu0 %2814
    %2816 = vrot.lane.b32.xlu0 %v2725, 96
    %v2817 = vpop.permute.xlu0 %2816
    %v2864 = vrot.slane %v1934, 4
    %v2865 = vrot.slane %v1935, 4
    %v2866 = vsel %vm1029, %v2864, %v2865
    %v2867 = vrot.slane %v1936, 4
    %v2868 = vsel %vm1029, %v2865, %v2867
    %v2869 = vrot.slane %v1937, 4
    %v2870 = vsel %vm1029, %v2867, %v2869
    %v2871 = vrot.slane %v1938, 4
    %v2872 = vsel %vm1029, %v2869, %v2871
    %v2873 = vrot.slane %v1939, 4
    %v2874 = vsel %vm1029, %v2871, %v2873
    %v2875 = vrot.slane %v1940, 4
    %v2876 = vsel %vm1029, %v2873, %v2875
    %v2877 = vrot.slane %v1941, 4
    %v2878 = vsel %vm1029, %v2875, %v2877
    %v2879 = vrot.slane %v1942, 4
    %v2880 = vsel %vm1029, %v2877, %v2879
    %v2881 = vrot.slane %v1943, 4
    %v2882 = vsel %vm1029, %v2879, %v2881
    %v2883 = vrot.slane %v1944, 4
    %v2884 = vsel %vm1029, %v2881, %v2883
    %v2885 = vrot.slane %v1945, 4
    %v2886 = vsel %vm1029, %v2883, %v2885
    %v2887 = vrot.slane %v1946, 4
    %v2888 = vsel %vm1029, %v2885, %v2887
    %v2889 = vrot.slane %v1947, 4
    %v2890 = vsel %vm1029, %v2887, %v2889
    %v2891 = vrot.slane %v1948, 4
    %v2892 = vsel %vm1029, %v2889, %v2891
    %v2893 = vrot.slane %v1949, 4
    %v2894 = vsel %vm1029, %v2891, %v2893
    %v2895 = vrot.slane %v1950, 4
    %v2896 = vsel %vm1029, %v2893, %v2895
    %v2897 = vrot.slane %v1951, 4
    %v2898 = vsel %vm1029, %v2895, %v2897
    %v2899 = vrot.slane %v1952, 4
    %v2900 = vsel %vm1029, %v2897, %v2899
    %v2901 = vrot.slane %v1953, 4
    %v2902 = vsel %vm1029, %v2899, %v2901
    %v2903 = vrot.slane %v1954, 4
    %v2904 = vsel %vm1029, %v2901, %v2903
    %v2905 = vrot.slane %v1955, 4
    %v2906 = vsel %vm1029, %v2903, %v2905
    %v2907 = vrot.slane %v1956, 4
    %v2908 = vsel %vm1029, %v2905, %v2907
    %v2909 = vrot.slane %v1957, 4
    %v2910 = vsel %vm1029, %v2907, %v2909
    %v2911 = vrot.slane %v1958, 4
    %v2912 = vsel %vm1029, %v2909, %v2911
    %v2913 = vrot.slane %v1959, 4
    %v2914 = vsel %vm1029, %v2911, %v2913
    %v2915 = vrot.slane %v1960, 4
    %v2916 = vsel %vm1029, %v2913, %v2915
    %v2917 = vrot.slane %v1961, 4
    %v2918 = vsel %vm1029, %v2915, %v2917
    %v2919 = vrot.slane %v1962, 4
    %v2920 = vsel %vm1029, %v2917, %v2919
    %v2921 = vrot.slane %v1963, 4
    %v2922 = vsel %vm1029, %v2919, %v2921
    %v2923 = vrot.slane %v1964, 4
    %v2924 = vsel %vm1029, %v2921, %v2923
    %v2925 = vrot.slane %v1965, 4
    %v2926 = vsel %vm1029, %v2923, %v2925
    %v2927 = vrot.slane %v1966, 4
    %v2928 = vsel %vm1029, %v2925, %v2927
    %v2929 = vrot.slane %v1967, 4
    %v2930 = vsel %vm1029, %v2927, %v2929
    %v2931 = vrot.slane %v1968, 4
    %v2932 = vsel %vm1029, %v2929, %v2931
    %v2933 = vrot.slane %v1969, 4
    %v2934 = vsel %vm1029, %v2931, %v2933
    %v2935 = vrot.slane %v1970, 4
    %v2936 = vsel %vm1029, %v2933, %v2935
    %v2937 = vrot.slane %v1971, 4
    %v2938 = vsel %vm1029, %v2935, %v2937
    %v2939 = vrot.slane %v1972, 4
    %v2940 = vsel %vm1029, %v2937, %v2939
    %v2941 = vrot.slane %v1973, 4
    %v2942 = vsel %vm1029, %v2939, %v2941
    %v2943 = vrot.slane %v1974, 4
    %v2944 = vsel %vm1029, %v2941, %v2943
    %v2945 = vrot.slane %v1975, 4
    %v2946 = vsel %vm1029, %v2943, %v2945
    %v2947 = vrot.slane %v1976, 4
    %v2948 = vsel %vm1029, %v2945, %v2947
    %v2949 = vrot.slane %v1977, 4
    %v2950 = vsel %vm1029, %v2947, %v2949
    %v2951 = vrot.slane %v1978, 4
    %v2952 = vsel %vm1029, %v2949, %v2951
    %v2953 = vrot.slane %v1979, 4
    %v2954 = vsel %vm1029, %v2951, %v2953
    %v2955 = vrot.slane %v1980, 4
    %v2956 = vsel %vm1029, %v2953, %v2955
    %vm3003 = vcmask 261120
    %v3004 = vsel %vm3003, %v1934, %v2264
    %v3005 = vsel %vm3003, %v1935, %v2266
    %v3006 = vsel %vm3003, %v1936, %v2268
    %v3007 = vsel %vm3003, %v1937, %v2270
    %v3008 = vsel %vm3003, %v1938, %v2272
    %v3009 = vsel %vm3003, %v1939, %v2274
    %v3010 = vsel %vm3003, %v1940, %v2276
    %v3011 = vsel %vm3003, %v1941, %v2278
    %v3012 = vsel %vm3003, %v1942, %v2280
    %v3013 = vsel %vm3003, %v1943, %v2282
    %v3014 = vsel %vm3003, %v1944, %v2284
    %v3015 = vsel %vm3003, %v1945, %v2286
    %v3016 = vsel %vm3003, %v1946, %v2288
    %v3017 = vsel %vm3003, %v1947, %v2290
    %v3018 = vsel %vm3003, %v1948, %v2292
    %v3019 = vsel %vm3003, %v1949, %v2294
    %v3020 = vsel %vm3003, %v1950, %v2296
    %v3021 = vsel %vm3003, %v1951, %v2298
    %v3022 = vsel %vm3003, %v1952, %v2300
    %v3023 = vsel %vm3003, %v1953, %v2302
    %v3024 = vsel %vm3003, %v1954, %v2304
    %v3025 = vsel %vm3003, %v1955, %v2306
    %v3026 = vsel %vm3003, %v1956, %v2308
    %v3027 = vsel %vm3003, %v1957, %v2310
    %v3028 = vsel %vm3003, %v1958, %v2312
    %v3029 = vsel %vm3003, %v1959, %v2314
    %v3030 = vsel %vm3003, %v1960, %v2316
    %v3031 = vsel %vm3003, %v1961, %v2318
    %v3032 = vsel %vm3003, %v1962, %v2320
    %v3033 = vsel %vm3003, %v1963, %v2322
    %v3034 = vsel %vm3003, %v1964, %v2324
    %v3035 = vsel %vm3003, %v1965, %v2326
    %v3036 = vsel %vm3003, %v1966, %v2328
    %v3037 = vsel %vm3003, %v1967, %v2330
    %v3038 = vsel %vm3003, %v1968, %v2332
    %v3039 = vsel %vm3003, %v1969, %v2334
    %v3040 = vsel %vm3003, %v1970, %v2336
    %v3041 = vsel %vm3003, %v1971, %v2338
    %v3042 = vsel %vm3003, %v1972, %v2340
    %v3043 = vsel %vm3003, %v1973, %v2342
    %v3044 = vsel %vm3003, %v1974, %v2344
    %v3045 = vsel %vm3003, %v1975, %v2346
    %v3046 = vsel %vm3003, %v1976, %v2348
    %v3047 = vsel %vm3003, %v1977, %v2350
    %v3048 = vsel %vm3003, %v1978, %v2352
    %v3049 = vsel %vm3003, %v1979, %v2354
    %vm3050 = vcmask 523264
    %v3051 = vsel %vm3050, %v3004, %v2496
    %v3052 = vsel %vm3050, %v3005, %v2498
    %v3053 = vsel %vm3050, %v3006, %v2500
    %v3054 = vsel %vm3050, %v3007, %v2502
    %v3055 = vsel %vm3050, %v3008, %v2504
    %v3056 = vsel %vm3050, %v3009, %v2506
    %v3057 = vsel %vm3050, %v3010, %v2508
    %v3058 = vsel %vm3050, %v3011, %v2510
    %v3059 = vsel %vm3050, %v3012, %v2512
    %v3060 = vsel %vm3050, %v3013, %v2514
    %v3061 = vsel %vm3050, %v3014, %v2516
    %v3062 = vsel %vm3050, %v3015, %v2518
    %v3063 = vsel %vm3050, %v3016, %v2520
    %v3064 = vsel %vm3050, %v3017, %v2522
    %v3065 = vsel %vm3050, %v3018, %v2524
    %v3066 = vsel %vm3050, %v3019, %v2526
    %v3067 = vsel %vm3050, %v3020, %v2528
    %v3068 = vsel %vm3050, %v3021, %v2530
    %v3069 = vsel %vm3050, %v3022, %v2532
    %v3070 = vsel %vm3050, %v3023, %v2534
    %v3071 = vsel %vm3050, %v3024, %v2536
    %v3072 = vsel %vm3050, %v3025, %v2538
    %v3073 = vsel %vm3050, %v3026, %v2540
    %v3074 = vsel %vm3050, %v3027, %v2542
    %v3075 = vsel %vm3050, %v3028, %v2544
    %v3076 = vsel %vm3050, %v3029, %v2546
    %v3077 = vsel %vm3050, %v3030, %v2548
    %v3078 = vsel %vm3050, %v3031, %v2550
    %v3079 = vsel %vm3050, %v3032, %v2552
    %v3080 = vsel %vm3050, %v3033, %v2554
    %v3081 = vsel %vm3050, %v3034, %v2556
    %v3082 = vsel %vm3050, %v3035, %v2558
    %v3083 = vsel %vm3050, %v3036, %v2560
    %v3084 = vsel %vm3050, %v3037, %v2562
    %v3085 = vsel %vm3050, %v3038, %v2564
    %v3086 = vsel %vm3050, %v3039, %v2566
    %v3087 = vsel %vm3050, %v3040, %v2568
    %v3088 = vsel %vm3050, %v3041, %v2570
    %v3089 = vsel %vm3050, %v3042, %v2572
    %v3090 = vsel %vm3050, %v3043, %v2574
    %v3091 = vsel %vm3050, %v3044, %v2576
    %v3092 = vsel %vm3050, %v3045, %v2578
    %v3093 = vsel %vm3050, %v3046, %v2580
    %v3094 = vsel %vm3050, %v3047, %v2582
    %v3095 = vsel %vm3050, %v3048, %v2584
    %v3096 = vsel %vm3050, %v3049, %v2586
    %vm3097 = vcmask 785408
    %v3098 = vsel %vm3097, %v3051, %v2727
    %v3099 = vsel %vm3097, %v3052, %v2729
    %v3100 = vsel %vm3097, %v3053, %v2731
    %v3101 = vsel %vm3097, %v3054, %v2733
    %v3102 = vsel %vm3097, %v3055, %v2735
    %v3103 = vsel %vm3097, %v3056, %v2737
    %v3104 = vsel %vm3097, %v3057, %v2739
    %v3105 = vsel %vm3097, %v3058, %v2741
    %v3106 = vsel %vm3097, %v3059, %v2743
    %v3107 = vsel %vm3097, %v3060, %v2745
    %v3108 = vsel %vm3097, %v3061, %v2747
    %v3109 = vsel %vm3097, %v3062, %v2749
    %v3110 = vsel %vm3097, %v3063, %v2751
    %v3111 = vsel %vm3097, %v3064, %v2753
    %v3112 = vsel %vm3097, %v3065, %v2755
    %v3113 = vsel %vm3097, %v3066, %v2757
    %v3114 = vsel %vm3097, %v3067, %v2759
    %v3115 = vsel %vm3097, %v3068, %v2761
    %v3116 = vsel %vm3097, %v3069, %v2763
    %v3117 = vsel %vm3097, %v3070, %v2765
    %v3118 = vsel %vm3097, %v3071, %v2767
    %v3119 = vsel %vm3097, %v3072, %v2769
    %v3120 = vsel %vm3097, %v3073, %v2771
    %v3121 = vsel %vm3097, %v3074, %v2773
    %v3122 = vsel %vm3097, %v3075, %v2775
    %v3123 = vsel %vm3097, %v3076, %v2777
    %v3124 = vsel %vm3097, %v3077, %v2779
    %v3125 = vsel %vm3097, %v3078, %v2781
    %v3126 = vsel %vm3097, %v3079, %v2783
    %v3127 = vsel %vm3097, %v3080, %v2785
    %v3128 = vsel %vm3097, %v3081, %v2787
    %v3129 = vsel %vm3097, %v3082, %v2789
    %v3130 = vsel %vm3097, %v3083, %v2791
    %v3131 = vsel %vm3097, %v3084, %v2793
    %v3132 = vsel %vm3097, %v3085, %v2795
    %v3133 = vsel %vm3097, %v3086, %v2797
    %v3134 = vsel %vm3097, %v3087, %v2799
    %v3135 = vsel %vm3097, %v3088, %v2801
    %v3136 = vsel %vm3097, %v3089, %v2803
    %v3137 = vsel %vm3097, %v3090, %v2805
    %v3138 = vsel %vm3097, %v3091, %v2807
    %v3139 = vsel %vm3097, %v3092, %v2809
    %v3140 = vsel %vm3097, %v3093, %v2811
    %v3141 = vsel %vm3097, %v3094, %v2813
    %v3142 = vsel %vm3097, %v3095, %v2815
    %v3143 = vsel %vm3097, %v3096, %v2817
    %v3144 = vpack.c.bf16 %v3099, %v3098
    %v3145 = vpack.c.bf16 %v2868, %v2866
    %v3146 = vpack.c.bf16 %v3101, %v3100
    %v3147 = vpack.c.bf16 %v2872, %v2870
    %v3148 = vpack.c.bf16 %v3103, %v3102
    %v3149 = vpack.c.bf16 %v2876, %v2874
    %v3150 = vpack.c.bf16 %v3105, %v3104
    %v3151 = vpack.c.bf16 %v2880, %v2878
    %v3152 = vpack.c.bf16 %v3107, %v3106
    %v3153 = vpack.c.bf16 %v2884, %v2882
    %v3154 = vpack.c.bf16 %v3109, %v3108
    %v3155 = vpack.c.bf16 %v2888, %v2886
    %v3156 = vpack.c.bf16 %v3111, %v3110
    %v3157 = vpack.c.bf16 %v2892, %v2890
    %v3158 = vpack.c.bf16 %v3113, %v3112
    %v3159 = vpack.c.bf16 %v2896, %v2894
    %v3160 = vpack.c.bf16 %v3115, %v3114
    %v3161 = vpack.c.bf16 %v2900, %v2898
    %v3162 = vpack.c.bf16 %v3117, %v3116
    %v3163 = vpack.c.bf16 %v2904, %v2902
    %v3164 = vpack.c.bf16 %v3119, %v3118
    %v3165 = vpack.c.bf16 %v2908, %v2906
    %v3166 = vpack.c.bf16 %v3121, %v3120
    %v3167 = vpack.c.bf16 %v2912, %v2910
    %v3168 = vpack.c.bf16 %v3123, %v3122
    %v3169 = vpack.c.bf16 %v2916, %v2914
    %v3170 = vpack.c.bf16 %v3125, %v3124
    %v3171 = vpack.c.bf16 %v2920, %v2918
    %v3172 = vpack.c.bf16 %v3127, %v3126
    %v3173 = vpack.c.bf16 %v2924, %v2922
    %v3174 = vpack.c.bf16 %v3129, %v3128
    %v3175 = vpack.c.bf16 %v2928, %v2926
    %v3176 = vpack.c.bf16 %v3131, %v3130
    %v3177 = vpack.c.bf16 %v2932, %v2930
    %v3178 = vpack.c.bf16 %v3133, %v3132
    %v3179 = vpack.c.bf16 %v2936, %v2934
    %v3180 = vpack.c.bf16 %v3135, %v3134
    %v3181 = vpack.c.bf16 %v2940, %v2938
    %v3182 = vpack.c.bf16 %v3137, %v3136
    %v3183 = vpack.c.bf16 %v2944, %v2942
    %v3184 = vpack.c.bf16 %v3139, %v3138
    %v3185 = vpack.c.bf16 %v2948, %v2946
    %v3186 = vpack.c.bf16 %v3141, %v3140
    %v3187 = vpack.c.bf16 %v2952, %v2950
    %v3188 = vpack.c.bf16 %v3143, %v3142
    %v3189 = vpack.c.bf16 %v2956, %v2954
    %v3237 = vrot.slane %v2075, 1
    %v3238 = vrot.slane %v2076, 1
    %v3239 = vsel %vm2169, %v3237, %v3238
    %v3240 = vrot.slane %v2077, 1
    %v3241 = vsel %vm2169, %v3238, %v3240
    %v3242 = vrot.slane %v2078, 1
    %v3243 = vsel %vm2169, %v3240, %v3242
    %v3244 = vrot.slane %v2079, 1
    %v3245 = vsel %vm2169, %v3242, %v3244
    %v3246 = vrot.slane %v2080, 1
    %v3247 = vsel %vm2169, %v3244, %v3246
    %v3248 = vrot.slane %v2081, 1
    %v3249 = vsel %vm2169, %v3246, %v3248
    %v3250 = vrot.slane %v2082, 1
    %v3251 = vsel %vm2169, %v3248, %v3250
    %v3252 = vrot.slane %v2083, 1
    %v3253 = vsel %vm2169, %v3250, %v3252
    %v3254 = vrot.slane %v2084, 1
    %v3255 = vsel %vm2169, %v3252, %v3254
    %v3256 = vrot.slane %v2085, 1
    %v3257 = vsel %vm2169, %v3254, %v3256
    %v3258 = vrot.slane %v2086, 1
    %v3259 = vsel %vm2169, %v3256, %v3258
    %v3260 = vrot.slane %v2087, 1
    %v3261 = vsel %vm2169, %v3258, %v3260
    %v3262 = vrot.slane %v2088, 1
    %v3263 = vsel %vm2169, %v3260, %v3262
    %v3264 = vrot.slane %v2089, 1
    %v3265 = vsel %vm2169, %v3262, %v3264
    %v3266 = vrot.slane %v2090, 1
    %v3267 = vsel %vm2169, %v3264, %v3266
    %v3268 = vrot.slane %v2091, 1
    %v3269 = vsel %vm2169, %v3266, %v3268
    %v3270 = vrot.slane %v2092, 1
    %v3271 = vsel %vm2169, %v3268, %v3270
    %v3272 = vrot.slane %v2093, 1
    %v3273 = vsel %vm2169, %v3270, %v3272
    %v3274 = vrot.slane %v2094, 1
    %v3275 = vsel %vm2169, %v3272, %v3274
    %v3276 = vrot.slane %v2095, 1
    %v3277 = vsel %vm2169, %v3274, %v3276
    %v3278 = vrot.slane %v2096, 1
    %v3279 = vsel %vm2169, %v3276, %v3278
    %v3280 = vrot.slane %v2097, 1
    %v3281 = vsel %vm2169, %v3278, %v3280
    %v3282 = vrot.slane %v2098, 1
    %v3283 = vsel %vm2169, %v3280, %v3282
    %v3284 = vrot.slane %v2099, 1
    %v3285 = vsel %vm2169, %v3282, %v3284
    %v3286 = vrot.slane %v2100, 1
    %v3287 = vsel %vm2169, %v3284, %v3286
    %v3288 = vrot.slane %v2101, 1
    %v3289 = vsel %vm2169, %v3286, %v3288
    %v3290 = vrot.slane %v2102, 1
    %v3291 = vsel %vm2169, %v3288, %v3290
    %v3292 = vrot.slane %v2103, 1
    %v3293 = vsel %vm2169, %v3290, %v3292
    %v3294 = vrot.slane %v2104, 1
    %v3295 = vsel %vm2169, %v3292, %v3294
    %v3296 = vrot.slane %v2105, 1
    %v3297 = vsel %vm2169, %v3294, %v3296
    %v3298 = vrot.slane %v2106, 1
    %v3299 = vsel %vm2169, %v3296, %v3298
    %v3300 = vrot.slane %v2107, 1
    %v3301 = vsel %vm2169, %v3298, %v3300
    %v3302 = vrot.slane %v2108, 1
    %v3303 = vsel %vm2169, %v3300, %v3302
    %v3304 = vrot.slane %v2109, 1
    %v3305 = vsel %vm2169, %v3302, %v3304
    %v3306 = vrot.slane %v2110, 1
    %v3307 = vsel %vm2169, %v3304, %v3306
    %v3308 = vrot.slane %v2111, 1
    %v3309 = vsel %vm2169, %v3306, %v3308
    %v3310 = vrot.slane %v2112, 1
    %v3311 = vsel %vm2169, %v3308, %v3310
    %v3312 = vrot.slane %v2113, 1
    %v3313 = vsel %vm2169, %v3310, %v3312
    %v3314 = vrot.slane %v2114, 1
    %v3315 = vsel %vm2169, %v3312, %v3314
    %v3316 = vrot.slane %v2115, 1
    %v3317 = vsel %vm2169, %v3314, %v3316
    %v3318 = vrot.slane %v2116, 1
    %v3319 = vsel %vm2169, %v3316, %v3318
    %v3320 = vrot.slane %v2117, 1
    %v3321 = vsel %vm2169, %v3318, %v3320
    %v3322 = vrot.slane %v2118, 1
    %v3323 = vsel %vm2169, %v3320, %v3322
    %v3324 = vrot.slane %v2119, 1
    %v3325 = vsel %vm2169, %v3322, %v3324
    %v3326 = vrot.slane %v2120, 1
    %v3327 = vsel %vm2169, %v3324, %v3326
    %v3328 = vrot.slane %v2121, 1
    %v3329 = vsel %vm2169, %v3326, %v3328
    %3330 = vrot.lane.b32.xlu0 %v3239, 32
    %v3331 = vpop.permute.xlu0 %3330
    %3332 = vrot.lane.b32.xlu0 %v3241, 32
    %v3333 = vpop.permute.xlu0 %3332
    %3334 = vrot.lane.b32.xlu0 %v3243, 32
    %v3335 = vpop.permute.xlu0 %3334
    %3336 = vrot.lane.b32.xlu0 %v3245, 32
    %v3337 = vpop.permute.xlu0 %3336
    %3338 = vrot.lane.b32.xlu0 %v3247, 32
    %v3339 = vpop.permute.xlu0 %3338
    %3340 = vrot.lane.b32.xlu0 %v3249, 32
    %v3341 = vpop.permute.xlu0 %3340
    %3342 = vrot.lane.b32.xlu0 %v3251, 32
    %v3343 = vpop.permute.xlu0 %3342
    %3344 = vrot.lane.b32.xlu0 %v3253, 32
    %v3345 = vpop.permute.xlu0 %3344
    %3346 = vrot.lane.b32.xlu0 %v3255, 32
    %v3347 = vpop.permute.xlu0 %3346
    %3348 = vrot.lane.b32.xlu0 %v3257, 32
    %v3349 = vpop.permute.xlu0 %3348
    %3350 = vrot.lane.b32.xlu0 %v3259, 32
    %v3351 = vpop.permute.xlu0 %3350
    %3352 = vrot.lane.b32.xlu0 %v3261, 32
    %v3353 = vpop.permute.xlu0 %3352
    %3354 = vrot.lane.b32.xlu0 %v3263, 32
    %v3355 = vpop.permute.xlu0 %3354
    %3356 = vrot.lane.b32.xlu0 %v3265, 32
    %v3357 = vpop.permute.xlu0 %3356
    %3358 = vrot.lane.b32.xlu0 %v3267, 32
    %v3359 = vpop.permute.xlu0 %3358
    %3360 = vrot.lane.b32.xlu0 %v3269, 32
    %v3361 = vpop.permute.xlu0 %3360
    %3362 = vrot.lane.b32.xlu0 %v3271, 32
    %v3363 = vpop.permute.xlu0 %3362
    %3364 = vrot.lane.b32.xlu0 %v3273, 32
    %v3365 = vpop.permute.xlu0 %3364
    %3366 = vrot.lane.b32.xlu0 %v3275, 32
    %v3367 = vpop.permute.xlu0 %3366
    %3368 = vrot.lane.b32.xlu0 %v3277, 32
    %v3369 = vpop.permute.xlu0 %3368
    %3370 = vrot.lane.b32.xlu0 %v3279, 32
    %v3371 = vpop.permute.xlu0 %3370
    %3372 = vrot.lane.b32.xlu0 %v3281, 32
    %v3373 = vpop.permute.xlu0 %3372
    %3374 = vrot.lane.b32.xlu0 %v3283, 32
    %v3375 = vpop.permute.xlu0 %3374
    %3376 = vrot.lane.b32.xlu0 %v3285, 32
    %v3377 = vpop.permute.xlu0 %3376
    %3378 = vrot.lane.b32.xlu0 %v3287, 32
    %v3379 = vpop.permute.xlu0 %3378
    %3380 = vrot.lane.b32.xlu0 %v3289, 32
    %v3381 = vpop.permute.xlu0 %3380
    %3382 = vrot.lane.b32.xlu0 %v3291, 32
    %v3383 = vpop.permute.xlu0 %3382
    %3384 = vrot.lane.b32.xlu0 %v3293, 32
    %v3385 = vpop.permute.xlu0 %3384
    %3386 = vrot.lane.b32.xlu0 %v3295, 32
    %v3387 = vpop.permute.xlu0 %3386
    %3388 = vrot.lane.b32.xlu0 %v3297, 32
    %v3389 = vpop.permute.xlu0 %3388
    %3390 = vrot.lane.b32.xlu0 %v3299, 32
    %v3391 = vpop.permute.xlu0 %3390
    %3392 = vrot.lane.b32.xlu0 %v3301, 32
    %v3393 = vpop.permute.xlu0 %3392
    %3394 = vrot.lane.b32.xlu0 %v3303, 32
    %v3395 = vpop.permute.xlu0 %3394
    %3396 = vrot.lane.b32.xlu0 %v3305, 32
    %v3397 = vpop.permute.xlu0 %3396
    %3398 = vrot.lane.b32.xlu0 %v3307, 32
    %v3399 = vpop.permute.xlu0 %3398
    %3400 = vrot.lane.b32.xlu0 %v3309, 32
    %v3401 = vpop.permute.xlu0 %3400
    %3402 = vrot.lane.b32.xlu0 %v3311, 32
    %v3403 = vpop.permute.xlu0 %3402
    %3404 = vrot.lane.b32.xlu0 %v3313, 32
    %v3405 = vpop.permute.xlu0 %3404
    %3406 = vrot.lane.b32.xlu0 %v3315, 32
    %v3407 = vpop.permute.xlu0 %3406
    %3408 = vrot.lane.b32.xlu0 %v3317, 32
    %v3409 = vpop.permute.xlu0 %3408
    %3410 = vrot.lane.b32.xlu0 %v3319, 32
    %v3411 = vpop.permute.xlu0 %3410
    %3412 = vrot.lane.b32.xlu0 %v3321, 32
    %v3413 = vpop.permute.xlu0 %3412
    %3414 = vrot.lane.b32.xlu0 %v3323, 32
    %v3415 = vpop.permute.xlu0 %3414
    %3416 = vrot.lane.b32.xlu0 %v3325, 32
    %v3417 = vpop.permute.xlu0 %3416
    %3418 = vrot.lane.b32.xlu0 %v3327, 32
    %v3419 = vpop.permute.xlu0 %3418
    %3420 = vrot.lane.b32.xlu0 %v3329, 32
    %v3421 = vpop.permute.xlu0 %3420
    %v3468 = vrot.slane %v2075, 2
    %v3469 = vrot.slane %v2076, 2
    %v3470 = vsel %vm2401, %v3468, %v3469
    %v3471 = vrot.slane %v2077, 2
    %v3472 = vsel %vm2401, %v3469, %v3471
    %v3473 = vrot.slane %v2078, 2
    %v3474 = vsel %vm2401, %v3471, %v3473
    %v3475 = vrot.slane %v2079, 2
    %v3476 = vsel %vm2401, %v3473, %v3475
    %v3477 = vrot.slane %v2080, 2
    %v3478 = vsel %vm2401, %v3475, %v3477
    %v3479 = vrot.slane %v2081, 2
    %v3480 = vsel %vm2401, %v3477, %v3479
    %v3481 = vrot.slane %v2082, 2
    %v3482 = vsel %vm2401, %v3479, %v3481
    %v3483 = vrot.slane %v2083, 2
    %v3484 = vsel %vm2401, %v3481, %v3483
    %v3485 = vrot.slane %v2084, 2
    %v3486 = vsel %vm2401, %v3483, %v3485
    %v3487 = vrot.slane %v2085, 2
    %v3488 = vsel %vm2401, %v3485, %v3487
    %v3489 = vrot.slane %v2086, 2
    %v3490 = vsel %vm2401, %v3487, %v3489
    %v3491 = vrot.slane %v2087, 2
    %v3492 = vsel %vm2401, %v3489, %v3491
    %v3493 = vrot.slane %v2088, 2
    %v3494 = vsel %vm2401, %v3491, %v3493
    %v3495 = vrot.slane %v2089, 2
    %v3496 = vsel %vm2401, %v3493, %v3495
    %v3497 = vrot.slane %v2090, 2
    %v3498 = vsel %vm2401, %v3495, %v3497
    %v3499 = vrot.slane %v2091, 2
    %v3500 = vsel %vm2401, %v3497, %v3499
    %v3501 = vrot.slane %v2092, 2
    %v3502 = vsel %vm2401, %v3499, %v3501
    %v3503 = vrot.slane %v2093, 2
    %v3504 = vsel %vm2401, %v3501, %v3503
    %v3505 = vrot.slane %v2094, 2
    %v3506 = vsel %vm2401, %v3503, %v3505
    %v3507 = vrot.slane %v2095, 2
    %v3508 = vsel %vm2401, %v3505, %v3507
    %v3509 = vrot.slane %v2096, 2
    %v3510 = vsel %vm2401, %v3507, %v3509
    %v3511 = vrot.slane %v2097, 2
    %v3512 = vsel %vm2401, %v3509, %v3511
    %v3513 = vrot.slane %v2098, 2
    %v3514 = vsel %vm2401, %v3511, %v3513
    %v3515 = vrot.slane %v2099, 2
    %v3516 = vsel %vm2401, %v3513, %v3515
    %v3517 = vrot.slane %v2100, 2
    %v3518 = vsel %vm2401, %v3515, %v3517
    %v3519 = vrot.slane %v2101, 2
    %v3520 = vsel %vm2401, %v3517, %v3519
    %v3521 = vrot.slane %v2102, 2
    %v3522 = vsel %vm2401, %v3519, %v3521
    %v3523 = vrot.slane %v2103, 2
    %v3524 = vsel %vm2401, %v3521, %v3523
    %v3525 = vrot.slane %v2104, 2
    %v3526 = vsel %vm2401, %v3523, %v3525
    %v3527 = vrot.slane %v2105, 2
    %v3528 = vsel %vm2401, %v3525, %v3527
    %v3529 = vrot.slane %v2106, 2
    %v3530 = vsel %vm2401, %v3527, %v3529
    %v3531 = vrot.slane %v2107, 2
    %v3532 = vsel %vm2401, %v3529, %v3531
    %v3533 = vrot.slane %v2108, 2
    %v3534 = vsel %vm2401, %v3531, %v3533
    %v3535 = vrot.slane %v2109, 2
    %v3536 = vsel %vm2401, %v3533, %v3535
    %v3537 = vrot.slane %v2110, 2
    %v3538 = vsel %vm2401, %v3535, %v3537
    %v3539 = vrot.slane %v2111, 2
    %v3540 = vsel %vm2401, %v3537, %v3539
    %v3541 = vrot.slane %v2112, 2
    %v3542 = vsel %vm2401, %v3539, %v3541
    %v3543 = vrot.slane %v2113, 2
    %v3544 = vsel %vm2401, %v3541, %v3543
    %v3545 = vrot.slane %v2114, 2
    %v3546 = vsel %vm2401, %v3543, %v3545
    %v3547 = vrot.slane %v2115, 2
    %v3548 = vsel %vm2401, %v3545, %v3547
    %v3549 = vrot.slane %v2116, 2
    %v3550 = vsel %vm2401, %v3547, %v3549
    %v3551 = vrot.slane %v2117, 2
    %v3552 = vsel %vm2401, %v3549, %v3551
    %v3553 = vrot.slane %v2118, 2
    %v3554 = vsel %vm2401, %v3551, %v3553
    %v3555 = vrot.slane %v2119, 2
    %v3556 = vsel %vm2401, %v3553, %v3555
    %v3557 = vrot.slane %v2120, 2
    %v3558 = vsel %vm2401, %v3555, %v3557
    %v3559 = vrot.slane %v2121, 2
    %v3560 = vsel %vm2401, %v3557, %v3559
    %3561 = vrot.lane.b32.xlu0 %v3470, 64
    %v3562 = vpop.permute.xlu0 %3561
    %3563 = vrot.lane.b32.xlu0 %v3472, 64
    %v3564 = vpop.permute.xlu0 %3563
    %3565 = vrot.lane.b32.xlu0 %v3474, 64
    %v3566 = vpop.permute.xlu0 %3565
    %3567 = vrot.lane.b32.xlu0 %v3476, 64
    %v3568 = vpop.permute.xlu0 %3567
    %3569 = vrot.lane.b32.xlu0 %v3478, 64
    %v3570 = vpop.permute.xlu0 %3569
    %3571 = vrot.lane.b32.xlu0 %v3480, 64
    %v3572 = vpop.permute.xlu0 %3571
    %3573 = vrot.lane.b32.xlu0 %v3482, 64
    %v3574 = vpop.permute.xlu0 %3573
    %3575 = vrot.lane.b32.xlu0 %v3484, 64
    %v3576 = vpop.permute.xlu0 %3575
    %3577 = vrot.lane.b32.xlu0 %v3486, 64
    %v3578 = vpop.permute.xlu0 %3577
    %3579 = vrot.lane.b32.xlu0 %v3488, 64
    %v3580 = vpop.permute.xlu0 %3579
    %3581 = vrot.lane.b32.xlu0 %v3490, 64
    %v3582 = vpop.permute.xlu0 %3581
    %3583 = vrot.lane.b32.xlu0 %v3492, 64
    %v3584 = vpop.permute.xlu0 %3583
    %3585 = vrot.lane.b32.xlu0 %v3494, 64
    %v3586 = vpop.permute.xlu0 %3585
    %3587 = vrot.lane.b32.xlu0 %v3496, 64
    %v3588 = vpop.permute.xlu0 %3587
    %3589 = vrot.lane.b32.xlu0 %v3498, 64
    %v3590 = vpop.permute.xlu0 %3589
    %3591 = vrot.lane.b32.xlu0 %v3500, 64
    %v3592 = vpop.permute.xlu0 %3591
    %3593 = vrot.lane.b32.xlu0 %v3502, 64
    %v3594 = vpop.permute.xlu0 %3593
    %3595 = vrot.lane.b32.xlu0 %v3504, 64
    %v3596 = vpop.permute.xlu0 %3595
    %3597 = vrot.lane.b32.xlu0 %v3506, 64
    %v3598 = vpop.permute.xlu0 %3597
    %3599 = vrot.lane.b32.xlu0 %v3508, 64
    %v3600 = vpop.permute.xlu0 %3599
    %3601 = vrot.lane.b32.xlu0 %v3510, 64
    %v3602 = vpop.permute.xlu0 %3601
    %3603 = vrot.lane.b32.xlu0 %v3512, 64
    %v3604 = vpop.permute.xlu0 %3603
    %3605 = vrot.lane.b32.xlu0 %v3514, 64
    %v3606 = vpop.permute.xlu0 %3605
    %3607 = vrot.lane.b32.xlu0 %v3516, 64
    %v3608 = vpop.permute.xlu0 %3607
    %3609 = vrot.lane.b32.xlu0 %v3518, 64
    %v3610 = vpop.permute.xlu0 %3609
    %3611 = vrot.lane.b32.xlu0 %v3520, 64
    %v3612 = vpop.permute.xlu0 %3611
    %3613 = vrot.lane.b32.xlu0 %v3522, 64
    %v3614 = vpop.permute.xlu0 %3613
    %3615 = vrot.lane.b32.xlu0 %v3524, 64
    %v3616 = vpop.permute.xlu0 %3615
    %3617 = vrot.lane.b32.xlu0 %v3526, 64
    %v3618 = vpop.permute.xlu0 %3617
    %3619 = vrot.lane.b32.xlu0 %v3528, 64
    %v3620 = vpop.permute.xlu0 %3619
    %3621 = vrot.lane.b32.xlu0 %v3530, 64
    %v3622 = vpop.permute.xlu0 %3621
    %3623 = vrot.lane.b32.xlu0 %v3532, 64
    %v3624 = vpop.permute.xlu0 %3623
    %3625 = vrot.lane.b32.xlu0 %v3534, 64
    %v3626 = vpop.permute.xlu0 %3625
    %3627 = vrot.lane.b32.xlu0 %v3536, 64
    %v3628 = vpop.permute.xlu0 %3627
    %3629 = vrot.lane.b32.xlu0 %v3538, 64
    %v3630 = vpop.permute.xlu0 %3629
    %3631 = vrot.lane.b32.xlu0 %v3540, 64
    %v3632 = vpop.permute.xlu0 %3631
    %3633 = vrot.lane.b32.xlu0 %v3542, 64
    %v3634 = vpop.permute.xlu0 %3633
    %3635 = vrot.lane.b32.xlu0 %v3544, 64
    %v3636 = vpop.permute.xlu0 %3635
    %3637 = vrot.lane.b32.xlu0 %v3546, 64
    %v3638 = vpop.permute.xlu0 %3637
    %3639 = vrot.lane.b32.xlu0 %v3548, 64
    %v3640 = vpop.permute.xlu0 %3639
    %3641 = vrot.lane.b32.xlu0 %v3550, 64
    %v3642 = vpop.permute.xlu0 %3641
    %3643 = vrot.lane.b32.xlu0 %v3552, 64
    %v3644 = vpop.permute.xlu0 %3643
    %3645 = vrot.lane.b32.xlu0 %v3554, 64
    %v3646 = vpop.permute.xlu0 %3645
    %3647 = vrot.lane.b32.xlu0 %v3556, 64
    %v3648 = vpop.permute.xlu0 %3647
    %3649 = vrot.lane.b32.xlu0 %v3558, 64
    %v3650 = vpop.permute.xlu0 %3649
    %3651 = vrot.lane.b32.xlu0 %v3560, 64
    %v3652 = vpop.permute.xlu0 %3651
    %v3699 = vrot.slane %v2075, 3
    %v3700 = vrot.slane %v2076, 3
    %v3701 = vsel %vm1030, %v3699, %v3700
    %v3702 = vrot.slane %v2077, 3
    %v3703 = vsel %vm1030, %v3700, %v3702
    %v3704 = vrot.slane %v2078, 3
    %v3705 = vsel %vm1030, %v3702, %v3704
    %v3706 = vrot.slane %v2079, 3
    %v3707 = vsel %vm1030, %v3704, %v3706
    %v3708 = vrot.slane %v2080, 3
    %v3709 = vsel %vm1030, %v3706, %v3708
    %v3710 = vrot.slane %v2081, 3
    %v3711 = vsel %vm1030, %v3708, %v3710
    %v3712 = vrot.slane %v2082, 3
    %v3713 = vsel %vm1030, %v3710, %v3712
    %v3714 = vrot.slane %v2083, 3
    %v3715 = vsel %vm1030, %v3712, %v3714
    %v3716 = vrot.slane %v2084, 3
    %v3717 = vsel %vm1030, %v3714, %v3716
    %v3718 = vrot.slane %v2085, 3
    %v3719 = vsel %vm1030, %v3716, %v3718
    %v3720 = vrot.slane %v2086, 3
    %v3721 = vsel %vm1030, %v3718, %v3720
    %v3722 = vrot.slane %v2087, 3
    %v3723 = vsel %vm1030, %v3720, %v3722
    %v3724 = vrot.slane %v2088, 3
    %v3725 = vsel %vm1030, %v3722, %v3724
    %v3726 = vrot.slane %v2089, 3
    %v3727 = vsel %vm1030, %v3724, %v3726
    %v3728 = vrot.slane %v2090, 3
    %v3729 = vsel %vm1030, %v3726, %v3728
    %v3730 = vrot.slane %v2091, 3
    %v3731 = vsel %vm1030, %v3728, %v3730
    %v3732 = vrot.slane %v2092, 3
    %v3733 = vsel %vm1030, %v3730, %v3732
    %v3734 = vrot.slane %v2093, 3
    %v3735 = vsel %vm1030, %v3732, %v3734
    %v3736 = vrot.slane %v2094, 3
    %v3737 = vsel %vm1030, %v3734, %v3736
    %v3738 = vrot.slane %v2095, 3
    %v3739 = vsel %vm1030, %v3736, %v3738
    %v3740 = vrot.slane %v2096, 3
    %v3741 = vsel %vm1030, %v3738, %v3740
    %v3742 = vrot.slane %v2097, 3
    %v3743 = vsel %vm1030, %v3740, %v3742
    %v3744 = vrot.slane %v2098, 3
    %v3745 = vsel %vm1030, %v3742, %v3744
    %v3746 = vrot.slane %v2099, 3
    %v3747 = vsel %vm1030, %v3744, %v3746
    %v3748 = vrot.slane %v2100, 3
    %v3749 = vsel %vm1030, %v3746, %v3748
    %v3750 = vrot.slane %v2101, 3
    %v3751 = vsel %vm1030, %v3748, %v3750
    %v3752 = vrot.slane %v2102, 3
    %v3753 = vsel %vm1030, %v3750, %v3752
    %v3754 = vrot.slane %v2103, 3
    %v3755 = vsel %vm1030, %v3752, %v3754
    %v3756 = vrot.slane %v2104, 3
    %v3757 = vsel %vm1030, %v3754, %v3756
    %v3758 = vrot.slane %v2105, 3
    %v3759 = vsel %vm1030, %v3756, %v3758
    %v3760 = vrot.slane %v2106, 3
    %v3761 = vsel %vm1030, %v3758, %v3760
    %v3762 = vrot.slane %v2107, 3
    %v3763 = vsel %vm1030, %v3760, %v3762
    %v3764 = vrot.slane %v2108, 3
    %v3765 = vsel %vm1030, %v3762, %v3764
    %v3766 = vrot.slane %v2109, 3
    %v3767 = vsel %vm1030, %v3764, %v3766
    %v3768 = vrot.slane %v2110, 3
    %v3769 = vsel %vm1030, %v3766, %v3768
    %v3770 = vrot.slane %v2111, 3
    %v3771 = vsel %vm1030, %v3768, %v3770
    %v3772 = vrot.slane %v2112, 3
    %v3773 = vsel %vm1030, %v3770, %v3772
    %v3774 = vrot.slane %v2113, 3
    %v3775 = vsel %vm1030, %v3772, %v3774
    %v3776 = vrot.slane %v2114, 3
    %v3777 = vsel %vm1030, %v3774, %v3776
    %v3778 = vrot.slane %v2115, 3
    %v3779 = vsel %vm1030, %v3776, %v3778
    %v3780 = vrot.slane %v2116, 3
    %v3781 = vsel %vm1030, %v3778, %v3780
    %v3782 = vrot.slane %v2117, 3
    %v3783 = vsel %vm1030, %v3780, %v3782
    %v3784 = vrot.slane %v2118, 3
    %v3785 = vsel %vm1030, %v3782, %v3784
    %v3786 = vrot.slane %v2119, 3
    %v3787 = vsel %vm1030, %v3784, %v3786
    %v3788 = vrot.slane %v2120, 3
    %v3789 = vsel %vm1030, %v3786, %v3788
    %v3790 = vrot.slane %v2121, 3
    %v3791 = vsel %vm1030, %v3788, %v3790
    %3792 = vrot.lane.b32.xlu0 %v3701, 96
    %v3793 = vpop.permute.xlu0 %3792
    %3794 = vrot.lane.b32.xlu0 %v3703, 96
    %v3795 = vpop.permute.xlu0 %3794
    %3796 = vrot.lane.b32.xlu0 %v3705, 96
    %v3797 = vpop.permute.xlu0 %3796
    %3798 = vrot.lane.b32.xlu0 %v3707, 96
    %v3799 = vpop.permute.xlu0 %3798
    %3800 = vrot.lane.b32.xlu0 %v3709, 96
    %v3801 = vpop.permute.xlu0 %3800
    %3802 = vrot.lane.b32.xlu0 %v3711, 96
    %v3803 = vpop.permute.xlu0 %3802
    %3804 = vrot.lane.b32.xlu0 %v3713, 96
    %v3805 = vpop.permute.xlu0 %3804
    %3806 = vrot.lane.b32.xlu0 %v3715, 96
    %v3807 = vpop.permute.xlu0 %3806
    %3808 = vrot.lane.b32.xlu0 %v3717, 96
    %v3809 = vpop.permute.xlu0 %3808
    %3810 = vrot.lane.b32.xlu0 %v3719, 96
    %v3811 = vpop.permute.xlu0 %3810
    %3812 = vrot.lane.b32.xlu0 %v3721, 96
    %v3813 = vpop.permute.xlu0 %3812
    %3814 = vrot.lane.b32.xlu0 %v3723, 96
    %v3815 = vpop.permute.xlu0 %3814
    %3816 = vrot.lane.b32.xlu0 %v3725, 96
    %v3817 = vpop.permute.xlu0 %3816
    %3818 = vrot.lane.b32.xlu0 %v3727, 96
    %v3819 = vpop.permute.xlu0 %3818
    %3820 = vrot.lane.b32.xlu0 %v3729, 96
    %v3821 = vpop.permute.xlu0 %3820
    %3822 = vrot.lane.b32.xlu0 %v3731, 96
    %v3823 = vpop.permute.xlu0 %3822
    %3824 = vrot.lane.b32.xlu0 %v3733, 96
    %v3825 = vpop.permute.xlu0 %3824
    %3826 = vrot.lane.b32.xlu0 %v3735, 96
    %v3827 = vpop.permute.xlu0 %3826
    %3828 = vrot.lane.b32.xlu0 %v3737, 96
    %v3829 = vpop.permute.xlu0 %3828
    %3830 = vrot.lane.b32.xlu0 %v3739, 96
    %v3831 = vpop.permute.xlu0 %3830
    %3832 = vrot.lane.b32.xlu0 %v3741, 96
    %v3833 = vpop.permute.xlu0 %3832
    %3834 = vrot.lane.b32.xlu0 %v3743, 96
    %v3835 = vpop.permute.xlu0 %3834
    %3836 = vrot.lane.b32.xlu0 %v3745, 96
    %v3837 = vpop.permute.xlu0 %3836
    %3838 = vrot.lane.b32.xlu0 %v3747, 96
    %v3839 = vpop.permute.xlu0 %3838
    %3840 = vrot.lane.b32.xlu0 %v3749, 96
    %v3841 = vpop.permute.xlu0 %3840
    %3842 = vrot.lane.b32.xlu0 %v3751, 96
    %v3843 = vpop.permute.xlu0 %3842
    %3844 = vrot.lane.b32.xlu0 %v3753, 96
    %v3845 = vpop.permute.xlu0 %3844
    %3846 = vrot.lane.b32.xlu0 %v3755, 96
    %v3847 = vpop.permute.xlu0 %3846
    %3848 = vrot.lane.b32.xlu0 %v3757, 96
    %v3849 = vpop.permute.xlu0 %3848
    %3850 = vrot.lane.b32.xlu0 %v3759, 96
    %v3851 = vpop.permute.xlu0 %3850
    %3852 = vrot.lane.b32.xlu0 %v3761, 96
    %v3853 = vpop.permute.xlu0 %3852
    %3854 = vrot.lane.b32.xlu0 %v3763, 96
    %v3855 = vpop.permute.xlu0 %3854
    %3856 = vrot.lane.b32.xlu0 %v3765, 96
    %v3857 = vpop.permute.xlu0 %3856
    %3858 = vrot.lane.b32.xlu0 %v3767, 96
    %v3859 = vpop.permute.xlu0 %3858
    %3860 = vrot.lane.b32.xlu0 %v3769, 96
    %v3861 = vpop.permute.xlu0 %3860
    %3862 = vrot.lane.b32.xlu0 %v3771, 96
    %v3863 = vpop.permute.xlu0 %3862
    %3864 = vrot.lane.b32.xlu0 %v3773, 96
    %v3865 = vpop.permute.xlu0 %3864
    %3866 = vrot.lane.b32.xlu0 %v3775, 96
    %v3867 = vpop.permute.xlu0 %3866
    %3868 = vrot.lane.b32.xlu0 %v3777, 96
    %v3869 = vpop.permute.xlu0 %3868
    %3870 = vrot.lane.b32.xlu0 %v3779, 96
    %v3871 = vpop.permute.xlu0 %3870
    %3872 = vrot.lane.b32.xlu0 %v3781, 96
    %v3873 = vpop.permute.xlu0 %3872
    %3874 = vrot.lane.b32.xlu0 %v3783, 96
    %v3875 = vpop.permute.xlu0 %3874
    %3876 = vrot.lane.b32.xlu0 %v3785, 96
    %v3877 = vpop.permute.xlu0 %3876
    %3878 = vrot.lane.b32.xlu0 %v3787, 96
    %v3879 = vpop.permute.xlu0 %3878
    %3880 = vrot.lane.b32.xlu0 %v3789, 96
    %v3881 = vpop.permute.xlu0 %3880
    %3882 = vrot.lane.b32.xlu0 %v3791, 96
    %v3883 = vpop.permute.xlu0 %3882
    %v3930 = vrot.slane %v2075, 4
    %v3931 = vrot.slane %v2076, 4
    %v3932 = vsel %vm1029, %v3930, %v3931
    %v3933 = vrot.slane %v2077, 4
    %v3934 = vsel %vm1029, %v3931, %v3933
    %v3935 = vrot.slane %v2078, 4
    %v3936 = vsel %vm1029, %v3933, %v3935
    %v3937 = vrot.slane %v2079, 4
    %v3938 = vsel %vm1029, %v3935, %v3937
    %v3939 = vrot.slane %v2080, 4
    %v3940 = vsel %vm1029, %v3937, %v3939
    %v3941 = vrot.slane %v2081, 4
    %v3942 = vsel %vm1029, %v3939, %v3941
    %v3943 = vrot.slane %v2082, 4
    %v3944 = vsel %vm1029, %v3941, %v3943
    %v3945 = vrot.slane %v2083, 4
    %v3946 = vsel %vm1029, %v3943, %v3945
    %v3947 = vrot.slane %v2084, 4
    %v3948 = vsel %vm1029, %v3945, %v3947
    %v3949 = vrot.slane %v2085, 4
    %v3950 = vsel %vm1029, %v3947, %v3949
    %v3951 = vrot.slane %v2086, 4
    %v3952 = vsel %vm1029, %v3949, %v3951
    %v3953 = vrot.slane %v2087, 4
    %v3954 = vsel %vm1029, %v3951, %v3953
    %v3955 = vrot.slane %v2088, 4
    %v3956 = vsel %vm1029, %v3953, %v3955
    %v3957 = vrot.slane %v2089, 4
    %v3958 = vsel %vm1029, %v3955, %v3957
    %v3959 = vrot.slane %v2090, 4
    %v3960 = vsel %vm1029, %v3957, %v3959
    %v3961 = vrot.slane %v2091, 4
    %v3962 = vsel %vm1029, %v3959, %v3961
    %v3963 = vrot.slane %v2092, 4
    %v3964 = vsel %vm1029, %v3961, %v3963
    %v3965 = vrot.slane %v2093, 4
    %v3966 = vsel %vm1029, %v3963, %v3965
    %v3967 = vrot.slane %v2094, 4
    %v3968 = vsel %vm1029, %v3965, %v3967
    %v3969 = vrot.slane %v2095, 4
    %v3970 = vsel %vm1029, %v3967, %v3969
    %v3971 = vrot.slane %v2096, 4
    %v3972 = vsel %vm1029, %v3969, %v3971
    %v3973 = vrot.slane %v2097, 4
    %v3974 = vsel %vm1029, %v3971, %v3973
    %v3975 = vrot.slane %v2098, 4
    %v3976 = vsel %vm1029, %v3973, %v3975
    %v3977 = vrot.slane %v2099, 4
    %v3978 = vsel %vm1029, %v3975, %v3977
    %v3979 = vrot.slane %v2100, 4
    %v3980 = vsel %vm1029, %v3977, %v3979
    %v3981 = vrot.slane %v2101, 4
    %v3982 = vsel %vm1029, %v3979, %v3981
    %v3983 = vrot.slane %v2102, 4
    %v3984 = vsel %vm1029, %v3981, %v3983
    %v3985 = vrot.slane %v2103, 4
    %v3986 = vsel %vm1029, %v3983, %v3985
    %v3987 = vrot.slane %v2104, 4
    %v3988 = vsel %vm1029, %v3985, %v3987
    %v3989 = vrot.slane %v2105, 4
    %v3990 = vsel %vm1029, %v3987, %v3989
    %v3991 = vrot.slane %v2106, 4
    %v3992 = vsel %vm1029, %v3989, %v3991
    %v3993 = vrot.slane %v2107, 4
    %v3994 = vsel %vm1029, %v3991, %v3993
    %v3995 = vrot.slane %v2108, 4
    %v3996 = vsel %vm1029, %v3993, %v3995
    %v3997 = vrot.slane %v2109, 4
    %v3998 = vsel %vm1029, %v3995, %v3997
    %v3999 = vrot.slane %v2110, 4
    %v4000 = vsel %vm1029, %v3997, %v3999
    %v4001 = vrot.slane %v2111, 4
    %v4002 = vsel %vm1029, %v3999, %v4001
    %v4003 = vrot.slane %v2112, 4
    %v4004 = vsel %vm1029, %v4001, %v4003
    %v4005 = vrot.slane %v2113, 4
    %v4006 = vsel %vm1029, %v4003, %v4005
    %v4007 = vrot.slane %v2114, 4
    %v4008 = vsel %vm1029, %v4005, %v4007
    %v4009 = vrot.slane %v2115, 4
    %v4010 = vsel %vm1029, %v4007, %v4009
    %v4011 = vrot.slane %v2116, 4
    %v4012 = vsel %vm1029, %v4009, %v4011
    %v4013 = vrot.slane %v2117, 4
    %v4014 = vsel %vm1029, %v4011, %v4013
    %v4015 = vrot.slane %v2118, 4
    %v4016 = vsel %vm1029, %v4013, %v4015
    %v4017 = vrot.slane %v2119, 4
    %v4018 = vsel %vm1029, %v4015, %v4017
    %v4019 = vrot.slane %v2120, 4
    %v4020 = vsel %vm1029, %v4017, %v4019
    %v4021 = vrot.slane %v2121, 4
    %v4022 = vsel %vm1029, %v4019, %v4021
    %v4069 = vsel %vm3003, %v2075, %v3331
    %v4070 = vsel %vm3003, %v2076, %v3333
    %v4071 = vsel %vm3003, %v2077, %v3335
    %v4072 = vsel %vm3003, %v2078, %v3337
    %v4073 = vsel %vm3003, %v2079, %v3339
    %v4074 = vsel %vm3003, %v2080, %v3341
    %v4075 = vsel %vm3003, %v2081, %v3343
    %v4076 = vsel %vm3003, %v2082, %v3345
    %v4077 = vsel %vm3003, %v2083, %v3347
    %v4078 = vsel %vm3003, %v2084, %v3349
    %v4079 = vsel %vm3003, %v2085, %v3351
    %v4080 = vsel %vm3003, %v2086, %v3353
    %v4081 = vsel %vm3003, %v2087, %v3355
    %v4082 = vsel %vm3003, %v2088, %v3357
    %v4083 = vsel %vm3003, %v2089, %v3359
    %v4084 = vsel %vm3003, %v2090, %v3361
    %v4085 = vsel %vm3003, %v2091, %v3363
    %v4086 = vsel %vm3003, %v2092, %v3365
    %v4087 = vsel %vm3003, %v2093, %v3367
    %v4088 = vsel %vm3003, %v2094, %v3369
    %v4089 = vsel %vm3003, %v2095, %v3371
    %v4090 = vsel %vm3003, %v2096, %v3373
    %v4091 = vsel %vm3003, %v2097, %v3375
    %v4092 = vsel %vm3003, %v2098, %v3377
    %v4093 = vsel %vm3003, %v2099, %v3379
    %v4094 = vsel %vm3003, %v2100, %v3381
    %v4095 = vsel %vm3003, %v2101, %v3383
    %v4096 = vsel %vm3003, %v2102, %v3385
    %v4097 = vsel %vm3003, %v2103, %v3387
    %v4098 = vsel %vm3003, %v2104, %v3389
    %v4099 = vsel %vm3003, %v2105, %v3391
    %v4100 = vsel %vm3003, %v2106, %v3393
    %v4101 = vsel %vm3003, %v2107, %v3395
    %v4102 = vsel %vm3003, %v2108, %v3397
    %v4103 = vsel %vm3003, %v2109, %v3399
    %v4104 = vsel %vm3003, %v2110, %v3401
    %v4105 = vsel %vm3003, %v2111, %v3403
    %v4106 = vsel %vm3003, %v2112, %v3405
    %v4107 = vsel %vm3003, %v2113, %v3407
    %v4108 = vsel %vm3003, %v2114, %v3409
    %v4109 = vsel %vm3003, %v2115, %v3411
    %v4110 = vsel %vm3003, %v2116, %v3413
    %v4111 = vsel %vm3003, %v2117, %v3415
    %v4112 = vsel %vm3003, %v2118, %v3417
    %v4113 = vsel %vm3003, %v2119, %v3419
    %v4114 = vsel %vm3003, %v2120, %v3421
    %v4115 = vsel %vm3050, %v4069, %v3562
    %v4116 = vsel %vm3050, %v4070, %v3564
    %v4117 = vsel %vm3050, %v4071, %v3566
    %v4118 = vsel %vm3050, %v4072, %v3568
    %v4119 = vsel %vm3050, %v4073, %v3570
    %v4120 = vsel %vm3050, %v4074, %v3572
    %v4121 = vsel %vm3050, %v4075, %v3574
    %v4122 = vsel %vm3050, %v4076, %v3576
    %v4123 = vsel %vm3050, %v4077, %v3578
    %v4124 = vsel %vm3050, %v4078, %v3580
    %v4125 = vsel %vm3050, %v4079, %v3582
    %v4126 = vsel %vm3050, %v4080, %v3584
    %v4127 = vsel %vm3050, %v4081, %v3586
    %v4128 = vsel %vm3050, %v4082, %v3588
    %v4129 = vsel %vm3050, %v4083, %v3590
    %v4130 = vsel %vm3050, %v4084, %v3592
    %v4131 = vsel %vm3050, %v4085, %v3594
    %v4132 = vsel %vm3050, %v4086, %v3596
    %v4133 = vsel %vm3050, %v4087, %v3598
    %v4134 = vsel %vm3050, %v4088, %v3600
    %v4135 = vsel %vm3050, %v4089, %v3602
    %v4136 = vsel %vm3050, %v4090, %v3604
    %v4137 = vsel %vm3050, %v4091, %v3606
    %v4138 = vsel %vm3050, %v4092, %v3608
    %v4139 = vsel %vm3050, %v4093, %v3610
    %v4140 = vsel %vm3050, %v4094, %v3612
    %v4141 = vsel %vm3050, %v4095, %v3614
    %v4142 = vsel %vm3050, %v4096, %v3616
    %v4143 = vsel %vm3050, %v4097, %v3618
    %v4144 = vsel %vm3050, %v4098, %v3620
    %v4145 = vsel %vm3050, %v4099, %v3622
    %v4146 = vsel %vm3050, %v4100, %v3624
    %v4147 = vsel %vm3050, %v4101, %v3626
    %v4148 = vsel %vm3050, %v4102, %v3628
    %v4149 = vsel %vm3050, %v4103, %v3630
    %v4150 = vsel %vm3050, %v4104, %v3632
    %v4151 = vsel %vm3050, %v4105, %v3634
    %v4152 = vsel %vm3050, %v4106, %v3636
    %v4153 = vsel %vm3050, %v4107, %v3638
    %v4154 = vsel %vm3050, %v4108, %v3640
    %v4155 = vsel %vm3050, %v4109, %v3642
    %v4156 = vsel %vm3050, %v4110, %v3644
    %v4157 = vsel %vm3050, %v4111, %v3646
    %v4158 = vsel %vm3050, %v4112, %v3648
    %v4159 = vsel %vm3050, %v4113, %v3650
    %v4160 = vsel %vm3050, %v4114, %v3652
    %v4161 = vsel %vm3097, %v4115, %v3793
    %v4162 = vsel %vm3097, %v4116, %v3795
    %v4163 = vsel %vm3097, %v4117, %v3797
    %v4164 = vsel %vm3097, %v4118, %v3799
    %v4165 = vsel %vm3097, %v4119, %v3801
    %v4166 = vsel %vm3097, %v4120, %v3803
    %v4167 = vsel %vm3097, %v4121, %v3805
    %v4168 = vsel %vm3097, %v4122, %v3807
    %v4169 = vsel %vm3097, %v4123, %v3809
    %v4170 = vsel %vm3097, %v4124, %v3811
    %v4171 = vsel %vm3097, %v4125, %v3813
    %v4172 = vsel %vm3097, %v4126, %v3815
    %v4173 = vsel %vm3097, %v4127, %v3817
    %v4174 = vsel %vm3097, %v4128, %v3819
    %v4175 = vsel %vm3097, %v4129, %v3821
    %v4176 = vsel %vm3097, %v4130, %v3823
    %v4177 = vsel %vm3097, %v4131, %v3825
    %v4178 = vsel %vm3097, %v4132, %v3827
    %v4179 = vsel %vm3097, %v4133, %v3829
    %v4180 = vsel %vm3097, %v4134, %v3831
    %v4181 = vsel %vm3097, %v4135, %v3833
    %v4182 = vsel %vm3097, %v4136, %v3835
    %v4183 = vsel %vm3097, %v4137, %v3837
    %v4184 = vsel %vm3097, %v4138, %v3839
    %v4185 = vsel %vm3097, %v4139, %v3841
    %v4186 = vsel %vm3097, %v4140, %v3843
    %v4187 = vsel %vm3097, %v4141, %v3845
    %v4188 = vsel %vm3097, %v4142, %v3847
    %v4189 = vsel %vm3097, %v4143, %v3849
    %v4190 = vsel %vm3097, %v4144, %v3851
    %v4191 = vsel %vm3097, %v4145, %v3853
    %v4192 = vsel %vm3097, %v4146, %v3855
    %v4193 = vsel %vm3097, %v4147, %v3857
    %v4194 = vsel %vm3097, %v4148, %v3859
    %v4195 = vsel %vm3097, %v4149, %v3861
    %v4196 = vsel %vm3097, %v4150, %v3863
    %v4197 = vsel %vm3097, %v4151, %v3865
    %v4198 = vsel %vm3097, %v4152, %v3867
    %v4199 = vsel %vm3097, %v4153, %v3869
    %v4200 = vsel %vm3097, %v4154, %v3871
    %v4201 = vsel %vm3097, %v4155, %v3873
    %v4202 = vsel %vm3097, %v4156, %v3875
    %v4203 = vsel %vm3097, %v4157, %v3877
    %v4204 = vsel %vm3097, %v4158, %v3879
    %v4205 = vsel %vm3097, %v4159, %v3881
    %v4206 = vsel %vm3097, %v4160, %v3883
    %v4207 = vpack.c.bf16 %v4162, %v4161
    %v4208 = vpack.c.bf16 %v3934, %v3932
    %v4209 = vpack.c.bf16 %v4164, %v4163
    %v4210 = vpack.c.bf16 %v3938, %v3936
    %v4211 = vpack.c.bf16 %v4166, %v4165
    %v4212 = vpack.c.bf16 %v3942, %v3940
    %v4213 = vpack.c.bf16 %v4168, %v4167
    %v4214 = vpack.c.bf16 %v3946, %v3944
    %v4215 = vpack.c.bf16 %v4170, %v4169
    %v4216 = vpack.c.bf16 %v3950, %v3948
    %v4217 = vpack.c.bf16 %v4172, %v4171
    %v4218 = vpack.c.bf16 %v3954, %v3952
    %v4219 = vpack.c.bf16 %v4174, %v4173
    %v4220 = vpack.c.bf16 %v3958, %v3956
    %v4221 = vpack.c.bf16 %v4176, %v4175
    %v4222 = vpack.c.bf16 %v3962, %v3960
    %v4223 = vpack.c.bf16 %v4178, %v4177
    %v4224 = vpack.c.bf16 %v3966, %v3964
    %v4225 = vpack.c.bf16 %v4180, %v4179
    %v4226 = vpack.c.bf16 %v3970, %v3968
    %v4227 = vpack.c.bf16 %v4182, %v4181
    %v4228 = vpack.c.bf16 %v3974, %v3972
    %v4229 = vpack.c.bf16 %v4184, %v4183
    %v4230 = vpack.c.bf16 %v3978, %v3976
    %v4231 = vpack.c.bf16 %v4186, %v4185
    %v4232 = vpack.c.bf16 %v3982, %v3980
    %v4233 = vpack.c.bf16 %v4188, %v4187
    %v4234 = vpack.c.bf16 %v3986, %v3984
    %v4235 = vpack.c.bf16 %v4190, %v4189
    %v4236 = vpack.c.bf16 %v3990, %v3988
    %v4237 = vpack.c.bf16 %v4192, %v4191
    %v4238 = vpack.c.bf16 %v3994, %v3992
    %v4239 = vpack.c.bf16 %v4194, %v4193
    %v4240 = vpack.c.bf16 %v3998, %v3996
    %v4241 = vpack.c.bf16 %v4196, %v4195
    %v4242 = vpack.c.bf16 %v4002, %v4000
    %v4243 = vpack.c.bf16 %v4198, %v4197
    %v4244 = vpack.c.bf16 %v4006, %v4004
    %v4245 = vpack.c.bf16 %v4200, %v4199
    %v4246 = vpack.c.bf16 %v4010, %v4008
    %v4247 = vpack.c.bf16 %v4202, %v4201
    %v4248 = vpack.c.bf16 %v4014, %v4012
    %v4249 = vpack.c.bf16 %v4204, %v4203
    %v4250 = vpack.c.bf16 %v4018, %v4016
    %v4251 = vpack.c.bf16 %v4206, %v4205
    %v4252 = vpack.c.bf16 %v4022, %v4020
    %4253 = vrot.lane.b32.xlu0 %v2261, 32
    %v4254 = vpop.permute.xlu0 %4253
    %4256 = vrot.lane.b32.xlu0 %v2493, 64
    %v4257 = vpop.permute.xlu0 %4256
    %4259 = vrot.lane.b32.xlu0 %v2724, 96
    %v4260 = vpop.permute.xlu0 %4259
    %v4262 = vsel %vm3003, %v1980, %v4254
    %v4263 = vsel %vm3050, %v4262, %v4257
    %v4264 = vsel %vm3097, %v4263, %v4260
    %v4265 = vpack.c.bf16 %v4264, %v4264
    %v4266 = vld [vmem:[%s3] sm:$0xf]
    %v4267 = vld [vmem:[%s3 + $0x4] sm:$0xf]
    %v4268 = vld [vmem:[%s3 + $0x8] sm:$0xf]
    %v4269 = vld [vmem:[%s3 + $0xc] sm:$0xf]
    %v4270 = vld [vmem:[%s3 + $0x10] sm:$0xf]
    %v4271 = vld [vmem:[%s3 + $0x14] sm:$0xf]
    %v4272 = vld [vmem:[%s3 + $0x18] sm:$0xf]
    %v4273 = vld [vmem:[%s3 + $0x1c] sm:$0xf]
    %v4274 = vld [vmem:[%s3 + $0x20] sm:$0xf]
    %v4275 = vld [vmem:[%s3 + $0x24] sm:$0xf]
    %v4276 = vld [vmem:[%s3 + $0x28] sm:$0xf]
    %v4277 = vld [vmem:[%s3 + $0x2c] sm:$0xf]
    %v4278 = vld [vmem:[%s3 + $0x30] sm:$0xf]
    %v4279 = vld [vmem:[%s3 + $0x34] sm:$0xf]
    %v4280 = vld [vmem:[%s3 + $0x38] sm:$0xf]
    %v4281 = vld [vmem:[%s3 + $0x3c] sm:$0xf]
    %v4282 = vld [vmem:[%s3 + $0x40] sm:$0xf]
    %v4283 = vld [vmem:[%s3 + $0x44] sm:$0xf]
    %v4284 = vld [vmem:[%s3 + $0x48] sm:$0xf]
    %v4285 = vld [vmem:[%s3 + $0x4c] sm:$0xf]
    %v4286 = vld [vmem:[%s4] sm:$0xf]
    %v4287 = vld [vmem:[%s4 + $0x4] sm:$0xf]
    %v4288 = vld [vmem:[%s4 + $0x8] sm:$0xf]
    %v4289 = vld [vmem:[%s4 + $0xc] sm:$0xf]
    %v4290 = vld [vmem:[%s4 + $0x10] sm:$0xf]
    %v4291 = vld [vmem:[%s4 + $0x14] sm:$0xf]
    %v4292 = vld [vmem:[%s4 + $0x18] sm:$0xf]
    %v4293 = vld [vmem:[%s4 + $0x1c] sm:$0xf]
    %v4294 = vld [vmem:[%s4 + $0x20] sm:$0xf]
    %v4295 = vld [vmem:[%s4 + $0x24] sm:$0xf]
    %v4296 = vld [vmem:[%s4 + $0x28] sm:$0xf]
    %v4297 = vld [vmem:[%s4 + $0x2c] sm:$0xf]
    %v4298 = vld [vmem:[%s4 + $0x30] sm:$0xf]
    %v4299 = vld [vmem:[%s4 + $0x34] sm:$0xf]
    %v4300 = vld [vmem:[%s4 + $0x38] sm:$0xf]
    %v4301 = vld [vmem:[%s4 + $0x3c] sm:$0xf]
    %v4318 = vunpack.c.l.b16 %v4286
    %v4319 = vunpack.c.l.b16 %v4287
    %v4320 = vunpack.c.l.b16 %v4288
    %v4321 = vunpack.c.l.b16 %v4289
    %v4322 = vunpack.c.l.b16 %v4290
    %v4323 = vunpack.c.l.b16 %v4291
    %v4324 = vunpack.c.l.b16 %v4292
    %v4325 = vunpack.c.l.b16 %v4293
    %v4326 = vunpack.c.l.b16 %v4294
    %v4327 = vunpack.c.l.b16 %v4295
    %v4328 = vunpack.c.l.b16 %v4296
    %v4329 = vunpack.c.l.b16 %v4297
    %v4330 = vunpack.c.l.b16 %v4298
    %v4331 = vunpack.c.l.b16 %v4299
    %v4332 = vunpack.c.l.b16 %v4300
    %v4333 = vunpack.c.l.b16 %v4301
    %v4334 = vpack.c.b16 %v4319, %v4318
    %v4335 = vpack.c.b16 %v4321, %v4320
    %v4336 = vpack.c.b16 %v4323, %v4322
    %v4337 = vpack.c.b16 %v4325, %v4324
    %v4338 = vpack.c.b16 %v4327, %v4326
    %v4339 = vpack.c.b16 %v4329, %v4328
    %v4340 = vpack.c.b16 %v4331, %v4330
    %v4341 = vpack.c.b16 %v4333, %v4332
    %4350 = vmatprep.subr.bf16.mxu0 0
    %4351 = vmatpush1.bf16.msra.mxu0 %v4341
    %4352 = vmatprep.subr.bf16.mxu0 0
    %4353 = vmatpush1.bf16.msra.mxu0 %v4340
    %4354 = vmatprep.subr.bf16.mxu0 0
    %4355 = vmatpush1.bf16.msra.mxu0 %v4339
    %4356 = vmatprep.subr.bf16.mxu0 0
    %4357 = vmatpush1.bf16.msra.mxu0 %v4338
    %4358 = vmatprep.subr.bf16.mxu0 0
    %4359 = vmatpush1.bf16.msra.mxu0 %v4337
    %4360 = vmatprep.subr.bf16.mxu0 0
    %4361 = vmatpush1.bf16.msra.mxu0 %v4336
    %4362 = vmatprep.subr.bf16.mxu0 0
    %4363 = vmatpush1.bf16.msra.mxu0 %v4335
    %4364 = vmatprep.subr.bf16.mxu0 0
    %4365 = vmatpush1.bf16.msra.mxu0 %v4334
    %4366 = vmatprep.subr.bf16.mxu0 0
    %4367 = vmatpush2.bf16.msra.mxu0 0
    %4368 = vmatprep.subr.bf16.mxu0 0
    %4369 = vmatpush2.bf16.msra.mxu0 0
    %4370 = vmatprep.subr.bf16.mxu0 0
    %4371 = vmatpush2.bf16.msra.mxu0 0
    %4372 = vmatprep.subr.bf16.mxu0 0
    %4373 = vmatpush2.bf16.msra.mxu0 0
    %4374 = vmatprep.subr.bf16.mxu0 0
    %4375 = vmatpush2.bf16.msra.mxu0 0
    %4376 = vmatprep.subr.bf16.mxu0 0
    %4377 = vmatpush2.bf16.msra.mxu0 0
    %4378 = vmatprep.subr.bf16.mxu0 0
    %4379 = vmatpush2.bf16.msra.mxu0 0
    %4380 = vmatprep.subr.bf16.mxu0 0
    %4381 = vmatpush2.bf16.msra.mxu0 0
    %4382 = vmatprep.mubr.bf16.mxu0 0
    %4383 = vmatmul.mubr.bf16.gmra.mxu0 %v4207
    %v4384 = vpop.f32.mrf.mxu0
    %v4385 = vadd.f32 0.0, %v4384
    %v4386 = vpop.f32.mrf.mxu0
    %v4387 = vpop.f32.mrf.mxu0
    %v4388 = vadd.f32 0.0, %v4387
    %v4389 = vpop.f32.mrf.mxu0
    %4390 = vmatprep.mubr.bf16.mxu0 0
    %4391 = vmatmul.mubr.bf16.gmra.mxu0 %v4209
    %v4392 = vpop.f32.mrf.mxu0
    %v4393 = vadd.f32 0.0, %v4392
    %v4394 = vpop.f32.mrf.mxu0
    %v4395 = vpop.f32.mrf.mxu0
    %v4396 = vadd.f32 0.0, %v4395
    %v4397 = vpop.f32.mrf.mxu0
    %4398 = vmatprep.mubr.bf16.mxu0 0
    %4399 = vmatmul.mubr.bf16.gmra.mxu0 %v4211
    %v4400 = vpop.f32.mrf.mxu0
    %v4401 = vadd.f32 0.0, %v4400
    %v4402 = vpop.f32.mrf.mxu0
    %v4403 = vpop.f32.mrf.mxu0
    %v4404 = vadd.f32 0.0, %v4403
    %v4405 = vpop.f32.mrf.mxu0
    %4406 = vmatprep.mubr.bf16.mxu0 0
    %4407 = vmatmul.mubr.bf16.gmra.mxu0 %v4213
    %v4408 = vpop.f32.mrf.mxu0
    %v4409 = vadd.f32 0.0, %v4408
    %v4410 = vpop.f32.mrf.mxu0
    %v4411 = vpop.f32.mrf.mxu0
    %v4412 = vadd.f32 0.0, %v4411
    %v4413 = vpop.f32.mrf.mxu0
    %4414 = vmatprep.mubr.bf16.mxu0 0
    %4415 = vmatmul.mubr.bf16.gmra.mxu0 %v4215
    %v4416 = vpop.f32.mrf.mxu0
    %v4417 = vadd.f32 0.0, %v4416
    %v4418 = vpop.f32.mrf.mxu0
    %v4419 = vpop.f32.mrf.mxu0
    %v4420 = vadd.f32 0.0, %v4419
    %v4421 = vpop.f32.mrf.mxu0
    %4422 = vmatprep.mubr.bf16.mxu0 0
    %4423 = vmatmul.mubr.bf16.gmra.mxu0 %v4217
    %v4424 = vpop.f32.mrf.mxu0
    %v4425 = vadd.f32 0.0, %v4424
    %v4426 = vpop.f32.mrf.mxu0
    %v4427 = vpop.f32.mrf.mxu0
    %v4428 = vadd.f32 0.0, %v4427
    %v4429 = vpop.f32.mrf.mxu0
    %4430 = vmatprep.mubr.bf16.mxu0 0
    %4431 = vmatmul.mubr.bf16.gmra.mxu0 %v4219
    %v4432 = vpop.f32.mrf.mxu0
    %v4433 = vadd.f32 0.0, %v4432
    %v4434 = vpop.f32.mrf.mxu0
    %v4435 = vpop.f32.mrf.mxu0
    %v4436 = vadd.f32 0.0, %v4435
    %v4437 = vpop.f32.mrf.mxu0
    %4438 = vmatprep.mubr.bf16.mxu0 0
    %4439 = vmatmul.mubr.bf16.gmra.mxu0 %v4221
    %v4440 = vpop.f32.mrf.mxu0
    %v4441 = vadd.f32 0.0, %v4440
    %v4442 = vpop.f32.mrf.mxu0
    %v4443 = vpop.f32.mrf.mxu0
    %v4444 = vadd.f32 0.0, %v4443
    %v4445 = vpop.f32.mrf.mxu0
    %4446 = vmatprep.mubr.bf16.mxu0 0
    %4447 = vmatmul.mubr.bf16.gmra.mxu0 %v4223
    %v4448 = vpop.f32.mrf.mxu0
    %v4449 = vadd.f32 0.0, %v4448
    %v4450 = vpop.f32.mrf.mxu0
    %v4451 = vpop.f32.mrf.mxu0
    %v4452 = vadd.f32 0.0, %v4451
    %v4453 = vpop.f32.mrf.mxu0
    %4454 = vmatprep.mubr.bf16.mxu0 0
    %4455 = vmatmul.mubr.bf16.gmra.mxu0 %v4225
    %v4456 = vpop.f32.mrf.mxu0
    %v4457 = vadd.f32 0.0, %v4456
    %v4458 = vpop.f32.mrf.mxu0
    %v4459 = vpop.f32.mrf.mxu0
    %v4460 = vadd.f32 0.0, %v4459
    %v4461 = vpop.f32.mrf.mxu0
    %4462 = vmatprep.mubr.bf16.mxu0 0
    %4463 = vmatmul.mubr.bf16.gmra.mxu0 %v4227
    %v4464 = vpop.f32.mrf.mxu0
    %v4465 = vadd.f32 0.0, %v4464
    %v4466 = vpop.f32.mrf.mxu0
    %v4467 = vpop.f32.mrf.mxu0
    %v4468 = vadd.f32 0.0, %v4467
    %v4469 = vpop.f32.mrf.mxu0
    %4470 = vmatprep.mubr.bf16.mxu0 0
    %4471 = vmatmul.mubr.bf16.gmra.mxu0 %v4229
    %v4472 = vpop.f32.mrf.mxu0
    %v4473 = vadd.f32 0.0, %v4472
    %v4474 = vpop.f32.mrf.mxu0
    %v4475 = vpop.f32.mrf.mxu0
    %v4476 = vadd.f32 0.0, %v4475
    %v4477 = vpop.f32.mrf.mxu0
    %4478 = vmatprep.mubr.bf16.mxu0 0
    %4479 = vmatmul.mubr.bf16.gmra.mxu0 %v4231
    %v4480 = vpop.f32.mrf.mxu0
    %v4481 = vadd.f32 0.0, %v4480
    %v4482 = vpop.f32.mrf.mxu0
    %v4483 = vpop.f32.mrf.mxu0
    %v4484 = vadd.f32 0.0, %v4483
    %v4485 = vpop.f32.mrf.mxu0
    %4486 = vmatprep.mubr.bf16.mxu0 0
    %4487 = vmatmul.mubr.bf16.gmra.mxu0 %v4233
    %v4488 = vpop.f32.mrf.mxu0
    %v4489 = vadd.f32 0.0, %v4488
    %v4490 = vpop.f32.mrf.mxu0
    %v4491 = vpop.f32.mrf.mxu0
    %v4492 = vadd.f32 0.0, %v4491
    %v4493 = vpop.f32.mrf.mxu0
    %4494 = vmatprep.mubr.bf16.mxu0 0
    %4495 = vmatmul.mubr.bf16.gmra.mxu0 %v4235
    %v4496 = vpop.f32.mrf.mxu0
    %v4497 = vadd.f32 0.0, %v4496
    %v4498 = vpop.f32.mrf.mxu0
    %v4499 = vpop.f32.mrf.mxu0
    %v4500 = vadd.f32 0.0, %v4499
    %v4501 = vpop.f32.mrf.mxu0
    %4502 = vmatprep.mubr.bf16.mxu0 0
    %4503 = vmatmul.mubr.bf16.gmra.mxu0 %v4237
    %v4504 = vpop.f32.mrf.mxu0
    %v4505 = vadd.f32 0.0, %v4504
    %v4506 = vpop.f32.mrf.mxu0
    %v4507 = vpop.f32.mrf.mxu0
    %v4508 = vadd.f32 0.0, %v4507
    %v4509 = vpop.f32.mrf.mxu0
    %4510 = vmatprep.mubr.bf16.mxu0 0
    %4511 = vmatmul.mubr.bf16.gmra.mxu0 %v4239
    %v4512 = vpop.f32.mrf.mxu0
    %v4513 = vadd.f32 0.0, %v4512
    %v4514 = vpop.f32.mrf.mxu0
    %v4515 = vpop.f32.mrf.mxu0
    %v4516 = vadd.f32 0.0, %v4515
    %v4517 = vpop.f32.mrf.mxu0
    %4518 = vmatprep.mubr.bf16.mxu0 0
    %4519 = vmatmul.mubr.bf16.gmra.mxu0 %v4241
    %v4520 = vpop.f32.mrf.mxu0
    %v4521 = vadd.f32 0.0, %v4520
    %v4522 = vpop.f32.mrf.mxu0
    %v4523 = vpop.f32.mrf.mxu0
    %v4524 = vadd.f32 0.0, %v4523
    %v4525 = vpop.f32.mrf.mxu0
    %4526 = vmatprep.mubr.bf16.mxu0 0
    %4527 = vmatmul.mubr.bf16.gmra.mxu0 %v4243
    %v4528 = vpop.f32.mrf.mxu0
    %v4529 = vadd.f32 0.0, %v4528
    %v4530 = vpop.f32.mrf.mxu0
    %v4531 = vpop.f32.mrf.mxu0
    %v4532 = vadd.f32 0.0, %v4531
    %v4533 = vpop.f32.mrf.mxu0
    %4534 = vmatprep.mubr.bf16.mxu0 0
    %4535 = vmatmul.mubr.bf16.gmra.mxu0 %v4245
    %v4536 = vpop.f32.mrf.mxu0
    %v4537 = vadd.f32 0.0, %v4536
    %v4538 = vpop.f32.mrf.mxu0
    %v4539 = vpop.f32.mrf.mxu0
    %v4540 = vadd.f32 0.0, %v4539
    %v4541 = vpop.f32.mrf.mxu0
    %4542 = vmatprep.mubr.bf16.mxu0 0
    %4543 = vmatmul.mubr.bf16.gmra.mxu0 %v4247
    %v4544 = vpop.f32.mrf.mxu0
    %v4545 = vadd.f32 0.0, %v4544
    %v4546 = vpop.f32.mrf.mxu0
    %v4547 = vpop.f32.mrf.mxu0
    %v4548 = vadd.f32 0.0, %v4547
    %v4549 = vpop.f32.mrf.mxu0
    %4550 = vmatprep.mubr.bf16.mxu0 0
    %4551 = vmatmul.mubr.bf16.gmra.mxu0 %v4249
    %v4552 = vpop.f32.mrf.mxu0
    %v4553 = vadd.f32 0.0, %v4552
    %v4554 = vpop.f32.mrf.mxu0
    %v4555 = vpop.f32.mrf.mxu0
    %v4556 = vadd.f32 0.0, %v4555
    %v4557 = vpop.f32.mrf.mxu0
    %4558 = vmatprep.mubr.bf16.mxu0 0
    %4559 = vmatmul.mubr.bf16.gmra.mxu0 %v4251
    %v4560 = vpop.f32.mrf.mxu0
    %v4561 = vadd.f32 0.0, %v4560
    %v4562 = vpop.f32.mrf.mxu0
    %v4563 = vpop.f32.mrf.mxu0
    %v4564 = vadd.f32 0.0, %v4563
    %v4565 = vpop.f32.mrf.mxu0
    %4566 = vdwg.mxu0
    %v4587 = vunpack.c.l.b16 %v4266
    %v4588 = vunpack.c.l.b16 %v4267
    %v4589 = vunpack.c.l.b16 %v4268
    %v4590 = vunpack.c.l.b16 %v4269
    %v4591 = vunpack.c.l.b16 %v4270
    %v4592 = vunpack.c.l.b16 %v4271
    %v4593 = vunpack.c.l.b16 %v4272
    %v4594 = vunpack.c.l.b16 %v4273
    %v4595 = vunpack.c.l.b16 %v4274
    %v4596 = vunpack.c.l.b16 %v4275
    %v4597 = vunpack.c.l.b16 %v4276
    %v4598 = vunpack.c.l.b16 %v4277
    %v4599 = vunpack.c.l.b16 %v4278
    %v4600 = vunpack.c.l.b16 %v4279
    %v4601 = vunpack.c.l.b16 %v4280
    %v4602 = vunpack.c.l.b16 %v4281
    %v4603 = vunpack.c.l.b16 %v4282
    %v4604 = vunpack.c.l.b16 %v4283
    %v4605 = vunpack.c.l.b16 %v4284
    %v4606 = vunpack.c.l.b16 %v4285
    %v4607 = vpack.c.b16 %v4588, %v4587
    %v4608 = vpack.c.b16 %v4590, %v4589
    %v4609 = vpack.c.b16 %v4592, %v4591
    %v4610 = vpack.c.b16 %v4594, %v4593
    %v4611 = vpack.c.b16 %v4596, %v4595
    %v4612 = vpack.c.b16 %v4598, %v4597
    %v4613 = vpack.c.b16 %v4600, %v4599
    %v4614 = vpack.c.b16 %v4602, %v4601
    %v4615 = vpack.c.b16 %v4604, %v4603
    %v4616 = vpack.c.b16 %v4606, %v4605
    %v4628 = vsel %vm3003, %v3145, 0
    %v4631 = vsel %vm3003, %v3147, 0
    %v4634 = vsel %vm3003, %v3149, 0
    %v4637 = vsel %vm3003, %v3151, 0
    %v4640 = vsel %vm3003, %v3153, 0
    %v4643 = vsel %vm3003, %v3155, 0
    %v4646 = vsel %vm3003, %v3157, 0
    %v4649 = vsel %vm3003, %v3159, 0
    %v4652 = vsel %vm3003, %v3161, 0
    %v4655 = vsel %vm3003, %v3163, 0
    %v4658 = vsel %vm3003, %v3165, 0
    %v4661 = vsel %vm3003, %v3167, 0
    %v4664 = vsel %vm3003, %v3169, 0
    %v4667 = vsel %vm3003, %v3171, 0
    %v4670 = vsel %vm3003, %v3173, 0
    %v4673 = vsel %vm3003, %v3175, 0
    %v4676 = vsel %vm3003, %v3177, 0
    %v4679 = vsel %vm3003, %v3179, 0
    %v4682 = vsel %vm3003, %v3181, 0
    %v4685 = vsel %vm3003, %v3183, 0
    %v4688 = vsel %vm3003, %v3185, 0
    %v4691 = vsel %vm3003, %v3187, 0
    %v4694 = vsel %vm3003, %v3189, 0
    %4696 = vmatprep.subr.bf16.mxu0 0
    %4697 = vmatpush1.bf16.msra.mxu0 %v4614
    %4698 = vmatprep.subr.bf16.mxu0 0
    %4699 = vmatpush1.bf16.msra.mxu0 %v4613
    %4700 = vmatprep.subr.bf16.mxu0 0
    %4701 = vmatpush1.bf16.msra.mxu0 %v4612
    %4702 = vmatprep.subr.bf16.mxu0 0
    %4703 = vmatpush1.bf16.msra.mxu0 %v4611
    %4704 = vmatprep.subr.bf16.mxu0 0
    %4705 = vmatpush1.bf16.msra.mxu0 %v4610
    %4706 = vmatprep.subr.bf16.mxu0 0
    %4707 = vmatpush1.bf16.msra.mxu0 %v4609
    %4708 = vmatprep.subr.bf16.mxu0 0
    %4709 = vmatpush1.bf16.msra.mxu0 %v4608
    %4710 = vmatprep.subr.bf16.mxu0 0
    %4711 = vmatpush1.bf16.msra.mxu0 %v4607
    %4712 = vmatprep.subr.bf16.mxu0 0
    %4713 = vmatpush2.bf16.msra.mxu0 0
    %4714 = vmatprep.subr.bf16.mxu0 0
    %4715 = vmatpush2.bf16.msra.mxu0 0
    %4716 = vmatprep.subr.bf16.mxu0 0
    %4717 = vmatpush2.bf16.msra.mxu0 0
    %4718 = vmatprep.subr.bf16.mxu0 0
    %4719 = vmatpush2.bf16.msra.mxu0 0
    %4720 = vmatprep.subr.bf16.mxu0 0
    %4721 = vmatpush2.bf16.msra.mxu0 0
    %4722 = vmatprep.subr.bf16.mxu0 0
    %4723 = vmatpush2.bf16.msra.mxu0 0
    %4724 = vmatprep.subr.bf16.mxu0 0
    %4725 = vmatpush2.bf16.msra.mxu0 %v4616
    %4726 = vmatprep.subr.bf16.mxu0 0
    %4727 = vmatpush2.bf16.msra.mxu0 %v4615
    %4728 = vmatprep.mubr.bf16.mxu0 %v4628
    %4729 = vmatmul.mubr.bf16.gmra.mxu0 %v3144
    %v4730 = vpop.f32.mrf.mxu0
    %v4731 = vadd.f32 %v4385, %v4730
    %v4732 = vpop.f32.mrf.mxu0
    %v4733 = vpop.f32.mrf.mxu0
    %v4734 = vadd.f32 %v4388, %v4733
    %v4735 = vpop.f32.mrf.mxu0
    %4736 = vmatprep.mubr.bf16.mxu0 %v4631
    %4737 = vmatmul.mubr.bf16.gmra.mxu0 %v3146
    %v4738 = vpop.f32.mrf.mxu0
    %v4739 = vadd.f32 %v4393, %v4738
    %v4740 = vpop.f32.mrf.mxu0
    %v4741 = vpop.f32.mrf.mxu0
    %v4742 = vadd.f32 %v4396, %v4741
    %v4743 = vpop.f32.mrf.mxu0
    %4744 = vmatprep.mubr.bf16.mxu0 %v4634
    %4745 = vmatmul.mubr.bf16.gmra.mxu0 %v3148
    %v4746 = vpop.f32.mrf.mxu0
    %v4747 = vadd.f32 %v4401, %v4746
    %v4748 = vpop.f32.mrf.mxu0
    %v4749 = vpop.f32.mrf.mxu0
    %v4750 = vadd.f32 %v4404, %v4749
    %v4751 = vpop.f32.mrf.mxu0
    %4752 = vmatprep.mubr.bf16.mxu0 %v4637
    %4753 = vmatmul.mubr.bf16.gmra.mxu0 %v3150
    %v4754 = vpop.f32.mrf.mxu0
    %v4755 = vadd.f32 %v4409, %v4754
    %v4756 = vpop.f32.mrf.mxu0
    %v4757 = vpop.f32.mrf.mxu0
    %v4758 = vadd.f32 %v4412, %v4757
    %v4759 = vpop.f32.mrf.mxu0
    %4760 = vmatprep.mubr.bf16.mxu0 %v4640
    %4761 = vmatmul.mubr.bf16.gmra.mxu0 %v3152
    %v4762 = vpop.f32.mrf.mxu0
    %v4763 = vadd.f32 %v4417, %v4762
    %v4764 = vpop.f32.mrf.mxu0
    %v4765 = vpop.f32.mrf.mxu0
    %v4766 = vadd.f32 %v4420, %v4765
    %v4767 = vpop.f32.mrf.mxu0
    %4768 = vmatprep.mubr.bf16.mxu0 %v4643
    %4769 = vmatmul.mubr.bf16.gmra.mxu0 %v3154
    %v4770 = vpop.f32.mrf.mxu0
    %v4771 = vadd.f32 %v4425, %v4770
    %v4772 = vpop.f32.mrf.mxu0
    %v4773 = vpop.f32.mrf.mxu0
    %v4774 = vadd.f32 %v4428, %v4773
    %v4775 = vpop.f32.mrf.mxu0
    %4776 = vmatprep.mubr.bf16.mxu0 %v4646
    %4777 = vmatmul.mubr.bf16.gmra.mxu0 %v3156
    %v4778 = vpop.f32.mrf.mxu0
    %v4779 = vadd.f32 %v4433, %v4778
    %v4780 = vpop.f32.mrf.mxu0
    %v4781 = vpop.f32.mrf.mxu0
    %v4782 = vadd.f32 %v4436, %v4781
    %v4783 = vpop.f32.mrf.mxu0
    %4784 = vmatprep.mubr.bf16.mxu0 %v4649
    %4785 = vmatmul.mubr.bf16.gmra.mxu0 %v3158
    %v4786 = vpop.f32.mrf.mxu0
    %v4787 = vadd.f32 %v4441, %v4786
    %v4788 = vpop.f32.mrf.mxu0
    %v4789 = vpop.f32.mrf.mxu0
    %v4790 = vadd.f32 %v4444, %v4789
    %v4791 = vpop.f32.mrf.mxu0
    %4792 = vmatprep.mubr.bf16.mxu0 %v4652
    %4793 = vmatmul.mubr.bf16.gmra.mxu0 %v3160
    %v4794 = vpop.f32.mrf.mxu0
    %v4795 = vadd.f32 %v4449, %v4794
    %v4796 = vpop.f32.mrf.mxu0
    %v4797 = vpop.f32.mrf.mxu0
    %v4798 = vadd.f32 %v4452, %v4797
    %v4799 = vpop.f32.mrf.mxu0
    %4800 = vmatprep.mubr.bf16.mxu0 %v4655
    %4801 = vmatmul.mubr.bf16.gmra.mxu0 %v3162
    %v4802 = vpop.f32.mrf.mxu0
    %v4803 = vadd.f32 %v4457, %v4802
    %v4804 = vpop.f32.mrf.mxu0
    %v4805 = vpop.f32.mrf.mxu0
    %v4806 = vadd.f32 %v4460, %v4805
    %v4807 = vpop.f32.mrf.mxu0
    %4808 = vmatprep.mubr.bf16.mxu0 %v4658
    %4809 = vmatmul.mubr.bf16.gmra.mxu0 %v3164
    %v4810 = vpop.f32.mrf.mxu0
    %v4811 = vadd.f32 %v4465, %v4810
    %v4812 = vpop.f32.mrf.mxu0
    %v4813 = vpop.f32.mrf.mxu0
    %v4814 = vadd.f32 %v4468, %v4813
    %v4815 = vpop.f32.mrf.mxu0
    %4816 = vmatprep.mubr.bf16.mxu0 %v4661
    %4817 = vmatmul.mubr.bf16.gmra.mxu0 %v3166
    %v4818 = vpop.f32.mrf.mxu0
    %v4819 = vadd.f32 %v4473, %v4818
    %v4820 = vpop.f32.mrf.mxu0
    %v4821 = vpop.f32.mrf.mxu0
    %v4822 = vadd.f32 %v4476, %v4821
    %v4823 = vpop.f32.mrf.mxu0
    %4824 = vmatprep.mubr.bf16.mxu0 %v4664
    %4825 = vmatmul.mubr.bf16.gmra.mxu0 %v3168
    %v4826 = vpop.f32.mrf.mxu0
    %v4827 = vadd.f32 %v4481, %v4826
    %v4828 = vpop.f32.mrf.mxu0
    %v4829 = vpop.f32.mrf.mxu0
    %v4830 = vadd.f32 %v4484, %v4829
    %v4831 = vpop.f32.mrf.mxu0
    %4832 = vmatprep.mubr.bf16.mxu0 %v4667
    %4833 = vmatmul.mubr.bf16.gmra.mxu0 %v3170
    %v4834 = vpop.f32.mrf.mxu0
    %v4835 = vadd.f32 %v4489, %v4834
    %v4836 = vpop.f32.mrf.mxu0
    %v4837 = vpop.f32.mrf.mxu0
    %v4838 = vadd.f32 %v4492, %v4837
    %v4839 = vpop.f32.mrf.mxu0
    %4840 = vmatprep.mubr.bf16.mxu0 %v4670
    %4841 = vmatmul.mubr.bf16.gmra.mxu0 %v3172
    %v4842 = vpop.f32.mrf.mxu0
    %v4843 = vadd.f32 %v4497, %v4842
    %v4844 = vpop.f32.mrf.mxu0
    %v4845 = vpop.f32.mrf.mxu0
    %v4846 = vadd.f32 %v4500, %v4845
    %v4847 = vpop.f32.mrf.mxu0
    %4848 = vmatprep.mubr.bf16.mxu0 %v4673
    %4849 = vmatmul.mubr.bf16.gmra.mxu0 %v3174
    %v4850 = vpop.f32.mrf.mxu0
    %v4851 = vadd.f32 %v4505, %v4850
    %v4852 = vpop.f32.mrf.mxu0
    %v4853 = vpop.f32.mrf.mxu0
    %v4854 = vadd.f32 %v4508, %v4853
    %v4855 = vpop.f32.mrf.mxu0
    %4856 = vmatprep.mubr.bf16.mxu0 %v4676
    %4857 = vmatmul.mubr.bf16.gmra.mxu0 %v3176
    %v4858 = vpop.f32.mrf.mxu0
    %v4859 = vadd.f32 %v4513, %v4858
    %v4860 = vpop.f32.mrf.mxu0
    %v4861 = vpop.f32.mrf.mxu0
    %v4862 = vadd.f32 %v4516, %v4861
    %v4863 = vpop.f32.mrf.mxu0
    %4864 = vmatprep.mubr.bf16.mxu0 %v4679
    %4865 = vmatmul.mubr.bf16.gmra.mxu0 %v3178
    %v4866 = vpop.f32.mrf.mxu0
    %v4867 = vadd.f32 %v4521, %v4866
    %v4868 = vpop.f32.mrf.mxu0
    %v4869 = vpop.f32.mrf.mxu0
    %v4870 = vadd.f32 %v4524, %v4869
    %v4871 = vpop.f32.mrf.mxu0
    %4872 = vmatprep.mubr.bf16.mxu0 %v4682
    %4873 = vmatmul.mubr.bf16.gmra.mxu0 %v3180
    %v4874 = vpop.f32.mrf.mxu0
    %v4875 = vadd.f32 %v4529, %v4874
    %v4876 = vpop.f32.mrf.mxu0
    %v4877 = vpop.f32.mrf.mxu0
    %v4878 = vadd.f32 %v4532, %v4877
    %v4879 = vpop.f32.mrf.mxu0
    %4880 = vmatprep.mubr.bf16.mxu0 %v4685
    %4881 = vmatmul.mubr.bf16.gmra.mxu0 %v3182
    %v4882 = vpop.f32.mrf.mxu0
    %v4883 = vadd.f32 %v4537, %v4882
    %v4884 = vpop.f32.mrf.mxu0
    %v4885 = vpop.f32.mrf.mxu0
    %v4886 = vadd.f32 %v4540, %v4885
    %v4887 = vpop.f32.mrf.mxu0
    %4888 = vmatprep.mubr.bf16.mxu0 %v4688
    %4889 = vmatmul.mubr.bf16.gmra.mxu0 %v3184
    %v4890 = vpop.f32.mrf.mxu0
    %v4891 = vadd.f32 %v4545, %v4890
    %v4892 = vpop.f32.mrf.mxu0
    %v4893 = vpop.f32.mrf.mxu0
    %v4894 = vadd.f32 %v4548, %v4893
    %v4895 = vpop.f32.mrf.mxu0
    %4896 = vmatprep.mubr.bf16.mxu0 %v4691
    %4897 = vmatmul.mubr.bf16.gmra.mxu0 %v3186
    %v4898 = vpop.f32.mrf.mxu0
    %v4899 = vadd.f32 %v4553, %v4898
    %v4900 = vpop.f32.mrf.mxu0
    %v4901 = vpop.f32.mrf.mxu0
    %v4902 = vadd.f32 %v4556, %v4901
    %v4903 = vpop.f32.mrf.mxu0
    %4904 = vmatprep.mubr.bf16.mxu0 %v4694
    %4905 = vmatmul.mubr.bf16.gmra.mxu0 %v3188
    %v4906 = vpop.f32.mrf.mxu0
    %v4907 = vadd.f32 %v4561, %v4906
    %v4908 = vpop.f32.mrf.mxu0
    %v4909 = vpop.f32.mrf.mxu0
    %v4910 = vadd.f32 %v4564, %v4909
    %v4911 = vpop.f32.mrf.mxu0
    %4912 = vdwg.mxu0
    %vm4913 = vsmask.f32 7424
    %v4915 = vshrl.u32 %v3144, 16
    %v4917 = vshll.u32 %v3144, 16
    %v4919 = vrot.slane %v4917, 1
    %v4920 = vor.u32 %v4915, %v4919
    %v4922 = vshll.u32 %v3146, 16
    %v4924 = vrot.slane %v4922, 1
    %v4925 = vsel %vm4913, %v4920, %v4924
    %v4926 = vshrl.u32 %v3146, 16
    %v4928 = vor.u32 %v4926, %v4924
    %v4930 = vshll.u32 %v3148, 16
    %v4932 = vrot.slane %v4930, 1
    %v4933 = vsel %vm4913, %v4928, %v4932
    %v4934 = vshrl.u32 %v3148, 16
    %v4936 = vor.u32 %v4934, %v4932
    %v4938 = vshll.u32 %v3150, 16
    %v4940 = vrot.slane %v4938, 1
    %v4941 = vsel %vm4913, %v4936, %v4940
    %v4942 = vshrl.u32 %v3150, 16
    %v4944 = vor.u32 %v4942, %v4940
    %v4946 = vshll.u32 %v3152, 16
    %v4948 = vrot.slane %v4946, 1
    %v4949 = vsel %vm4913, %v4944, %v4948
    %v4950 = vshrl.u32 %v3152, 16
    %v4952 = vor.u32 %v4950, %v4948
    %v4954 = vshll.u32 %v3154, 16
    %v4956 = vrot.slane %v4954, 1
    %v4957 = vsel %vm4913, %v4952, %v4956
    %v4958 = vshrl.u32 %v3154, 16
    %v4960 = vor.u32 %v4958, %v4956
    %v4962 = vshll.u32 %v3156, 16
    %v4964 = vrot.slane %v4962, 1
    %v4965 = vsel %vm4913, %v4960, %v4964
    %v4966 = vshrl.u32 %v3156, 16
    %v4968 = vor.u32 %v4966, %v4964
    %v4970 = vshll.u32 %v3158, 16
    %v4972 = vrot.slane %v4970, 1
    %v4973 = vsel %vm4913, %v4968, %v4972
    %v4974 = vshrl.u32 %v3158, 16
    %v4976 = vor.u32 %v4974, %v4972
    %v4978 = vshll.u32 %v3160, 16
    %v4980 = vrot.slane %v4978, 1
    %v4981 = vsel %vm4913, %v4976, %v4980
    %v4982 = vshrl.u32 %v3160, 16
    %v4984 = vor.u32 %v4982, %v4980
    %v4986 = vshll.u32 %v3162, 16
    %v4988 = vrot.slane %v4986, 1
    %v4989 = vsel %vm4913, %v4984, %v4988
    %v4990 = vshrl.u32 %v3162, 16
    %v4992 = vor.u32 %v4990, %v4988
    %v4994 = vshll.u32 %v3164, 16
    %v4996 = vrot.slane %v4994, 1
    %v4997 = vsel %vm4913, %v4992, %v4996
    %v4998 = vshrl.u32 %v3164, 16
    %v5000 = vor.u32 %v4998, %v4996
    %v5002 = vshll.u32 %v3166, 16
    %v5004 = vrot.slane %v5002, 1
    %v5005 = vsel %vm4913, %v5000, %v5004
    %v5006 = vshrl.u32 %v3166, 16
    %v5008 = vor.u32 %v5006, %v5004
    %v5010 = vshll.u32 %v3168, 16
    %v5012 = vrot.slane %v5010, 1
    %v5013 = vsel %vm4913, %v5008, %v5012
    %v5014 = vshrl.u32 %v3168, 16
    %v5016 = vor.u32 %v5014, %v5012
    %v5018 = vshll.u32 %v3170, 16
    %v5020 = vrot.slane %v5018, 1
    %v5021 = vsel %vm4913, %v5016, %v5020
    %v5022 = vshrl.u32 %v3170, 16
    %v5024 = vor.u32 %v5022, %v5020
    %v5026 = vshll.u32 %v3172, 16
    %v5028 = vrot.slane %v5026, 1
    %v5029 = vsel %vm4913, %v5024, %v5028
    %v5030 = vshrl.u32 %v3172, 16
    %v5032 = vor.u32 %v5030, %v5028
    %v5034 = vshll.u32 %v3174, 16
    %v5036 = vrot.slane %v5034, 1
    %v5037 = vsel %vm4913, %v5032, %v5036
    %v5038 = vshrl.u32 %v3174, 16
    %v5040 = vor.u32 %v5038, %v5036
    %v5042 = vshll.u32 %v3176, 16
    %v5044 = vrot.slane %v5042, 1
    %v5045 = vsel %vm4913, %v5040, %v5044
    %v5046 = vshrl.u32 %v3176, 16
    %v5048 = vor.u32 %v5046, %v5044
    %v5050 = vshll.u32 %v3178, 16
    %v5052 = vrot.slane %v5050, 1
    %v5053 = vsel %vm4913, %v5048, %v5052
    %v5054 = vshrl.u32 %v3178, 16
    %v5056 = vor.u32 %v5054, %v5052
    %v5058 = vshll.u32 %v3180, 16
    %v5060 = vrot.slane %v5058, 1
    %v5061 = vsel %vm4913, %v5056, %v5060
    %v5062 = vshrl.u32 %v3180, 16
    %v5064 = vor.u32 %v5062, %v5060
    %v5066 = vshll.u32 %v3182, 16
    %v5068 = vrot.slane %v5066, 1
    %v5069 = vsel %vm4913, %v5064, %v5068
    %v5070 = vshrl.u32 %v3182, 16
    %v5072 = vor.u32 %v5070, %v5068
    %v5074 = vshll.u32 %v3184, 16
    %v5076 = vrot.slane %v5074, 1
    %v5077 = vsel %vm4913, %v5072, %v5076
    %v5078 = vshrl.u32 %v3184, 16
    %v5080 = vor.u32 %v5078, %v5076
    %v5082 = vshll.u32 %v3186, 16
    %v5084 = vrot.slane %v5082, 1
    %v5085 = vsel %vm4913, %v5080, %v5084
    %v5086 = vshrl.u32 %v3186, 16
    %v5088 = vor.u32 %v5086, %v5084
    %v5090 = vshll.u32 %v3188, 16
    %v5092 = vrot.slane %v5090, 1
    %v5093 = vsel %vm4913, %v5088, %v5092
    %v5094 = vshrl.u32 %v3188, 16
    %v5096 = vor.u32 %v5094, %v5092
    %v5098 = vshll.u32 %v4265, 16
    %v5100 = vrot.slane %v5098, 1
    %v5101 = vsel %vm4913, %v5096, %v5100
    %5125 = vmatprep.subr.bf16.mxu0 0
    %5126 = vmatpush1.bf16.msra.mxu0 %v4341
    %5127 = vmatprep.subr.bf16.mxu0 0
    %5128 = vmatpush1.bf16.msra.mxu0 %v4340
    %5129 = vmatprep.subr.bf16.mxu0 0
    %5130 = vmatpush1.bf16.msra.mxu0 %v4339
    %5131 = vmatprep.subr.bf16.mxu0 0
    %5132 = vmatpush1.bf16.msra.mxu0 %v4338
    %5133 = vmatprep.subr.bf16.mxu0 0
    %5134 = vmatpush1.bf16.msra.mxu0 %v4337
    %5135 = vmatprep.subr.bf16.mxu0 0
    %5136 = vmatpush1.bf16.msra.mxu0 %v4336
    %5137 = vmatprep.subr.bf16.mxu0 0
    %5138 = vmatpush1.bf16.msra.mxu0 %v4335
    %5139 = vmatprep.subr.bf16.mxu0 0
    %5140 = vmatpush1.bf16.msra.mxu0 %v4334
    %5141 = vmatprep.subr.bf16.mxu0 0
    %5142 = vmatpush2.bf16.msra.mxu0 0
    %5143 = vmatprep.subr.bf16.mxu0 0
    %5144 = vmatpush2.bf16.msra.mxu0 0
    %5145 = vmatprep.subr.bf16.mxu0 0
    %5146 = vmatpush2.bf16.msra.mxu0 0
    %5147 = vmatprep.subr.bf16.mxu0 0
    %5148 = vmatpush2.bf16.msra.mxu0 0
    %5149 = vmatprep.subr.bf16.mxu0 0
    %5150 = vmatpush2.bf16.msra.mxu0 0
    %5151 = vmatprep.subr.bf16.mxu0 0
    %5152 = vmatpush2.bf16.msra.mxu0 0
    %5153 = vmatprep.subr.bf16.mxu0 0
    %5154 = vmatpush2.bf16.msra.mxu0 0
    %5155 = vmatprep.subr.bf16.mxu0 0
    %5156 = vmatpush2.bf16.msra.mxu0 0
    %5157 = vmatprep.mubr.bf16.mxu0 0
    %5158 = vmatmul.mubr.bf16.gmra.mxu0 %v4925
    %v5159 = vpop.f32.mrf.mxu0
    %v5160 = vadd.f32 0.0, %v5159
    %v5161 = vpop.f32.mrf.mxu0
    %v5162 = vpop.f32.mrf.mxu0
    %v5163 = vadd.f32 0.0, %v5162
    %v5164 = vpop.f32.mrf.mxu0
    %5165 = vmatprep.mubr.bf16.mxu0 0
    %5166 = vmatmul.mubr.bf16.gmra.mxu0 %v4933
    %v5167 = vpop.f32.mrf.mxu0
    %v5168 = vadd.f32 0.0, %v5167
    %v5169 = vpop.f32.mrf.mxu0
    %v5170 = vpop.f32.mrf.mxu0
    %v5171 = vadd.f32 0.0, %v5170
    %v5172 = vpop.f32.mrf.mxu0
    %5173 = vmatprep.mubr.bf16.mxu0 0
    %5174 = vmatmul.mubr.bf16.gmra.mxu0 %v4941
    %v5175 = vpop.f32.mrf.mxu0
    %v5176 = vadd.f32 0.0, %v5175
    %v5177 = vpop.f32.mrf.mxu0
    %v5178 = vpop.f32.mrf.mxu0
    %v5179 = vadd.f32 0.0, %v5178
    %v5180 = vpop.f32.mrf.mxu0
    %5181 = vmatprep.mubr.bf16.mxu0 0
    %5182 = vmatmul.mubr.bf16.gmra.mxu0 %v4949
    %v5183 = vpop.f32.mrf.mxu0
    %v5184 = vadd.f32 0.0, %v5183
    %v5185 = vpop.f32.mrf.mxu0
    %v5186 = vpop.f32.mrf.mxu0
    %v5187 = vadd.f32 0.0, %v5186
    %v5188 = vpop.f32.mrf.mxu0
    %5189 = vmatprep.mubr.bf16.mxu0 0
    %5190 = vmatmul.mubr.bf16.gmra.mxu0 %v4957
    %v5191 = vpop.f32.mrf.mxu0
    %v5192 = vadd.f32 0.0, %v5191
    %v5193 = vpop.f32.mrf.mxu0
    %v5194 = vpop.f32.mrf.mxu0
    %v5195 = vadd.f32 0.0, %v5194
    %v5196 = vpop.f32.mrf.mxu0
    %5197 = vmatprep.mubr.bf16.mxu0 0
    %5198 = vmatmul.mubr.bf16.gmra.mxu0 %v4965
    %v5199 = vpop.f32.mrf.mxu0
    %v5200 = vadd.f32 0.0, %v5199
    %v5201 = vpop.f32.mrf.mxu0
    %v5202 = vpop.f32.mrf.mxu0
    %v5203 = vadd.f32 0.0, %v5202
    %v5204 = vpop.f32.mrf.mxu0
    %5205 = vmatprep.mubr.bf16.mxu0 0
    %5206 = vmatmul.mubr.bf16.gmra.mxu0 %v4973
    %v5207 = vpop.f32.mrf.mxu0
    %v5208 = vadd.f32 0.0, %v5207
    %v5209 = vpop.f32.mrf.mxu0
    %v5210 = vpop.f32.mrf.mxu0
    %v5211 = vadd.f32 0.0, %v5210
    %v5212 = vpop.f32.mrf.mxu0
    %5213 = vmatprep.mubr.bf16.mxu0 0
    %5214 = vmatmul.mubr.bf16.gmra.mxu0 %v4981
    %v5215 = vpop.f32.mrf.mxu0
    %v5216 = vadd.f32 0.0, %v5215
    %v5217 = vpop.f32.mrf.mxu0
    %v5218 = vpop.f32.mrf.mxu0
    %v5219 = vadd.f32 0.0, %v5218
    %v5220 = vpop.f32.mrf.mxu0
    %5221 = vmatprep.mubr.bf16.mxu0 0
    %5222 = vmatmul.mubr.bf16.gmra.mxu0 %v4989
    %v5223 = vpop.f32.mrf.mxu0
    %v5224 = vadd.f32 0.0, %v5223
    %v5225 = vpop.f32.mrf.mxu0
    %v5226 = vpop.f32.mrf.mxu0
    %v5227 = vadd.f32 0.0, %v5226
    %v5228 = vpop.f32.mrf.mxu0
    %5229 = vmatprep.mubr.bf16.mxu0 0
    %5230 = vmatmul.mubr.bf16.gmra.mxu0 %v4997
    %v5231 = vpop.f32.mrf.mxu0
    %v5232 = vadd.f32 0.0, %v5231
    %v5233 = vpop.f32.mrf.mxu0
    %v5234 = vpop.f32.mrf.mxu0
    %v5235 = vadd.f32 0.0, %v5234
    %v5236 = vpop.f32.mrf.mxu0
    %5237 = vmatprep.mubr.bf16.mxu0 0
    %5238 = vmatmul.mubr.bf16.gmra.mxu0 %v5005
    %v5239 = vpop.f32.mrf.mxu0
    %v5240 = vadd.f32 0.0, %v5239
    %v5241 = vpop.f32.mrf.mxu0
    %v5242 = vpop.f32.mrf.mxu0
    %v5243 = vadd.f32 0.0, %v5242
    %v5244 = vpop.f32.mrf.mxu0
    %5245 = vmatprep.mubr.bf16.mxu0 0
    %5246 = vmatmul.mubr.bf16.gmra.mxu0 %v5013
    %v5247 = vpop.f32.mrf.mxu0
    %v5248 = vadd.f32 0.0, %v5247
    %v5249 = vpop.f32.mrf.mxu0
    %v5250 = vpop.f32.mrf.mxu0
    %v5251 = vadd.f32 0.0, %v5250
    %v5252 = vpop.f32.mrf.mxu0
    %5253 = vmatprep.mubr.bf16.mxu0 0
    %5254 = vmatmul.mubr.bf16.gmra.mxu0 %v5021
    %v5255 = vpop.f32.mrf.mxu0
    %v5256 = vadd.f32 0.0, %v5255
    %v5257 = vpop.f32.mrf.mxu0
    %v5258 = vpop.f32.mrf.mxu0
    %v5259 = vadd.f32 0.0, %v5258
    %v5260 = vpop.f32.mrf.mxu0
    %5261 = vmatprep.mubr.bf16.mxu0 0
    %5262 = vmatmul.mubr.bf16.gmra.mxu0 %v5029
    %v5263 = vpop.f32.mrf.mxu0
    %v5264 = vadd.f32 0.0, %v5263
    %v5265 = vpop.f32.mrf.mxu0
    %v5266 = vpop.f32.mrf.mxu0
    %v5267 = vadd.f32 0.0, %v5266
    %v5268 = vpop.f32.mrf.mxu0
    %5269 = vmatprep.mubr.bf16.mxu0 0
    %5270 = vmatmul.mubr.bf16.gmra.mxu0 %v5037
    %v5271 = vpop.f32.mrf.mxu0
    %v5272 = vadd.f32 0.0, %v5271
    %v5273 = vpop.f32.mrf.mxu0
    %v5274 = vpop.f32.mrf.mxu0
    %v5275 = vadd.f32 0.0, %v5274
    %v5276 = vpop.f32.mrf.mxu0
    %5277 = vmatprep.mubr.bf16.mxu0 0
    %5278 = vmatmul.mubr.bf16.gmra.mxu0 %v5045
    %v5279 = vpop.f32.mrf.mxu0
    %v5280 = vadd.f32 0.0, %v5279
    %v5281 = vpop.f32.mrf.mxu0
    %v5282 = vpop.f32.mrf.mxu0
    %v5283 = vadd.f32 0.0, %v5282
    %v5284 = vpop.f32.mrf.mxu0
    %5285 = vmatprep.mubr.bf16.mxu0 0
    %5286 = vmatmul.mubr.bf16.gmra.mxu0 %v5053
    %v5287 = vpop.f32.mrf.mxu0
    %v5288 = vadd.f32 0.0, %v5287
    %v5289 = vpop.f32.mrf.mxu0
    %v5290 = vpop.f32.mrf.mxu0
    %v5291 = vadd.f32 0.0, %v5290
    %v5292 = vpop.f32.mrf.mxu0
    %5293 = vmatprep.mubr.bf16.mxu0 0
    %5294 = vmatmul.mubr.bf16.gmra.mxu0 %v5061
    %v5295 = vpop.f32.mrf.mxu0
    %v5296 = vadd.f32 0.0, %v5295
    %v5297 = vpop.f32.mrf.mxu0
    %v5298 = vpop.f32.mrf.mxu0
    %v5299 = vadd.f32 0.0, %v5298
    %v5300 = vpop.f32.mrf.mxu0
    %5301 = vmatprep.mubr.bf16.mxu0 0
    %5302 = vmatmul.mubr.bf16.gmra.mxu0 %v5069
    %v5303 = vpop.f32.mrf.mxu0
    %v5304 = vadd.f32 0.0, %v5303
    %v5305 = vpop.f32.mrf.mxu0
    %v5306 = vpop.f32.mrf.mxu0
    %v5307 = vadd.f32 0.0, %v5306
    %v5308 = vpop.f32.mrf.mxu0
    %5309 = vmatprep.mubr.bf16.mxu0 0
    %5310 = vmatmul.mubr.bf16.gmra.mxu0 %v5077
    %v5311 = vpop.f32.mrf.mxu0
    %v5312 = vadd.f32 0.0, %v5311
    %v5313 = vpop.f32.mrf.mxu0
    %v5314 = vpop.f32.mrf.mxu0
    %v5315 = vadd.f32 0.0, %v5314
    %v5316 = vpop.f32.mrf.mxu0
    %5317 = vmatprep.mubr.bf16.mxu0 0
    %5318 = vmatmul.mubr.bf16.gmra.mxu0 %v5085
    %v5319 = vpop.f32.mrf.mxu0
    %v5320 = vadd.f32 0.0, %v5319
    %v5321 = vpop.f32.mrf.mxu0
    %v5322 = vpop.f32.mrf.mxu0
    %v5323 = vadd.f32 0.0, %v5322
    %v5324 = vpop.f32.mrf.mxu0
    %5325 = vmatprep.mubr.bf16.mxu0 0
    %5326 = vmatmul.mubr.bf16.gmra.mxu0 %v5093
    %v5327 = vpop.f32.mrf.mxu0
    %v5328 = vadd.f32 0.0, %v5327
    %v5329 = vpop.f32.mrf.mxu0
    %v5330 = vpop.f32.mrf.mxu0
    %v5331 = vadd.f32 0.0, %v5330
    %v5332 = vpop.f32.mrf.mxu0
    %5333 = vmatprep.mubr.bf16.mxu0 0
    %5334 = vmatmul.mubr.bf16.gmra.mxu0 %v5101
    %v5335 = vpop.f32.mrf.mxu0
    %v5336 = vadd.f32 0.0, %v5335
    %v5337 = vpop.f32.mrf.mxu0
    %v5338 = vpop.f32.mrf.mxu0
    %v5339 = vadd.f32 0.0, %v5338
    %v5340 = vpop.f32.mrf.mxu0
    %5341 = vdwg.mxu0
    %v5343 = vsel %vm3003, %v4208, 0
    %v5346 = vsel %vm3003, %v4210, 0
    %v5349 = vsel %vm3003, %v4212, 0
    %v5352 = vsel %vm3003, %v4214, 0
    %v5355 = vsel %vm3003, %v4216, 0
    %v5358 = vsel %vm3003, %v4218, 0
    %v5361 = vsel %vm3003, %v4220, 0
    %v5364 = vsel %vm3003, %v4222, 0
    %v5367 = vsel %vm3003, %v4224, 0
    %v5370 = vsel %vm3003, %v4226, 0
    %v5373 = vsel %vm3003, %v4228, 0
    %v5376 = vsel %vm3003, %v4230, 0
    %v5379 = vsel %vm3003, %v4232, 0
    %v5382 = vsel %vm3003, %v4234, 0
    %v5385 = vsel %vm3003, %v4236, 0
    %v5388 = vsel %vm3003, %v4238, 0
    %v5391 = vsel %vm3003, %v4240, 0
    %v5394 = vsel %vm3003, %v4242, 0
    %v5397 = vsel %vm3003, %v4244, 0
    %v5400 = vsel %vm3003, %v4246, 0
    %v5403 = vsel %vm3003, %v4248, 0
    %v5406 = vsel %vm3003, %v4250, 0
    %v5409 = vsel %vm3003, %v4252, 0
    %5411 = vmatprep.subr.bf16.mxu0 0
    %5412 = vmatpush1.bf16.msra.mxu0 %v4614
    %5413 = vmatprep.subr.bf16.mxu0 0
    %5414 = vmatpush1.bf16.msra.mxu0 %v4613
    %5415 = vmatprep.subr.bf16.mxu0 0
    %5416 = vmatpush1.bf16.msra.mxu0 %v4612
    %5417 = vmatprep.subr.bf16.mxu0 0
    %5418 = vmatpush1.bf16.msra.mxu0 %v4611
    %5419 = vmatprep.subr.bf16.mxu0 0
    %5420 = vmatpush1.bf16.msra.mxu0 %v4610
    %5421 = vmatprep.subr.bf16.mxu0 0
    %5422 = vmatpush1.bf16.msra.mxu0 %v4609
    %5423 = vmatprep.subr.bf16.mxu0 0
    %5424 = vmatpush1.bf16.msra.mxu0 %v4608
    %5425 = vmatprep.subr.bf16.mxu0 0
    %5426 = vmatpush1.bf16.msra.mxu0 %v4607
    %5427 = vmatprep.subr.bf16.mxu0 0
    %5428 = vmatpush2.bf16.msra.mxu0 0
    %5429 = vmatprep.subr.bf16.mxu0 0
    %5430 = vmatpush2.bf16.msra.mxu0 0
    %5431 = vmatprep.subr.bf16.mxu0 0
    %5432 = vmatpush2.bf16.msra.mxu0 0
    %5433 = vmatprep.subr.bf16.mxu0 0
    %5434 = vmatpush2.bf16.msra.mxu0 0
    %5435 = vmatprep.subr.bf16.mxu0 0
    %5436 = vmatpush2.bf16.msra.mxu0 0
    %5437 = vmatprep.subr.bf16.mxu0 0
    %5438 = vmatpush2.bf16.msra.mxu0 0
    %5439 = vmatprep.subr.bf16.mxu0 0
    %5440 = vmatpush2.bf16.msra.mxu0 %v4616
    %5441 = vmatprep.subr.bf16.mxu0 0
    %5442 = vmatpush2.bf16.msra.mxu0 %v4615
    %5443 = vmatprep.mubr.bf16.mxu0 %v5343
    %5444 = vmatmul.mubr.bf16.gmra.mxu0 %v4207
    %v5445 = vpop.f32.mrf.mxu0
    %v5446 = vadd.f32 %v5160, %v5445
    %v5447 = vpop.f32.mrf.mxu0
    %v5448 = vpop.f32.mrf.mxu0
    %v5449 = vadd.f32 %v5163, %v5448
    %v5450 = vpop.f32.mrf.mxu0
    %5451 = vmatprep.mubr.bf16.mxu0 %v5346
    %5452 = vmatmul.mubr.bf16.gmra.mxu0 %v4209
    %v5453 = vpop.f32.mrf.mxu0
    %v5454 = vadd.f32 %v5168, %v5453
    %v5455 = vpop.f32.mrf.mxu0
    %v5456 = vpop.f32.mrf.mxu0
    %v5457 = vadd.f32 %v5171, %v5456
    %v5458 = vpop.f32.mrf.mxu0
    %5459 = vmatprep.mubr.bf16.mxu0 %v5349
    %5460 = vmatmul.mubr.bf16.gmra.mxu0 %v4211
    %v5461 = vpop.f32.mrf.mxu0
    %v5462 = vadd.f32 %v5176, %v5461
    %v5463 = vpop.f32.mrf.mxu0
    %v5464 = vpop.f32.mrf.mxu0
    %v5465 = vadd.f32 %v5179, %v5464
    %v5466 = vpop.f32.mrf.mxu0
    %5467 = vmatprep.mubr.bf16.mxu0 %v5352
    %5468 = vmatmul.mubr.bf16.gmra.mxu0 %v4213
    %v5469 = vpop.f32.mrf.mxu0
    %v5470 = vadd.f32 %v5184, %v5469
    %v5471 = vpop.f32.mrf.mxu0
    %v5472 = vpop.f32.mrf.mxu0
    %v5473 = vadd.f32 %v5187, %v5472
    %v5474 = vpop.f32.mrf.mxu0
    %5475 = vmatprep.mubr.bf16.mxu0 %v5355
    %5476 = vmatmul.mubr.bf16.gmra.mxu0 %v4215
    %v5477 = vpop.f32.mrf.mxu0
    %v5478 = vadd.f32 %v5192, %v5477
    %v5479 = vpop.f32.mrf.mxu0
    %v5480 = vpop.f32.mrf.mxu0
    %v5481 = vadd.f32 %v5195, %v5480
    %v5482 = vpop.f32.mrf.mxu0
    %5483 = vmatprep.mubr.bf16.mxu0 %v5358
    %5484 = vmatmul.mubr.bf16.gmra.mxu0 %v4217
    %v5485 = vpop.f32.mrf.mxu0
    %v5486 = vadd.f32 %v5200, %v5485
    %v5487 = vpop.f32.mrf.mxu0
    %v5488 = vpop.f32.mrf.mxu0
    %v5489 = vadd.f32 %v5203, %v5488
    %v5490 = vpop.f32.mrf.mxu0
    %5491 = vmatprep.mubr.bf16.mxu0 %v5361
    %5492 = vmatmul.mubr.bf16.gmra.mxu0 %v4219
    %v5493 = vpop.f32.mrf.mxu0
    %v5494 = vadd.f32 %v5208, %v5493
    %v5495 = vpop.f32.mrf.mxu0
    %v5496 = vpop.f32.mrf.mxu0
    %v5497 = vadd.f32 %v5211, %v5496
    %v5498 = vpop.f32.mrf.mxu0
    %5499 = vmatprep.mubr.bf16.mxu0 %v5364
    %5500 = vmatmul.mubr.bf16.gmra.mxu0 %v4221
    %v5501 = vpop.f32.mrf.mxu0
    %v5502 = vadd.f32 %v5216, %v5501
    %v5503 = vpop.f32.mrf.mxu0
    %v5504 = vpop.f32.mrf.mxu0
    %v5505 = vadd.f32 %v5219, %v5504
    %v5506 = vpop.f32.mrf.mxu0
    %5507 = vmatprep.mubr.bf16.mxu0 %v5367
    %5508 = vmatmul.mubr.bf16.gmra.mxu0 %v4223
    %v5509 = vpop.f32.mrf.mxu0
    %v5510 = vadd.f32 %v5224, %v5509
    %v5511 = vpop.f32.mrf.mxu0
    %v5512 = vpop.f32.mrf.mxu0
    %v5513 = vadd.f32 %v5227, %v5512
    %v5514 = vpop.f32.mrf.mxu0
    %5515 = vmatprep.mubr.bf16.mxu0 %v5370
    %5516 = vmatmul.mubr.bf16.gmra.mxu0 %v4225
    %v5517 = vpop.f32.mrf.mxu0
    %v5518 = vadd.f32 %v5232, %v5517
    %v5519 = vpop.f32.mrf.mxu0
    %v5520 = vpop.f32.mrf.mxu0
    %v5521 = vadd.f32 %v5235, %v5520
    %v5522 = vpop.f32.mrf.mxu0
    %5523 = vmatprep.mubr.bf16.mxu0 %v5373
    %5524 = vmatmul.mubr.bf16.gmra.mxu0 %v4227
    %v5525 = vpop.f32.mrf.mxu0
    %v5526 = vadd.f32 %v5240, %v5525
    %v5527 = vpop.f32.mrf.mxu0
    %v5528 = vpop.f32.mrf.mxu0
    %v5529 = vadd.f32 %v5243, %v5528
    %v5530 = vpop.f32.mrf.mxu0
    %5531 = vmatprep.mubr.bf16.mxu0 %v5376
    %5532 = vmatmul.mubr.bf16.gmra.mxu0 %v4229
    %v5533 = vpop.f32.mrf.mxu0
    %v5534 = vadd.f32 %v5248, %v5533
    %v5535 = vpop.f32.mrf.mxu0
    %v5536 = vpop.f32.mrf.mxu0
    %v5537 = vadd.f32 %v5251, %v5536
    %v5538 = vpop.f32.mrf.mxu0
    %5539 = vmatprep.mubr.bf16.mxu0 %v5379
    %5540 = vmatmul.mubr.bf16.gmra.mxu0 %v4231
    %v5541 = vpop.f32.mrf.mxu0
    %v5542 = vadd.f32 %v5256, %v5541
    %v5543 = vpop.f32.mrf.mxu0
    %v5544 = vpop.f32.mrf.mxu0
    %v5545 = vadd.f32 %v5259, %v5544
    %v5546 = vpop.f32.mrf.mxu0
    %5547 = vmatprep.mubr.bf16.mxu0 %v5382
    %5548 = vmatmul.mubr.bf16.gmra.mxu0 %v4233
    %v5549 = vpop.f32.mrf.mxu0
    %v5550 = vadd.f32 %v5264, %v5549
    %v5551 = vpop.f32.mrf.mxu0
    %v5552 = vpop.f32.mrf.mxu0
    %v5553 = vadd.f32 %v5267, %v5552
    %v5554 = vpop.f32.mrf.mxu0
    %5555 = vmatprep.mubr.bf16.mxu0 %v5385
    %5556 = vmatmul.mubr.bf16.gmra.mxu0 %v4235
    %v5557 = vpop.f32.mrf.mxu0
    %v5558 = vadd.f32 %v5272, %v5557
    %v5559 = vpop.f32.mrf.mxu0
    %v5560 = vpop.f32.mrf.mxu0
    %v5561 = vadd.f32 %v5275, %v5560
    %v5562 = vpop.f32.mrf.mxu0
    %5563 = vmatprep.mubr.bf16.mxu0 %v5388
    %5564 = vmatmul.mubr.bf16.gmra.mxu0 %v4237
    %v5565 = vpop.f32.mrf.mxu0
    %v5566 = vadd.f32 %v5280, %v5565
    %v5567 = vpop.f32.mrf.mxu0
    %v5568 = vpop.f32.mrf.mxu0
    %v5569 = vadd.f32 %v5283, %v5568
    %v5570 = vpop.f32.mrf.mxu0
    %5571 = vmatprep.mubr.bf16.mxu0 %v5391
    %5572 = vmatmul.mubr.bf16.gmra.mxu0 %v4239
    %v5573 = vpop.f32.mrf.mxu0
    %v5574 = vadd.f32 %v5288, %v5573
    %v5575 = vpop.f32.mrf.mxu0
    %v5576 = vpop.f32.mrf.mxu0
    %v5577 = vadd.f32 %v5291, %v5576
    %v5578 = vpop.f32.mrf.mxu0
    %5579 = vmatprep.mubr.bf16.mxu0 %v5394
    %5580 = vmatmul.mubr.bf16.gmra.mxu0 %v4241
    %v5581 = vpop.f32.mrf.mxu0
    %v5582 = vadd.f32 %v5296, %v5581
    %v5583 = vpop.f32.mrf.mxu0
    %v5584 = vpop.f32.mrf.mxu0
    %v5585 = vadd.f32 %v5299, %v5584
    %v5586 = vpop.f32.mrf.mxu0
    %5587 = vmatprep.mubr.bf16.mxu0 %v5397
    %5588 = vmatmul.mubr.bf16.gmra.mxu0 %v4243
    %v5589 = vpop.f32.mrf.mxu0
    %v5590 = vadd.f32 %v5304, %v5589
    %v5591 = vpop.f32.mrf.mxu0
    %v5592 = vpop.f32.mrf.mxu0
    %v5593 = vadd.f32 %v5307, %v5592
    %v5594 = vpop.f32.mrf.mxu0
    %5595 = vmatprep.mubr.bf16.mxu0 %v5400
    %5596 = vmatmul.mubr.bf16.gmra.mxu0 %v4245
    %v5597 = vpop.f32.mrf.mxu0
    %v5598 = vadd.f32 %v5312, %v5597
    %v5599 = vpop.f32.mrf.mxu0
    %v5600 = vpop.f32.mrf.mxu0
    %v5601 = vadd.f32 %v5315, %v5600
    %v5602 = vpop.f32.mrf.mxu0
    %5603 = vmatprep.mubr.bf16.mxu0 %v5403
    %5604 = vmatmul.mubr.bf16.gmra.mxu0 %v4247
    %v5605 = vpop.f32.mrf.mxu0
    %v5606 = vadd.f32 %v5320, %v5605
    %v5607 = vpop.f32.mrf.mxu0
    %v5608 = vpop.f32.mrf.mxu0
    %v5609 = vadd.f32 %v5323, %v5608
    %v5610 = vpop.f32.mrf.mxu0
    %5611 = vmatprep.mubr.bf16.mxu0 %v5406
    %5612 = vmatmul.mubr.bf16.gmra.mxu0 %v4249
    %v5613 = vpop.f32.mrf.mxu0
    %v5614 = vadd.f32 %v5328, %v5613
    %v5615 = vpop.f32.mrf.mxu0
    %v5616 = vpop.f32.mrf.mxu0
    %v5617 = vadd.f32 %v5331, %v5616
    %v5618 = vpop.f32.mrf.mxu0
    %5619 = vmatprep.mubr.bf16.mxu0 %v5409
    %5620 = vmatmul.mubr.bf16.gmra.mxu0 %v4251
    %v5621 = vpop.f32.mrf.mxu0
    %v5622 = vadd.f32 %v5336, %v5621
    %v5623 = vpop.f32.mrf.mxu0
    %v5624 = vpop.f32.mrf.mxu0
    %v5625 = vadd.f32 %v5339, %v5624
    %v5626 = vpop.f32.mrf.mxu0
    %5627 = vdwg.mxu0
    %v5628 = vmax.f32 %v4731, %v5446
    %v5629 = vmax.f32 %v4734, %v5449
    %v5630 = vmax.f32 %v4739, %v5454
    %v5631 = vmax.f32 %v4742, %v5457
    %v5632 = vmax.f32 %v4747, %v5462
    %v5633 = vmax.f32 %v4750, %v5465
    %v5634 = vmax.f32 %v4755, %v5470
    %v5635 = vmax.f32 %v4758, %v5473
    %v5636 = vmax.f32 %v4763, %v5478
    %v5637 = vmax.f32 %v4766, %v5481
    %v5638 = vmax.f32 %v4771, %v5486
    %v5639 = vmax.f32 %v4774, %v5489
    %v5640 = vmax.f32 %v4779, %v5494
    %v5641 = vmax.f32 %v4782, %v5497
    %v5642 = vmax.f32 %v4787, %v5502
    %v5643 = vmax.f32 %v4790, %v5505
    %v5644 = vmax.f32 %v4795, %v5510
    %v5645 = vmax.f32 %v4798, %v5513
    %v5646 = vmax.f32 %v4803, %v5518
    %v5647 = vmax.f32 %v4806, %v5521
    %v5648 = vmax.f32 %v4811, %v5526
    %v5649 = vmax.f32 %v4814, %v5529
    %v5650 = vmax.f32 %v4819, %v5534
    %v5651 = vmax.f32 %v4822, %v5537
    %v5652 = vmax.f32 %v4827, %v5542
    %v5653 = vmax.f32 %v4830, %v5545
    %v5654 = vmax.f32 %v4835, %v5550
    %v5655 = vmax.f32 %v4838, %v5553
    %v5656 = vmax.f32 %v4843, %v5558
    %v5657 = vmax.f32 %v4846, %v5561
    %v5658 = vmax.f32 %v4851, %v5566
    %v5659 = vmax.f32 %v4854, %v5569
    %v5660 = vmax.f32 %v4859, %v5574
    %v5661 = vmax.f32 %v4862, %v5577
    %v5662 = vmax.f32 %v4867, %v5582
    %v5663 = vmax.f32 %v4870, %v5585
    %v5664 = vmax.f32 %v4875, %v5590
    %v5665 = vmax.f32 %v4878, %v5593
    %v5666 = vmax.f32 %v4883, %v5598
    %v5667 = vmax.f32 %v4886, %v5601
    %v5668 = vmax.f32 %v4891, %v5606
    %v5669 = vmax.f32 %v4894, %v5609
    %v5670 = vmax.f32 %v4899, %v5614
    %v5671 = vmax.f32 %v4902, %v5617
    %v5672 = vmax.f32 %v4907, %v5622
    %v5673 = vmax.f32 %v4910, %v5625
    %v5674 = vld [vmem:[#allocation6] sm:$0x1]
    %v5676 = vlaneseq
    %v5677 = vshrl.u32 %v5676, 7
    %v5678 = vsub.s32 0, %v5677
    %v5679 = vrot.slane %v5674, %v5678
    %v5681 = vadd.f32 %v5628, %v5679
    %v5682 = vadd.f32 %v5629, %v5679
    %v5683 = vadd.f32 %v5630, %v5679
    %v5684 = vadd.f32 %v5631, %v5679
    %v5685 = vadd.f32 %v5632, %v5679
    %v5686 = vadd.f32 %v5633, %v5679
    %v5687 = vadd.f32 %v5634, %v5679
    %v5688 = vadd.f32 %v5635, %v5679
    %v5689 = vadd.f32 %v5636, %v5679
    %v5690 = vadd.f32 %v5637, %v5679
    %v5691 = vadd.f32 %v5638, %v5679
    %v5692 = vadd.f32 %v5639, %v5679
    %v5693 = vadd.f32 %v5640, %v5679
    %v5694 = vadd.f32 %v5641, %v5679
    %v5695 = vadd.f32 %v5642, %v5679
    %v5696 = vadd.f32 %v5643, %v5679
    %v5697 = vadd.f32 %v5644, %v5679
    %v5698 = vadd.f32 %v5645, %v5679
    %v5699 = vadd.f32 %v5646, %v5679
    %v5700 = vadd.f32 %v5647, %v5679
    %v5701 = vadd.f32 %v5648, %v5679
    %v5702 = vadd.f32 %v5649, %v5679
    %v5703 = vadd.f32 %v5650, %v5679
    %v5704 = vadd.f32 %v5651, %v5679
    %v5705 = vadd.f32 %v5652, %v5679
    %v5706 = vadd.f32 %v5653, %v5679
    %v5707 = vadd.f32 %v5654, %v5679
    %v5708 = vadd.f32 %v5655, %v5679
    %v5709 = vadd.f32 %v5656, %v5679
    %v5710 = vadd.f32 %v5657, %v5679
    %v5711 = vadd.f32 %v5658, %v5679
    %v5712 = vadd.f32 %v5659, %v5679
    %v5713 = vadd.f32 %v5660, %v5679
    %v5714 = vadd.f32 %v5661, %v5679
    %v5715 = vadd.f32 %v5662, %v5679
    %v5716 = vadd.f32 %v5663, %v5679
    %v5717 = vadd.f32 %v5664, %v5679
    %v5718 = vadd.f32 %v5665, %v5679
    %v5719 = vadd.f32 %v5666, %v5679
    %v5720 = vadd.f32 %v5667, %v5679
    %v5721 = vadd.f32 %v5668, %v5679
    %v5722 = vadd.f32 %v5669, %v5679
    %v5723 = vadd.f32 %v5670, %v5679
    %v5724 = vadd.f32 %v5671, %v5679
    %v5725 = vadd.f32 %v5672, %v5679
    %v5726 = vadd.f32 %v5673, %v5679
    %v5727 = vmax.f32 %v5681, 0.0
    %v5728 = vmax.f32 %v5682, 0.0
    %v5729 = vmax.f32 %v5683, 0.0
    %v5730 = vmax.f32 %v5684, 0.0
    %v5731 = vmax.f32 %v5685, 0.0
    %v5732 = vmax.f32 %v5686, 0.0
    %v5733 = vmax.f32 %v5687, 0.0
    %v5734 = vmax.f32 %v5688, 0.0
    %v5735 = vmax.f32 %v5689, 0.0
    %v5736 = vmax.f32 %v5690, 0.0
    %v5737 = vmax.f32 %v5691, 0.0
    %v5738 = vmax.f32 %v5692, 0.0
    %v5739 = vmax.f32 %v5693, 0.0
    %v5740 = vmax.f32 %v5694, 0.0
    %v5741 = vmax.f32 %v5695, 0.0
    %v5742 = vmax.f32 %v5696, 0.0
    %v5743 = vmax.f32 %v5697, 0.0
    %v5744 = vmax.f32 %v5698, 0.0
    %v5745 = vmax.f32 %v5699, 0.0
    %v5746 = vmax.f32 %v5700, 0.0
    %v5747 = vmax.f32 %v5701, 0.0
    %v5748 = vmax.f32 %v5702, 0.0
    %v5749 = vmax.f32 %v5703, 0.0
    %v5750 = vmax.f32 %v5704, 0.0
    %v5751 = vmax.f32 %v5705, 0.0
    %v5752 = vmax.f32 %v5706, 0.0
    %v5753 = vmax.f32 %v5707, 0.0
    %v5754 = vmax.f32 %v5708, 0.0
    %v5755 = vmax.f32 %v5709, 0.0
    %v5756 = vmax.f32 %v5710, 0.0
    %v5757 = vmax.f32 %v5711, 0.0
    %v5758 = vmax.f32 %v5712, 0.0
    %v5759 = vmax.f32 %v5713, 0.0
    %v5760 = vmax.f32 %v5714, 0.0
    %v5761 = vmax.f32 %v5715, 0.0
    %v5762 = vmax.f32 %v5716, 0.0
    %v5763 = vmax.f32 %v5717, 0.0
    %v5764 = vmax.f32 %v5718, 0.0
    %v5765 = vmax.f32 %v5719, 0.0
    %v5766 = vmax.f32 %v5720, 0.0
    %v5767 = vmax.f32 %v5721, 0.0
    %v5768 = vmax.f32 %v5722, 0.0
    %v5769 = vmax.f32 %v5723, 0.0
    %v5770 = vmax.f32 %v5724, 0.0
    %v5771 = vmax.f32 %v5725, 0.0
    %v5772 = vmax.f32 %v5726, 0.0
    %v5773 = vpack.c.bf16 %v5728, %v5727
    %v5774 = vpack.c.bf16 %v5730, %v5729
    %v5775 = vpack.c.bf16 %v5732, %v5731
    %v5776 = vpack.c.bf16 %v5734, %v5733
    %v5777 = vpack.c.bf16 %v5736, %v5735
    %v5778 = vpack.c.bf16 %v5738, %v5737
    %v5779 = vpack.c.bf16 %v5740, %v5739
    %v5780 = vpack.c.bf16 %v5742, %v5741
    %v5781 = vpack.c.bf16 %v5744, %v5743
    %v5782 = vpack.c.bf16 %v5746, %v5745
    %v5783 = vpack.c.bf16 %v5748, %v5747
    %v5784 = vpack.c.bf16 %v5750, %v5749
    %v5785 = vpack.c.bf16 %v5752, %v5751
    %v5786 = vpack.c.bf16 %v5754, %v5753
    %v5787 = vpack.c.bf16 %v5756, %v5755
    %v5788 = vpack.c.bf16 %v5758, %v5757
    %v5789 = vpack.c.bf16 %v5760, %v5759
    %v5790 = vpack.c.bf16 %v5762, %v5761
    %v5791 = vpack.c.bf16 %v5764, %v5763
    %v5792 = vpack.c.bf16 %v5766, %v5765
    %v5793 = vpack.c.bf16 %v5768, %v5767
    %v5794 = vpack.c.bf16 %v5770, %v5769
    %v5795 = vpack.c.bf16 %v5772, %v5771
    %v5819 = vunpack.c.l.b16 %v5773
    %v5820 = vunpack.c.h.b16 %v5773
    %v5821 = vunpack.c.l.b16 %v5774
    %v5822 = vunpack.c.h.b16 %v5774
    %v5823 = vunpack.c.l.b16 %v5775
    %v5824 = vunpack.c.h.b16 %v5775
    %v5825 = vunpack.c.l.b16 %v5776
    %v5826 = vunpack.c.h.b16 %v5776
    %v5827 = vunpack.c.l.b16 %v5777
    %v5828 = vunpack.c.h.b16 %v5777
    %v5829 = vunpack.c.l.b16 %v5778
    %v5830 = vunpack.c.h.b16 %v5778
    %v5831 = vunpack.c.l.b16 %v5779
    %v5832 = vunpack.c.h.b16 %v5779
    %v5833 = vunpack.c.l.b16 %v5780
    %v5834 = vunpack.c.h.b16 %v5780
    %v5835 = vunpack.c.l.b16 %v5781
    %v5836 = vunpack.c.h.b16 %v5781
    %v5837 = vunpack.c.l.b16 %v5782
    %v5838 = vunpack.c.h.b16 %v5782
    %v5839 = vunpack.c.l.b16 %v5783
    %v5840 = vunpack.c.h.b16 %v5783
    %v5841 = vunpack.c.l.b16 %v5784
    %v5842 = vunpack.c.h.b16 %v5784
    %v5843 = vunpack.c.l.b16 %v5785
    %v5844 = vunpack.c.h.b16 %v5785
    %v5845 = vunpack.c.l.b16 %v5786
    %v5846 = vunpack.c.h.b16 %v5786
    %v5847 = vunpack.c.l.b16 %v5787
    %v5848 = vunpack.c.h.b16 %v5787
    %v5849 = vunpack.c.l.b16 %v5788
    %v5850 = vunpack.c.h.b16 %v5788
    %v5851 = vunpack.c.l.b16 %v5789
    %v5852 = vunpack.c.h.b16 %v5789
    %v5853 = vunpack.c.l.b16 %v5790
    %v5854 = vunpack.c.h.b16 %v5790
    %v5855 = vunpack.c.l.b16 %v5791
    %v5856 = vunpack.c.h.b16 %v5791
    %v5857 = vunpack.c.l.b16 %v5792
    %v5858 = vunpack.c.h.b16 %v5792
    %v5859 = vunpack.c.l.b16 %v5793
    %v5860 = vunpack.c.h.b16 %v5793
    %v5861 = vunpack.c.l.b16 %v5794
    %v5862 = vunpack.c.h.b16 %v5794
    %v5863 = vunpack.c.l.b16 %v5795
    %v5864 = vunpack.c.h.b16 %v5795
    %v5865 = vpack.c.b16 %v5819, %v5819
    %v5866 = vpack.c.b16 %v5820, %v5820
    %v5867 = vpack.c.b16 %v5821, %v5821
    %v5868 = vpack.c.b16 %v5822, %v5822
    %v5869 = vpack.c.b16 %v5823, %v5823
    %v5870 = vpack.c.b16 %v5824, %v5824
    %v5871 = vpack.c.b16 %v5825, %v5825
    %v5872 = vpack.c.b16 %v5826, %v5826
    %v5873 = vpack.c.b16 %v5827, %v5827
    %v5874 = vpack.c.b16 %v5828, %v5828
    %v5875 = vpack.c.b16 %v5829, %v5829
    %v5876 = vpack.c.b16 %v5830, %v5830
    %v5877 = vpack.c.b16 %v5831, %v5831
    %v5878 = vpack.c.b16 %v5832, %v5832
    %v5879 = vpack.c.b16 %v5833, %v5833
    %v5880 = vpack.c.b16 %v5834, %v5834
    %v5881 = vpack.c.b16 %v5835, %v5835
    %v5882 = vpack.c.b16 %v5836, %v5836
    %v5883 = vpack.c.b16 %v5837, %v5837
    %v5884 = vpack.c.b16 %v5838, %v5838
    %v5885 = vpack.c.b16 %v5839, %v5839
    %v5886 = vpack.c.b16 %v5840, %v5840
    %v5887 = vpack.c.b16 %v5841, %v5841
    %v5888 = vpack.c.b16 %v5842, %v5842
    %v5889 = vpack.c.b16 %v5843, %v5843
    %v5890 = vpack.c.b16 %v5844, %v5844
    %v5891 = vpack.c.b16 %v5845, %v5845
    %v5892 = vpack.c.b16 %v5846, %v5846
    %v5893 = vpack.c.b16 %v5847, %v5847
    %v5894 = vpack.c.b16 %v5848, %v5848
    %v5895 = vpack.c.b16 %v5849, %v5849
    %v5896 = vpack.c.b16 %v5850, %v5850
    %v5897 = vpack.c.b16 %v5851, %v5851
    %v5898 = vpack.c.b16 %v5852, %v5852
    %v5899 = vpack.c.b16 %v5853, %v5853
    %v5900 = vpack.c.b16 %v5854, %v5854
    %v5901 = vpack.c.b16 %v5855, %v5855
    %v5902 = vpack.c.b16 %v5856, %v5856
    %v5903 = vpack.c.b16 %v5857, %v5857
    %v5904 = vpack.c.b16 %v5858, %v5858
    %v5905 = vpack.c.b16 %v5859, %v5859
    %v5906 = vpack.c.b16 %v5860, %v5860
    %v5907 = vpack.c.b16 %v5861, %v5861
    %v5908 = vpack.c.b16 %v5862, %v5862
    %v5909 = vpack.c.b16 %v5863, %v5863
    %v5910 = vpack.c.b16 %v5864, %v5864
    %vm5957 = vcmask 519168
    %5958 = vst.msk [vmem:[%s6] sm:$0xf] %vm5957, %v5865
    %5959 = vst.msk [vmem:[%s6 + $0x4] sm:$0xf] %vm5957, %v5866
    %5960 = vst.msk [vmem:[%s6 + $0x8] sm:$0xf] %vm5957, %v5867
    %5961 = vst.msk [vmem:[%s6 + $0xc] sm:$0xf] %vm5957, %v5868
    %5962 = vst.msk [vmem:[%s6 + $0x10] sm:$0xf] %vm5957, %v5869
    %5963 = vst.msk [vmem:[%s6 + $0x14] sm:$0xf] %vm5957, %v5870
    %5964 = vst.msk [vmem:[%s6 + $0x18] sm:$0xf] %vm5957, %v5871
    %5965 = vst.msk [vmem:[%s6 + $0x1c] sm:$0xf] %vm5957, %v5872
    %5966 = vst.msk [vmem:[%s6 + $0x20] sm:$0xf] %vm5957, %v5873
    %5967 = vst.msk [vmem:[%s6 + $0x24] sm:$0xf] %vm5957, %v5874
    %5968 = vst.msk [vmem:[%s6 + $0x28] sm:$0xf] %vm5957, %v5875
    %5969 = vst.msk [vmem:[%s6 + $0x2c] sm:$0xf] %vm5957, %v5876
    %5970 = vst.msk [vmem:[%s6 + $0x30] sm:$0xf] %vm5957, %v5877
    %5971 = vst.msk [vmem:[%s6 + $0x34] sm:$0xf] %vm5957, %v5878
    %5972 = vst.msk [vmem:[%s6 + $0x38] sm:$0xf] %vm5957, %v5879
    %5973 = vst.msk [vmem:[%s6 + $0x3c] sm:$0xf] %vm5957, %v5880
    %5974 = vst.msk [vmem:[%s6 + $0x40] sm:$0xf] %vm5957, %v5881
    %5975 = vst.msk [vmem:[%s6 + $0x44] sm:$0xf] %vm5957, %v5882
    %5976 = vst.msk [vmem:[%s6 + $0x48] sm:$0xf] %vm5957, %v5883
    %5977 = vst.msk [vmem:[%s6 + $0x4c] sm:$0xf] %vm5957, %v5884
    %5978 = vst.msk [vmem:[%s6 + $0x50] sm:$0xf] %vm5957, %v5885
    %5979 = vst.msk [vmem:[%s6 + $0x54] sm:$0xf] %vm5957, %v5886
    %5980 = vst.msk [vmem:[%s6 + $0x58] sm:$0xf] %vm5957, %v5887
    %5981 = vst.msk [vmem:[%s6 + $0x5c] sm:$0xf] %vm5957, %v5888
    %5982 = vst.msk [vmem:[%s6 + $0x60] sm:$0xf] %vm5957, %v5889
    %5983 = vst.msk [vmem:[%s6 + $0x64] sm:$0xf] %vm5957, %v5890
    %5984 = vst.msk [vmem:[%s6 + $0x68] sm:$0xf] %vm5957, %v5891
    %5985 = vst.msk [vmem:[%s6 + $0x6c] sm:$0xf] %vm5957, %v5892
    %5986 = vst.msk [vmem:[%s6 + $0x70] sm:$0xf] %vm5957, %v5893
    %5987 = vst.msk [vmem:[%s6 + $0x74] sm:$0xf] %vm5957, %v5894
    %5988 = vst.msk [vmem:[%s6 + $0x78] sm:$0xf] %vm5957, %v5895
    %5989 = vst.msk [vmem:[%s6 + $0x7c] sm:$0xf] %vm5957, %v5896
    %5990 = vst.msk [vmem:[%s6 + $0x80] sm:$0xf] %vm5957, %v5897
    %5991 = vst.msk [vmem:[%s6 + $0x84] sm:$0xf] %vm5957, %v5898
    %5992 = vst.msk [vmem:[%s6 + $0x88] sm:$0xf] %vm5957, %v5899
    %5993 = vst.msk [vmem:[%s6 + $0x8c] sm:$0xf] %vm5957, %v5900
    %5994 = vst.msk [vmem:[%s6 + $0x90] sm:$0xf] %vm5957, %v5901
    %5995 = vst.msk [vmem:[%s6 + $0x94] sm:$0xf] %vm5957, %v5902
    %5996 = vst.msk [vmem:[%s6 + $0x98] sm:$0xf] %vm5957, %v5903
    %5997 = vst.msk [vmem:[%s6 + $0x9c] sm:$0xf] %vm5957, %v5904
    %5998 = vst.msk [vmem:[%s6 + $0xa0] sm:$0xf] %vm5957, %v5905
    %5999 = vst.msk [vmem:[%s6 + $0xa4] sm:$0xf] %vm5957, %v5906
    %6000 = vst.msk [vmem:[%s6 + $0xa8] sm:$0xf] %vm5957, %v5907
    %6001 = vst.msk [vmem:[%s6 + $0xac] sm:$0xf] %vm5957, %v5908
    %6002 = vst.msk [vmem:[%s6 + $0xb0] sm:$0xf] %vm5957, %v5909
    %6003 = vst.msk [vmem:[%s6 + $0xb4] sm:$0xf] %vm5957, %v5910
    // Predicated region
    $region38: #{forward.2} parent=1 // pred_check
      _
    $region39: #{forward.2} parent=1 // pred_check_branch
      %6005 = sbr.rel (0) target = $region41
    $region40: #{forward.2} parent=1 // pred_region
      _
    $region41: #{forward.2} parent=1 // pred_fallthru
      _
    // Predicated region
    $region42: #{forward.2} parent=1 // pred_check
      _
    $region43: #{forward.2} parent=1 // pred_check_branch
      %6007 = sbr.rel (0) target = $region45
    $region44: #{forward.2} parent=1 // pred_region
      _
    $region45: #{forward.2} parent=1 // pred_fallthru
      _
    %6008 = vsyncpa [#allocation3], 1
    %6009 = vsyncpa [#allocation5], 1

// kernel: forward.3
$region0: #{forward.3}
  #allocation0 [shape = 'u32[]', space=smem, size = 0x4, offset = 0x4, fixed_abs, tag = 'smem constant byte address 0x4 - core index']
  #allocation1 [shape = 'u32[144,128]{1,0:T(1,128)}', space=vmem, size = 0x12000, scoped, tag = 'internal scratch']
  %s0 = inlined_call_operand.vmem [shape: bf16[16,1216], index: 0, kind: input, shape index: {}]
  %s1 = inlined_call_operand.vmem [shape: bf16[1216,1024], index: 1, kind: input, shape index: {}]
  %s2 = inlined_call_operand.vmem [shape: f32[1,1024], index: 2, kind: input, shape index: {}]
  %s3 = inlined_call_operand.hbm [shape: bf16[1024,512], index: 3, kind: input, shape index: {}]
  %s4 = inlined_call_operand.vmem [shape: f32[1,512], index: 4, kind: input, shape index: {}]
  %s5 = inlined_call_operand.vmem [shape: bf16[512,128], index: 5, kind: input, shape index: {}]
  %s6 = inlined_call_operand.vmem [shape: f32[1,128], index: 6, kind: input, shape index: {}]
  %s7 = inlined_call_operand.vmem [shape: f32[16,128], index: 7, kind: output, shape index: {}]
  %s8 = sld [smem:[#allocation0]]
  $region42: #{forward.3} parent=0
    _
  %s10 = ssub.s32 1, %s8
  %s11 = scalar_select 0, %s10, %s8
  $region1: #{forward.3} parent=0
    #allocation2 [shape = 'u8[1048576]{0}', space=vmem, size = 0x100000, scoped, tag = 'input window, operand 3, single buffered']
    #allocation3 [shape = 's32[1]{0}', space=sflag, size = 0x4, scoped, tag = 'scoped memory for forward.3']
    %12 = vsyncpa [#allocation3], 0
    // Predicated region
    $region2: #{forward.3} parent=1 // pred_check
      _
    $region3: #{forward.3} parent=1 // pred_check_branch
      %14 = sbr.rel (0) target = $region5
    $region4: #{forward.3} parent=1 // pred_region
      _
    $region5: #{forward.3} parent=1 // pred_fallthru
      _
    // Predicated region
    $region6: #{forward.3} parent=1 // pred_check
      _
    $region7: #{forward.3} parent=1 // pred_check_branch
      %16 = sbr.rel (0) target = $region9
    $region8: #{forward.3} parent=1 // pred_region
      _
    $region9: #{forward.3} parent=1 // pred_fallthru
      _
    // Predicated region
    $region10: #{forward.3} parent=1 // pred_check
      _
    $region11: #{forward.3} parent=1 // pred_check_branch
      %18 = sbr.rel (0) target = $region13
    $region12: #{forward.3} parent=1 // pred_region
      _
    $region13: #{forward.3} parent=1 // pred_fallthru
      _
    // Predicated region
    $region14: #{forward.3} parent=1 // pred_check
      _
    $region15: #{forward.3} parent=1 // pred_check_branch
      %20 = sbr.rel (0) target = $region17
    $region16: #{forward.3} parent=1 // pred_region
      %s22 = ssub.s32 32768, 32768
      %23 = vsyncadd [#allocation3], %s22
      %s24 = sshll.u32 [#allocation2], 4
      %s25 = int_to_ptr.vmem [resolvable:$true] %s24
      %30 = dma.hbm_to_vmem [thread:$0]  %s3, 32768, %s25, [#allocation3], 256, 256, 16
    $region17: #{forward.3} parent=1 // pred_fallthru
      _
    // Predicated region
    $region18: #{forward.3} parent=1 // pred_check
      _
    $region19: #{forward.3} parent=1 // pred_check_branch
      %32 = sbr.rel (0) target = $region21
    $region20: #{forward.3} parent=1 // pred_region
      _
    $region21: #{forward.3} parent=1 // pred_fallthru
      _
    // Predicated region
    $region22: #{forward.3} parent=1 // pred_check
      _
    $region23: #{forward.3} parent=1 // pred_check_branch
      %34 = sbr.rel (0) target = $region25
    $region24: #{forward.3} parent=1 // pred_region
      _
    $region25: #{forward.3} parent=1 // pred_fallthru
      _
    // Predicated region
    $region26: #{forward.3} parent=1 // pred_check
      _
    $region27: #{forward.3} parent=1 // pred_check_branch
      %36 = sbr.rel (0) target = $region29
    $region28: #{forward.3} parent=1 // pred_region
      _
    $region29: #{forward.3} parent=1 // pred_fallthru
      _
    // Predicated region
    $region30: #{forward.3} parent=1 // pred_check
      _
    $region31: #{forward.3} parent=1 // pred_check_branch
      %38 = sbr.rel (0) target = $region33
    $region32: #{forward.3} parent=1 // pred_region
      %39 = dma.done [#allocation3], 32768
    $region33: #{forward.3} parent=1 // pred_fallthru
      _
    %v41 = vld [vmem:[%s0] sm:$0xff]
    %v42 = vld [vmem:[%s0 + $0x8] sm:$0xff]
    %v43 = vld [vmem:[%s0 + $0x10] sm:$0xff]
    %v44 = vld [vmem:[%s0 + $0x18] sm:$0xff]
    %v45 = vld [vmem:[%s0 + $0x20] sm:$0xff]
    %v46 = vld [vmem:[%s0 + $0x28] sm:$0xff]
    %v47 = vld [vmem:[%s0 + $0x30] sm:$0xff]
    %v48 = vld [vmem:[%s0 + $0x38] sm:$0xff]
    %v49 = vld [vmem:[%s0 + $0x40] sm:$0xff]
    %v50 = vld [vmem:[%s0 + $0x48] sm:$0xff]
    %v51 = vld [vmem:[%s1] sm:$0xff]
    %v52 = vld [vmem:[%s1 + $0x8] sm:$0xff]
    %v53 = vld [vmem:[%s1 + $0x10] sm:$0xff]
    %v54 = vld [vmem:[%s1 + $0x18] sm:$0xff]
    %v55 = vld [vmem:[%s1 + $0x20] sm:$0xff]
    %v56 = vld [vmem:[%s1 + $0x28] sm:$0xff]
    %v57 = vld [vmem:[%s1 + $0x30] sm:$0xff]
    %v58 = vld [vmem:[%s1 + $0x38] sm:$0xff]
    %v59 = vld [vmem:[%s1 + $0x40] sm:$0xff]
    %v60 = vld [vmem:[%s1 + $0x48] sm:$0xff]
    %v61 = vld [vmem:[%s1 + $0x50] sm:$0xff]
    %v62 = vld [vmem:[%s1 + $0x58] sm:$0xff]
    %v63 = vld [vmem:[%s1 + $0x60] sm:$0xff]
    %v64 = vld [vmem:[%s1 + $0x68] sm:$0xff]
    %v65 = vld [vmem:[%s1 + $0x70] sm:$0xff]
    %v66 = vld [vmem:[%s1 + $0x78] sm:$0xff]
    %v67 = vld [vmem:[%s1 + $0x80] sm:$0xff]
    %v68 = vld [vmem:[%s1 + $0x88] sm:$0xff]
    %v69 = vld [vmem:[%s1 + $0x90] sm:$0xff]
    %v70 = vld [vmem:[%s1 + $0x98] sm:$0xff]
    %v71 = vld [vmem:[%s1 + $0xa0] sm:$0xff]
    %v72 = vld [vmem:[%s1 + $0xa8] sm:$0xff]
    %v73 = vld [vmem:[%s1 + $0xb0] sm:$0xff]
    %v74 = vld [vmem:[%s1 + $0xb8] sm:$0xff]
    %v75 = vld [vmem:[%s1 + $0xc0] sm:$0xff]
    %v76 = vld [vmem:[%s1 + $0xc8] sm:$0xff]
    %v77 = vld [vmem:[%s1 + $0xd0] sm:$0xff]
    %v78 = vld [vmem:[%s1 + $0xd8] sm:$0xff]
    %v79 = vld [vmem:[%s1 + $0xe0] sm:$0xff]
    %v80 = vld [vmem:[%s1 + $0xe8] sm:$0xff]
    %v81 = vld [vmem:[%s1 + $0xf0] sm:$0xff]
    %v82 = vld [vmem:[%s1 + $0xf8] sm:$0xff]
    %v83 = vld [vmem:[%s1 + $0x100] sm:$0xff]
    %v84 = vld [vmem:[%s1 + $0x108] sm:$0xff]
    %v85 = vld [vmem:[%s1 + $0x110] sm:$0xff]
    %v86 = vld [vmem:[%s1 + $0x118] sm:$0xff]
    %v87 = vld [vmem:[%s1 + $0x120] sm:$0xff]
    %v88 = vld [vmem:[%s1 + $0x128] sm:$0xff]
    %v89 = vld [vmem:[%s1 + $0x130] sm:$0xff]
    %v90 = vld [vmem:[%s1 + $0x138] sm:$0xff]
    %v91 = vld [vmem:[%s1 + $0x140] sm:$0xff]
    %v92 = vld [vmem:[%s1 + $0x148] sm:$0xff]
    %v93 = vld [vmem:[%s1 + $0x150] sm:$0xff]
    %v94 = vld [vmem:[%s1 + $0x158] sm:$0xff]
    %v95 = vld [vmem:[%s1 + $0x160] sm:$0xff]
    %v96 = vld [vmem:[%s1 + $0x168] sm:$0xff]
    %v97 = vld [vmem:[%s1 + $0x170] sm:$0xff]
    %v98 = vld [vmem:[%s1 + $0x178] sm:$0xff]
    %v99 = vld [vmem:[%s1 + $0x180] sm:$0xff]
    %v100 = vld [vmem:[%s1 + $0x188] sm:$0xff]
    %v101 = vld [vmem:[%s1 + $0x190] sm:$0xff]
    %v102 = vld [vmem:[%s1 + $0x198] sm:$0xff]
    %v103 = vld [vmem:[%s1 + $0x1a0] sm:$0xff]
    %v104 = vld [vmem:[%s1 + $0x1a8] sm:$0xff]
    %v105 = vld [vmem:[%s1 + $0x1b0] sm:$0xff]
    %v106 = vld [vmem:[%s1 + $0x1b8] sm:$0xff]
    %v107 = vld [vmem:[%s1 + $0x1c0] sm:$0xff]
    %v108 = vld [vmem:[%s1 + $0x1c8] sm:$0xff]
    %v109 = vld [vmem:[%s1 + $0x1d0] sm:$0xff]
    %v110 = vld [vmem:[%s1 + $0x1d8] sm:$0xff]
    %v111 = vld [vmem:[%s1 + $0x1e0] sm:$0xff]
    %v112 = vld [vmem:[%s1 + $0x1e8] sm:$0xff]
    %v113 = vld [vmem:[%s1 + $0x1f0] sm:$0xff]
    %v114 = vld [vmem:[%s1 + $0x1f8] sm:$0xff]
    %v115 = vld [vmem:[%s1 + $0x200] sm:$0xff]
    %v116 = vld [vmem:[%s1 + $0x208] sm:$0xff]
    %v117 = vld [vmem:[%s1 + $0x210] sm:$0xff]
    %v118 = vld [vmem:[%s1 + $0x218] sm:$0xff]
    %v119 = vld [vmem:[%s1 + $0x220] sm:$0xff]
    %v120 = vld [vmem:[%s1 + $0x228] sm:$0xff]
    %v121 = vld [vmem:[%s1 + $0x230] sm:$0xff]
    %v122 = vld [vmem:[%s1 + $0x238] sm:$0xff]
    %v123 = vld [vmem:[%s1 + $0x240] sm:$0xff]
    %v124 = vld [vmem:[%s1 + $0x248] sm:$0xff]
    %v125 = vld [vmem:[%s1 + $0x250] sm:$0xff]
    %v126 = vld [vmem:[%s1 + $0x258] sm:$0xff]
    %v127 = vld [vmem:[%s1 + $0x260] sm:$0xff]
    %v128 = vld [vmem:[%s1 + $0x268] sm:$0xff]
    %v129 = vld [vmem:[%s1 + $0x270] sm:$0xff]
    %v130 = vld [vmem:[%s1 + $0x278] sm:$0xff]
    %v131 = vld [vmem:[%s1 + $0x280] sm:$0xff]
    %v132 = vld [vmem:[%s1 + $0x288] sm:$0xff]
    %v133 = vld [vmem:[%s1 + $0x290] sm:$0xff]
    %v134 = vld [vmem:[%s1 + $0x298] sm:$0xff]
    %v135 = vld [vmem:[%s1 + $0x2a0] sm:$0xff]
    %v136 = vld [vmem:[%s1 + $0x2a8] sm:$0xff]
    %v137 = vld [vmem:[%s1 + $0x2b0] sm:$0xff]
    %v138 = vld [vmem:[%s1 + $0x2b8] sm:$0xff]
    %v139 = vld [vmem:[%s1 + $0x2c0] sm:$0xff]
    %v140 = vld [vmem:[%s1 + $0x2c8] sm:$0xff]
    %v141 = vld [vmem:[%s1 + $0x2d0] sm:$0xff]
    %v142 = vld [vmem:[%s1 + $0x2d8] sm:$0xff]
    %v143 = vld [vmem:[%s1 + $0x2e0] sm:$0xff]
    %v144 = vld [vmem:[%s1 + $0x2e8] sm:$0xff]
    %v145 = vld [vmem:[%s1 + $0x2f0] sm:$0xff]
    %v146 = vld [vmem:[%s1 + $0x2f8] sm:$0xff]
    %v147 = vld [vmem:[%s1 + $0x300] sm:$0xff]
    %v148 = vld [vmem:[%s1 + $0x308] sm:$0xff]
    %v149 = vld [vmem:[%s1 + $0x310] sm:$0xff]
    %v150 = vld [vmem:[%s1 + $0x318] sm:$0xff]
    %v151 = vld [vmem:[%s1 + $0x320] sm:$0xff]
    %v152 = vld [vmem:[%s1 + $0x328] sm:$0xff]
    %v153 = vld [vmem:[%s1 + $0x330] sm:$0xff]
    %v154 = vld [vmem:[%s1 + $0x338] sm:$0xff]
    %v155 = vld [vmem:[%s1 + $0x340] sm:$0xff]
    %v156 = vld [vmem:[%s1 + $0x348] sm:$0xff]
    %v157 = vld [vmem:[%s1 + $0x350] sm:$0xff]
    %v158 = vld [vmem:[%s1 + $0x358] sm:$0xff]
    %v159 = vld [vmem:[%s1 + $0x360] sm:$0xff]
    %v160 = vld [vmem:[%s1 + $0x368] sm:$0xff]
    %v161 = vld [vmem:[%s1 + $0x370] sm:$0xff]
    %v162 = vld [vmem:[%s1 + $0x378] sm:$0xff]
    %v163 = vld [vmem:[%s1 + $0x380] sm:$0xff]
    %v164 = vld [vmem:[%s1 + $0x388] sm:$0xff]
    %v165 = vld [vmem:[%s1 + $0x390] sm:$0xff]
    %v166 = vld [vmem:[%s1 + $0x398] sm:$0xff]
    %v167 = vld [vmem:[%s1 + $0x3a0] sm:$0xff]
    %v168 = vld [vmem:[%s1 + $0x3a8] sm:$0xff]
    %v169 = vld [vmem:[%s1 + $0x3b0] sm:$0xff]
    %v170 = vld [vmem:[%s1 + $0x3b8] sm:$0xff]
    %v171 = vld [vmem:[%s1 + $0x3c0] sm:$0xff]
    %v172 = vld [vmem:[%s1 + $0x3c8] sm:$0xff]
    %v173 = vld [vmem:[%s1 + $0x3d0] sm:$0xff]
    %v174 = vld [vmem:[%s1 + $0x3d8] sm:$0xff]
    %v175 = vld [vmem:[%s1 + $0x3e0] sm:$0xff]
    %v176 = vld [vmem:[%s1 + $0x3e8] sm:$0xff]
    %v177 = vld [vmem:[%s1 + $0x3f0] sm:$0xff]
    %v178 = vld [vmem:[%s1 + $0x3f8] sm:$0xff]
    %v179 = vld [vmem:[%s1 + $0x400] sm:$0xff]
    %v180 = vld [vmem:[%s1 + $0x408] sm:$0xff]
    %v181 = vld [vmem:[%s1 + $0x410] sm:$0xff]
    %v182 = vld [vmem:[%s1 + $0x418] sm:$0xff]
    %v183 = vld [vmem:[%s1 + $0x420] sm:$0xff]
    %v184 = vld [vmem:[%s1 + $0x428] sm:$0xff]
    %v185 = vld [vmem:[%s1 + $0x430] sm:$0xff]
    %v186 = vld [vmem:[%s1 + $0x438] sm:$0xff]
    %v187 = vld [vmem:[%s1 + $0x440] sm:$0xff]
    %v188 = vld [vmem:[%s1 + $0x448] sm:$0xff]
    %v189 = vld [vmem:[%s1 + $0x450] sm:$0xff]
    %v190 = vld [vmem:[%s1 + $0x458] sm:$0xff]
    %v191 = vld [vmem:[%s1 + $0x460] sm:$0xff]
    %v192 = vld [vmem:[%s1 + $0x468] sm:$0xff]
    %v193 = vld [vmem:[%s1 + $0x470] sm:$0xff]
    %v194 = vld [vmem:[%s1 + $0x478] sm:$0xff]
    %v195 = vld [vmem:[%s1 + $0x480] sm:$0xff]
    %v196 = vld [vmem:[%s1 + $0x488] sm:$0xff]
    %v197 = vld [vmem:[%s1 + $0x490] sm:$0xff]
    %v198 = vld [vmem:[%s1 + $0x498] sm:$0xff]
    %v199 = vld [vmem:[%s1 + $0x4a0] sm:$0xff]
    %v200 = vld [vmem:[%s1 + $0x4a8] sm:$0xff]
    %v201 = vld [vmem:[%s1 + $0x4b0] sm:$0xff]
    %v202 = vld [vmem:[%s1 + $0x4b8] sm:$0xff]
    %v203 = vld [vmem:[%s1 + $0x4c0] sm:$0xff]
    %v204 = vld [vmem:[%s1 + $0x4c8] sm:$0xff]
    %v205 = vld [vmem:[%s1 + $0x4d0] sm:$0xff]
    %v206 = vld [vmem:[%s1 + $0x4d8] sm:$0xff]
    %v207 = vld [vmem:[%s1 + $0x4e0] sm:$0xff]
    %v208 = vld [vmem:[%s1 + $0x4e8] sm:$0xff]
    %v209 = vld [vmem:[%s1 + $0x4f0] sm:$0xff]
    %v210 = vld [vmem:[%s1 + $0x4f8] sm:$0xff]
    %v211 = vld [vmem:[%s1 + $0x500] sm:$0xff]
    %v212 = vld [vmem:[%s1 + $0x508] sm:$0xff]
    %v213 = vld [vmem:[%s1 + $0x510] sm:$0xff]
    %v214 = vld [vmem:[%s1 + $0x518] sm:$0xff]
    %v215 = vld [vmem:[%s1 + $0x520] sm:$0xff]
    %v216 = vld [vmem:[%s1 + $0x528] sm:$0xff]
    %v217 = vld [vmem:[%s1 + $0x530] sm:$0xff]
    %v218 = vld [vmem:[%s1 + $0x538] sm:$0xff]
    %v219 = vld [vmem:[%s1 + $0x540] sm:$0xff]
    %v220 = vld [vmem:[%s1 + $0x548] sm:$0xff]
    %v221 = vld [vmem:[%s1 + $0x550] sm:$0xff]
    %v222 = vld [vmem:[%s1 + $0x558] sm:$0xff]
    %v223 = vld [vmem:[%s1 + $0x560] sm:$0xff]
    %v224 = vld [vmem:[%s1 + $0x568] sm:$0xff]
    %v225 = vld [vmem:[%s1 + $0x570] sm:$0xff]
    %v226 = vld [vmem:[%s1 + $0x578] sm:$0xff]
    %v227 = vld [vmem:[%s1 + $0x580] sm:$0xff]
    %v228 = vld [vmem:[%s1 + $0x588] sm:$0xff]
    %v229 = vld [vmem:[%s1 + $0x590] sm:$0xff]
    %v230 = vld [vmem:[%s1 + $0x598] sm:$0xff]
    %v231 = vld [vmem:[%s1 + $0x5a0] sm:$0xff]
    %v232 = vld [vmem:[%s1 + $0x5a8] sm:$0xff]
    %v233 = vld [vmem:[%s1 + $0x5b0] sm:$0xff]
    %v234 = vld [vmem:[%s1 + $0x5b8] sm:$0xff]
    %v235 = vld [vmem:[%s1 + $0x5c0] sm:$0xff]
    %v236 = vld [vmem:[%s1 + $0x5c8] sm:$0xff]
    %v237 = vld [vmem:[%s1 + $0x5d0] sm:$0xff]
    %v238 = vld [vmem:[%s1 + $0x5d8] sm:$0xff]
    %v239 = vld [vmem:[%s1 + $0x5e0] sm:$0xff]
    %v240 = vld [vmem:[%s1 + $0x5e8] sm:$0xff]
    %v241 = vld [vmem:[%s1 + $0x5f0] sm:$0xff]
    %v242 = vld [vmem:[%s1 + $0x5f8] sm:$0xff]
    %v243 = vld [vmem:[%s1 + $0x600] sm:$0xff]
    %v244 = vld [vmem:[%s1 + $0x608] sm:$0xff]
    %v245 = vld [vmem:[%s1 + $0x610] sm:$0xff]
    %v246 = vld [vmem:[%s1 + $0x618] sm:$0xff]
    %v247 = vld [vmem:[%s1 + $0x620] sm:$0xff]
    %v248 = vld [vmem:[%s1 + $0x628] sm:$0xff]
    %v249 = vld [vmem:[%s1 + $0x630] sm:$0xff]
    %v250 = vld [vmem:[%s1 + $0x638] sm:$0xff]
    %v251 = vld [vmem:[%s1 + $0x640] sm:$0xff]
    %v252 = vld [vmem:[%s1 + $0x648] sm:$0xff]
    %v253 = vld [vmem:[%s1 + $0x650] sm:$0xff]
    %v254 = vld [vmem:[%s1 + $0x658] sm:$0xff]
    %v255 = vld [vmem:[%s1 + $0x660] sm:$0xff]
    %v256 = vld [vmem:[%s1 + $0x668] sm:$0xff]
    %v257 = vld [vmem:[%s1 + $0x670] sm:$0xff]
    %v258 = vld [vmem:[%s1 + $0x678] sm:$0xff]
    %v259 = vld [vmem:[%s1 + $0x680] sm:$0xff]
    %v260 = vld [vmem:[%s1 + $0x688] sm:$0xff]
    %v261 = vld [vmem:[%s1 + $0x690] sm:$0xff]
    %v262 = vld [vmem:[%s1 + $0x698] sm:$0xff]
    %v263 = vld [vmem:[%s1 + $0x6a0] sm:$0xff]
    %v264 = vld [vmem:[%s1 + $0x6a8] sm:$0xff]
    %v265 = vld [vmem:[%s1 + $0x6b0] sm:$0xff]
    %v266 = vld [vmem:[%s1 + $0x6b8] sm:$0xff]
    %v267 = vld [vmem:[%s1 + $0x6c0] sm:$0xff]
    %v268 = vld [vmem:[%s1 + $0x6c8] sm:$0xff]
    %v269 = vld [vmem:[%s1 + $0x6d0] sm:$0xff]
    %v270 = vld [vmem:[%s1 + $0x6d8] sm:$0xff]
    %v271 = vld [vmem:[%s1 + $0x6e0] sm:$0xff]
    %v272 = vld [vmem:[%s1 + $0x6e8] sm:$0xff]
    %v273 = vld [vmem:[%s1 + $0x6f0] sm:$0xff]
    %v274 = vld [vmem:[%s1 + $0x6f8] sm:$0xff]
    %v275 = vld [vmem:[%s1 + $0x700] sm:$0xff]
    %v276 = vld [vmem:[%s1 + $0x708] sm:$0xff]
    %v277 = vld [vmem:[%s1 + $0x710] sm:$0xff]
    %v278 = vld [vmem:[%s1 + $0x718] sm:$0xff]
    %v279 = vld [vmem:[%s1 + $0x720] sm:$0xff]
    %v280 = vld [vmem:[%s1 + $0x728] sm:$0xff]
    %v281 = vld [vmem:[%s1 + $0x730] sm:$0xff]
    %v282 = vld [vmem:[%s1 + $0x738] sm:$0xff]
    %v283 = vld [vmem:[%s1 + $0x740] sm:$0xff]
    %v284 = vld [vmem:[%s1 + $0x748] sm:$0xff]
    %v285 = vld [vmem:[%s1 + $0x750] sm:$0xff]
    %v286 = vld [vmem:[%s1 + $0x758] sm:$0xff]
    %v287 = vld [vmem:[%s1 + $0x760] sm:$0xff]
    %v288 = vld [vmem:[%s1 + $0x768] sm:$0xff]
    %v289 = vld [vmem:[%s1 + $0x770] sm:$0xff]
    %v290 = vld [vmem:[%s1 + $0x778] sm:$0xff]
    %v291 = vld [vmem:[%s1 + $0x780] sm:$0xff]
    %v292 = vld [vmem:[%s1 + $0x788] sm:$0xff]
    %v293 = vld [vmem:[%s1 + $0x790] sm:$0xff]
    %v294 = vld [vmem:[%s1 + $0x798] sm:$0xff]
    %v295 = vld [vmem:[%s1 + $0x7a0] sm:$0xff]
    %v296 = vld [vmem:[%s1 + $0x7a8] sm:$0xff]
    %v297 = vld [vmem:[%s1 + $0x7b0] sm:$0xff]
    %v298 = vld [vmem:[%s1 + $0x7b8] sm:$0xff]
    %v299 = vld [vmem:[%s1 + $0x7c0] sm:$0xff]
    %v300 = vld [vmem:[%s1 + $0x7c8] sm:$0xff]
    %v301 = vld [vmem:[%s1 + $0x7d0] sm:$0xff]
    %v302 = vld [vmem:[%s1 + $0x7d8] sm:$0xff]
    %v303 = vld [vmem:[%s1 + $0x7e0] sm:$0xff]
    %v304 = vld [vmem:[%s1 + $0x7e8] sm:$0xff]
    %v305 = vld [vmem:[%s1 + $0x7f0] sm:$0xff]
    %v306 = vld [vmem:[%s1 + $0x7f8] sm:$0xff]
    %v307 = vld [vmem:[%s1 + $0x800] sm:$0xff]
    %v308 = vld [vmem:[%s1 + $0x808] sm:$0xff]
    %v309 = vld [vmem:[%s1 + $0x810] sm:$0xff]
    %v310 = vld [vmem:[%s1 + $0x818] sm:$0xff]
    %v311 = vld [vmem:[%s1 + $0x820] sm:$0xff]
    %v312 = vld [vmem:[%s1 + $0x828] sm:$0xff]
    %v313 = vld [vmem:[%s1 + $0x830] sm:$0xff]
    %v314 = vld [vmem:[%s1 + $0x838] sm:$0xff]
    %v315 = vld [vmem:[%s1 + $0x840] sm:$0xff]
    %v316 = vld [vmem:[%s1 + $0x848] sm:$0xff]
    %v317 = vld [vmem:[%s1 + $0x850] sm:$0xff]
    %v318 = vld [vmem:[%s1 + $0x858] sm:$0xff]
    %v319 = vld [vmem:[%s1 + $0x860] sm:$0xff]
    %v320 = vld [vmem:[%s1 + $0x868] sm:$0xff]
    %v321 = vld [vmem:[%s1 + $0x870] sm:$0xff]
    %v322 = vld [vmem:[%s1 + $0x878] sm:$0xff]
    %v323 = vld [vmem:[%s1 + $0x880] sm:$0xff]
    %v324 = vld [vmem:[%s1 + $0x888] sm:$0xff]
    %v325 = vld [vmem:[%s1 + $0x890] sm:$0xff]
    %v326 = vld [vmem:[%s1 + $0x898] sm:$0xff]
    %v327 = vld [vmem:[%s1 + $0x8a0] sm:$0xff]
    %v328 = vld [vmem:[%s1 + $0x8a8] sm:$0xff]
    %v329 = vld [vmem:[%s1 + $0x8b0] sm:$0xff]
    %v330 = vld [vmem:[%s1 + $0x8b8] sm:$0xff]
    %v331 = vld [vmem:[%s1 + $0x8c0] sm:$0xff]
    %v332 = vld [vmem:[%s1 + $0x8c8] sm:$0xff]
    %v333 = vld [vmem:[%s1 + $0x8d0] sm:$0xff]
    %v334 = vld [vmem:[%s1 + $0x8d8] sm:$0xff]
    %v335 = vld [vmem:[%s1 + $0x8e0] sm:$0xff]
    %v336 = vld [vmem:[%s1 + $0x8e8] sm:$0xff]
    %v337 = vld [vmem:[%s1 + $0x8f0] sm:$0xff]
    %v338 = vld [vmem:[%s1 + $0x8f8] sm:$0xff]
    %v339 = vld [vmem:[%s1 + $0x900] sm:$0xff]
    %v340 = vld [vmem:[%s1 + $0x908] sm:$0xff]
    %v341 = vld [vmem:[%s1 + $0x910] sm:$0xff]
    %v342 = vld [vmem:[%s1 + $0x918] sm:$0xff]
    %v343 = vld [vmem:[%s1 + $0x920] sm:$0xff]
    %v344 = vld [vmem:[%s1 + $0x928] sm:$0xff]
    %v345 = vld [vmem:[%s1 + $0x930] sm:$0xff]
    %v346 = vld [vmem:[%s1 + $0x938] sm:$0xff]
    %v347 = vld [vmem:[%s1 + $0x940] sm:$0xff]
    %v348 = vld [vmem:[%s1 + $0x948] sm:$0xff]
    %v349 = vld [vmem:[%s1 + $0x950] sm:$0xff]
    %v350 = vld [vmem:[%s1 + $0x958] sm:$0xff]
    %v351 = vld [vmem:[%s1 + $0x960] sm:$0xff]
    %v352 = vld [vmem:[%s1 + $0x968] sm:$0xff]
    %v353 = vld [vmem:[%s1 + $0x970] sm:$0xff]
    %v354 = vld [vmem:[%s1 + $0x978] sm:$0xff]
    %v355 = vld [vmem:[%s1 + $0x980] sm:$0xff]
    %v356 = vld [vmem:[%s1 + $0x988] sm:$0xff]
    %v357 = vld [vmem:[%s1 + $0x990] sm:$0xff]
    %v358 = vld [vmem:[%s1 + $0x998] sm:$0xff]
    %v359 = vld [vmem:[%s1 + $0x9a0] sm:$0xff]
    %v360 = vld [vmem:[%s1 + $0x9a8] sm:$0xff]
    %v361 = vld [vmem:[%s1 + $0x9b0] sm:$0xff]
    %v362 = vld [vmem:[%s1 + $0x9b8] sm:$0xff]
    %v363 = vld [vmem:[%s1 + $0x9c0] sm:$0xff]
    %v364 = vld [vmem:[%s1 + $0x9c8] sm:$0xff]
    %v365 = vld [vmem:[%s1 + $0x9d0] sm:$0xff]
    %v366 = vld [vmem:[%s1 + $0x9d8] sm:$0xff]
    %v367 = vld [vmem:[%s1 + $0x9e0] sm:$0xff]
    %v368 = vld [vmem:[%s1 + $0x9e8] sm:$0xff]
    %v369 = vld [vmem:[%s1 + $0x9f0] sm:$0xff]
    %v370 = vld [vmem:[%s1 + $0x9f8] sm:$0xff]
    %v371 = vld [vmem:[%s1 + $0xa00] sm:$0xff]
    %v372 = vld [vmem:[%s1 + $0xa08] sm:$0xff]
    %v373 = vld [vmem:[%s1 + $0xa10] sm:$0xff]
    %v374 = vld [vmem:[%s1 + $0xa18] sm:$0xff]
    %v375 = vld [vmem:[%s1 + $0xa20] sm:$0xff]
    %v376 = vld [vmem:[%s1 + $0xa28] sm:$0xff]
    %v377 = vld [vmem:[%s1 + $0xa30] sm:$0xff]
    %v378 = vld [vmem:[%s1 + $0xa38] sm:$0xff]
    %v379 = vld [vmem:[%s1 + $0xa40] sm:$0xff]
    %v380 = vld [vmem:[%s1 + $0xa48] sm:$0xff]
    %v381 = vld [vmem:[%s1 + $0xa50] sm:$0xff]
    %v382 = vld [vmem:[%s1 + $0xa58] sm:$0xff]
    %v383 = vld [vmem:[%s1 + $0xa60] sm:$0xff]
    %v384 = vld [vmem:[%s1 + $0xa68] sm:$0xff]
    %v385 = vld [vmem:[%s1 + $0xa70] sm:$0xff]
    %v386 = vld [vmem:[%s1 + $0xa78] sm:$0xff]
    %v387 = vld [vmem:[%s1 + $0xa80] sm:$0xff]
    %v388 = vld [vmem:[%s1 + $0xa88] sm:$0xff]
    %v389 = vld [vmem:[%s1 + $0xa90] sm:$0xff]
    %v390 = vld [vmem:[%s1 + $0xa98] sm:$0xff]
    %v391 = vld [vmem:[%s1 + $0xaa0] sm:$0xff]
    %v392 = vld [vmem:[%s1 + $0xaa8] sm:$0xff]
    %v393 = vld [vmem:[%s1 + $0xab0] sm:$0xff]
    %v394 = vld [vmem:[%s1 + $0xab8] sm:$0xff]
    %v395 = vld [vmem:[%s1 + $0xac0] sm:$0xff]
    %v396 = vld [vmem:[%s1 + $0xac8] sm:$0xff]
    %v397 = vld [vmem:[%s1 + $0xad0] sm:$0xff]
    %v398 = vld [vmem:[%s1 + $0xad8] sm:$0xff]
    %v399 = vld [vmem:[%s1 + $0xae0] sm:$0xff]
    %v400 = vld [vmem:[%s1 + $0xae8] sm:$0xff]
    %v401 = vld [vmem:[%s1 + $0xaf0] sm:$0xff]
    %v402 = vld [vmem:[%s1 + $0xaf8] sm:$0xff]
    %v403 = vld [vmem:[%s1 + $0xb00] sm:$0xff]
    %v404 = vld [vmem:[%s1 + $0xb08] sm:$0xff]
    %v405 = vld [vmem:[%s1 + $0xb10] sm:$0xff]
    %v406 = vld [vmem:[%s1 + $0xb18] sm:$0xff]
    %v407 = vld [vmem:[%s1 + $0xb20] sm:$0xff]
    %v408 = vld [vmem:[%s1 + $0xb28] sm:$0xff]
    %v409 = vld [vmem:[%s1 + $0xb30] sm:$0xff]
    %v410 = vld [vmem:[%s1 + $0xb38] sm:$0xff]
    %v411 = vld [vmem:[%s1 + $0xb40] sm:$0xff]
    %v412 = vld [vmem:[%s1 + $0xb48] sm:$0xff]
    %v413 = vld [vmem:[%s1 + $0xb50] sm:$0xff]
    %v414 = vld [vmem:[%s1 + $0xb58] sm:$0xff]
    %v415 = vld [vmem:[%s1 + $0xb60] sm:$0xff]
    %v416 = vld [vmem:[%s1 + $0xb68] sm:$0xff]
    %v417 = vld [vmem:[%s1 + $0xb70] sm:$0xff]
    %v418 = vld [vmem:[%s1 + $0xb78] sm:$0xff]
    %v419 = vld [vmem:[%s1 + $0xb80] sm:$0xff]
    %v420 = vld [vmem:[%s1 + $0xb88] sm:$0xff]
    %v421 = vld [vmem:[%s1 + $0xb90] sm:$0xff]
    %v422 = vld [vmem:[%s1 + $0xb98] sm:$0xff]
    %v423 = vld [vmem:[%s1 + $0xba0] sm:$0xff]
    %v424 = vld [vmem:[%s1 + $0xba8] sm:$0xff]
    %v425 = vld [vmem:[%s1 + $0xbb0] sm:$0xff]
    %v426 = vld [vmem:[%s1 + $0xbb8] sm:$0xff]
    %v427 = vld [vmem:[%s1 + $0xbc0] sm:$0xff]
    %v428 = vld [vmem:[%s1 + $0xbc8] sm:$0xff]
    %v429 = vld [vmem:[%s1 + $0xbd0] sm:$0xff]
    %v430 = vld [vmem:[%s1 + $0xbd8] sm:$0xff]
    %v431 = vld [vmem:[%s1 + $0xbe0] sm:$0xff]
    %v432 = vld [vmem:[%s1 + $0xbe8] sm:$0xff]
    %v433 = vld [vmem:[%s1 + $0xbf0] sm:$0xff]
    %v434 = vld [vmem:[%s1 + $0xbf8] sm:$0xff]
    %v435 = vld [vmem:[%s1 + $0xc00] sm:$0xff]
    %v436 = vld [vmem:[%s1 + $0xc08] sm:$0xff]
    %v437 = vld [vmem:[%s1 + $0xc10] sm:$0xff]
    %v438 = vld [vmem:[%s1 + $0xc18] sm:$0xff]
    %v439 = vld [vmem:[%s1 + $0xc20] sm:$0xff]
    %v440 = vld [vmem:[%s1 + $0xc28] sm:$0xff]
    %v441 = vld [vmem:[%s1 + $0xc30] sm:$0xff]
    %v442 = vld [vmem:[%s1 + $0xc38] sm:$0xff]
    %v443 = vld [vmem:[%s1 + $0xc40] sm:$0xff]
    %v444 = vld [vmem:[%s1 + $0xc48] sm:$0xff]
    %v445 = vld [vmem:[%s1 + $0xc50] sm:$0xff]
    %v446 = vld [vmem:[%s1 + $0xc58] sm:$0xff]
    %v447 = vld [vmem:[%s1 + $0xc60] sm:$0xff]
    %v448 = vld [vmem:[%s1 + $0xc68] sm:$0xff]
    %v449 = vld [vmem:[%s1 + $0xc70] sm:$0xff]
    %v450 = vld [vmem:[%s1 + $0xc78] sm:$0xff]
    %v451 = vld [vmem:[%s1 + $0xc80] sm:$0xff]
    %v452 = vld [vmem:[%s1 + $0xc88] sm:$0xff]
    %v453 = vld [vmem:[%s1 + $0xc90] sm:$0xff]
    %v454 = vld [vmem:[%s1 + $0xc98] sm:$0xff]
    %v455 = vld [vmem:[%s1 + $0xca0] sm:$0xff]
    %v456 = vld [vmem:[%s1 + $0xca8] sm:$0xff]
    %v457 = vld [vmem:[%s1 + $0xcb0] sm:$0xff]
    %v458 = vld [vmem:[%s1 + $0xcb8] sm:$0xff]
    %v459 = vld [vmem:[%s1 + $0xcc0] sm:$0xff]
    %v460 = vld [vmem:[%s1 + $0xcc8] sm:$0xff]
    %v461 = vld [vmem:[%s1 + $0xcd0] sm:$0xff]
    %v462 = vld [vmem:[%s1 + $0xcd8] sm:$0xff]
    %v463 = vld [vmem:[%s1 + $0xce0] sm:$0xff]
    %v464 = vld [vmem:[%s1 + $0xce8] sm:$0xff]
    %v465 = vld [vmem:[%s1 + $0xcf0] sm:$0xff]
    %v466 = vld [vmem:[%s1 + $0xcf8] sm:$0xff]
    %v467 = vld [vmem:[%s1 + $0xd00] sm:$0xff]
    %v468 = vld [vmem:[%s1 + $0xd08] sm:$0xff]
    %v469 = vld [vmem:[%s1 + $0xd10] sm:$0xff]
    %v470 = vld [vmem:[%s1 + $0xd18] sm:$0xff]
    %v471 = vld [vmem:[%s1 + $0xd20] sm:$0xff]
    %v472 = vld [vmem:[%s1 + $0xd28] sm:$0xff]
    %v473 = vld [vmem:[%s1 + $0xd30] sm:$0xff]
    %v474 = vld [vmem:[%s1 + $0xd38] sm:$0xff]
    %v475 = vld [vmem:[%s1 + $0xd40] sm:$0xff]
    %v476 = vld [vmem:[%s1 + $0xd48] sm:$0xff]
    %v477 = vld [vmem:[%s1 + $0xd50] sm:$0xff]
    %v478 = vld [vmem:[%s1 + $0xd58] sm:$0xff]
    %v479 = vld [vmem:[%s1 + $0xd60] sm:$0xff]
    %v480 = vld [vmem:[%s1 + $0xd68] sm:$0xff]
    %v481 = vld [vmem:[%s1 + $0xd70] sm:$0xff]
    %v482 = vld [vmem:[%s1 + $0xd78] sm:$0xff]
    %v483 = vld [vmem:[%s1 + $0xd80] sm:$0xff]
    %v484 = vld [vmem:[%s1 + $0xd88] sm:$0xff]
    %v485 = vld [vmem:[%s1 + $0xd90] sm:$0xff]
    %v486 = vld [vmem:[%s1 + $0xd98] sm:$0xff]
    %v487 = vld [vmem:[%s1 + $0xda0] sm:$0xff]
    %v488 = vld [vmem:[%s1 + $0xda8] sm:$0xff]
    %v489 = vld [vmem:[%s1 + $0xdb0] sm:$0xff]
    %v490 = vld [vmem:[%s1 + $0xdb8] sm:$0xff]
    %v491 = vld [vmem:[%s1 + $0xdc0] sm:$0xff]
    %v492 = vld [vmem:[%s1 + $0xdc8] sm:$0xff]
    %v493 = vld [vmem:[%s1 + $0xdd0] sm:$0xff]
    %v494 = vld [vmem:[%s1 + $0xdd8] sm:$0xff]
    %v495 = vld [vmem:[%s1 + $0xde0] sm:$0xff]
    %v496 = vld [vmem:[%s1 + $0xde8] sm:$0xff]
    %v497 = vld [vmem:[%s1 + $0xdf0] sm:$0xff]
    %v498 = vld [vmem:[%s1 + $0xdf8] sm:$0xff]
    %v499 = vld [vmem:[%s1 + $0xe00] sm:$0xff]
    %v500 = vld [vmem:[%s1 + $0xe08] sm:$0xff]
    %v501 = vld [vmem:[%s1 + $0xe10] sm:$0xff]
    %v502 = vld [vmem:[%s1 + $0xe18] sm:$0xff]
    %v503 = vld [vmem:[%s1 + $0xe20] sm:$0xff]
    %v504 = vld [vmem:[%s1 + $0xe28] sm:$0xff]
    %v505 = vld [vmem:[%s1 + $0xe30] sm:$0xff]
    %v506 = vld [vmem:[%s1 + $0xe38] sm:$0xff]
    %v507 = vld [vmem:[%s1 + $0xe40] sm:$0xff]
    %v508 = vld [vmem:[%s1 + $0xe48] sm:$0xff]
    %v509 = vld [vmem:[%s1 + $0xe50] sm:$0xff]
    %v510 = vld [vmem:[%s1 + $0xe58] sm:$0xff]
    %v511 = vld [vmem:[%s1 + $0xe60] sm:$0xff]
    %v512 = vld [vmem:[%s1 + $0xe68] sm:$0xff]
    %v513 = vld [vmem:[%s1 + $0xe70] sm:$0xff]
    %v514 = vld [vmem:[%s1 + $0xe78] sm:$0xff]
    %v515 = vld [vmem:[%s1 + $0xe80] sm:$0xff]
    %v516 = vld [vmem:[%s1 + $0xe88] sm:$0xff]
    %v517 = vld [vmem:[%s1 + $0xe90] sm:$0xff]
    %v518 = vld [vmem:[%s1 + $0xe98] sm:$0xff]
    %v519 = vld [vmem:[%s1 + $0xea0] sm:$0xff]
    %v520 = vld [vmem:[%s1 + $0xea8] sm:$0xff]
    %v521 = vld [vmem:[%s1 + $0xeb0] sm:$0xff]
    %v522 = vld [vmem:[%s1 + $0xeb8] sm:$0xff]
    %v523 = vld [vmem:[%s1 + $0xec0] sm:$0xff]
    %v524 = vld [vmem:[%s1 + $0xec8] sm:$0xff]
    %v525 = vld [vmem:[%s1 + $0xed0] sm:$0xff]
    %v526 = vld [vmem:[%s1 + $0xed8] sm:$0xff]
    %v527 = vld [vmem:[%s1 + $0xee0] sm:$0xff]
    %v528 = vld [vmem:[%s1 + $0xee8] sm:$0xff]
    %v529 = vld [vmem:[%s1 + $0xef0] sm:$0xff]
    %v530 = vld [vmem:[%s1 + $0xef8] sm:$0xff]
    %v531 = vld [vmem:[%s1 + $0xf00] sm:$0xff]
    %v532 = vld [vmem:[%s1 + $0xf08] sm:$0xff]
    %v533 = vld [vmem:[%s1 + $0xf10] sm:$0xff]
    %v534 = vld [vmem:[%s1 + $0xf18] sm:$0xff]
    %v535 = vld [vmem:[%s1 + $0xf20] sm:$0xff]
    %v536 = vld [vmem:[%s1 + $0xf28] sm:$0xff]
    %v537 = vld [vmem:[%s1 + $0xf30] sm:$0xff]
    %v538 = vld [vmem:[%s1 + $0xf38] sm:$0xff]
    %v539 = vld [vmem:[%s1 + $0xf40] sm:$0xff]
    %v540 = vld [vmem:[%s1 + $0xf48] sm:$0xff]
    %v541 = vld [vmem:[%s1 + $0xf50] sm:$0xff]
    %v542 = vld [vmem:[%s1 + $0xf58] sm:$0xff]
    %v543 = vld [vmem:[%s1 + $0xf60] sm:$0xff]
    %v544 = vld [vmem:[%s1 + $0xf68] sm:$0xff]
    %v545 = vld [vmem:[%s1 + $0xf70] sm:$0xff]
    %v546 = vld [vmem:[%s1 + $0xf78] sm:$0xff]
    %v547 = vld [vmem:[%s1 + $0xf80] sm:$0xff]
    %v548 = vld [vmem:[%s1 + $0xf88] sm:$0xff]
    %v549 = vld [vmem:[%s1 + $0xf90] sm:$0xff]
    %v550 = vld [vmem:[%s1 + $0xf98] sm:$0xff]
    %v551 = vld [vmem:[%s1 + $0xfa0] sm:$0xff]
    %v552 = vld [vmem:[%s1 + $0xfa8] sm:$0xff]
    %v553 = vld [vmem:[%s1 + $0xfb0] sm:$0xff]
    %v554 = vld [vmem:[%s1 + $0xfb8] sm:$0xff]
    %v555 = vld [vmem:[%s1 + $0xfc0] sm:$0xff]
    %v556 = vld [vmem:[%s1 + $0xfc8] sm:$0xff]
    %v557 = vld [vmem:[%s1 + $0xfd0] sm:$0xff]
    %v558 = vld [vmem:[%s1 + $0xfd8] sm:$0xff]
    %v559 = vld [vmem:[%s1 + $0xfe0] sm:$0xff]
    %v560 = vld [vmem:[%s1 + $0xfe8] sm:$0xff]
    %v561 = vld [vmem:[%s1 + $0xff0] sm:$0xff]
    %v562 = vld [vmem:[%s1 + $0xff8] sm:$0xff]
    %v563 = vld [vmem:[%s1 + $0x1000] sm:$0xff]
    %v564 = vld [vmem:[%s1 + $0x1008] sm:$0xff]
    %v565 = vld [vmem:[%s1 + $0x1010] sm:$0xff]
    %v566 = vld [vmem:[%s1 + $0x1018] sm:$0xff]
    %v567 = vld [vmem:[%s1 + $0x1020] sm:$0xff]
    %v568 = vld [vmem:[%s1 + $0x1028] sm:$0xff]
    %v569 = vld [vmem:[%s1 + $0x1030] sm:$0xff]
    %v570 = vld [vmem:[%s1 + $0x1038] sm:$0xff]
    %v571 = vld [vmem:[%s1 + $0x1040] sm:$0xff]
    %v572 = vld [vmem:[%s1 + $0x1048] sm:$0xff]
    %v573 = vld [vmem:[%s1 + $0x1050] sm:$0xff]
    %v574 = vld [vmem:[%s1 + $0x1058] sm:$0xff]
    %v575 = vld [vmem:[%s1 + $0x1060] sm:$0xff]
    %v576 = vld [vmem:[%s1 + $0x1068] sm:$0xff]
    %v577 = vld [vmem:[%s1 + $0x1070] sm:$0xff]
    %v578 = vld [vmem:[%s1 + $0x1078] sm:$0xff]
    %v579 = vld [vmem:[%s1 + $0x1080] sm:$0xff]
    %v580 = vld [vmem:[%s1 + $0x1088] sm:$0xff]
    %v581 = vld [vmem:[%s1 + $0x1090] sm:$0xff]
    %v582 = vld [vmem:[%s1 + $0x1098] sm:$0xff]
    %v583 = vld [vmem:[%s1 + $0x10a0] sm:$0xff]
    %v584 = vld [vmem:[%s1 + $0x10a8] sm:$0xff]
    %v585 = vld [vmem:[%s1 + $0x10b0] sm:$0xff]
    %v586 = vld [vmem:[%s1 + $0x10b8] sm:$0xff]
    %v587 = vld [vmem:[%s1 + $0x10c0] sm:$0xff]
    %v588 = vld [vmem:[%s1 + $0x10c8] sm:$0xff]
    %v589 = vld [vmem:[%s1 + $0x10d0] sm:$0xff]
    %v590 = vld [vmem:[%s1 + $0x10d8] sm:$0xff]
    %v591 = vld [vmem:[%s1 + $0x10e0] sm:$0xff]
    %v592 = vld [vmem:[%s1 + $0x10e8] sm:$0xff]
    %v593 = vld [vmem:[%s1 + $0x10f0] sm:$0xff]
    %v594 = vld [vmem:[%s1 + $0x10f8] sm:$0xff]
    %v595 = vld [vmem:[%s1 + $0x1100] sm:$0xff]
    %v596 = vld [vmem:[%s1 + $0x1108] sm:$0xff]
    %v597 = vld [vmem:[%s1 + $0x1110] sm:$0xff]
    %v598 = vld [vmem:[%s1 + $0x1118] sm:$0xff]
    %v599 = vld [vmem:[%s1 + $0x1120] sm:$0xff]
    %v600 = vld [vmem:[%s1 + $0x1128] sm:$0xff]
    %v601 = vld [vmem:[%s1 + $0x1130] sm:$0xff]
    %v602 = vld [vmem:[%s1 + $0x1138] sm:$0xff]
    %v603 = vld [vmem:[%s1 + $0x1140] sm:$0xff]
    %v604 = vld [vmem:[%s1 + $0x1148] sm:$0xff]
    %v605 = vld [vmem:[%s1 + $0x1150] sm:$0xff]
    %v606 = vld [vmem:[%s1 + $0x1158] sm:$0xff]
    %v607 = vld [vmem:[%s1 + $0x1160] sm:$0xff]
    %v608 = vld [vmem:[%s1 + $0x1168] sm:$0xff]
    %v609 = vld [vmem:[%s1 + $0x1170] sm:$0xff]
    %v610 = vld [vmem:[%s1 + $0x1178] sm:$0xff]
    %v611 = vld [vmem:[%s1 + $0x1180] sm:$0xff]
    %v612 = vld [vmem:[%s1 + $0x1188] sm:$0xff]
    %v613 = vld [vmem:[%s1 + $0x1190] sm:$0xff]
    %v614 = vld [vmem:[%s1 + $0x1198] sm:$0xff]
    %v615 = vld [vmem:[%s1 + $0x11a0] sm:$0xff]
    %v616 = vld [vmem:[%s1 + $0x11a8] sm:$0xff]
    %v617 = vld [vmem:[%s1 + $0x11b0] sm:$0xff]
    %v618 = vld [vmem:[%s1 + $0x11b8] sm:$0xff]
    %v619 = vld [vmem:[%s1 + $0x11c0] sm:$0xff]
    %v620 = vld [vmem:[%s1 + $0x11c8] sm:$0xff]
    %v621 = vld [vmem:[%s1 + $0x11d0] sm:$0xff]
    %v622 = vld [vmem:[%s1 + $0x11d8] sm:$0xff]
    %v623 = vld [vmem:[%s1 + $0x11e0] sm:$0xff]
    %v624 = vld [vmem:[%s1 + $0x11e8] sm:$0xff]
    %v625 = vld [vmem:[%s1 + $0x11f0] sm:$0xff]
    %v626 = vld [vmem:[%s1 + $0x11f8] sm:$0xff]
    %v627 = vld [vmem:[%s1 + $0x1200] sm:$0xff]
    %v628 = vld [vmem:[%s1 + $0x1208] sm:$0xff]
    %v629 = vld [vmem:[%s1 + $0x1210] sm:$0xff]
    %v630 = vld [vmem:[%s1 + $0x1218] sm:$0xff]
    %v631 = vld [vmem:[%s1 + $0x1220] sm:$0xff]
    %v632 = vld [vmem:[%s1 + $0x1228] sm:$0xff]
    %v633 = vld [vmem:[%s1 + $0x1230] sm:$0xff]
    %v634 = vld [vmem:[%s1 + $0x1238] sm:$0xff]
    %v635 = vld [vmem:[%s1 + $0x1240] sm:$0xff]
    %v636 = vld [vmem:[%s1 + $0x1248] sm:$0xff]
    %v637 = vld [vmem:[%s1 + $0x1250] sm:$0xff]
    %v638 = vld [vmem:[%s1 + $0x1258] sm:$0xff]
    %v639 = vld [vmem:[%s1 + $0x1260] sm:$0xff]
    %v640 = vld [vmem:[%s1 + $0x1268] sm:$0xff]
    %v641 = vld [vmem:[%s1 + $0x1270] sm:$0xff]
    %v642 = vld [vmem:[%s1 + $0x1278] sm:$0xff]
    %v643 = vld [vmem:[%s1 + $0x1280] sm:$0xff]
    %v644 = vld [vmem:[%s1 + $0x1288] sm:$0xff]
    %v645 = vld [vmem:[%s1 + $0x1290] sm:$0xff]
    %v646 = vld [vmem:[%s1 + $0x1298] sm:$0xff]
    %v647 = vld [vmem:[%s1 + $0x12a0] sm:$0xff]
    %v648 = vld [vmem:[%s1 + $0x12a8] sm:$0xff]
    %v649 = vld [vmem:[%s1 + $0x12b0] sm:$0xff]
    %v650 = vld [vmem:[%s1 + $0x12b8] sm:$0xff]
    %v651 = vld [vmem:[%s1 + $0x12c0] sm:$0xff]
    %v652 = vld [vmem:[%s1 + $0x12c8] sm:$0xff]
    %v653 = vld [vmem:[%s1 + $0x12d0] sm:$0xff]
    %v654 = vld [vmem:[%s1 + $0x12d8] sm:$0xff]
    %v655 = vld [vmem:[%s1 + $0x12e0] sm:$0xff]
    %v656 = vld [vmem:[%s1 + $0x12e8] sm:$0xff]
    %v657 = vld [vmem:[%s1 + $0x12f0] sm:$0xff]
    %v658 = vld [vmem:[%s1 + $0x12f8] sm:$0xff]
    %v659 = vld [vmem:[%s2] sm:$0xff]
    %v661 = vlaneseq
    %v662 = vshrl.u32 %v661, 7
    %v663 = vsub.s32 0, %v662
    %v664 = vrot.slane %v659, %v663
    %v665 = vlaneseq
    %v666 = vshrl.u32 %v665, 7
    %v667 = vsub.s32 1, %v666
    %v668 = vrot.slane %v659, %v667
    %v669 = vlaneseq
    %v670 = vshrl.u32 %v669, 7
    %v671 = vsub.s32 2, %v670
    %v672 = vrot.slane %v659, %v671
    %v673 = vlaneseq
    %v674 = vshrl.u32 %v673, 7
    %v675 = vsub.s32 3, %v674
    %v676 = vrot.slane %v659, %v675
    %v677 = vlaneseq
    %v678 = vshrl.u32 %v677, 7
    %v679 = vsub.s32 4, %v678
    %v680 = vrot.slane %v659, %v679
    %v681 = vlaneseq
    %v682 = vshrl.u32 %v681, 7
    %v683 = vsub.s32 5, %v682
    %v684 = vrot.slane %v659, %v683
    %v685 = vlaneseq
    %v686 = vshrl.u32 %v685, 7
    %v687 = vsub.s32 6, %v686
    %v688 = vrot.slane %v659, %v687
    %v689 = vlaneseq
    %v690 = vshrl.u32 %v689, 7
    %v691 = vsub.s32 7, %v690
    %v692 = vrot.slane %v659, %v691
    %v711 = vunpack.c.l.b16 %v41
    %v712 = vunpack.c.h.b16 %v41
    %v713 = vunpack.c.l.b16 %v42
    %v714 = vunpack.c.h.b16 %v42
    %v715 = vunpack.c.l.b16 %v43
    %v716 = vunpack.c.h.b16 %v43
    %v717 = vunpack.c.l.b16 %v44
    %v718 = vunpack.c.h.b16 %v44
    %v719 = vunpack.c.l.b16 %v45
    %v720 = vunpack.c.h.b16 %v45
    %v721 = vunpack.c.l.b16 %v46
    %v722 = vunpack.c.h.b16 %v46
    %v723 = vunpack.c.l.b16 %v47
    %v724 = vunpack.c.h.b16 %v47
    %v725 = vunpack.c.l.b16 %v48
    %v726 = vunpack.c.h.b16 %v48
    %v727 = vunpack.c.l.b16 %v49
    %v728 = vunpack.c.h.b16 %v49
    %v729 = vunpack.c.l.b16 %v50
    %v730 = vunpack.c.h.b16 %v50
    %v731 = vpack.c.b16 %v721, %v711
    %v732 = vpack.c.b16 %v722, %v712
    %v733 = vpack.c.b16 %v723, %v713
    %v734 = vpack.c.b16 %v724, %v714
    %v735 = vpack.c.b16 %v725, %v715
    %v736 = vpack.c.b16 %v726, %v716
    %v737 = vpack.c.b16 %v727, %v717
    %v738 = vpack.c.b16 %v728, %v718
    %v739 = vpack.c.b16 %v729, %v719
    %v740 = vpack.c.b16 %v730, %v720
    %v1358 = vunpack.c.l.b16 %v51
    %v1359 = vunpack.c.h.b16 %v51
    %v1360 = vunpack.c.l.b16 %v52
    %v1361 = vunpack.c.h.b16 %v52
    %v1362 = vunpack.c.l.b16 %v53
    %v1363 = vunpack.c.h.b16 %v53
    %v1364 = vunpack.c.l.b16 %v54
    %v1365 = vunpack.c.h.b16 %v54
    %v1366 = vunpack.c.l.b16 %v55
    %v1367 = vunpack.c.h.b16 %v55
    %v1368 = vunpack.c.l.b16 %v56
    %v1369 = vunpack.c.h.b16 %v56
    %v1370 = vunpack.c.l.b16 %v57
    %v1371 = vunpack.c.h.b16 %v57
    %v1372 = vunpack.c.l.b16 %v58
    %v1373 = vunpack.c.h.b16 %v58
    %v1374 = vunpack.c.l.b16 %v59
    %v1375 = vunpack.c.h.b16 %v59
    %v1376 = vunpack.c.l.b16 %v60
    %v1377 = vunpack.c.h.b16 %v60
    %v1378 = vunpack.c.l.b16 %v61
    %v1379 = vunpack.c.h.b16 %v61
    %v1380 = vunpack.c.l.b16 %v62
    %v1381 = vunpack.c.h.b16 %v62
    %v1382 = vunpack.c.l.b16 %v63
    %v1383 = vunpack.c.h.b16 %v63
    %v1384 = vunpack.c.l.b16 %v64
    %v1385 = vunpack.c.h.b16 %v64
    %v1386 = vunpack.c.l.b16 %v65
    %v1387 = vunpack.c.h.b16 %v65
    %v1388 = vunpack.c.l.b16 %v66
    %v1389 = vunpack.c.h.b16 %v66
    %v1390 = vunpack.c.l.b16 %v67
    %v1391 = vunpack.c.h.b16 %v67
    %v1392 = vunpack.c.l.b16 %v68
    %v1393 = vunpack.c.h.b16 %v68
    %v1394 = vunpack.c.l.b16 %v69
    %v1395 = vunpack.c.h.b16 %v69
    %v1396 = vunpack.c.l.b16 %v70
    %v1397 = vunpack.c.h.b16 %v70
    %v1398 = vunpack.c.l.b16 %v71
    %v1399 = vunpack.c.h.b16 %v71
    %v1400 = vunpack.c.l.b16 %v72
    %v1401 = vunpack.c.h.b16 %v72
    %v1402 = vunpack.c.l.b16 %v73
    %v1403 = vunpack.c.h.b16 %v73
    %v1404 = vunpack.c.l.b16 %v74
    %v1405 = vunpack.c.h.b16 %v74
    %v1406 = vunpack.c.l.b16 %v75
    %v1407 = vunpack.c.h.b16 %v75
    %v1408 = vunpack.c.l.b16 %v76
    %v1409 = vunpack.c.h.b16 %v76
    %v1410 = vunpack.c.l.b16 %v77
    %v1411 = vunpack.c.h.b16 %v77
    %v1412 = vunpack.c.l.b16 %v78
    %v1413 = vunpack.c.h.b16 %v78
    %v1414 = vunpack.c.l.b16 %v79
    %v1415 = vunpack.c.h.b16 %v79
    %v1416 = vunpack.c.l.b16 %v80
    %v1417 = vunpack.c.h.b16 %v80
    %v1418 = vunpack.c.l.b16 %v81
    %v1419 = vunpack.c.h.b16 %v81
    %v1420 = vunpack.c.l.b16 %v82
    %v1421 = vunpack.c.h.b16 %v82
    %v1422 = vunpack.c.l.b16 %v83
    %v1423 = vunpack.c.h.b16 %v83
    %v1424 = vunpack.c.l.b16 %v84
    %v1425 = vunpack.c.h.b16 %v84
    %v1426 = vunpack.c.l.b16 %v85
    %v1427 = vunpack.c.h.b16 %v85
    %v1428 = vunpack.c.l.b16 %v86
    %v1429 = vunpack.c.h.b16 %v86
    %v1430 = vunpack.c.l.b16 %v87
    %v1431 = vunpack.c.h.b16 %v87
    %v1432 = vunpack.c.l.b16 %v88
    %v1433 = vunpack.c.h.b16 %v88
    %v1434 = vunpack.c.l.b16 %v89
    %v1435 = vunpack.c.h.b16 %v89
    %v1436 = vunpack.c.l.b16 %v90
    %v1437 = vunpack.c.h.b16 %v90
    %v1438 = vunpack.c.l.b16 %v91
    %v1439 = vunpack.c.h.b16 %v91
    %v1440 = vunpack.c.l.b16 %v92
    %v1441 = vunpack.c.h.b16 %v92
    %v1442 = vunpack.c.l.b16 %v93
    %v1443 = vunpack.c.h.b16 %v93
    %v1444 = vunpack.c.l.b16 %v94
    %v1445 = vunpack.c.h.b16 %v94
    %v1446 = vunpack.c.l.b16 %v95
    %v1447 = vunpack.c.h.b16 %v95
    %v1448 = vunpack.c.l.b16 %v96
    %v1449 = vunpack.c.h.b16 %v96
    %v1450 = vunpack.c.l.b16 %v97
    %v1451 = vunpack.c.h.b16 %v97
    %v1452 = vunpack.c.l.b16 %v98
    %v1453 = vunpack.c.h.b16 %v98
    %v1454 = vunpack.c.l.b16 %v99
    %v1455 = vunpack.c.h.b16 %v99
    %v1456 = vunpack.c.l.b16 %v100
    %v1457 = vunpack.c.h.b16 %v100
    %v1458 = vunpack.c.l.b16 %v101
    %v1459 = vunpack.c.h.b16 %v101
    %v1460 = vunpack.c.l.b16 %v102
    %v1461 = vunpack.c.h.b16 %v102
    %v1462 = vunpack.c.l.b16 %v103
    %v1463 = vunpack.c.h.b16 %v103
    %v1464 = vunpack.c.l.b16 %v104
    %v1465 = vunpack.c.h.b16 %v104
    %v1466 = vunpack.c.l.b16 %v105
    %v1467 = vunpack.c.h.b16 %v105
    %v1468 = vunpack.c.l.b16 %v106
    %v1469 = vunpack.c.h.b16 %v106
    %v1470 = vunpack.c.l.b16 %v107
    %v1471 = vunpack.c.h.b16 %v107
    %v1472 = vunpack.c.l.b16 %v108
    %v1473 = vunpack.c.h.b16 %v108
    %v1474 = vunpack.c.l.b16 %v109
    %v1475 = vunpack.c.h.b16 %v109
    %v1476 = vunpack.c.l.b16 %v110
    %v1477 = vunpack.c.h.b16 %v110
    %v1478 = vunpack.c.l.b16 %v111
    %v1479 = vunpack.c.h.b16 %v111
    %v1480 = vunpack.c.l.b16 %v112
    %v1481 = vunpack.c.h.b16 %v112
    %v1482 = vunpack.c.l.b16 %v113
    %v1483 = vunpack.c.h.b16 %v113
    %v1484 = vunpack.c.l.b16 %v114
    %v1485 = vunpack.c.h.b16 %v114
    %v1486 = vunpack.c.l.b16 %v115
    %v1487 = vunpack.c.h.b16 %v115
    %v1488 = vunpack.c.l.b16 %v116
    %v1489 = vunpack.c.h.b16 %v116
    %v1490 = vunpack.c.l.b16 %v117
    %v1491 = vunpack.c.h.b16 %v117
    %v1492 = vunpack.c.l.b16 %v118
    %v1493 = vunpack.c.h.b16 %v118
    %v1494 = vunpack.c.l.b16 %v119
    %v1495 = vunpack.c.h.b16 %v119
    %v1496 = vunpack.c.l.b16 %v120
    %v1497 = vunpack.c.h.b16 %v120
    %v1498 = vunpack.c.l.b16 %v121
    %v1499 = vunpack.c.h.b16 %v121
    %v1500 = vunpack.c.l.b16 %v122
    %v1501 = vunpack.c.h.b16 %v122
    %v1502 = vunpack.c.l.b16 %v123
    %v1503 = vunpack.c.h.b16 %v123
    %v1504 = vunpack.c.l.b16 %v124
    %v1505 = vunpack.c.h.b16 %v124
    %v1506 = vunpack.c.l.b16 %v125
    %v1507 = vunpack.c.h.b16 %v125
    %v1508 = vunpack.c.l.b16 %v126
    %v1509 = vunpack.c.h.b16 %v126
    %v1510 = vunpack.c.l.b16 %v127
    %v1511 = vunpack.c.h.b16 %v127
    %v1512 = vunpack.c.l.b16 %v128
    %v1513 = vunpack.c.h.b16 %v128
    %v1514 = vunpack.c.l.b16 %v129
    %v1515 = vunpack.c.h.b16 %v129
    %v1516 = vunpack.c.l.b16 %v130
    %v1517 = vunpack.c.h.b16 %v130
    %v1518 = vunpack.c.l.b16 %v131
    %v1519 = vunpack.c.h.b16 %v131
    %v1520 = vunpack.c.l.b16 %v132
    %v1521 = vunpack.c.h.b16 %v132
    %v1522 = vunpack.c.l.b16 %v133
    %v1523 = vunpack.c.h.b16 %v133
    %v1524 = vunpack.c.l.b16 %v134
    %v1525 = vunpack.c.h.b16 %v134
    %v1526 = vunpack.c.l.b16 %v135
    %v1527 = vunpack.c.h.b16 %v135
    %v1528 = vunpack.c.l.b16 %v136
    %v1529 = vunpack.c.h.b16 %v136
    %v1530 = vunpack.c.l.b16 %v137
    %v1531 = vunpack.c.h.b16 %v137
    %v1532 = vunpack.c.l.b16 %v138
    %v1533 = vunpack.c.h.b16 %v138
    %v1534 = vunpack.c.l.b16 %v139
    %v1535 = vunpack.c.h.b16 %v139
    %v1536 = vunpack.c.l.b16 %v140
    %v1537 = vunpack.c.h.b16 %v140
    %v1538 = vunpack.c.l.b16 %v141
    %v1539 = vunpack.c.h.b16 %v141
    %v1540 = vunpack.c.l.b16 %v142
    %v1541 = vunpack.c.h.b16 %v142
    %v1542 = vunpack.c.l.b16 %v143
    %v1543 = vunpack.c.h.b16 %v143
    %v1544 = vunpack.c.l.b16 %v144
    %v1545 = vunpack.c.h.b16 %v144
    %v1546 = vunpack.c.l.b16 %v145
    %v1547 = vunpack.c.h.b16 %v145
    %v1548 = vunpack.c.l.b16 %v146
    %v1549 = vunpack.c.h.b16 %v146
    %v1550 = vunpack.c.l.b16 %v147
    %v1551 = vunpack.c.h.b16 %v147
    %v1552 = vunpack.c.l.b16 %v148
    %v1553 = vunpack.c.h.b16 %v148
    %v1554 = vunpack.c.l.b16 %v149
    %v1555 = vunpack.c.h.b16 %v149
    %v1556 = vunpack.c.l.b16 %v150
    %v1557 = vunpack.c.h.b16 %v150
    %v1558 = vunpack.c.l.b16 %v151
    %v1559 = vunpack.c.h.b16 %v151
    %v1560 = vunpack.c.l.b16 %v152
    %v1561 = vunpack.c.h.b16 %v152
    %v1562 = vunpack.c.l.b16 %v153
    %v1563 = vunpack.c.h.b16 %v153
    %v1564 = vunpack.c.l.b16 %v154
    %v1565 = vunpack.c.h.b16 %v154
    %v1566 = vunpack.c.l.b16 %v155
    %v1567 = vunpack.c.h.b16 %v155
    %v1568 = vunpack.c.l.b16 %v156
    %v1569 = vunpack.c.h.b16 %v156
    %v1570 = vunpack.c.l.b16 %v157
    %v1571 = vunpack.c.h.b16 %v157
    %v1572 = vunpack.c.l.b16 %v158
    %v1573 = vunpack.c.h.b16 %v158
    %v1574 = vunpack.c.l.b16 %v159
    %v1575 = vunpack.c.h.b16 %v159
    %v1576 = vunpack.c.l.b16 %v160
    %v1577 = vunpack.c.h.b16 %v160
    %v1578 = vunpack.c.l.b16 %v161
    %v1579 = vunpack.c.h.b16 %v161
    %v1580 = vunpack.c.l.b16 %v162
    %v1581 = vunpack.c.h.b16 %v162
    %v1582 = vunpack.c.l.b16 %v163
    %v1583 = vunpack.c.h.b16 %v163
    %v1584 = vunpack.c.l.b16 %v164
    %v1585 = vunpack.c.h.b16 %v164
    %v1586 = vunpack.c.l.b16 %v165
    %v1587 = vunpack.c.h.b16 %v165
    %v1588 = vunpack.c.l.b16 %v166
    %v1589 = vunpack.c.h.b16 %v166
    %v1590 = vunpack.c.l.b16 %v167
    %v1591 = vunpack.c.h.b16 %v167
    %v1592 = vunpack.c.l.b16 %v168
    %v1593 = vunpack.c.h.b16 %v168
    %v1594 = vunpack.c.l.b16 %v169
    %v1595 = vunpack.c.h.b16 %v169
    %v1596 = vunpack.c.l.b16 %v170
    %v1597 = vunpack.c.h.b16 %v170
    %v1598 = vunpack.c.l.b16 %v171
    %v1599 = vunpack.c.h.b16 %v171
    %v1600 = vunpack.c.l.b16 %v172
    %v1601 = vunpack.c.h.b16 %v172
    %v1602 = vunpack.c.l.b16 %v173
    %v1603 = vunpack.c.h.b16 %v173
    %v1604 = vunpack.c.l.b16 %v174
    %v1605 = vunpack.c.h.b16 %v174
    %v1606 = vunpack.c.l.b16 %v175
    %v1607 = vunpack.c.h.b16 %v175
    %v1608 = vunpack.c.l.b16 %v176
    %v1609 = vunpack.c.h.b16 %v176
    %v1610 = vunpack.c.l.b16 %v177
    %v1611 = vunpack.c.h.b16 %v177
    %v1612 = vunpack.c.l.b16 %v178
    %v1613 = vunpack.c.h.b16 %v178
    %v1614 = vunpack.c.l.b16 %v179
    %v1615 = vunpack.c.h.b16 %v179
    %v1616 = vunpack.c.l.b16 %v180
    %v1617 = vunpack.c.h.b16 %v180
    %v1618 = vunpack.c.l.b16 %v181
    %v1619 = vunpack.c.h.b16 %v181
    %v1620 = vunpack.c.l.b16 %v182
    %v1621 = vunpack.c.h.b16 %v182
    %v1622 = vunpack.c.l.b16 %v183
    %v1623 = vunpack.c.h.b16 %v183
    %v1624 = vunpack.c.l.b16 %v184
    %v1625 = vunpack.c.h.b16 %v184
    %v1626 = vunpack.c.l.b16 %v185
    %v1627 = vunpack.c.h.b16 %v185
    %v1628 = vunpack.c.l.b16 %v186
    %v1629 = vunpack.c.h.b16 %v186
    %v1630 = vunpack.c.l.b16 %v187
    %v1631 = vunpack.c.h.b16 %v187
    %v1632 = vunpack.c.l.b16 %v188
    %v1633 = vunpack.c.h.b16 %v188
    %v1634 = vunpack.c.l.b16 %v189
    %v1635 = vunpack.c.h.b16 %v189
    %v1636 = vunpack.c.l.b16 %v190
    %v1637 = vunpack.c.h.b16 %v190
    %v1638 = vunpack.c.l.b16 %v191
    %v1639 = vunpack.c.h.b16 %v191
    %v1640 = vunpack.c.l.b16 %v192
    %v1641 = vunpack.c.h.b16 %v192
    %v1642 = vunpack.c.l.b16 %v193
    %v1643 = vunpack.c.h.b16 %v193
    %v1644 = vunpack.c.l.b16 %v194
    %v1645 = vunpack.c.h.b16 %v194
    %v1646 = vunpack.c.l.b16 %v195
    %v1647 = vunpack.c.h.b16 %v195
    %v1648 = vunpack.c.l.b16 %v196
    %v1649 = vunpack.c.h.b16 %v196
    %v1650 = vunpack.c.l.b16 %v197
    %v1651 = vunpack.c.h.b16 %v197
    %v1652 = vunpack.c.l.b16 %v198
    %v1653 = vunpack.c.h.b16 %v198
    %v1654 = vunpack.c.l.b16 %v199
    %v1655 = vunpack.c.h.b16 %v199
    %v1656 = vunpack.c.l.b16 %v200
    %v1657 = vunpack.c.h.b16 %v200
    %v1658 = vunpack.c.l.b16 %v201
    %v1659 = vunpack.c.h.b16 %v201
    %v1660 = vunpack.c.l.b16 %v202
    %v1661 = vunpack.c.h.b16 %v202
    %v1662 = vunpack.c.l.b16 %v203
    %v1663 = vunpack.c.h.b16 %v203
    %v1664 = vunpack.c.l.b16 %v204
    %v1665 = vunpack.c.h.b16 %v204
    %v1666 = vunpack.c.l.b16 %v205
    %v1667 = vunpack.c.h.b16 %v205
    %v1668 = vunpack.c.l.b16 %v206
    %v1669 = vunpack.c.h.b16 %v206
    %v1670 = vunpack.c.l.b16 %v207
    %v1671 = vunpack.c.h.b16 %v207
    %v1672 = vunpack.c.l.b16 %v208
    %v1673 = vunpack.c.h.b16 %v208
    %v1674 = vunpack.c.l.b16 %v209
    %v1675 = vunpack.c.h.b16 %v209
    %v1676 = vunpack.c.l.b16 %v210
    %v1677 = vunpack.c.h.b16 %v210
    %v1678 = vunpack.c.l.b16 %v211
    %v1679 = vunpack.c.h.b16 %v211
    %v1680 = vunpack.c.l.b16 %v212
    %v1681 = vunpack.c.h.b16 %v212
    %v1682 = vunpack.c.l.b16 %v213
    %v1683 = vunpack.c.h.b16 %v213
    %v1684 = vunpack.c.l.b16 %v214
    %v1685 = vunpack.c.h.b16 %v214
    %v1686 = vunpack.c.l.b16 %v215
    %v1687 = vunpack.c.h.b16 %v215
    %v1688 = vunpack.c.l.b16 %v216
    %v1689 = vunpack.c.h.b16 %v216
    %v1690 = vunpack.c.l.b16 %v217
    %v1691 = vunpack.c.h.b16 %v217
    %v1692 = vunpack.c.l.b16 %v218
    %v1693 = vunpack.c.h.b16 %v218
    %v1694 = vunpack.c.l.b16 %v219
    %v1695 = vunpack.c.h.b16 %v219
    %v1696 = vunpack.c.l.b16 %v220
    %v1697 = vunpack.c.h.b16 %v220
    %v1698 = vunpack.c.l.b16 %v221
    %v1699 = vunpack.c.h.b16 %v221
    %v1700 = vunpack.c.l.b16 %v222
    %v1701 = vunpack.c.h.b16 %v222
    %v1702 = vunpack.c.l.b16 %v223
    %v1703 = vunpack.c.h.b16 %v223
    %v1704 = vunpack.c.l.b16 %v224
    %v1705 = vunpack.c.h.b16 %v224
    %v1706 = vunpack.c.l.b16 %v225
    %v1707 = vunpack.c.h.b16 %v225
    %v1708 = vunpack.c.l.b16 %v226
    %v1709 = vunpack.c.h.b16 %v226
    %v1710 = vunpack.c.l.b16 %v227
    %v1711 = vunpack.c.h.b16 %v227
    %v1712 = vunpack.c.l.b16 %v228
    %v1713 = vunpack.c.h.b16 %v228
    %v1714 = vunpack.c.l.b16 %v229
    %v1715 = vunpack.c.h.b16 %v229
    %v1716 = vunpack.c.l.b16 %v230
    %v1717 = vunpack.c.h.b16 %v230
    %v1718 = vunpack.c.l.b16 %v231
    %v1719 = vunpack.c.h.b16 %v231
    %v1720 = vunpack.c.l.b16 %v232
    %v1721 = vunpack.c.h.b16 %v232
    %v1722 = vunpack.c.l.b16 %v233
    %v1723 = vunpack.c.h.b16 %v233
    %v1724 = vunpack.c.l.b16 %v234
    %v1725 = vunpack.c.h.b16 %v234
    %v1726 = vunpack.c.l.b16 %v235
    %v1727 = vunpack.c.h.b16 %v235
    %v1728 = vunpack.c.l.b16 %v236
    %v1729 = vunpack.c.h.b16 %v236
    %v1730 = vunpack.c.l.b16 %v237
    %v1731 = vunpack.c.h.b16 %v237
    %v1732 = vunpack.c.l.b16 %v238
    %v1733 = vunpack.c.h.b16 %v238
    %v1734 = vunpack.c.l.b16 %v239
    %v1735 = vunpack.c.h.b16 %v239
    %v1736 = vunpack.c.l.b16 %v240
    %v1737 = vunpack.c.h.b16 %v240
    %v1738 = vunpack.c.l.b16 %v241
    %v1739 = vunpack.c.h.b16 %v241
    %v1740 = vunpack.c.l.b16 %v242
    %v1741 = vunpack.c.h.b16 %v242
    %v1742 = vunpack.c.l.b16 %v243
    %v1743 = vunpack.c.h.b16 %v243
    %v1744 = vunpack.c.l.b16 %v244
    %v1745 = vunpack.c.h.b16 %v244
    %v1746 = vunpack.c.l.b16 %v245
    %v1747 = vunpack.c.h.b16 %v245
    %v1748 = vunpack.c.l.b16 %v246
    %v1749 = vunpack.c.h.b16 %v246
    %v1750 = vunpack.c.l.b16 %v247
    %v1751 = vunpack.c.h.b16 %v247
    %v1752 = vunpack.c.l.b16 %v248
    %v1753 = vunpack.c.h.b16 %v248
    %v1754 = vunpack.c.l.b16 %v249
    %v1755 = vunpack.c.h.b16 %v249
    %v1756 = vunpack.c.l.b16 %v250
    %v1757 = vunpack.c.h.b16 %v250
    %v1758 = vunpack.c.l.b16 %v251
    %v1759 = vunpack.c.h.b16 %v251
    %v1760 = vunpack.c.l.b16 %v252
    %v1761 = vunpack.c.h.b16 %v252
    %v1762 = vunpack.c.l.b16 %v253
    %v1763 = vunpack.c.h.b16 %v253
    %v1764 = vunpack.c.l.b16 %v254
    %v1765 = vunpack.c.h.b16 %v254
    %v1766 = vunpack.c.l.b16 %v255
    %v1767 = vunpack.c.h.b16 %v255
    %v1768 = vunpack.c.l.b16 %v256
    %v1769 = vunpack.c.h.b16 %v256
    %v1770 = vunpack.c.l.b16 %v257
    %v1771 = vunpack.c.h.b16 %v257
    %v1772 = vunpack.c.l.b16 %v258
    %v1773 = vunpack.c.h.b16 %v258
    %v1774 = vunpack.c.l.b16 %v259
    %v1775 = vunpack.c.h.b16 %v259
    %v1776 = vunpack.c.l.b16 %v260
    %v1777 = vunpack.c.h.b16 %v260
    %v1778 = vunpack.c.l.b16 %v261
    %v1779 = vunpack.c.h.b16 %v261
    %v1780 = vunpack.c.l.b16 %v262
    %v1781 = vunpack.c.h.b16 %v262
    %v1782 = vunpack.c.l.b16 %v263
    %v1783 = vunpack.c.h.b16 %v263
    %v1784 = vunpack.c.l.b16 %v264
    %v1785 = vunpack.c.h.b16 %v264
    %v1786 = vunpack.c.l.b16 %v265
    %v1787 = vunpack.c.h.b16 %v265
    %v1788 = vunpack.c.l.b16 %v266
    %v1789 = vunpack.c.h.b16 %v266
    %v1790 = vunpack.c.l.b16 %v267
    %v1791 = vunpack.c.h.b16 %v267
    %v1792 = vunpack.c.l.b16 %v268
    %v1793 = vunpack.c.h.b16 %v268
    %v1794 = vunpack.c.l.b16 %v269
    %v1795 = vunpack.c.h.b16 %v269
    %v1796 = vunpack.c.l.b16 %v270
    %v1797 = vunpack.c.h.b16 %v270
    %v1798 = vunpack.c.l.b16 %v271
    %v1799 = vunpack.c.h.b16 %v271
    %v1800 = vunpack.c.l.b16 %v272
    %v1801 = vunpack.c.h.b16 %v272
    %v1802 = vunpack.c.l.b16 %v273
    %v1803 = vunpack.c.h.b16 %v273
    %v1804 = vunpack.c.l.b16 %v274
    %v1805 = vunpack.c.h.b16 %v274
    %v1806 = vunpack.c.l.b16 %v275
    %v1807 = vunpack.c.h.b16 %v275
    %v1808 = vunpack.c.l.b16 %v276
    %v1809 = vunpack.c.h.b16 %v276
    %v1810 = vunpack.c.l.b16 %v277
    %v1811 = vunpack.c.h.b16 %v277
    %v1812 = vunpack.c.l.b16 %v278
    %v1813 = vunpack.c.h.b16 %v278
    %v1814 = vunpack.c.l.b16 %v279
    %v1815 = vunpack.c.h.b16 %v279
    %v1816 = vunpack.c.l.b16 %v280
    %v1817 = vunpack.c.h.b16 %v280
    %v1818 = vunpack.c.l.b16 %v281
    %v1819 = vunpack.c.h.b16 %v281
    %v1820 = vunpack.c.l.b16 %v282
    %v1821 = vunpack.c.h.b16 %v282
    %v1822 = vunpack.c.l.b16 %v283
    %v1823 = vunpack.c.h.b16 %v283
    %v1824 = vunpack.c.l.b16 %v284
    %v1825 = vunpack.c.h.b16 %v284
    %v1826 = vunpack.c.l.b16 %v285
    %v1827 = vunpack.c.h.b16 %v285
    %v1828 = vunpack.c.l.b16 %v286
    %v1829 = vunpack.c.h.b16 %v286
    %v1830 = vunpack.c.l.b16 %v287
    %v1831 = vunpack.c.h.b16 %v287
    %v1832 = vunpack.c.l.b16 %v288
    %v1833 = vunpack.c.h.b16 %v288
    %v1834 = vunpack.c.l.b16 %v289
    %v1835 = vunpack.c.h.b16 %v289
    %v1836 = vunpack.c.l.b16 %v290
    %v1837 = vunpack.c.h.b16 %v290
    %v1838 = vunpack.c.l.b16 %v291
    %v1839 = vunpack.c.h.b16 %v291
    %v1840 = vunpack.c.l.b16 %v292
    %v1841 = vunpack.c.h.b16 %v292
    %v1842 = vunpack.c.l.b16 %v293
    %v1843 = vunpack.c.h.b16 %v293
    %v1844 = vunpack.c.l.b16 %v294
    %v1845 = vunpack.c.h.b16 %v294
    %v1846 = vunpack.c.l.b16 %v295
    %v1847 = vunpack.c.h.b16 %v295
    %v1848 = vunpack.c.l.b16 %v296
    %v1849 = vunpack.c.h.b16 %v296
    %v1850 = vunpack.c.l.b16 %v297
    %v1851 = vunpack.c.h.b16 %v297
    %v1852 = vunpack.c.l.b16 %v298
    %v1853 = vunpack.c.h.b16 %v298
    %v1854 = vunpack.c.l.b16 %v299
    %v1855 = vunpack.c.h.b16 %v299
    %v1856 = vunpack.c.l.b16 %v300
    %v1857 = vunpack.c.h.b16 %v300
    %v1858 = vunpack.c.l.b16 %v301
    %v1859 = vunpack.c.h.b16 %v301
    %v1860 = vunpack.c.l.b16 %v302
    %v1861 = vunpack.c.h.b16 %v302
    %v1862 = vunpack.c.l.b16 %v303
    %v1863 = vunpack.c.h.b16 %v303
    %v1864 = vunpack.c.l.b16 %v304
    %v1865 = vunpack.c.h.b16 %v304
    %v1866 = vunpack.c.l.b16 %v305
    %v1867 = vunpack.c.h.b16 %v305
    %v1868 = vunpack.c.l.b16 %v306
    %v1869 = vunpack.c.h.b16 %v306
    %v1870 = vunpack.c.l.b16 %v307
    %v1871 = vunpack.c.h.b16 %v307
    %v1872 = vunpack.c.l.b16 %v308
    %v1873 = vunpack.c.h.b16 %v308
    %v1874 = vunpack.c.l.b16 %v309
    %v1875 = vunpack.c.h.b16 %v309
    %v1876 = vunpack.c.l.b16 %v310
    %v1877 = vunpack.c.h.b16 %v310
    %v1878 = vunpack.c.l.b16 %v311
    %v1879 = vunpack.c.h.b16 %v311
    %v1880 = vunpack.c.l.b16 %v312
    %v1881 = vunpack.c.h.b16 %v312
    %v1882 = vunpack.c.l.b16 %v313
    %v1883 = vunpack.c.h.b16 %v313
    %v1884 = vunpack.c.l.b16 %v314
    %v1885 = vunpack.c.h.b16 %v314
    %v1886 = vunpack.c.l.b16 %v315
    %v1887 = vunpack.c.h.b16 %v315
    %v1888 = vunpack.c.l.b16 %v316
    %v1889 = vunpack.c.h.b16 %v316
    %v1890 = vunpack.c.l.b16 %v317
    %v1891 = vunpack.c.h.b16 %v317
    %v1892 = vunpack.c.l.b16 %v318
    %v1893 = vunpack.c.h.b16 %v318
    %v1894 = vunpack.c.l.b16 %v319
    %v1895 = vunpack.c.h.b16 %v319
    %v1896 = vunpack.c.l.b16 %v320
    %v1897 = vunpack.c.h.b16 %v320
    %v1898 = vunpack.c.l.b16 %v321
    %v1899 = vunpack.c.h.b16 %v321
    %v1900 = vunpack.c.l.b16 %v322
    %v1901 = vunpack.c.h.b16 %v322
    %v1902 = vunpack.c.l.b16 %v323
    %v1903 = vunpack.c.h.b16 %v323
    %v1904 = vunpack.c.l.b16 %v324
    %v1905 = vunpack.c.h.b16 %v324
    %v1906 = vunpack.c.l.b16 %v325
    %v1907 = vunpack.c.h.b16 %v325
    %v1908 = vunpack.c.l.b16 %v326
    %v1909 = vunpack.c.h.b16 %v326
    %v1910 = vunpack.c.l.b16 %v327
    %v1911 = vunpack.c.h.b16 %v327
    %v1912 = vunpack.c.l.b16 %v328
    %v1913 = vunpack.c.h.b16 %v328
    %v1914 = vunpack.c.l.b16 %v329
    %v1915 = vunpack.c.h.b16 %v329
    %v1916 = vunpack.c.l.b16 %v330
    %v1917 = vunpack.c.h.b16 %v330
    %v1918 = vunpack.c.l.b16 %v331
    %v1919 = vunpack.c.h.b16 %v331
    %v1920 = vunpack.c.l.b16 %v332
    %v1921 = vunpack.c.h.b16 %v332
    %v1922 = vunpack.c.l.b16 %v333
    %v1923 = vunpack.c.h.b16 %v333
    %v1924 = vunpack.c.l.b16 %v334
    %v1925 = vunpack.c.h.b16 %v334
    %v1926 = vunpack.c.l.b16 %v335
    %v1927 = vunpack.c.h.b16 %v335
    %v1928 = vunpack.c.l.b16 %v336
    %v1929 = vunpack.c.h.b16 %v336
    %v1930 = vunpack.c.l.b16 %v337
    %v1931 = vunpack.c.h.b16 %v337
    %v1932 = vunpack.c.l.b16 %v338
    %v1933 = vunpack.c.h.b16 %v338
    %v1934 = vunpack.c.l.b16 %v339
    %v1935 = vunpack.c.h.b16 %v339
    %v1936 = vunpack.c.l.b16 %v340
    %v1937 = vunpack.c.h.b16 %v340
    %v1938 = vunpack.c.l.b16 %v341
    %v1939 = vunpack.c.h.b16 %v341
    %v1940 = vunpack.c.l.b16 %v342
    %v1941 = vunpack.c.h.b16 %v342
    %v1942 = vunpack.c.l.b16 %v343
    %v1943 = vunpack.c.h.b16 %v343
    %v1944 = vunpack.c.l.b16 %v344
    %v1945 = vunpack.c.h.b16 %v344
    %v1946 = vunpack.c.l.b16 %v345
    %v1947 = vunpack.c.h.b16 %v345
    %v1948 = vunpack.c.l.b16 %v346
    %v1949 = vunpack.c.h.b16 %v346
    %v1950 = vunpack.c.l.b16 %v347
    %v1951 = vunpack.c.h.b16 %v347
    %v1952 = vunpack.c.l.b16 %v348
    %v1953 = vunpack.c.h.b16 %v348
    %v1954 = vunpack.c.l.b16 %v349
    %v1955 = vunpack.c.h.b16 %v349
    %v1956 = vunpack.c.l.b16 %v350
    %v1957 = vunpack.c.h.b16 %v350
    %v1958 = vunpack.c.l.b16 %v351
    %v1959 = vunpack.c.h.b16 %v351
    %v1960 = vunpack.c.l.b16 %v352
    %v1961 = vunpack.c.h.b16 %v352
    %v1962 = vunpack.c.l.b16 %v353
    %v1963 = vunpack.c.h.b16 %v353
    %v1964 = vunpack.c.l.b16 %v354
    %v1965 = vunpack.c.h.b16 %v354
    %v1966 = vunpack.c.l.b16 %v355
    %v1967 = vunpack.c.h.b16 %v355
    %v1968 = vunpack.c.l.b16 %v356
    %v1969 = vunpack.c.h.b16 %v356
    %v1970 = vunpack.c.l.b16 %v357
    %v1971 = vunpack.c.h.b16 %v357
    %v1972 = vunpack.c.l.b16 %v358
    %v1973 = vunpack.c.h.b16 %v358
    %v1974 = vunpack.c.l.b16 %v359
    %v1975 = vunpack.c.h.b16 %v359
    %v1976 = vunpack.c.l.b16 %v360
    %v1977 = vunpack.c.h.b16 %v360
    %v1978 = vunpack.c.l.b16 %v361
    %v1979 = vunpack.c.h.b16 %v361
    %v1980 = vunpack.c.l.b16 %v362
    %v1981 = vunpack.c.h.b16 %v362
    %v1982 = vunpack.c.l.b16 %v363
    %v1983 = vunpack.c.h.b16 %v363
    %v1984 = vunpack.c.l.b16 %v364
    %v1985 = vunpack.c.h.b16 %v364
    %v1986 = vunpack.c.l.b16 %v365
    %v1987 = vunpack.c.h.b16 %v365
    %v1988 = vunpack.c.l.b16 %v366
    %v1989 = vunpack.c.h.b16 %v366
    %v1990 = vunpack.c.l.b16 %v367
    %v1991 = vunpack.c.h.b16 %v367
    %v1992 = vunpack.c.l.b16 %v368
    %v1993 = vunpack.c.h.b16 %v368
    %v1994 = vunpack.c.l.b16 %v369
    %v1995 = vunpack.c.h.b16 %v369
    %v1996 = vunpack.c.l.b16 %v370
    %v1997 = vunpack.c.h.b16 %v370
    %v1998 = vunpack.c.l.b16 %v371
    %v1999 = vunpack.c.h.b16 %v371
    %v2000 = vunpack.c.l.b16 %v372
    %v2001 = vunpack.c.h.b16 %v372
    %v2002 = vunpack.c.l.b16 %v373
    %v2003 = vunpack.c.h.b16 %v373
    %v2004 = vunpack.c.l.b16 %v374
    %v2005 = vunpack.c.h.b16 %v374
    %v2006 = vunpack.c.l.b16 %v375
    %v2007 = vunpack.c.h.b16 %v375
    %v2008 = vunpack.c.l.b16 %v376
    %v2009 = vunpack.c.h.b16 %v376
    %v2010 = vunpack.c.l.b16 %v377
    %v2011 = vunpack.c.h.b16 %v377
    %v2012 = vunpack.c.l.b16 %v378
    %v2013 = vunpack.c.h.b16 %v378
    %v2014 = vunpack.c.l.b16 %v379
    %v2015 = vunpack.c.h.b16 %v379
    %v2016 = vunpack.c.l.b16 %v380
    %v2017 = vunpack.c.h.b16 %v380
    %v2018 = vunpack.c.l.b16 %v381
    %v2019 = vunpack.c.h.b16 %v381
    %v2020 = vunpack.c.l.b16 %v382
    %v2021 = vunpack.c.h.b16 %v382
    %v2022 = vunpack.c.l.b16 %v383
    %v2023 = vunpack.c.h.b16 %v383
    %v2024 = vunpack.c.l.b16 %v384
    %v2025 = vunpack.c.h.b16 %v384
    %v2026 = vunpack.c.l.b16 %v385
    %v2027 = vunpack.c.h.b16 %v385
    %v2028 = vunpack.c.l.b16 %v386
    %v2029 = vunpack.c.h.b16 %v386
    %v2030 = vunpack.c.l.b16 %v387
    %v2031 = vunpack.c.h.b16 %v387
    %v2032 = vunpack.c.l.b16 %v388
    %v2033 = vunpack.c.h.b16 %v388
    %v2034 = vunpack.c.l.b16 %v389
    %v2035 = vunpack.c.h.b16 %v389
    %v2036 = vunpack.c.l.b16 %v390
    %v2037 = vunpack.c.h.b16 %v390
    %v2038 = vunpack.c.l.b16 %v391
    %v2039 = vunpack.c.h.b16 %v391
    %v2040 = vunpack.c.l.b16 %v392
    %v2041 = vunpack.c.h.b16 %v392
    %v2042 = vunpack.c.l.b16 %v393
    %v2043 = vunpack.c.h.b16 %v393
    %v2044 = vunpack.c.l.b16 %v394
    %v2045 = vunpack.c.h.b16 %v394
    %v2046 = vunpack.c.l.b16 %v395
    %v2047 = vunpack.c.h.b16 %v395
    %v2048 = vunpack.c.l.b16 %v396
    %v2049 = vunpack.c.h.b16 %v396
    %v2050 = vunpack.c.l.b16 %v397
    %v2051 = vunpack.c.h.b16 %v397
    %v2052 = vunpack.c.l.b16 %v398
    %v2053 = vunpack.c.h.b16 %v398
    %v2054 = vunpack.c.l.b16 %v399
    %v2055 = vunpack.c.h.b16 %v399
    %v2056 = vunpack.c.l.b16 %v400
    %v2057 = vunpack.c.h.b16 %v400
    %v2058 = vunpack.c.l.b16 %v401
    %v2059 = vunpack.c.h.b16 %v401
    %v2060 = vunpack.c.l.b16 %v402
    %v2061 = vunpack.c.h.b16 %v402
    %v2062 = vunpack.c.l.b16 %v403
    %v2063 = vunpack.c.h.b16 %v403
    %v2064 = vunpack.c.l.b16 %v404
    %v2065 = vunpack.c.h.b16 %v404
    %v2066 = vunpack.c.l.b16 %v405
    %v2067 = vunpack.c.h.b16 %v405
    %v2068 = vunpack.c.l.b16 %v406
    %v2069 = vunpack.c.h.b16 %v406
    %v2070 = vunpack.c.l.b16 %v407
    %v2071 = vunpack.c.h.b16 %v407
    %v2072 = vunpack.c.l.b16 %v408
    %v2073 = vunpack.c.h.b16 %v408
    %v2074 = vunpack.c.l.b16 %v409
    %v2075 = vunpack.c.h.b16 %v409
    %v2076 = vunpack.c.l.b16 %v410
    %v2077 = vunpack.c.h.b16 %v410
    %v2078 = vunpack.c.l.b16 %v411
    %v2079 = vunpack.c.h.b16 %v411
    %v2080 = vunpack.c.l.b16 %v412
    %v2081 = vunpack.c.h.b16 %v412
    %v2082 = vunpack.c.l.b16 %v413
    %v2083 = vunpack.c.h.b16 %v413
    %v2084 = vunpack.c.l.b16 %v414
    %v2085 = vunpack.c.h.b16 %v414
    %v2086 = vunpack.c.l.b16 %v415
    %v2087 = vunpack.c.h.b16 %v415
    %v2088 = vunpack.c.l.b16 %v416
    %v2089 = vunpack.c.h.b16 %v416
    %v2090 = vunpack.c.l.b16 %v417
    %v2091 = vunpack.c.h.b16 %v417
    %v2092 = vunpack.c.l.b16 %v418
    %v2093 = vunpack.c.h.b16 %v418
    %v2094 = vunpack.c.l.b16 %v419
    %v2095 = vunpack.c.h.b16 %v419
    %v2096 = vunpack.c.l.b16 %v420
    %v2097 = vunpack.c.h.b16 %v420
    %v2098 = vunpack.c.l.b16 %v421
    %v2099 = vunpack.c.h.b16 %v421
    %v2100 = vunpack.c.l.b16 %v422
    %v2101 = vunpack.c.h.b16 %v422
    %v2102 = vunpack.c.l.b16 %v423
    %v2103 = vunpack.c.h.b16 %v423
    %v2104 = vunpack.c.l.b16 %v424
    %v2105 = vunpack.c.h.b16 %v424
    %v2106 = vunpack.c.l.b16 %v425
    %v2107 = vunpack.c.h.b16 %v425
    %v2108 = vunpack.c.l.b16 %v426
    %v2109 = vunpack.c.h.b16 %v426
    %v2110 = vunpack.c.l.b16 %v427
    %v2111 = vunpack.c.h.b16 %v427
    %v2112 = vunpack.c.l.b16 %v428
    %v2113 = vunpack.c.h.b16 %v428
    %v2114 = vunpack.c.l.b16 %v429
    %v2115 = vunpack.c.h.b16 %v429
    %v2116 = vunpack.c.l.b16 %v430
    %v2117 = vunpack.c.h.b16 %v430
    %v2118 = vunpack.c.l.b16 %v431
    %v2119 = vunpack.c.h.b16 %v431
    %v2120 = vunpack.c.l.b16 %v432
    %v2121 = vunpack.c.h.b16 %v432
    %v2122 = vunpack.c.l.b16 %v433
    %v2123 = vunpack.c.h.b16 %v433
    %v2124 = vunpack.c.l.b16 %v434
    %v2125 = vunpack.c.h.b16 %v434
    %v2126 = vunpack.c.l.b16 %v435
    %v2127 = vunpack.c.h.b16 %v435
    %v2128 = vunpack.c.l.b16 %v436
    %v2129 = vunpack.c.h.b16 %v436
    %v2130 = vunpack.c.l.b16 %v437
    %v2131 = vunpack.c.h.b16 %v437
    %v2132 = vunpack.c.l.b16 %v438
    %v2133 = vunpack.c.h.b16 %v438
    %v2134 = vunpack.c.l.b16 %v439
    %v2135 = vunpack.c.h.b16 %v439
    %v2136 = vunpack.c.l.b16 %v440
    %v2137 = vunpack.c.h.b16 %v440
    %v2138 = vunpack.c.l.b16 %v441
    %v2139 = vunpack.c.h.b16 %v441
    %v2140 = vunpack.c.l.b16 %v442
    %v2141 = vunpack.c.h.b16 %v442
    %v2142 = vunpack.c.l.b16 %v443
    %v2143 = vunpack.c.h.b16 %v443
    %v2144 = vunpack.c.l.b16 %v444
    %v2145 = vunpack.c.h.b16 %v444
    %v2146 = vunpack.c.l.b16 %v445
    %v2147 = vunpack.c.h.b16 %v445
    %v2148 = vunpack.c.l.b16 %v446
    %v2149 = vunpack.c.h.b16 %v446
    %v2150 = vunpack.c.l.b16 %v447
    %v2151 = vunpack.c.h.b16 %v447
    %v2152 = vunpack.c.l.b16 %v448
    %v2153 = vunpack.c.h.b16 %v448
    %v2154 = vunpack.c.l.b16 %v449
    %v2155 = vunpack.c.h.b16 %v449
    %v2156 = vunpack.c.l.b16 %v450
    %v2157 = vunpack.c.h.b16 %v450
    %v2158 = vunpack.c.l.b16 %v451
    %v2159 = vunpack.c.h.b16 %v451
    %v2160 = vunpack.c.l.b16 %v452
    %v2161 = vunpack.c.h.b16 %v452
    %v2162 = vunpack.c.l.b16 %v453
    %v2163 = vunpack.c.h.b16 %v453
    %v2164 = vunpack.c.l.b16 %v454
    %v2165 = vunpack.c.h.b16 %v454
    %v2166 = vunpack.c.l.b16 %v455
    %v2167 = vunpack.c.h.b16 %v455
    %v2168 = vunpack.c.l.b16 %v456
    %v2169 = vunpack.c.h.b16 %v456
    %v2170 = vunpack.c.l.b16 %v457
    %v2171 = vunpack.c.h.b16 %v457
    %v2172 = vunpack.c.l.b16 %v458
    %v2173 = vunpack.c.h.b16 %v458
    %v2174 = vunpack.c.l.b16 %v459
    %v2175 = vunpack.c.h.b16 %v459
    %v2176 = vunpack.c.l.b16 %v460
    %v2177 = vunpack.c.h.b16 %v460
    %v2178 = vunpack.c.l.b16 %v461
    %v2179 = vunpack.c.h.b16 %v461
    %v2180 = vunpack.c.l.b16 %v462
    %v2181 = vunpack.c.h.b16 %v462
    %v2182 = vunpack.c.l.b16 %v463
    %v2183 = vunpack.c.h.b16 %v463
    %v2184 = vunpack.c.l.b16 %v464
    %v2185 = vunpack.c.h.b16 %v464
    %v2186 = vunpack.c.l.b16 %v465
    %v2187 = vunpack.c.h.b16 %v465
    %v2188 = vunpack.c.l.b16 %v466
    %v2189 = vunpack.c.h.b16 %v466
    %v2190 = vunpack.c.l.b16 %v467
    %v2191 = vunpack.c.h.b16 %v467
    %v2192 = vunpack.c.l.b16 %v468
    %v2193 = vunpack.c.h.b16 %v468
    %v2194 = vunpack.c.l.b16 %v469
    %v2195 = vunpack.c.h.b16 %v469
    %v2196 = vunpack.c.l.b16 %v470
    %v2197 = vunpack.c.h.b16 %v470
    %v2198 = vunpack.c.l.b16 %v471
    %v2199 = vunpack.c.h.b16 %v471
    %v2200 = vunpack.c.l.b16 %v472
    %v2201 = vunpack.c.h.b16 %v472
    %v2202 = vunpack.c.l.b16 %v473
    %v2203 = vunpack.c.h.b16 %v473
    %v2204 = vunpack.c.l.b16 %v474
    %v2205 = vunpack.c.h.b16 %v474
    %v2206 = vunpack.c.l.b16 %v475
    %v2207 = vunpack.c.h.b16 %v475
    %v2208 = vunpack.c.l.b16 %v476
    %v2209 = vunpack.c.h.b16 %v476
    %v2210 = vunpack.c.l.b16 %v477
    %v2211 = vunpack.c.h.b16 %v477
    %v2212 = vunpack.c.l.b16 %v478
    %v2213 = vunpack.c.h.b16 %v478
    %v2214 = vunpack.c.l.b16 %v479
    %v2215 = vunpack.c.h.b16 %v479
    %v2216 = vunpack.c.l.b16 %v480
    %v2217 = vunpack.c.h.b16 %v480
    %v2218 = vunpack.c.l.b16 %v481
    %v2219 = vunpack.c.h.b16 %v481
    %v2220 = vunpack.c.l.b16 %v482
    %v2221 = vunpack.c.h.b16 %v482
    %v2222 = vunpack.c.l.b16 %v483
    %v2223 = vunpack.c.h.b16 %v483
    %v2224 = vunpack.c.l.b16 %v484
    %v2225 = vunpack.c.h.b16 %v484
    %v2226 = vunpack.c.l.b16 %v485
    %v2227 = vunpack.c.h.b16 %v485
    %v2228 = vunpack.c.l.b16 %v486
    %v2229 = vunpack.c.h.b16 %v486
    %v2230 = vunpack.c.l.b16 %v487
    %v2231 = vunpack.c.h.b16 %v487
    %v2232 = vunpack.c.l.b16 %v488
    %v2233 = vunpack.c.h.b16 %v488
    %v2234 = vunpack.c.l.b16 %v489
    %v2235 = vunpack.c.h.b16 %v489
    %v2236 = vunpack.c.l.b16 %v490
    %v2237 = vunpack.c.h.b16 %v490
    %v2238 = vunpack.c.l.b16 %v491
    %v2239 = vunpack.c.h.b16 %v491
    %v2240 = vunpack.c.l.b16 %v492
    %v2241 = vunpack.c.h.b16 %v492
    %v2242 = vunpack.c.l.b16 %v493
    %v2243 = vunpack.c.h.b16 %v493
    %v2244 = vunpack.c.l.b16 %v494
    %v2245 = vunpack.c.h.b16 %v494
    %v2246 = vunpack.c.l.b16 %v495
    %v2247 = vunpack.c.h.b16 %v495
    %v2248 = vunpack.c.l.b16 %v496
    %v2249 = vunpack.c.h.b16 %v496
    %v2250 = vunpack.c.l.b16 %v497
    %v2251 = vunpack.c.h.b16 %v497
    %v2252 = vunpack.c.l.b16 %v498
    %v2253 = vunpack.c.h.b16 %v498
    %v2254 = vunpack.c.l.b16 %v499
    %v2255 = vunpack.c.h.b16 %v499
    %v2256 = vunpack.c.l.b16 %v500
    %v2257 = vunpack.c.h.b16 %v500
    %v2258 = vunpack.c.l.b16 %v501
    %v2259 = vunpack.c.h.b16 %v501
    %v2260 = vunpack.c.l.b16 %v502
    %v2261 = vunpack.c.h.b16 %v502
    %v2262 = vunpack.c.l.b16 %v503
    %v2263 = vunpack.c.h.b16 %v503
    %v2264 = vunpack.c.l.b16 %v504
    %v2265 = vunpack.c.h.b16 %v504
    %v2266 = vunpack.c.l.b16 %v505
    %v2267 = vunpack.c.h.b16 %v505
    %v2268 = vunpack.c.l.b16 %v506
    %v2269 = vunpack.c.h.b16 %v506
    %v2270 = vunpack.c.l.b16 %v507
    %v2271 = vunpack.c.h.b16 %v507
    %v2272 = vunpack.c.l.b16 %v508
    %v2273 = vunpack.c.h.b16 %v508
    %v2274 = vunpack.c.l.b16 %v509
    %v2275 = vunpack.c.h.b16 %v509
    %v2276 = vunpack.c.l.b16 %v510
    %v2277 = vunpack.c.h.b16 %v510
    %v2278 = vunpack.c.l.b16 %v511
    %v2279 = vunpack.c.h.b16 %v511
    %v2280 = vunpack.c.l.b16 %v512
    %v2281 = vunpack.c.h.b16 %v512
    %v2282 = vunpack.c.l.b16 %v513
    %v2283 = vunpack.c.h.b16 %v513
    %v2284 = vunpack.c.l.b16 %v514
    %v2285 = vunpack.c.h.b16 %v514
    %v2286 = vunpack.c.l.b16 %v515
    %v2287 = vunpack.c.h.b16 %v515
    %v2288 = vunpack.c.l.b16 %v516
    %v2289 = vunpack.c.h.b16 %v516
    %v2290 = vunpack.c.l.b16 %v517
    %v2291 = vunpack.c.h.b16 %v517
    %v2292 = vunpack.c.l.b16 %v518
    %v2293 = vunpack.c.h.b16 %v518
    %v2294 = vunpack.c.l.b16 %v519
    %v2295 = vunpack.c.h.b16 %v519
    %v2296 = vunpack.c.l.b16 %v520
    %v2297 = vunpack.c.h.b16 %v520
    %v2298 = vunpack.c.l.b16 %v521
    %v2299 = vunpack.c.h.b16 %v521
    %v2300 = vunpack.c.l.b16 %v522
    %v2301 = vunpack.c.h.b16 %v522
    %v2302 = vunpack.c.l.b16 %v523
    %v2303 = vunpack.c.h.b16 %v523
    %v2304 = vunpack.c.l.b16 %v524
    %v2305 = vunpack.c.h.b16 %v524
    %v2306 = vunpack.c.l.b16 %v525
    %v2307 = vunpack.c.h.b16 %v525
    %v2308 = vunpack.c.l.b16 %v526
    %v2309 = vunpack.c.h.b16 %v526
    %v2310 = vunpack.c.l.b16 %v527
    %v2311 = vunpack.c.h.b16 %v527
    %v2312 = vunpack.c.l.b16 %v528
    %v2313 = vunpack.c.h.b16 %v528
    %v2314 = vunpack.c.l.b16 %v529
    %v2315 = vunpack.c.h.b16 %v529
    %v2316 = vunpack.c.l.b16 %v530
    %v2317 = vunpack.c.h.b16 %v530
    %v2318 = vunpack.c.l.b16 %v531
    %v2319 = vunpack.c.h.b16 %v531
    %v2320 = vunpack.c.l.b16 %v532
    %v2321 = vunpack.c.h.b16 %v532
    %v2322 = vunpack.c.l.b16 %v533
    %v2323 = vunpack.c.h.b16 %v533
    %v2324 = vunpack.c.l.b16 %v534
    %v2325 = vunpack.c.h.b16 %v534
    %v2326 = vunpack.c.l.b16 %v535
    %v2327 = vunpack.c.h.b16 %v535
    %v2328 = vunpack.c.l.b16 %v536
    %v2329 = vunpack.c.h.b16 %v536
    %v2330 = vunpack.c.l.b16 %v537
    %v2331 = vunpack.c.h.b16 %v537
    %v2332 = vunpack.c.l.b16 %v538
    %v2333 = vunpack.c.h.b16 %v538
    %v2334 = vunpack.c.l.b16 %v539
    %v2335 = vunpack.c.h.b16 %v539
    %v2336 = vunpack.c.l.b16 %v540
    %v2337 = vunpack.c.h.b16 %v540
    %v2338 = vunpack.c.l.b16 %v541
    %v2339 = vunpack.c.h.b16 %v541
    %v2340 = vunpack.c.l.b16 %v542
    %v2341 = vunpack.c.h.b16 %v542
    %v2342 = vunpack.c.l.b16 %v543
    %v2343 = vunpack.c.h.b16 %v543
    %v2344 = vunpack.c.l.b16 %v544
    %v2345 = vunpack.c.h.b16 %v544
    %v2346 = vunpack.c.l.b16 %v545
    %v2347 = vunpack.c.h.b16 %v545
    %v2348 = vunpack.c.l.b16 %v546
    %v2349 = vunpack.c.h.b16 %v546
    %v2350 = vunpack.c.l.b16 %v547
    %v2351 = vunpack.c.h.b16 %v547
    %v2352 = vunpack.c.l.b16 %v548
    %v2353 = vunpack.c.h.b16 %v548
    %v2354 = vunpack.c.l.b16 %v549
    %v2355 = vunpack.c.h.b16 %v549
    %v2356 = vunpack.c.l.b16 %v550
    %v2357 = vunpack.c.h.b16 %v550
    %v2358 = vunpack.c.l.b16 %v551
    %v2359 = vunpack.c.h.b16 %v551
    %v2360 = vunpack.c.l.b16 %v552
    %v2361 = vunpack.c.h.b16 %v552
    %v2362 = vunpack.c.l.b16 %v553
    %v2363 = vunpack.c.h.b16 %v553
    %v2364 = vunpack.c.l.b16 %v554
    %v2365 = vunpack.c.h.b16 %v554
    %v2366 = vunpack.c.l.b16 %v555
    %v2367 = vunpack.c.h.b16 %v555
    %v2368 = vunpack.c.l.b16 %v556
    %v2369 = vunpack.c.h.b16 %v556
    %v2370 = vunpack.c.l.b16 %v557
    %v2371 = vunpack.c.h.b16 %v557
    %v2372 = vunpack.c.l.b16 %v558
    %v2373 = vunpack.c.h.b16 %v558
    %v2374 = vunpack.c.l.b16 %v559
    %v2375 = vunpack.c.h.b16 %v559
    %v2376 = vunpack.c.l.b16 %v560
    %v2377 = vunpack.c.h.b16 %v560
    %v2378 = vunpack.c.l.b16 %v561
    %v2379 = vunpack.c.h.b16 %v561
    %v2380 = vunpack.c.l.b16 %v562
    %v2381 = vunpack.c.h.b16 %v562
    %v2382 = vunpack.c.l.b16 %v563
    %v2383 = vunpack.c.h.b16 %v563
    %v2384 = vunpack.c.l.b16 %v564
    %v2385 = vunpack.c.h.b16 %v564
    %v2386 = vunpack.c.l.b16 %v565
    %v2387 = vunpack.c.h.b16 %v565
    %v2388 = vunpack.c.l.b16 %v566
    %v2389 = vunpack.c.h.b16 %v566
    %v2390 = vunpack.c.l.b16 %v567
    %v2391 = vunpack.c.h.b16 %v567
    %v2392 = vunpack.c.l.b16 %v568
    %v2393 = vunpack.c.h.b16 %v568
    %v2394 = vunpack.c.l.b16 %v569
    %v2395 = vunpack.c.h.b16 %v569
    %v2396 = vunpack.c.l.b16 %v570
    %v2397 = vunpack.c.h.b16 %v570
    %v2398 = vunpack.c.l.b16 %v571
    %v2399 = vunpack.c.h.b16 %v571
    %v2400 = vunpack.c.l.b16 %v572
    %v2401 = vunpack.c.h.b16 %v572
    %v2402 = vunpack.c.l.b16 %v573
    %v2403 = vunpack.c.h.b16 %v573
    %v2404 = vunpack.c.l.b16 %v574
    %v2405 = vunpack.c.h.b16 %v574
    %v2406 = vunpack.c.l.b16 %v575
    %v2407 = vunpack.c.h.b16 %v575
    %v2408 = vunpack.c.l.b16 %v576
    %v2409 = vunpack.c.h.b16 %v576
    %v2410 = vunpack.c.l.b16 %v577
    %v2411 = vunpack.c.h.b16 %v577
    %v2412 = vunpack.c.l.b16 %v578
    %v2413 = vunpack.c.h.b16 %v578
    %v2414 = vunpack.c.l.b16 %v579
    %v2415 = vunpack.c.h.b16 %v579
    %v2416 = vunpack.c.l.b16 %v580
    %v2417 = vunpack.c.h.b16 %v580
    %v2418 = vunpack.c.l.b16 %v581
    %v2419 = vunpack.c.h.b16 %v581
    %v2420 = vunpack.c.l.b16 %v582
    %v2421 = vunpack.c.h.b16 %v582
    %v2422 = vunpack.c.l.b16 %v583
    %v2423 = vunpack.c.h.b16 %v583
    %v2424 = vunpack.c.l.b16 %v584
    %v2425 = vunpack.c.h.b16 %v584
    %v2426 = vunpack.c.l.b16 %v585
    %v2427 = vunpack.c.h.b16 %v585
    %v2428 = vunpack.c.l.b16 %v586
    %v2429 = vunpack.c.h.b16 %v586
    %v2430 = vunpack.c.l.b16 %v587
    %v2431 = vunpack.c.h.b16 %v587
    %v2432 = vunpack.c.l.b16 %v588
    %v2433 = vunpack.c.h.b16 %v588
    %v2434 = vunpack.c.l.b16 %v589
    %v2435 = vunpack.c.h.b16 %v589
    %v2436 = vunpack.c.l.b16 %v590
    %v2437 = vunpack.c.h.b16 %v590
    %v2438 = vunpack.c.l.b16 %v591
    %v2439 = vunpack.c.h.b16 %v591
    %v2440 = vunpack.c.l.b16 %v592
    %v2441 = vunpack.c.h.b16 %v592
    %v2442 = vunpack.c.l.b16 %v593
    %v2443 = vunpack.c.h.b16 %v593
    %v2444 = vunpack.c.l.b16 %v594
    %v2445 = vunpack.c.h.b16 %v594
    %v2446 = vunpack.c.l.b16 %v595
    %v2447 = vunpack.c.h.b16 %v595
    %v2448 = vunpack.c.l.b16 %v596
    %v2449 = vunpack.c.h.b16 %v596
    %v2450 = vunpack.c.l.b16 %v597
    %v2451 = vunpack.c.h.b16 %v597
    %v2452 = vunpack.c.l.b16 %v598
    %v2453 = vunpack.c.h.b16 %v598
    %v2454 = vunpack.c.l.b16 %v599
    %v2455 = vunpack.c.h.b16 %v599
    %v2456 = vunpack.c.l.b16 %v600
    %v2457 = vunpack.c.h.b16 %v600
    %v2458 = vunpack.c.l.b16 %v601
    %v2459 = vunpack.c.h.b16 %v601
    %v2460 = vunpack.c.l.b16 %v602
    %v2461 = vunpack.c.h.b16 %v602
    %v2462 = vunpack.c.l.b16 %v603
    %v2463 = vunpack.c.h.b16 %v603
    %v2464 = vunpack.c.l.b16 %v604
    %v2465 = vunpack.c.h.b16 %v604
    %v2466 = vunpack.c.l.b16 %v605
    %v2467 = vunpack.c.h.b16 %v605
    %v2468 = vunpack.c.l.b16 %v606
    %v2469 = vunpack.c.h.b16 %v606
    %v2470 = vunpack.c.l.b16 %v607
    %v2471 = vunpack.c.h.b16 %v607
    %v2472 = vunpack.c.l.b16 %v608
    %v2473 = vunpack.c.h.b16 %v608
    %v2474 = vunpack.c.l.b16 %v609
    %v2475 = vunpack.c.h.b16 %v609
    %v2476 = vunpack.c.l.b16 %v610
    %v2477 = vunpack.c.h.b16 %v610
    %v2478 = vunpack.c.l.b16 %v611
    %v2479 = vunpack.c.h.b16 %v611
    %v2480 = vunpack.c.l.b16 %v612
    %v2481 = vunpack.c.h.b16 %v612
    %v2482 = vunpack.c.l.b16 %v613
    %v2483 = vunpack.c.h.b16 %v613
    %v2484 = vunpack.c.l.b16 %v614
    %v2485 = vunpack.c.h.b16 %v614
    %v2486 = vunpack.c.l.b16 %v615
    %v2487 = vunpack.c.h.b16 %v615
    %v2488 = vunpack.c.l.b16 %v616
    %v2489 = vunpack.c.h.b16 %v616
    %v2490 = vunpack.c.l.b16 %v617
    %v2491 = vunpack.c.h.b16 %v617
    %v2492 = vunpack.c.l.b16 %v618
    %v2493 = vunpack.c.h.b16 %v618
    %v2494 = vunpack.c.l.b16 %v619
    %v2495 = vunpack.c.h.b16 %v619
    %v2496 = vunpack.c.l.b16 %v620
    %v2497 = vunpack.c.h.b16 %v620
    %v2498 = vunpack.c.l.b16 %v621
    %v2499 = vunpack.c.h.b16 %v621
    %v2500 = vunpack.c.l.b16 %v622
    %v2501 = vunpack.c.h.b16 %v622
    %v2502 = vunpack.c.l.b16 %v623
    %v2503 = vunpack.c.h.b16 %v623
    %v2504 = vunpack.c.l.b16 %v624
    %v2505 = vunpack.c.h.b16 %v624
    %v2506 = vunpack.c.l.b16 %v625
    %v2507 = vunpack.c.h.b16 %v625
    %v2508 = vunpack.c.l.b16 %v626
    %v2509 = vunpack.c.h.b16 %v626
    %v2510 = vunpack.c.l.b16 %v627
    %v2511 = vunpack.c.h.b16 %v627
    %v2512 = vunpack.c.l.b16 %v628
    %v2513 = vunpack.c.h.b16 %v628
    %v2514 = vunpack.c.l.b16 %v629
    %v2515 = vunpack.c.h.b16 %v629
    %v2516 = vunpack.c.l.b16 %v630
    %v2517 = vunpack.c.h.b16 %v630
    %v2518 = vunpack.c.l.b16 %v631
    %v2519 = vunpack.c.h.b16 %v631
    %v2520 = vunpack.c.l.b16 %v632
    %v2521 = vunpack.c.h.b16 %v632
    %v2522 = vunpack.c.l.b16 %v633
    %v2523 = vunpack.c.h.b16 %v633
    %v2524 = vunpack.c.l.b16 %v634
    %v2525 = vunpack.c.h.b16 %v634
    %v2526 = vunpack.c.l.b16 %v635
    %v2527 = vunpack.c.h.b16 %v635
    %v2528 = vunpack.c.l.b16 %v636
    %v2529 = vunpack.c.h.b16 %v636
    %v2530 = vunpack.c.l.b16 %v637
    %v2531 = vunpack.c.h.b16 %v637
    %v2532 = vunpack.c.l.b16 %v638
    %v2533 = vunpack.c.h.b16 %v638
    %v2534 = vunpack.c.l.b16 %v639
    %v2535 = vunpack.c.h.b16 %v639
    %v2536 = vunpack.c.l.b16 %v640
    %v2537 = vunpack.c.h.b16 %v640
    %v2538 = vunpack.c.l.b16 %v641
    %v2539 = vunpack.c.h.b16 %v641
    %v2540 = vunpack.c.l.b16 %v642
    %v2541 = vunpack.c.h.b16 %v642
    %v2542 = vunpack.c.l.b16 %v643
    %v2543 = vunpack.c.h.b16 %v643
    %v2544 = vunpack.c.l.b16 %v644
    %v2545 = vunpack.c.h.b16 %v644
    %v2546 = vunpack.c.l.b16 %v645
    %v2547 = vunpack.c.h.b16 %v645
    %v2548 = vunpack.c.l.b16 %v646
    %v2549 = vunpack.c.h.b16 %v646
    %v2550 = vunpack.c.l.b16 %v647
    %v2551 = vunpack.c.h.b16 %v647
    %v2552 = vunpack.c.l.b16 %v648
    %v2553 = vunpack.c.h.b16 %v648
    %v2554 = vunpack.c.l.b16 %v649
    %v2555 = vunpack.c.h.b16 %v649
    %v2556 = vunpack.c.l.b16 %v650
    %v2557 = vunpack.c.h.b16 %v650
    %v2558 = vunpack.c.l.b16 %v651
    %v2559 = vunpack.c.h.b16 %v651
    %v2560 = vunpack.c.l.b16 %v652
    %v2561 = vunpack.c.h.b16 %v652
    %v2562 = vunpack.c.l.b16 %v653
    %v2563 = vunpack.c.h.b16 %v653
    %v2564 = vunpack.c.l.b16 %v654
    %v2565 = vunpack.c.h.b16 %v654
    %v2566 = vunpack.c.l.b16 %v655
    %v2567 = vunpack.c.h.b16 %v655
    %v2568 = vunpack.c.l.b16 %v656
    %v2569 = vunpack.c.h.b16 %v656
    %v2570 = vunpack.c.l.b16 %v657
    %v2571 = vunpack.c.h.b16 %v657
    %v2572 = vunpack.c.l.b16 %v658
    %v2573 = vunpack.c.h.b16 %v658
    %v2574 = vpack.c.b16 %v1366, %v1358
    %v2575 = vpack.c.b16 %v1367, %v1359
    %v2576 = vpack.c.b16 %v1368, %v1360
    %v2577 = vpack.c.b16 %v1369, %v1361
    %v2578 = vpack.c.b16 %v1370, %v1362
    %v2579 = vpack.c.b16 %v1371, %v1363
    %v2580 = vpack.c.b16 %v1372, %v1364
    %v2581 = vpack.c.b16 %v1373, %v1365
    %v2582 = vpack.c.b16 %v1382, %v1374
    %v2583 = vpack.c.b16 %v1383, %v1375
    %v2584 = vpack.c.b16 %v1384, %v1376
    %v2585 = vpack.c.b16 %v1385, %v1377
    %v2586 = vpack.c.b16 %v1386, %v1378
    %v2587 = vpack.c.b16 %v1387, %v1379
    %v2588 = vpack.c.b16 %v1388, %v1380
    %v2589 = vpack.c.b16 %v1389, %v1381
    %v2590 = vpack.c.b16 %v1398, %v1390
    %v2591 = vpack.c.b16 %v1399, %v1391
    %v2592 = vpack.c.b16 %v1400, %v1392
    %v2593 = vpack.c.b16 %v1401, %v1393
    %v2594 = vpack.c.b16 %v1402, %v1394
    %v2595 = vpack.c.b16 %v1403, %v1395
    %v2596 = vpack.c.b16 %v1404, %v1396
    %v2597 = vpack.c.b16 %v1405, %v1397
    %v2598 = vpack.c.b16 %v1414, %v1406
    %v2599 = vpack.c.b16 %v1415, %v1407
    %v2600 = vpack.c.b16 %v1416, %v1408
    %v2601 = vpack.c.b16 %v1417, %v1409
    %v2602 = vpack.c.b16 %v1418, %v1410
    %v2603 = vpack.c.b16 %v1419, %v1411
    %v2604 = vpack.c.b16 %v1420, %v1412
    %v2605 = vpack.c.b16 %v1421, %v1413
    %v2606 = vpack.c.b16 %v1430, %v1422
    %v2607 = vpack.c.b16 %v1431, %v1423
    %v2608 = vpack.c.b16 %v1432, %v1424
    %v2609 = vpack.c.b16 %v1433, %v1425
    %v2610 = vpack.c.b16 %v1434, %v1426
    %v2611 = vpack.c.b16 %v1435, %v1427
    %v2612 = vpack.c.b16 %v1436, %v1428
    %v2613 = vpack.c.b16 %v1437, %v1429
    %v2614 = vpack.c.b16 %v1446, %v1438
    %v2615 = vpack.c.b16 %v1447, %v1439
    %v2616 = vpack.c.b16 %v1448, %v1440
    %v2617 = vpack.c.b16 %v1449, %v1441
    %v2618 = vpack.c.b16 %v1450, %v1442
    %v2619 = vpack.c.b16 %v1451, %v1443
    %v2620 = vpack.c.b16 %v1452, %v1444
    %v2621 = vpack.c.b16 %v1453, %v1445
    %v2622 = vpack.c.b16 %v1462, %v1454
    %v2623 = vpack.c.b16 %v1463, %v1455
    %v2624 = vpack.c.b16 %v1464, %v1456
    %v2625 = vpack.c.b16 %v1465, %v1457
    %v2626 = vpack.c.b16 %v1466, %v1458
    %v2627 = vpack.c.b16 %v1467, %v1459
    %v2628 = vpack.c.b16 %v1468, %v1460
    %v2629 = vpack.c.b16 %v1469, %v1461
    %v2630 = vpack.c.b16 %v1478, %v1470
    %v2631 = vpack.c.b16 %v1479, %v1471
    %v2632 = vpack.c.b16 %v1480, %v1472
    %v2633 = vpack.c.b16 %v1481, %v1473
    %v2634 = vpack.c.b16 %v1482, %v1474
    %v2635 = vpack.c.b16 %v1483, %v1475
    %v2636 = vpack.c.b16 %v1484, %v1476
    %v2637 = vpack.c.b16 %v1485, %v1477
    %v2638 = vpack.c.b16 %v1494, %v1486
    %v2639 = vpack.c.b16 %v1495, %v1487
    %v2640 = vpack.c.b16 %v1496, %v1488
    %v2641 = vpack.c.b16 %v1497, %v1489
    %v2642 = vpack.c.b16 %v1498, %v1490
    %v2643 = vpack.c.b16 %v1499, %v1491
    %v2644 = vpack.c.b16 %v1500, %v1492
    %v2645 = vpack.c.b16 %v1501, %v1493
    %v2646 = vpack.c.b16 %v1510, %v1502
    %v2647 = vpack.c.b16 %v1511, %v1503
    %v2648 = vpack.c.b16 %v1512, %v1504
    %v2649 = vpack.c.b16 %v1513, %v1505
    %v2650 = vpack.c.b16 %v1514, %v1506
    %v2651 = vpack.c.b16 %v1515, %v1507
    %v2652 = vpack.c.b16 %v1516, %v1508
    %v2653 = vpack.c.b16 %v1517, %v1509
    %v2654 = vpack.c.b16 %v1526, %v1518
    %v2655 = vpack.c.b16 %v1527, %v1519
    %v2656 = vpack.c.b16 %v1528, %v1520
    %v2657 = vpack.c.b16 %v1529, %v1521
    %v2658 = vpack.c.b16 %v1530, %v1522
    %v2659 = vpack.c.b16 %v1531, %v1523
    %v2660 = vpack.c.b16 %v1532, %v1524
    %v2661 = vpack.c.b16 %v1533, %v1525
    %v2662 = vpack.c.b16 %v1542, %v1534
    %v2663 = vpack.c.b16 %v1543, %v1535
    %v2664 = vpack.c.b16 %v1544, %v1536
    %v2665 = vpack.c.b16 %v1545, %v1537
    %v2666 = vpack.c.b16 %v1546, %v1538
    %v2667 = vpack.c.b16 %v1547, %v1539
    %v2668 = vpack.c.b16 %v1548, %v1540
    %v2669 = vpack.c.b16 %v1549, %v1541
    %v2670 = vpack.c.b16 %v1558, %v1550
    %v2671 = vpack.c.b16 %v1559, %v1551
    %v2672 = vpack.c.b16 %v1560, %v1552
    %v2673 = vpack.c.b16 %v1561, %v1553
    %v2674 = vpack.c.b16 %v1562, %v1554
    %v2675 = vpack.c.b16 %v1563, %v1555
    %v2676 = vpack.c.b16 %v1564, %v1556
    %v2677 = vpack.c.b16 %v1565, %v1557
    %v2678 = vpack.c.b16 %v1574, %v1566
    %v2679 = vpack.c.b16 %v1575, %v1567
    %v2680 = vpack.c.b16 %v1576, %v1568
    %v2681 = vpack.c.b16 %v1577, %v1569
    %v2682 = vpack.c.b16 %v1578, %v1570
    %v2683 = vpack.c.b16 %v1579, %v1571
    %v2684 = vpack.c.b16 %v1580, %v1572
    %v2685 = vpack.c.b16 %v1581, %v1573
    %v2686 = vpack.c.b16 %v1590, %v1582
    %v2687 = vpack.c.b16 %v1591, %v1583
    %v2688 = vpack.c.b16 %v1592, %v1584
    %v2689 = vpack.c.b16 %v1593, %v1585
    %v2690 = vpack.c.b16 %v1594, %v1586
    %v2691 = vpack.c.b16 %v1595, %v1587
    %v2692 = vpack.c.b16 %v1596, %v1588
    %v2693 = vpack.c.b16 %v1597, %v1589
    %v2694 = vpack.c.b16 %v1606, %v1598
    %v2695 = vpack.c.b16 %v1607, %v1599
    %v2696 = vpack.c.b16 %v1608, %v1600
    %v2697 = vpack.c.b16 %v1609, %v1601
    %v2698 = vpack.c.b16 %v1610, %v1602
    %v2699 = vpack.c.b16 %v1611, %v1603
    %v2700 = vpack.c.b16 %v1612, %v1604
    %v2701 = vpack.c.b16 %v1613, %v1605
    %v2702 = vpack.c.b16 %v1622, %v1614
    %v2703 = vpack.c.b16 %v1623, %v1615
    %v2704 = vpack.c.b16 %v1624, %v1616
    %v2705 = vpack.c.b16 %v1625, %v1617
    %v2706 = vpack.c.b16 %v1626, %v1618
    %v2707 = vpack.c.b16 %v1627, %v1619
    %v2708 = vpack.c.b16 %v1628, %v1620
    %v2709 = vpack.c.b16 %v1629, %v1621
    %v2710 = vpack.c.b16 %v1638, %v1630
    %v2711 = vpack.c.b16 %v1639, %v1631
    %v2712 = vpack.c.b16 %v1640, %v1632
    %v2713 = vpack.c.b16 %v1641, %v1633
    %v2714 = vpack.c.b16 %v1642, %v1634
    %v2715 = vpack.c.b16 %v1643, %v1635
    %v2716 = vpack.c.b16 %v1644, %v1636
    %v2717 = vpack.c.b16 %v1645, %v1637
    %v2718 = vpack.c.b16 %v1654, %v1646
    %v2719 = vpack.c.b16 %v1655, %v1647
    %v2720 = vpack.c.b16 %v1656, %v1648
    %v2721 = vpack.c.b16 %v1657, %v1649
    %v2722 = vpack.c.b16 %v1658, %v1650
    %v2723 = vpack.c.b16 %v1659, %v1651
    %v2724 = vpack.c.b16 %v1660, %v1652
    %v2725 = vpack.c.b16 %v1661, %v1653
    %v2726 = vpack.c.b16 %v1670, %v1662
    %v2727 = vpack.c.b16 %v1671, %v1663
    %v2728 = vpack.c.b16 %v1672, %v1664
    %v2729 = vpack.c.b16 %v1673, %v1665
    %v2730 = vpack.c.b16 %v1674, %v1666
    %v2731 = vpack.c.b16 %v1675, %v1667
    %v2732 = vpack.c.b16 %v1676, %v1668
    %v2733 = vpack.c.b16 %v1677, %v1669
    %v2734 = vpack.c.b16 %v1686, %v1678
    %v2735 = vpack.c.b16 %v1687, %v1679
    %v2736 = vpack.c.b16 %v1688, %v1680
    %v2737 = vpack.c.b16 %v1689, %v1681
    %v2738 = vpack.c.b16 %v1690, %v1682
    %v2739 = vpack.c.b16 %v1691, %v1683
    %v2740 = vpack.c.b16 %v1692, %v1684
    %v2741 = vpack.c.b16 %v1693, %v1685
    %v2742 = vpack.c.b16 %v1702, %v1694
    %v2743 = vpack.c.b16 %v1703, %v1695
    %v2744 = vpack.c.b16 %v1704, %v1696
    %v2745 = vpack.c.b16 %v1705, %v1697
    %v2746 = vpack.c.b16 %v1706, %v1698
    %v2747 = vpack.c.b16 %v1707, %v1699
    %v2748 = vpack.c.b16 %v1708, %v1700
    %v2749 = vpack.c.b16 %v1709, %v1701
    %v2750 = vpack.c.b16 %v1718, %v1710
    %v2751 = vpack.c.b16 %v1719, %v1711
    %v2752 = vpack.c.b16 %v1720, %v1712
    %v2753 = vpack.c.b16 %v1721, %v1713
    %v2754 = vpack.c.b16 %v1722, %v1714
    %v2755 = vpack.c.b16 %v1723, %v1715
    %v2756 = vpack.c.b16 %v1724, %v1716
    %v2757 = vpack.c.b16 %v1725, %v1717
    %v2758 = vpack.c.b16 %v1734, %v1726
    %v2759 = vpack.c.b16 %v1735, %v1727
    %v2760 = vpack.c.b16 %v1736, %v1728
    %v2761 = vpack.c.b16 %v1737, %v1729
    %v2762 = vpack.c.b16 %v1738, %v1730
    %v2763 = vpack.c.b16 %v1739, %v1731
    %v2764 = vpack.c.b16 %v1740, %v1732
    %v2765 = vpack.c.b16 %v1741, %v1733
    %v2766 = vpack.c.b16 %v1750, %v1742
    %v2767 = vpack.c.b16 %v1751, %v1743
    %v2768 = vpack.c.b16 %v1752, %v1744
    %v2769 = vpack.c.b16 %v1753, %v1745
    %v2770 = vpack.c.b16 %v1754, %v1746
    %v2771 = vpack.c.b16 %v1755, %v1747
    %v2772 = vpack.c.b16 %v1756, %v1748
    %v2773 = vpack.c.b16 %v1757, %v1749
    %v2774 = vpack.c.b16 %v1766, %v1758
    %v2775 = vpack.c.b16 %v1767, %v1759
    %v2776 = vpack.c.b16 %v1768, %v1760
    %v2777 = vpack.c.b16 %v1769, %v1761
    %v2778 = vpack.c.b16 %v1770, %v1762
    %v2779 = vpack.c.b16 %v1771, %v1763
    %v2780 = vpack.c.b16 %v1772, %v1764
    %v2781 = vpack.c.b16 %v1773, %v1765
    %v2782 = vpack.c.b16 %v1782, %v1774
    %v2783 = vpack.c.b16 %v1783, %v1775
    %v2784 = vpack.c.b16 %v1784, %v1776
    %v2785 = vpack.c.b16 %v1785, %v1777
    %v2786 = vpack.c.b16 %v1786, %v1778
    %v2787 = vpack.c.b16 %v1787, %v1779
    %v2788 = vpack.c.b16 %v1788, %v1780
    %v2789 = vpack.c.b16 %v1789, %v1781
    %v2790 = vpack.c.b16 %v1798, %v1790
    %v2791 = vpack.c.b16 %v1799, %v1791
    %v2792 = vpack.c.b16 %v1800, %v1792
    %v2793 = vpack.c.b16 %v1801, %v1793
    %v2794 = vpack.c.b16 %v1802, %v1794
    %v2795 = vpack.c.b16 %v1803, %v1795
    %v2796 = vpack.c.b16 %v1804, %v1796
    %v2797 = vpack.c.b16 %v1805, %v1797
    %v2798 = vpack.c.b16 %v1814, %v1806
    %v2799 = vpack.c.b16 %v1815, %v1807
    %v2800 = vpack.c.b16 %v1816, %v1808
    %v2801 = vpack.c.b16 %v1817, %v1809
    %v2802 = vpack.c.b16 %v1818, %v1810
    %v2803 = vpack.c.b16 %v1819, %v1811
    %v2804 = vpack.c.b16 %v1820, %v1812
    %v2805 = vpack.c.b16 %v1821, %v1813
    %v2806 = vpack.c.b16 %v1830, %v1822
    %v2807 = vpack.c.b16 %v1831, %v1823
    %v2808 = vpack.c.b16 %v1832, %v1824
    %v2809 = vpack.c.b16 %v1833, %v1825
    %v2810 = vpack.c.b16 %v1834, %v1826
    %v2811 = vpack.c.b16 %v1835, %v1827
    %v2812 = vpack.c.b16 %v1836, %v1828
    %v2813 = vpack.c.b16 %v1837, %v1829
    %v2814 = vpack.c.b16 %v1846, %v1838
    %v2815 = vpack.c.b16 %v1847, %v1839
    %v2816 = vpack.c.b16 %v1848, %v1840
    %v2817 = vpack.c.b16 %v1849, %v1841
    %v2818 = vpack.c.b16 %v1850, %v1842
    %v2819 = vpack.c.b16 %v1851, %v1843
    %v2820 = vpack.c.b16 %v1852, %v1844
    %v2821 = vpack.c.b16 %v1853, %v1845
    %v2822 = vpack.c.b16 %v1862, %v1854
    %v2823 = vpack.c.b16 %v1863, %v1855
    %v2824 = vpack.c.b16 %v1864, %v1856
    %v2825 = vpack.c.b16 %v1865, %v1857
    %v2826 = vpack.c.b16 %v1866, %v1858
    %v2827 = vpack.c.b16 %v1867, %v1859
    %v2828 = vpack.c.b16 %v1868, %v1860
    %v2829 = vpack.c.b16 %v1869, %v1861
    %v2830 = vpack.c.b16 %v1878, %v1870
    %v2831 = vpack.c.b16 %v1879, %v1871
    %v2832 = vpack.c.b16 %v1880, %v1872
    %v2833 = vpack.c.b16 %v1881, %v1873
    %v2834 = vpack.c.b16 %v1882, %v1874
    %v2835 = vpack.c.b16 %v1883, %v1875
    %v2836 = vpack.c.b16 %v1884, %v1876
    %v2837 = vpack.c.b16 %v1885, %v1877
    %v2838 = vpack.c.b16 %v1894, %v1886
    %v2839 = vpack.c.b16 %v1895, %v1887
    %v2840 = vpack.c.b16 %v1896, %v1888
    %v2841 = vpack.c.b16 %v1897, %v1889
    %v2842 = vpack.c.b16 %v1898, %v1890
    %v2843 = vpack.c.b16 %v1899, %v1891
    %v2844 = vpack.c.b16 %v1900, %v1892
    %v2845 = vpack.c.b16 %v1901, %v1893
    %v2846 = vpack.c.b16 %v1910, %v1902
    %v2847 = vpack.c.b16 %v1911, %v1903
    %v2848 = vpack.c.b16 %v1912, %v1904
    %v2849 = vpack.c.b16 %v1913, %v1905
    %v2850 = vpack.c.b16 %v1914, %v1906
    %v2851 = vpack.c.b16 %v1915, %v1907
    %v2852 = vpack.c.b16 %v1916, %v1908
    %v2853 = vpack.c.b16 %v1917, %v1909
    %v2854 = vpack.c.b16 %v1926, %v1918
    %v2855 = vpack.c.b16 %v1927, %v1919
    %v2856 = vpack.c.b16 %v1928, %v1920
    %v2857 = vpack.c.b16 %v1929, %v1921
    %v2858 = vpack.c.b16 %v1930, %v1922
    %v2859 = vpack.c.b16 %v1931, %v1923
    %v2860 = vpack.c.b16 %v1932, %v1924
    %v2861 = vpack.c.b16 %v1933, %v1925
    %v2862 = vpack.c.b16 %v1942, %v1934
    %v2863 = vpack.c.b16 %v1943, %v1935
    %v2864 = vpack.c.b16 %v1944, %v1936
    %v2865 = vpack.c.b16 %v1945, %v1937
    %v2866 = vpack.c.b16 %v1946, %v1938
    %v2867 = vpack.c.b16 %v1947, %v1939
    %v2868 = vpack.c.b16 %v1948, %v1940
    %v2869 = vpack.c.b16 %v1949, %v1941
    %v2870 = vpack.c.b16 %v1958, %v1950
    %v2871 = vpack.c.b16 %v1959, %v1951
    %v2872 = vpack.c.b16 %v1960, %v1952
    %v2873 = vpack.c.b16 %v1961, %v1953
    %v2874 = vpack.c.b16 %v1962, %v1954
    %v2875 = vpack.c.b16 %v1963, %v1955
    %v2876 = vpack.c.b16 %v1964, %v1956
    %v2877 = vpack.c.b16 %v1965, %v1957
    %v2878 = vpack.c.b16 %v1974, %v1966
    %v2879 = vpack.c.b16 %v1975, %v1967
    %v2880 = vpack.c.b16 %v1976, %v1968
    %v2881 = vpack.c.b16 %v1977, %v1969
    %v2882 = vpack.c.b16 %v1978, %v1970
    %v2883 = vpack.c.b16 %v1979, %v1971
    %v2884 = vpack.c.b16 %v1980, %v1972
    %v2885 = vpack.c.b16 %v1981, %v1973
    %v2886 = vpack.c.b16 %v1990, %v1982
    %v2887 = vpack.c.b16 %v1991, %v1983
    %v2888 = vpack.c.b16 %v1992, %v1984
    %v2889 = vpack.c.b16 %v1993, %v1985
    %v2890 = vpack.c.b16 %v1994, %v1986
    %v2891 = vpack.c.b16 %v1995, %v1987
    %v2892 = vpack.c.b16 %v1996, %v1988
    %v2893 = vpack.c.b16 %v1997, %v1989
    %v2894 = vpack.c.b16 %v2006, %v1998
    %v2895 = vpack.c.b16 %v2007, %v1999
    %v2896 = vpack.c.b16 %v2008, %v2000
    %v2897 = vpack.c.b16 %v2009, %v2001
    %v2898 = vpack.c.b16 %v2010, %v2002
    %v2899 = vpack.c.b16 %v2011, %v2003
    %v2900 = vpack.c.b16 %v2012, %v2004
    %v2901 = vpack.c.b16 %v2013, %v2005
    %v2902 = vpack.c.b16 %v2022, %v2014
    %v2903 = vpack.c.b16 %v2023, %v2015
    %v2904 = vpack.c.b16 %v2024, %v2016
    %v2905 = vpack.c.b16 %v2025, %v2017
    %v2906 = vpack.c.b16 %v2026, %v2018
    %v2907 = vpack.c.b16 %v2027, %v2019
    %v2908 = vpack.c.b16 %v2028, %v2020
    %v2909 = vpack.c.b16 %v2029, %v2021
    %v2910 = vpack.c.b16 %v2038, %v2030
    %v2911 = vpack.c.b16 %v2039, %v2031
    %v2912 = vpack.c.b16 %v2040, %v2032
    %v2913 = vpack.c.b16 %v2041, %v2033
    %v2914 = vpack.c.b16 %v2042, %v2034
    %v2915 = vpack.c.b16 %v2043, %v2035
    %v2916 = vpack.c.b16 %v2044, %v2036
    %v2917 = vpack.c.b16 %v2045, %v2037
    %v2918 = vpack.c.b16 %v2054, %v2046
    %v2919 = vpack.c.b16 %v2055, %v2047
    %v2920 = vpack.c.b16 %v2056, %v2048
    %v2921 = vpack.c.b16 %v2057, %v2049
    %v2922 = vpack.c.b16 %v2058, %v2050
    %v2923 = vpack.c.b16 %v2059, %v2051
    %v2924 = vpack.c.b16 %v2060, %v2052
    %v2925 = vpack.c.b16 %v2061, %v2053
    %v2926 = vpack.c.b16 %v2070, %v2062
    %v2927 = vpack.c.b16 %v2071, %v2063
    %v2928 = vpack.c.b16 %v2072, %v2064
    %v2929 = vpack.c.b16 %v2073, %v2065
    %v2930 = vpack.c.b16 %v2074, %v2066
    %v2931 = vpack.c.b16 %v2075, %v2067
    %v2932 = vpack.c.b16 %v2076, %v2068
    %v2933 = vpack.c.b16 %v2077, %v2069
    %v2934 = vpack.c.b16 %v2086, %v2078
    %v2935 = vpack.c.b16 %v2087, %v2079
    %v2936 = vpack.c.b16 %v2088, %v2080
    %v2937 = vpack.c.b16 %v2089, %v2081
    %v2938 = vpack.c.b16 %v2090, %v2082
    %v2939 = vpack.c.b16 %v2091, %v2083
    %v2940 = vpack.c.b16 %v2092, %v2084
    %v2941 = vpack.c.b16 %v2093, %v2085
    %v2942 = vpack.c.b16 %v2102, %v2094
    %v2943 = vpack.c.b16 %v2103, %v2095
    %v2944 = vpack.c.b16 %v2104, %v2096
    %v2945 = vpack.c.b16 %v2105, %v2097
    %v2946 = vpack.c.b16 %v2106, %v2098
    %v2947 = vpack.c.b16 %v2107, %v2099
    %v2948 = vpack.c.b16 %v2108, %v2100
    %v2949 = vpack.c.b16 %v2109, %v2101
    %v2950 = vpack.c.b16 %v2118, %v2110
    %v2951 = vpack.c.b16 %v2119, %v2111
    %v2952 = vpack.c.b16 %v2120, %v2112
    %v2953 = vpack.c.b16 %v2121, %v2113
    %v2954 = vpack.c.b16 %v2122, %v2114
    %v2955 = vpack.c.b16 %v2123, %v2115
    %v2956 = vpack.c.b16 %v2124, %v2116
    %v2957 = vpack.c.b16 %v2125, %v2117
    %v2958 = vpack.c.b16 %v2134, %v2126
    %v2959 = vpack.c.b16 %v2135, %v2127
    %v2960 = vpack.c.b16 %v2136, %v2128
    %v2961 = vpack.c.b16 %v2137, %v2129
    %v2962 = vpack.c.b16 %v2138, %v2130
    %v2963 = vpack.c.b16 %v2139, %v2131
    %v2964 = vpack.c.b16 %v2140, %v2132
    %v2965 = vpack.c.b16 %v2141, %v2133
    %v2966 = vpack.c.b16 %v2150, %v2142
    %v2967 = vpack.c.b16 %v2151, %v2143
    %v2968 = vpack.c.b16 %v2152, %v2144
    %v2969 = vpack.c.b16 %v2153, %v2145
    %v2970 = vpack.c.b16 %v2154, %v2146
    %v2971 = vpack.c.b16 %v2155, %v2147
    %v2972 = vpack.c.b16 %v2156, %v2148
    %v2973 = vpack.c.b16 %v2157, %v2149
    %v2974 = vpack.c.b16 %v2166, %v2158
    %v2975 = vpack.c.b16 %v2167, %v2159
    %v2976 = vpack.c.b16 %v2168, %v2160
    %v2977 = vpack.c.b16 %v2169, %v2161
    %v2978 = vpack.c.b16 %v2170, %v2162
    %v2979 = vpack.c.b16 %v2171, %v2163
    %v2980 = vpack.c.b16 %v2172, %v2164
    %v2981 = vpack.c.b16 %v2173, %v2165
    %v2982 = vpack.c.b16 %v2182, %v2174
    %v2983 = vpack.c.b16 %v2183, %v2175
    %v2984 = vpack.c.b16 %v2184, %v2176
    %v2985 = vpack.c.b16 %v2185, %v2177
    %v2986 = vpack.c.b16 %v2186, %v2178
    %v2987 = vpack.c.b16 %v2187, %v2179
    %v2988 = vpack.c.b16 %v2188, %v2180
    %v2989 = vpack.c.b16 %v2189, %v2181
    %v2990 = vpack.c.b16 %v2198, %v2190
    %v2991 = vpack.c.b16 %v2199, %v2191
    %v2992 = vpack.c.b16 %v2200, %v2192
    %v2993 = vpack.c.b16 %v2201, %v2193
    %v2994 = vpack.c.b16 %v2202, %v2194
    %v2995 = vpack.c.b16 %v2203, %v2195
    %v2996 = vpack.c.b16 %v2204, %v2196
    %v2997 = vpack.c.b16 %v2205, %v2197
    %v2998 = vpack.c.b16 %v2214, %v2206
    %v2999 = vpack.c.b16 %v2215, %v2207
    %v3000 = vpack.c.b16 %v2216, %v2208
    %v3001 = vpack.c.b16 %v2217, %v2209
    %v3002 = vpack.c.b16 %v2218, %v2210
    %v3003 = vpack.c.b16 %v2219, %v2211
    %v3004 = vpack.c.b16 %v2220, %v2212
    %v3005 = vpack.c.b16 %v2221, %v2213
    %v3006 = vpack.c.b16 %v2230, %v2222
    %v3007 = vpack.c.b16 %v2231, %v2223
    %v3008 = vpack.c.b16 %v2232, %v2224
    %v3009 = vpack.c.b16 %v2233, %v2225
    %v3010 = vpack.c.b16 %v2234, %v2226
    %v3011 = vpack.c.b16 %v2235, %v2227
    %v3012 = vpack.c.b16 %v2236, %v2228
    %v3013 = vpack.c.b16 %v2237, %v2229
    %v3014 = vpack.c.b16 %v2246, %v2238
    %v3015 = vpack.c.b16 %v2247, %v2239
    %v3016 = vpack.c.b16 %v2248, %v2240
    %v3017 = vpack.c.b16 %v2249, %v2241
    %v3018 = vpack.c.b16 %v2250, %v2242
    %v3019 = vpack.c.b16 %v2251, %v2243
    %v3020 = vpack.c.b16 %v2252, %v2244
    %v3021 = vpack.c.b16 %v2253, %v2245
    %v3022 = vpack.c.b16 %v2262, %v2254
    %v3023 = vpack.c.b16 %v2263, %v2255
    %v3024 = vpack.c.b16 %v2264, %v2256
    %v3025 = vpack.c.b16 %v2265, %v2257
    %v3026 = vpack.c.b16 %v2266, %v2258
    %v3027 = vpack.c.b16 %v2267, %v2259
    %v3028 = vpack.c.b16 %v2268, %v2260
    %v3029 = vpack.c.b16 %v2269, %v2261
    %v3030 = vpack.c.b16 %v2278, %v2270
    %v3031 = vpack.c.b16 %v2279, %v2271
    %v3032 = vpack.c.b16 %v2280, %v2272
    %v3033 = vpack.c.b16 %v2281, %v2273
    %v3034 = vpack.c.b16 %v2282, %v2274
    %v3035 = vpack.c.b16 %v2283, %v2275
    %v3036 = vpack.c.b16 %v2284, %v2276
    %v3037 = vpack.c.b16 %v2285, %v2277
    %v3038 = vpack.c.b16 %v2294, %v2286
    %v3039 = vpack.c.b16 %v2295, %v2287
    %v3040 = vpack.c.b16 %v2296, %v2288
    %v3041 = vpack.c.b16 %v2297, %v2289
    %v3042 = vpack.c.b16 %v2298, %v2290
    %v3043 = vpack.c.b16 %v2299, %v2291
    %v3044 = vpack.c.b16 %v2300, %v2292
    %v3045 = vpack.c.b16 %v2301, %v2293
    %v3046 = vpack.c.b16 %v2310, %v2302
    %v3047 = vpack.c.b16 %v2311, %v2303
    %v3048 = vpack.c.b16 %v2312, %v2304
    %v3049 = vpack.c.b16 %v2313, %v2305
    %v3050 = vpack.c.b16 %v2314, %v2306
    %v3051 = vpack.c.b16 %v2315, %v2307
    %v3052 = vpack.c.b16 %v2316, %v2308
    %v3053 = vpack.c.b16 %v2317, %v2309
    %v3054 = vpack.c.b16 %v2326, %v2318
    %v3055 = vpack.c.b16 %v2327, %v2319
    %v3056 = vpack.c.b16 %v2328, %v2320
    %v3057 = vpack.c.b16 %v2329, %v2321
    %v3058 = vpack.c.b16 %v2330, %v2322
    %v3059 = vpack.c.b16 %v2331, %v2323
    %v3060 = vpack.c.b16 %v2332, %v2324
    %v3061 = vpack.c.b16 %v2333, %v2325
    %v3062 = vpack.c.b16 %v2342, %v2334
    %v3063 = vpack.c.b16 %v2343, %v2335
    %v3064 = vpack.c.b16 %v2344, %v2336
    %v3065 = vpack.c.b16 %v2345, %v2337
    %v3066 = vpack.c.b16 %v2346, %v2338
    %v3067 = vpack.c.b16 %v2347, %v2339
    %v3068 = vpack.c.b16 %v2348, %v2340
    %v3069 = vpack.c.b16 %v2349, %v2341
    %v3070 = vpack.c.b16 %v2358, %v2350
    %v3071 = vpack.c.b16 %v2359, %v2351
    %v3072 = vpack.c.b16 %v2360, %v2352
    %v3073 = vpack.c.b16 %v2361, %v2353
    %v3074 = vpack.c.b16 %v2362, %v2354
    %v3075 = vpack.c.b16 %v2363, %v2355
    %v3076 = vpack.c.b16 %v2364, %v2356
    %v3077 = vpack.c.b16 %v2365, %v2357
    %v3078 = vpack.c.b16 %v2374, %v2366
    %v3079 = vpack.c.b16 %v2375, %v2367
    %v3080 = vpack.c.b16 %v2376, %v2368
    %v3081 = vpack.c.b16 %v2377, %v2369
    %v3082 = vpack.c.b16 %v2378, %v2370
    %v3083 = vpack.c.b16 %v2379, %v2371
    %v3084 = vpack.c.b16 %v2380, %v2372
    %v3085 = vpack.c.b16 %v2381, %v2373
    %v3086 = vpack.c.b16 %v2390, %v2382
    %v3087 = vpack.c.b16 %v2391, %v2383
    %v3088 = vpack.c.b16 %v2392, %v2384
    %v3089 = vpack.c.b16 %v2393, %v2385
    %v3090 = vpack.c.b16 %v2394, %v2386
    %v3091 = vpack.c.b16 %v2395, %v2387
    %v3092 = vpack.c.b16 %v2396, %v2388
    %v3093 = vpack.c.b16 %v2397, %v2389
    %v3094 = vpack.c.b16 %v2406, %v2398
    %v3095 = vpack.c.b16 %v2407, %v2399
    %v3096 = vpack.c.b16 %v2408, %v2400
    %v3097 = vpack.c.b16 %v2409, %v2401
    %v3098 = vpack.c.b16 %v2410, %v2402
    %v3099 = vpack.c.b16 %v2411, %v2403
    %v3100 = vpack.c.b16 %v2412, %v2404
    %v3101 = vpack.c.b16 %v2413, %v2405
    %v3102 = vpack.c.b16 %v2422, %v2414
    %v3103 = vpack.c.b16 %v2423, %v2415
    %v3104 = vpack.c.b16 %v2424, %v2416
    %v3105 = vpack.c.b16 %v2425, %v2417
    %v3106 = vpack.c.b16 %v2426, %v2418
    %v3107 = vpack.c.b16 %v2427, %v2419
    %v3108 = vpack.c.b16 %v2428, %v2420
    %v3109 = vpack.c.b16 %v2429, %v2421
    %v3110 = vpack.c.b16 %v2438, %v2430
    %v3111 = vpack.c.b16 %v2439, %v2431
    %v3112 = vpack.c.b16 %v2440, %v2432
    %v3113 = vpack.c.b16 %v2441, %v2433
    %v3114 = vpack.c.b16 %v2442, %v2434
    %v3115 = vpack.c.b16 %v2443, %v2435
    %v3116 = vpack.c.b16 %v2444, %v2436
    %v3117 = vpack.c.b16 %v2445, %v2437
    %v3118 = vpack.c.b16 %v2454, %v2446
    %v3119 = vpack.c.b16 %v2455, %v2447
    %v3120 = vpack.c.b16 %v2456, %v2448
    %v3121 = vpack.c.b16 %v2457, %v2449
    %v3122 = vpack.c.b16 %v2458, %v2450
    %v3123 = vpack.c.b16 %v2459, %v2451
    %v3124 = vpack.c.b16 %v2460, %v2452
    %v3125 = vpack.c.b16 %v2461, %v2453
    %v3126 = vpack.c.b16 %v2470, %v2462
    %v3127 = vpack.c.b16 %v2471, %v2463
    %v3128 = vpack.c.b16 %v2472, %v2464
    %v3129 = vpack.c.b16 %v2473, %v2465
    %v3130 = vpack.c.b16 %v2474, %v2466
    %v3131 = vpack.c.b16 %v2475, %v2467
    %v3132 = vpack.c.b16 %v2476, %v2468
    %v3133 = vpack.c.b16 %v2477, %v2469
    %v3134 = vpack.c.b16 %v2486, %v2478
    %v3135 = vpack.c.b16 %v2487, %v2479
    %v3136 = vpack.c.b16 %v2488, %v2480
    %v3137 = vpack.c.b16 %v2489, %v2481
    %v3138 = vpack.c.b16 %v2490, %v2482
    %v3139 = vpack.c.b16 %v2491, %v2483
    %v3140 = vpack.c.b16 %v2492, %v2484
    %v3141 = vpack.c.b16 %v2493, %v2485
    %v3142 = vpack.c.b16 %v2502, %v2494
    %v3143 = vpack.c.b16 %v2503, %v2495
    %v3144 = vpack.c.b16 %v2504, %v2496
    %v3145 = vpack.c.b16 %v2505, %v2497
    %v3146 = vpack.c.b16 %v2506, %v2498
    %v3147 = vpack.c.b16 %v2507, %v2499
    %v3148 = vpack.c.b16 %v2508, %v2500
    %v3149 = vpack.c.b16 %v2509, %v2501
    %v3150 = vpack.c.b16 %v2518, %v2510
    %v3151 = vpack.c.b16 %v2519, %v2511
    %v3152 = vpack.c.b16 %v2520, %v2512
    %v3153 = vpack.c.b16 %v2521, %v2513
    %v3154 = vpack.c.b16 %v2522, %v2514
    %v3155 = vpack.c.b16 %v2523, %v2515
    %v3156 = vpack.c.b16 %v2524, %v2516
    %v3157 = vpack.c.b16 %v2525, %v2517
    %v3158 = vpack.c.b16 %v2534, %v2526
    %v3159 = vpack.c.b16 %v2535, %v2527
    %v3160 = vpack.c.b16 %v2536, %v2528
    %v3161 = vpack.c.b16 %v2537, %v2529
    %v3162 = vpack.c.b16 %v2538, %v2530
    %v3163 = vpack.c.b16 %v2539, %v2531
    %v3164 = vpack.c.b16 %v2540, %v2532
    %v3165 = vpack.c.b16 %v2541, %v2533
    %v3166 = vpack.c.b16 %v2550, %v2542
    %v3167 = vpack.c.b16 %v2551, %v2543
    %v3168 = vpack.c.b16 %v2552, %v2544
    %v3169 = vpack.c.b16 %v2553, %v2545
    %v3170 = vpack.c.b16 %v2554, %v2546
    %v3171 = vpack.c.b16 %v2555, %v2547
    %v3172 = vpack.c.b16 %v2556, %v2548
    %v3173 = vpack.c.b16 %v2557, %v2549
    %v3174 = vpack.c.b16 %v2566, %v2558
    %v3175 = vpack.c.b16 %v2567, %v2559
    %v3176 = vpack.c.b16 %v2568, %v2560
    %v3177 = vpack.c.b16 %v2569, %v2561
    %v3178 = vpack.c.b16 %v2570, %v2562
    %v3179 = vpack.c.b16 %v2571, %v2563
    %v3180 = vpack.c.b16 %v2572, %v2564
    %v3181 = vpack.c.b16 %v2573, %v2565
    %vm3790 = vcmask 523264
    %v3792 = vsel %vm3790, %v740, 0
    %3794 = vmatprep.subr.bf16.mxu0 %v2631
    %3795 = vmatpush1.bf16.msra.mxu0 %v2630
    %3796 = vmatprep.subr.bf16.mxu0 %v2623
    %3797 = vmatpush1.bf16.msra.mxu0 %v2622
    %3798 = vmatprep.subr.bf16.mxu0 %v2615
    %3799 = vmatpush1.bf16.msra.mxu0 %v2614
    %3800 = vmatprep.subr.bf16.mxu0 %v2607
    %3801 = vmatpush1.bf16.msra.mxu0 %v2606
    %3802 = vmatprep.subr.bf16.mxu0 %v2599
    %3803 = vmatpush1.bf16.msra.mxu0 %v2598
    %3804 = vmatprep.subr.bf16.mxu0 %v2591
    %3805 = vmatpush1.bf16.msra.mxu0 %v2590
    %3806 = vmatprep.subr.bf16.mxu0 %v2583
    %3807 = vmatpush1.bf16.msra.mxu0 %v2582
    %3808 = vmatprep.subr.bf16.mxu0 %v2575
    %3809 = vmatpush1.bf16.msra.mxu0 %v2574
    %3810 = vmatprep.subr.bf16.mxu0 %v2695
    %3811 = vmatpush2.bf16.msra.mxu0 %v2694
    %3812 = vmatprep.subr.bf16.mxu0 %v2687
    %3813 = vmatpush2.bf16.msra.mxu0 %v2686
    %3814 = vmatprep.subr.bf16.mxu0 %v2679
    %3815 = vmatpush2.bf16.msra.mxu0 %v2678
    %3816 = vmatprep.subr.bf16.mxu0 %v2671
    %3817 = vmatpush2.bf16.msra.mxu0 %v2670
    %3818 = vmatprep.subr.bf16.mxu0 %v2663
    %3819 = vmatpush2.bf16.msra.mxu0 %v2662
    %3820 = vmatprep.subr.bf16.mxu0 %v2655
    %3821 = vmatpush2.bf16.msra.mxu0 %v2654
    %3822 = vmatprep.subr.bf16.mxu0 %v2647
    %3823 = vmatpush2.bf16.msra.mxu0 %v2646
    %3824 = vmatprep.subr.bf16.mxu0 %v2639
    %3825 = vmatpush2.bf16.msra.mxu0 %v2638
    %3826 = vmatprep.mubr.bf16.mxu0 %v732
    %3827 = vmatmul.mubr.bf16.gmra.mxu0 %v731
    %v3828 = vpop.f32.mrf.mxu0
    %v3829 = vadd.f32 %v664, %v3828
    %v3830 = vpop.f32.mrf.mxu0
    %v3831 = vadd.f32 %v668, %v3830
    %v3832 = vpop.f32.mrf.mxu0
    %v3833 = vadd.f32 %v664, %v3832
    %v3834 = vpop.f32.mrf.mxu0
    %v3835 = vadd.f32 %v668, %v3834
    %3836 = vdwg.mxu0
    %3837 = vmatprep.subr.bf16.mxu0 %v2759
    %3838 = vmatpush1.bf16.msra.mxu0 %v2758
    %3839 = vmatprep.subr.bf16.mxu0 %v2751
    %3840 = vmatpush1.bf16.msra.mxu0 %v2750
    %3841 = vmatprep.subr.bf16.mxu0 %v2743
    %3842 = vmatpush1.bf16.msra.mxu0 %v2742
    %3843 = vmatprep.subr.bf16.mxu0 %v2735
    %3844 = vmatpush1.bf16.msra.mxu0 %v2734
    %3845 = vmatprep.subr.bf16.mxu0 %v2727
    %3846 = vmatpush1.bf16.msra.mxu0 %v2726
    %3847 = vmatprep.subr.bf16.mxu0 %v2719
    %3848 = vmatpush1.bf16.msra.mxu0 %v2718
    %3849 = vmatprep.subr.bf16.mxu0 %v2711
    %3850 = vmatpush1.bf16.msra.mxu0 %v2710
    %3851 = vmatprep.subr.bf16.mxu0 %v2703
    %3852 = vmatpush1.bf16.msra.mxu0 %v2702
    %3853 = vmatprep.subr.bf16.mxu0 %v2823
    %3854 = vmatpush2.bf16.msra.mxu0 %v2822
    %3855 = vmatprep.subr.bf16.mxu0 %v2815
    %3856 = vmatpush2.bf16.msra.mxu0 %v2814
    %3857 = vmatprep.subr.bf16.mxu0 %v2807
    %3858 = vmatpush2.bf16.msra.mxu0 %v2806
    %3859 = vmatprep.subr.bf16.mxu0 %v2799
    %3860 = vmatpush2.bf16.msra.mxu0 %v2798
    %3861 = vmatprep.subr.bf16.mxu0 %v2791
    %3862 = vmatpush2.bf16.msra.mxu0 %v2790
    %3863 = vmatprep.subr.bf16.mxu0 %v2783
    %3864 = vmatpush2.bf16.msra.mxu0 %v2782
    %3865 = vmatprep.subr.bf16.mxu0 %v2775
    %3866 = vmatpush2.bf16.msra.mxu0 %v2774
    %3867 = vmatprep.subr.bf16.mxu0 %v2767
    %3868 = vmatpush2.bf16.msra.mxu0 %v2766
    %3869 = vmatprep.mubr.bf16.mxu0 %v734
    %3870 = vmatmul.mubr.bf16.gmra.mxu0 %v733
    %v3871 = vpop.f32.mrf.mxu0
    %v3872 = vadd.f32 %v3829, %v3871
    %v3873 = vpop.f32.mrf.mxu0
    %v3874 = vadd.f32 %v3831, %v3873
    %v3875 = vpop.f32.mrf.mxu0
    %v3876 = vadd.f32 %v3833, %v3875
    %v3877 = vpop.f32.mrf.mxu0
    %v3878 = vadd.f32 %v3835, %v3877
    %3879 = vdwg.mxu0
    %3880 = vmatprep.subr.bf16.mxu0 %v2887
    %3881 = vmatpush1.bf16.msra.mxu0 %v2886
    %3882 = vmatprep.subr.bf16.mxu0 %v2879
    %3883 = vmatpush1.bf16.msra.mxu0 %v2878
    %3884 = vmatprep.subr.bf16.mxu0 %v2871
    %3885 = vmatpush1.bf16.msra.mxu0 %v2870
    %3886 = vmatprep.subr.bf16.mxu0 %v2863
    %3887 = vmatpush1.bf16.msra.mxu0 %v2862
    %3888 = vmatprep.subr.bf16.mxu0 %v2855
    %3889 = vmatpush1.bf16.msra.mxu0 %v2854
    %3890 = vmatprep.subr.bf16.mxu0 %v2847
    %3891 = vmatpush1.bf16.msra.mxu0 %v2846
    %3892 = vmatprep.subr.bf16.mxu0 %v2839
    %3893 = vmatpush1.bf16.msra.mxu0 %v2838
    %3894 = vmatprep.subr.bf16.mxu0 %v2831
    %3895 = vmatpush1.bf16.msra.mxu0 %v2830
    %3896 = vmatprep.subr.bf16.mxu0 %v2951
    %3897 = vmatpush2.bf16.msra.mxu0 %v2950
    %3898 = vmatprep.subr.bf16.mxu0 %v2943
    %3899 = vmatpush2.bf16.msra.mxu0 %v2942
    %3900 = vmatprep.subr.bf16.mxu0 %v2935
    %3901 = vmatpush2.bf16.msra.mxu0 %v2934
    %3902 = vmatprep.subr.bf16.mxu0 %v2927
    %3903 = vmatpush2.bf16.msra.mxu0 %v2926
    %3904 = vmatprep.subr.bf16.mxu0 %v2919
    %3905 = vmatpush2.bf16.msra.mxu0 %v2918
    %3906 = vmatprep.subr.bf16.mxu0 %v2911
    %3907 = vmatpush2.bf16.msra.mxu0 %v2910
    %3908 = vmatprep.subr.bf16.mxu0 %v2903
    %3909 = vmatpush2.bf16.msra.mxu0 %v2902
    %3910 = vmatprep.subr.bf16.mxu0 %v2895
    %3911 = vmatpush2.bf16.msra.mxu0 %v2894
    %3912 = vmatprep.mubr.bf16.mxu0 %v736
    %3913 = vmatmul.mubr.bf16.gmra.mxu0 %v735
    %v3914 = vpop.f32.mrf.mxu0
    %v3915 = vadd.f32 %v3872, %v3914
    %v3916 = vpop.f32.mrf.mxu0
    %v3917 = vadd.f32 %v3874, %v3916
    %v3918 = vpop.f32.mrf.mxu0
    %v3919 = vadd.f32 %v3876, %v3918
    %v3920 = vpop.f32.mrf.mxu0
    %v3921 = vadd.f32 %v3878, %v3920
    %3922 = vdwg.mxu0
    %3923 = vmatprep.subr.bf16.mxu0 %v3015
    %3924 = vmatpush1.bf16.msra.mxu0 %v3014
    %3925 = vmatprep.subr.bf16.mxu0 %v3007
    %3926 = vmatpush1.bf16.msra.mxu0 %v3006
    %3927 = vmatprep.subr.bf16.mxu0 %v2999
    %3928 = vmatpush1.bf16.msra.mxu0 %v2998
    %3929 = vmatprep.subr.bf16.mxu0 %v2991
    %3930 = vmatpush1.bf16.msra.mxu0 %v2990
    %3931 = vmatprep.subr.bf16.mxu0 %v2983
    %3932 = vmatpush1.bf16.msra.mxu0 %v2982
    %3933 = vmatprep.subr.bf16.mxu0 %v2975
    %3934 = vmatpush1.bf16.msra.mxu0 %v2974
    %3935 = vmatprep.subr.bf16.mxu0 %v2967
    %3936 = vmatpush1.bf16.msra.mxu0 %v2966
    %3937 = vmatprep.subr.bf16.mxu0 %v2959
    %3938 = vmatpush1.bf16.msra.mxu0 %v2958
    %3939 = vmatprep.subr.bf16.mxu0 %v3079
    %3940 = vmatpush2.bf16.msra.mxu0 %v3078
    %3941 = vmatprep.subr.bf16.mxu0 %v3071
    %3942 = vmatpush2.bf16.msra.mxu0 %v3070
    %3943 = vmatprep.subr.bf16.mxu0 %v3063
    %3944 = vmatpush2.bf16.msra.mxu0 %v3062
    %3945 = vmatprep.subr.bf16.mxu0 %v3055
    %3946 = vmatpush2.bf16.msra.mxu0 %v3054
    %3947 = vmatprep.subr.bf16.mxu0 %v3047
    %3948 = vmatpush2.bf16.msra.mxu0 %v3046
    %3949 = vmatprep.subr.bf16.mxu0 %v3039
    %3950 = vmatpush2.bf16.msra.mxu0 %v3038
    %3951 = vmatprep.subr.bf16.mxu0 %v3031
    %3952 = vmatpush2.bf16.msra.mxu0 %v3030
    %3953 = vmatprep.subr.bf16.mxu0 %v3023
    %3954 = vmatpush2.bf16.msra.mxu0 %v3022
    %3955 = vmatprep.mubr.bf16.mxu0 %v738
    %3956 = vmatmul.mubr.bf16.gmra.mxu0 %v737
    %v3957 = vpop.f32.mrf.mxu0
    %v3958 = vadd.f32 %v3915, %v3957
    %v3959 = vpop.f32.mrf.mxu0
    %v3960 = vadd.f32 %v3917, %v3959
    %v3961 = vpop.f32.mrf.mxu0
    %v3962 = vadd.f32 %v3919, %v3961
    %v3963 = vpop.f32.mrf.mxu0
    %v3964 = vadd.f32 %v3921, %v3963
    %3965 = vdwg.mxu0
    %3966 = vmatprep.subr.bf16.mxu0 %v3143
    %3967 = vmatpush1.bf16.msra.mxu0 %v3142
    %3968 = vmatprep.subr.bf16.mxu0 %v3135
    %3969 = vmatpush1.bf16.msra.mxu0 %v3134
    %3970 = vmatprep.subr.bf16.mxu0 %v3127
    %3971 = vmatpush1.bf16.msra.mxu0 %v3126
    %3972 = vmatprep.subr.bf16.mxu0 %v3119
    %3973 = vmatpush1.bf16.msra.mxu0 %v3118
    %3974 = vmatprep.subr.bf16.mxu0 %v3111
    %3975 = vmatpush1.bf16.msra.mxu0 %v3110
    %3976 = vmatprep.subr.bf16.mxu0 %v3103
    %3977 = vmatpush1.bf16.msra.mxu0 %v3102
    %3978 = vmatprep.subr.bf16.mxu0 %v3095
    %3979 = vmatpush1.bf16.msra.mxu0 %v3094
    %3980 = vmatprep.subr.bf16.mxu0 %v3087
    %3981 = vmatpush1.bf16.msra.mxu0 %v3086
    %3982 = vmatprep.subr.bf16.mxu0 0
    %3983 = vmatpush2.bf16.msra.mxu0 0
    %3984 = vmatprep.subr.bf16.mxu0 0
    %3985 = vmatpush2.bf16.msra.mxu0 0
    %3986 = vmatprep.subr.bf16.mxu0 0
    %3987 = vmatpush2.bf16.msra.mxu0 0
    %3988 = vmatprep.subr.bf16.mxu0 0
    %3989 = vmatpush2.bf16.msra.mxu0 0
    %3990 = vmatprep.subr.bf16.mxu0 %v3175
    %3991 = vmatpush2.bf16.msra.mxu0 %v3174
    %3992 = vmatprep.subr.bf16.mxu0 %v3167
    %3993 = vmatpush2.bf16.msra.mxu0 %v3166
    %3994 = vmatprep.subr.bf16.mxu0 %v3159
    %3995 = vmatpush2.bf16.msra.mxu0 %v3158
    %3996 = vmatprep.subr.bf16.mxu0 %v3151
    %3997 = vmatpush2.bf16.msra.mxu0 %v3150
    %3998 = vmatprep.mubr.bf16.mxu0 %v3792
    %3999 = vmatmul.mubr.bf16.gmra.mxu0 %v739
    %v4000 = vpop.f32.mrf.mxu0
    %v4001 = vadd.f32 %v3958, %v4000
    %v4002 = vpop.f32.mrf.mxu0
    %v4003 = vadd.f32 %v3960, %v4002
    %v4004 = vpop.f32.mrf.mxu0
    %v4005 = vadd.f32 %v3962, %v4004
    %v4006 = vpop.f32.mrf.mxu0
    %v4007 = vadd.f32 %v3964, %v4006
    %4008 = vdwg.mxu0
    %4009 = vmatprep.subr.bf16.mxu0 %v2633
    %4010 = vmatpush1.bf16.msra.mxu0 %v2632
    %4011 = vmatprep.subr.bf16.mxu0 %v2625
    %4012 = vmatpush1.bf16.msra.mxu0 %v2624
    %4013 = vmatprep.subr.bf16.mxu0 %v2617
    %4014 = vmatpush1.bf16.msra.mxu0 %v2616
    %4015 = vmatprep.subr.bf16.mxu0 %v2609
    %4016 = vmatpush1.bf16.msra.mxu0 %v2608
    %4017 = vmatprep.subr.bf16.mxu0 %v2601
    %4018 = vmatpush1.bf16.msra.mxu0 %v2600
    %4019 = vmatprep.subr.bf16.mxu0 %v2593
    %4020 = vmatpush1.bf16.msra.mxu0 %v2592
    %4021 = vmatprep.subr.bf16.mxu0 %v2585
    %4022 = vmatpush1.bf16.msra.mxu0 %v2584
    %4023 = vmatprep.subr.bf16.mxu0 %v2577
    %4024 = vmatpush1.bf16.msra.mxu0 %v2576
    %4025 = vmatprep.subr.bf16.mxu0 %v2697
    %4026 = vmatpush2.bf16.msra.mxu0 %v2696
    %4027 = vmatprep.subr.bf16.mxu0 %v2689
    %4028 = vmatpush2.bf16.msra.mxu0 %v2688
    %4029 = vmatprep.subr.bf16.mxu0 %v2681
    %4030 = vmatpush2.bf16.msra.mxu0 %v2680
    %4031 = vmatprep.subr.bf16.mxu0 %v2673
    %4032 = vmatpush2.bf16.msra.mxu0 %v2672
    %4033 = vmatprep.subr.bf16.mxu0 %v2665
    %4034 = vmatpush2.bf16.msra.mxu0 %v2664
    %4035 = vmatprep.subr.bf16.mxu0 %v2657
    %4036 = vmatpush2.bf16.msra.mxu0 %v2656
    %4037 = vmatprep.subr.bf16.mxu0 %v2649
    %4038 = vmatpush2.bf16.msra.mxu0 %v2648
    %4039 = vmatprep.subr.bf16.mxu0 %v2641
    %4040 = vmatpush2.bf16.msra.mxu0 %v2640
    %4041 = vmatprep.mubr.bf16.mxu0 %v732
    %4042 = vmatmul.mubr.bf16.gmra.mxu0 %v731
    %v4043 = vpop.f32.mrf.mxu0
    %v4044 = vadd.f32 %v672, %v4043
    %v4045 = vpop.f32.mrf.mxu0
    %v4046 = vadd.f32 %v676, %v4045
    %v4047 = vpop.f32.mrf.mxu0
    %v4048 = vadd.f32 %v672, %v4047
    %v4049 = vpop.f32.mrf.mxu0
    %v4050 = vadd.f32 %v676, %v4049
    %4051 = vdwg.mxu0
    %4052 = vmatprep.subr.bf16.mxu0 %v2761
    %4053 = vmatpush1.bf16.msra.mxu0 %v2760
    %4054 = vmatprep.subr.bf16.mxu0 %v2753
    %4055 = vmatpush1.bf16.msra.mxu0 %v2752
    %4056 = vmatprep.subr.bf16.mxu0 %v2745
    %4057 = vmatpush1.bf16.msra.mxu0 %v2744
    %4058 = vmatprep.subr.bf16.mxu0 %v2737
    %4059 = vmatpush1.bf16.msra.mxu0 %v2736
    %4060 = vmatprep.subr.bf16.mxu0 %v2729
    %4061 = vmatpush1.bf16.msra.mxu0 %v2728
    %4062 = vmatprep.subr.bf16.mxu0 %v2721
    %4063 = vmatpush1.bf16.msra.mxu0 %v2720
    %4064 = vmatprep.subr.bf16.mxu0 %v2713
    %4065 = vmatpush1.bf16.msra.mxu0 %v2712
    %4066 = vmatprep.subr.bf16.mxu0 %v2705
    %4067 = vmatpush1.bf16.msra.mxu0 %v2704
    %4068 = vmatprep.subr.bf16.mxu0 %v2825
    %4069 = vmatpush2.bf16.msra.mxu0 %v2824
    %4070 = vmatprep.subr.bf16.mxu0 %v2817
    %4071 = vmatpush2.bf16.msra.mxu0 %v2816
    %4072 = vmatprep.subr.bf16.mxu0 %v2809
    %4073 = vmatpush2.bf16.msra.mxu0 %v2808
    %4074 = vmatprep.subr.bf16.mxu0 %v2801
    %4075 = vmatpush2.bf16.msra.mxu0 %v2800
    %4076 = vmatprep.subr.bf16.mxu0 %v2793
    %4077 = vmatpush2.bf16.msra.mxu0 %v2792
    %4078 = vmatprep.subr.bf16.mxu0 %v2785
    %4079 = vmatpush2.bf16.msra.mxu0 %v2784
    %4080 = vmatprep.subr.bf16.mxu0 %v2777
    %4081 = vmatpush2.bf16.msra.mxu0 %v2776
    %4082 = vmatprep.subr.bf16.mxu0 %v2769
    %4083 = vmatpush2.bf16.msra.mxu0 %v2768
    %4084 = vmatprep.mubr.bf16.mxu0 %v734
    %4085 = vmatmul.mubr.bf16.gmra.mxu0 %v733
    %v4086 = vpop.f32.mrf.mxu0
    %v4087 = vadd.f32 %v4044, %v4086
    %v4088 = vpop.f32.mrf.mxu0
    %v4089 = vadd.f32 %v4046, %v4088
    %v4090 = vpop.f32.mrf.mxu0
    %v4091 = vadd.f32 %v4048, %v4090
    %v4092 = vpop.f32.mrf.mxu0
    %v4093 = vadd.f32 %v4050, %v4092
    %4094 = vdwg.mxu0
    %4095 = vmatprep.subr.bf16.mxu0 %v2889
    %4096 = vmatpush1.bf16.msra.mxu0 %v2888
    %4097 = vmatprep.subr.bf16.mxu0 %v2881
    %4098 = vmatpush1.bf16.msra.mxu0 %v2880
    %4099 = vmatprep.subr.bf16.mxu0 %v2873
    %4100 = vmatpush1.bf16.msra.mxu0 %v2872
    %4101 = vmatprep.subr.bf16.mxu0 %v2865
    %4102 = vmatpush1.bf16.msra.mxu0 %v2864
    %4103 = vmatprep.subr.bf16.mxu0 %v2857
    %4104 = vmatpush1.bf16.msra.mxu0 %v2856
    %4105 = vmatprep.subr.bf16.mxu0 %v2849
    %4106 = vmatpush1.bf16.msra.mxu0 %v2848
    %4107 = vmatprep.subr.bf16.mxu0 %v2841
    %4108 = vmatpush1.bf16.msra.mxu0 %v2840
    %4109 = vmatprep.subr.bf16.mxu0 %v2833
    %4110 = vmatpush1.bf16.msra.mxu0 %v2832
    %4111 = vmatprep.subr.bf16.mxu0 %v2953
    %4112 = vmatpush2.bf16.msra.mxu0 %v2952
    %4113 = vmatprep.subr.bf16.mxu0 %v2945
    %4114 = vmatpush2.bf16.msra.mxu0 %v2944
    %4115 = vmatprep.subr.bf16.mxu0 %v2937
    %4116 = vmatpush2.bf16.msra.mxu0 %v2936
    %4117 = vmatprep.subr.bf16.mxu0 %v2929
    %4118 = vmatpush2.bf16.msra.mxu0 %v2928
    %4119 = vmatprep.subr.bf16.mxu0 %v2921
    %4120 = vmatpush2.bf16.msra.mxu0 %v2920
    %4121 = vmatprep.subr.bf16.mxu0 %v2913
    %4122 = vmatpush2.bf16.msra.mxu0 %v2912
    %4123 = vmatprep.subr.bf16.mxu0 %v2905
    %4124 = vmatpush2.bf16.msra.mxu0 %v2904
    %4125 = vmatprep.subr.bf16.mxu0 %v2897
    %4126 = vmatpush2.bf16.msra.mxu0 %v2896
    %4127 = vmatprep.mubr.bf16.mxu0 %v736
    %4128 = vmatmul.mubr.bf16.gmra.mxu0 %v735
    %v4129 = vpop.f32.mrf.mxu0
    %v4130 = vadd.f32 %v4087, %v4129
    %v4131 = vpop.f32.mrf.mxu0
    %v4132 = vadd.f32 %v4089, %v4131
    %v4133 = vpop.f32.mrf.mxu0
    %v4134 = vadd.f32 %v4091, %v4133
    %v4135 = vpop.f32.mrf.mxu0
    %v4136 = vadd.f32 %v4093, %v4135
    %4137 = vdwg.mxu0
    %4138 = vmatprep.subr.bf16.mxu0 %v3017
    %4139 = vmatpush1.bf16.msra.mxu0 %v3016
    %4140 = vmatprep.subr.bf16.mxu0 %v3009
    %4141 = vmatpush1.bf16.msra.mxu0 %v3008
    %4142 = vmatprep.subr.bf16.mxu0 %v3001
    %4143 = vmatpush1.bf16.msra.mxu0 %v3000
    %4144 = vmatprep.subr.bf16.mxu0 %v2993
    %4145 = vmatpush1.bf16.msra.mxu0 %v2992
    %4146 = vmatprep.subr.bf16.mxu0 %v2985
    %4147 = vmatpush1.bf16.msra.mxu0 %v2984
    %4148 = vmatprep.subr.bf16.mxu0 %v2977
    %4149 = vmatpush1.bf16.msra.mxu0 %v2976
    %4150 = vmatprep.subr.bf16.mxu0 %v2969
    %4151 = vmatpush1.bf16.msra.mxu0 %v2968
    %4152 = vmatprep.subr.bf16.mxu0 %v2961
    %4153 = vmatpush1.bf16.msra.mxu0 %v2960
    %4154 = vmatprep.subr.bf16.mxu0 %v3081
    %4155 = vmatpush2.bf16.msra.mxu0 %v3080
    %4156 = vmatprep.subr.bf16.mxu0 %v3073
    %4157 = vmatpush2.bf16.msra.mxu0 %v3072
    %4158 = vmatprep.subr.bf16.mxu0 %v3065
    %4159 = vmatpush2.bf16.msra.mxu0 %v3064
    %4160 = vmatprep.subr.bf16.mxu0 %v3057
    %4161 = vmatpush2.bf16.msra.mxu0 %v3056
    %4162 = vmatprep.subr.bf16.mxu0 %v3049
    %4163 = vmatpush2.bf16.msra.mxu0 %v3048
    %4164 = vmatprep.subr.bf16.mxu0 %v3041
    %4165 = vmatpush2.bf16.msra.mxu0 %v3040
    %4166 = vmatprep.subr.bf16.mxu0 %v3033
    %4167 = vmatpush2.bf16.msra.mxu0 %v3032
    %4168 = vmatprep.subr.bf16.mxu0 %v3025
    %4169 = vmatpush2.bf16.msra.mxu0 %v3024
    %4170 = vmatprep.mubr.bf16.mxu0 %v738
    %4171 = vmatmul.mubr.bf16.gmra.mxu0 %v737
    %v4172 = vpop.f32.mrf.mxu0
    %v4173 = vadd.f32 %v4130, %v4172
    %v4174 = vpop.f32.mrf.mxu0
    %v4175 = vadd.f32 %v4132, %v4174
    %v4176 = vpop.f32.mrf.mxu0
    %v4177 = vadd.f32 %v4134, %v4176
    %v4178 = vpop.f32.mrf.mxu0
    %v4179 = vadd.f32 %v4136, %v4178
    %4180 = vdwg.mxu0
    %4181 = vmatprep.subr.bf16.mxu0 %v3145
    %4182 = vmatpush1.bf16.msra.mxu0 %v3144
    %4183 = vmatprep.subr.bf16.mxu0 %v3137
    %4184 = vmatpush1.bf16.msra.mxu0 %v3136
    %4185 = vmatprep.subr.bf16.mxu0 %v3129
    %4186 = vmatpush1.bf16.msra.mxu0 %v3128
    %4187 = vmatprep.subr.bf16.mxu0 %v3121
    %4188 = vmatpush1.bf16.msra.mxu0 %v3120
    %4189 = vmatprep.subr.bf16.mxu0 %v3113
    %4190 = vmatpush1.bf16.msra.mxu0 %v3112
    %4191 = vmatprep.subr.bf16.mxu0 %v3105
    %4192 = vmatpush1.bf16.msra.mxu0 %v3104
    %4193 = vmatprep.subr.bf16.mxu0 %v3097
    %4194 = vmatpush1.bf16.msra.mxu0 %v3096
    %4195 = vmatprep.subr.bf16.mxu0 %v3089
    %4196 = vmatpush1.bf16.msra.mxu0 %v3088
    %4197 = vmatprep.subr.bf16.mxu0 0
    %4198 = vmatpush2.bf16.msra.mxu0 0
    %4199 = vmatprep.subr.bf16.mxu0 0
    %4200 = vmatpush2.bf16.msra.mxu0 0
    %4201 = vmatprep.subr.bf16.mxu0 0
    %4202 = vmatpush2.bf16.msra.mxu0 0
    %4203 = vmatprep.subr.bf16.mxu0 0
    %4204 = vmatpush2.bf16.msra.mxu0 0
    %4205 = vmatprep.subr.bf16.mxu0 %v3177
    %4206 = vmatpush2.bf16.msra.mxu0 %v3176
    %4207 = vmatprep.subr.bf16.mxu0 %v3169
    %4208 = vmatpush2.bf16.msra.mxu0 %v3168
    %4209 = vmatprep.subr.bf16.mxu0 %v3161
    %4210 = vmatpush2.bf16.msra.mxu0 %v3160
    %4211 = vmatprep.subr.bf16.mxu0 %v3153
    %4212 = vmatpush2.bf16.msra.mxu0 %v3152
    %4213 = vmatprep.mubr.bf16.mxu0 %v3792
    %4214 = vmatmul.mubr.bf16.gmra.mxu0 %v739
    %v4215 = vpop.f32.mrf.mxu0
    %v4216 = vadd.f32 %v4173, %v4215
    %v4217 = vpop.f32.mrf.mxu0
    %v4218 = vadd.f32 %v4175, %v4217
    %v4219 = vpop.f32.mrf.mxu0
    %v4220 = vadd.f32 %v4177, %v4219
    %v4221 = vpop.f32.mrf.mxu0
    %v4222 = vadd.f32 %v4179, %v4221
    %4223 = vdwg.mxu0
    %4224 = vmatprep.subr.bf16.mxu0 %v2635
    %4225 = vmatpush1.bf16.msra.mxu0 %v2634
    %4226 = vmatprep.subr.bf16.mxu0 %v2627
    %4227 = vmatpush1.bf16.msra.mxu0 %v2626
    %4228 = vmatprep.subr.bf16.mxu0 %v2619
    %4229 = vmatpush1.bf16.msra.mxu0 %v2618
    %4230 = vmatprep.subr.bf16.mxu0 %v2611
    %4231 = vmatpush1.bf16.msra.mxu0 %v2610
    %4232 = vmatprep.subr.bf16.mxu0 %v2603
    %4233 = vmatpush1.bf16.msra.mxu0 %v2602
    %4234 = vmatprep.subr.bf16.mxu0 %v2595
    %4235 = vmatpush1.bf16.msra.mxu0 %v2594
    %4236 = vmatprep.subr.bf16.mxu0 %v2587
    %4237 = vmatpush1.bf16.msra.mxu0 %v2586
    %4238 = vmatprep.subr.bf16.mxu0 %v2579
    %4239 = vmatpush1.bf16.msra.mxu0 %v2578
    %4240 = vmatprep.subr.bf16.mxu0 %v2699
    %4241 = vmatpush2.bf16.msra.mxu0 %v2698
    %4242 = vmatprep.subr.bf16.mxu0 %v2691
    %4243 = vmatpush2.bf16.msra.mxu0 %v2690
    %4244 = vmatprep.subr.bf16.mxu0 %v2683
    %4245 = vmatpush2.bf16.msra.mxu0 %v2682
    %4246 = vmatprep.subr.bf16.mxu0 %v2675
    %4247 = vmatpush2.bf16.msra.mxu0 %v2674
    %4248 = vmatprep.subr.bf16.mxu0 %v2667
    %4249 = vmatpush2.bf16.msra.mxu0 %v2666
    %4250 = vmatprep.subr.bf16.mxu0 %v2659
    %4251 = vmatpush2.bf16.msra.mxu0 %v2658
    %4252 = vmatprep.subr.bf16.mxu0 %v2651
    %4253 = vmatpush2.bf16.msra.mxu0 %v2650
    %4254 = vmatprep.subr.bf16.mxu0 %v2643
    %4255 = vmatpush2.bf16.msra.mxu0 %v2642
    %4256 = vmatprep.mubr.bf16.mxu0 %v732
    %4257 = vmatmul.mubr.bf16.gmra.mxu0 %v731
    %v4258 = vpop.f32.mrf.mxu0
    %v4259 = vadd.f32 %v680, %v4258
    %v4260 = vpop.f32.mrf.mxu0
    %v4261 = vadd.f32 %v684, %v4260
    %v4262 = vpop.f32.mrf.mxu0
    %v4263 = vadd.f32 %v680, %v4262
    %v4264 = vpop.f32.mrf.mxu0
    %v4265 = vadd.f32 %v684, %v4264
    %4266 = vdwg.mxu0
    %4267 = vmatprep.subr.bf16.mxu0 %v2763
    %4268 = vmatpush1.bf16.msra.mxu0 %v2762
    %4269 = vmatprep.subr.bf16.mxu0 %v2755
    %4270 = vmatpush1.bf16.msra.mxu0 %v2754
    %4271 = vmatprep.subr.bf16.mxu0 %v2747
    %4272 = vmatpush1.bf16.msra.mxu0 %v2746
    %4273 = vmatprep.subr.bf16.mxu0 %v2739
    %4274 = vmatpush1.bf16.msra.mxu0 %v2738
    %4275 = vmatprep.subr.bf16.mxu0 %v2731
    %4276 = vmatpush1.bf16.msra.mxu0 %v2730
    %4277 = vmatprep.subr.bf16.mxu0 %v2723
    %4278 = vmatpush1.bf16.msra.mxu0 %v2722
    %4279 = vmatprep.subr.bf16.mxu0 %v2715
    %4280 = vmatpush1.bf16.msra.mxu0 %v2714
    %4281 = vmatprep.subr.bf16.mxu0 %v2707
    %4282 = vmatpush1.bf16.msra.mxu0 %v2706
    %4283 = vmatprep.subr.bf16.mxu0 %v2827
    %4284 = vmatpush2.bf16.msra.mxu0 %v2826
    %4285 = vmatprep.subr.bf16.mxu0 %v2819
    %4286 = vmatpush2.bf16.msra.mxu0 %v2818
    %4287 = vmatprep.subr.bf16.mxu0 %v2811
    %4288 = vmatpush2.bf16.msra.mxu0 %v2810
    %4289 = vmatprep.subr.bf16.mxu0 %v2803
    %4290 = vmatpush2.bf16.msra.mxu0 %v2802
    %4291 = vmatprep.subr.bf16.mxu0 %v2795
    %4292 = vmatpush2.bf16.msra.mxu0 %v2794
    %4293 = vmatprep.subr.bf16.mxu0 %v2787
    %4294 = vmatpush2.bf16.msra.mxu0 %v2786
    %4295 = vmatprep.subr.bf16.mxu0 %v2779
    %4296 = vmatpush2.bf16.msra.mxu0 %v2778
    %4297 = vmatprep.subr.bf16.mxu0 %v2771
    %4298 = vmatpush2.bf16.msra.mxu0 %v2770
    %4299 = vmatprep.mubr.bf16.mxu0 %v734
    %4300 = vmatmul.mubr.bf16.gmra.mxu0 %v733
    %v4301 = vpop.f32.mrf.mxu0
    %v4302 = vadd.f32 %v4259, %v4301
    %v4303 = vpop.f32.mrf.mxu0
    %v4304 = vadd.f32 %v4261, %v4303
    %v4305 = vpop.f32.mrf.mxu0
    %v4306 = vadd.f32 %v4263, %v4305
    %v4307 = vpop.f32.mrf.mxu0
    %v4308 = vadd.f32 %v4265, %v4307
    %4309 = vdwg.mxu0
    %4310 = vmatprep.subr.bf16.mxu0 %v2891
    %4311 = vmatpush1.bf16.msra.mxu0 %v2890
    %4312 = vmatprep.subr.bf16.mxu0 %v2883
    %4313 = vmatpush1.bf16.msra.mxu0 %v2882
    %4314 = vmatprep.subr.bf16.mxu0 %v2875
    %4315 = vmatpush1.bf16.msra.mxu0 %v2874
    %4316 = vmatprep.subr.bf16.mxu0 %v2867
    %4317 = vmatpush1.bf16.msra.mxu0 %v2866
    %4318 = vmatprep.subr.bf16.mxu0 %v2859
    %4319 = vmatpush1.bf16.msra.mxu0 %v2858
    %4320 = vmatprep.subr.bf16.mxu0 %v2851
    %4321 = vmatpush1.bf16.msra.mxu0 %v2850
    %4322 = vmatprep.subr.bf16.mxu0 %v2843
    %4323 = vmatpush1.bf16.msra.mxu0 %v2842
    %4324 = vmatprep.subr.bf16.mxu0 %v2835
    %4325 = vmatpush1.bf16.msra.mxu0 %v2834
    %4326 = vmatprep.subr.bf16.mxu0 %v2955
    %4327 = vmatpush2.bf16.msra.mxu0 %v2954
    %4328 = vmatprep.subr.bf16.mxu0 %v2947
    %4329 = vmatpush2.bf16.msra.mxu0 %v2946
    %4330 = vmatprep.subr.bf16.mxu0 %v2939
    %4331 = vmatpush2.bf16.msra.mxu0 %v2938
    %4332 = vmatprep.subr.bf16.mxu0 %v2931
    %4333 = vmatpush2.bf16.msra.mxu0 %v2930
    %4334 = vmatprep.subr.bf16.mxu0 %v2923
    %4335 = vmatpush2.bf16.msra.mxu0 %v2922
    %4336 = vmatprep.subr.bf16.mxu0 %v2915
    %4337 = vmatpush2.bf16.msra.mxu0 %v2914
    %4338 = vmatprep.subr.bf16.mxu0 %v2907
    %4339 = vmatpush2.bf16.msra.mxu0 %v2906
    %4340 = vmatprep.subr.bf16.mxu0 %v2899
    %4341 = vmatpush2.bf16.msra.mxu0 %v2898
    %4342 = vmatprep.mubr.bf16.mxu0 %v736
    %4343 = vmatmul.mubr.bf16.gmra.mxu0 %v735
    %v4344 = vpop.f32.mrf.mxu0
    %v4345 = vadd.f32 %v4302, %v4344
    %v4346 = vpop.f32.mrf.mxu0
    %v4347 = vadd.f32 %v4304, %v4346
    %v4348 = vpop.f32.mrf.mxu0
    %v4349 = vadd.f32 %v4306, %v4348
    %v4350 = vpop.f32.mrf.mxu0
    %v4351 = vadd.f32 %v4308, %v4350
    %4352 = vdwg.mxu0
    %4353 = vmatprep.subr.bf16.mxu0 %v3019
    %4354 = vmatpush1.bf16.msra.mxu0 %v3018
    %4355 = vmatprep.subr.bf16.mxu0 %v3011
    %4356 = vmatpush1.bf16.msra.mxu0 %v3010
    %4357 = vmatprep.subr.bf16.mxu0 %v3003
    %4358 = vmatpush1.bf16.msra.mxu0 %v3002
    %4359 = vmatprep.subr.bf16.mxu0 %v2995
    %4360 = vmatpush1.bf16.msra.mxu0 %v2994
    %4361 = vmatprep.subr.bf16.mxu0 %v2987
    %4362 = vmatpush1.bf16.msra.mxu0 %v2986
    %4363 = vmatprep.subr.bf16.mxu0 %v2979
    %4364 = vmatpush1.bf16.msra.mxu0 %v2978
    %4365 = vmatprep.subr.bf16.mxu0 %v2971
    %4366 = vmatpush1.bf16.msra.mxu0 %v2970
    %4367 = vmatprep.subr.bf16.mxu0 %v2963
    %4368 = vmatpush1.bf16.msra.mxu0 %v2962
    %4369 = vmatprep.subr.bf16.mxu0 %v3083
    %4370 = vmatpush2.bf16.msra.mxu0 %v3082
    %4371 = vmatprep.subr.bf16.mxu0 %v3075
    %4372 = vmatpush2.bf16.msra.mxu0 %v3074
    %4373 = vmatprep.subr.bf16.mxu0 %v3067
    %4374 = vmatpush2.bf16.msra.mxu0 %v3066
    %4375 = vmatprep.subr.bf16.mxu0 %v3059
    %4376 = vmatpush2.bf16.msra.mxu0 %v3058
    %4377 = vmatprep.subr.bf16.mxu0 %v3051
    %4378 = vmatpush2.bf16.msra.mxu0 %v3050
    %4379 = vmatprep.subr.bf16.mxu0 %v3043
    %4380 = vmatpush2.bf16.msra.mxu0 %v3042
    %4381 = vmatprep.subr.bf16.mxu0 %v3035
    %4382 = vmatpush2.bf16.msra.mxu0 %v3034
    %4383 = vmatprep.subr.bf16.mxu0 %v3027
    %4384 = vmatpush2.bf16.msra.mxu0 %v3026
    %4385 = vmatprep.mubr.bf16.mxu0 %v738
    %4386 = vmatmul.mubr.bf16.gmra.mxu0 %v737
    %v4387 = vpop.f32.mrf.mxu0
    %v4388 = vadd.f32 %v4345, %v4387
    %v4389 = vpop.f32.mrf.mxu0
    %v4390 = vadd.f32 %v4347, %v4389
    %v4391 = vpop.f32.mrf.mxu0
    %v4392 = vadd.f32 %v4349, %v4391
    %v4393 = vpop.f32.mrf.mxu0
    %v4394 = vadd.f32 %v4351, %v4393
    %4395 = vdwg.mxu0
    %4396 = vmatprep.subr.bf16.mxu0 %v3147
    %4397 = vmatpush1.bf16.msra.mxu0 %v3146
    %4398 = vmatprep.subr.bf16.mxu0 %v3139
    %4399 = vmatpush1.bf16.msra.mxu0 %v3138
    %4400 = vmatprep.subr.bf16.mxu0 %v3131
    %4401 = vmatpush1.bf16.msra.mxu0 %v3130
    %4402 = vmatprep.subr.bf16.mxu0 %v3123
    %4403 = vmatpush1.bf16.msra.mxu0 %v3122
    %4404 = vmatprep.subr.bf16.mxu0 %v3115
    %4405 = vmatpush1.bf16.msra.mxu0 %v3114
    %4406 = vmatprep.subr.bf16.mxu0 %v3107
    %4407 = vmatpush1.bf16.msra.mxu0 %v3106
    %4408 = vmatprep.subr.bf16.mxu0 %v3099
    %4409 = vmatpush1.bf16.msra.mxu0 %v3098
    %4410 = vmatprep.subr.bf16.mxu0 %v3091
    %4411 = vmatpush1.bf16.msra.mxu0 %v3090
    %4412 = vmatprep.subr.bf16.mxu0 0
    %4413 = vmatpush2.bf16.msra.mxu0 0
    %4414 = vmatprep.subr.bf16.mxu0 0
    %4415 = vmatpush2.bf16.msra.mxu0 0
    %4416 = vmatprep.subr.bf16.mxu0 0
    %4417 = vmatpush2.bf16.msra.mxu0 0
    %4418 = vmatprep.subr.bf16.mxu0 0
    %4419 = vmatpush2.bf16.msra.mxu0 0
    %4420 = vmatprep.subr.bf16.mxu0 %v3179
    %4421 = vmatpush2.bf16.msra.mxu0 %v3178
    %4422 = vmatprep.subr.bf16.mxu0 %v3171
    %4423 = vmatpush2.bf16.msra.mxu0 %v3170
    %4424 = vmatprep.subr.bf16.mxu0 %v3163
    %4425 = vmatpush2.bf16.msra.mxu0 %v3162
    %4426 = vmatprep.subr.bf16.mxu0 %v3155
    %4427 = vmatpush2.bf16.msra.mxu0 %v3154
    %4428 = vmatprep.mubr.bf16.mxu0 %v3792
    %4429 = vmatmul.mubr.bf16.gmra.mxu0 %v739
    %v4430 = vpop.f32.mrf.mxu0
    %v4431 = vadd.f32 %v4388, %v4430
    %v4432 = vpop.f32.mrf.mxu0
    %v4433 = vadd.f32 %v4390, %v4432
    %v4434 = vpop.f32.mrf.mxu0
    %v4435 = vadd.f32 %v4392, %v4434
    %v4436 = vpop.f32.mrf.mxu0
    %v4437 = vadd.f32 %v4394, %v4436
    %4438 = vdwg.mxu0
    %4439 = vmatprep.subr.bf16.mxu0 %v2637
    %4440 = vmatpush1.bf16.msra.mxu0 %v2636
    %4441 = vmatprep.subr.bf16.mxu0 %v2629
    %4442 = vmatpush1.bf16.msra.mxu0 %v2628
    %4443 = vmatprep.subr.bf16.mxu0 %v2621
    %4444 = vmatpush1.bf16.msra.mxu0 %v2620
    %4445 = vmatprep.subr.bf16.mxu0 %v2613
    %4446 = vmatpush1.bf16.msra.mxu0 %v2612
    %4447 = vmatprep.subr.bf16.mxu0 %v2605
    %4448 = vmatpush1.bf16.msra.mxu0 %v2604
    %4449 = vmatprep.subr.bf16.mxu0 %v2597
    %4450 = vmatpush1.bf16.msra.mxu0 %v2596
    %4451 = vmatprep.subr.bf16.mxu0 %v2589
    %4452 = vmatpush1.bf16.msra.mxu0 %v2588
    %4453 = vmatprep.subr.bf16.mxu0 %v2581
    %4454 = vmatpush1.bf16.msra.mxu0 %v2580
    %4455 = vmatprep.subr.bf16.mxu0 %v2701
    %4456 = vmatpush2.bf16.msra.mxu0 %v2700
    %4457 = vmatprep.subr.bf16.mxu0 %v2693
    %4458 = vmatpush2.bf16.msra.mxu0 %v2692
    %4459 = vmatprep.subr.bf16.mxu0 %v2685
    %4460 = vmatpush2.bf16.msra.mxu0 %v2684
    %4461 = vmatprep.subr.bf16.mxu0 %v2677
    %4462 = vmatpush2.bf16.msra.mxu0 %v2676
    %4463 = vmatprep.subr.bf16.mxu0 %v2669
    %4464 = vmatpush2.bf16.msra.mxu0 %v2668
    %4465 = vmatprep.subr.bf16.mxu0 %v2661
    %4466 = vmatpush2.bf16.msra.mxu0 %v2660
    %4467 = vmatprep.subr.bf16.mxu0 %v2653
    %4468 = vmatpush2.bf16.msra.mxu0 %v2652
    %4469 = vmatprep.subr.bf16.mxu0 %v2645
    %4470 = vmatpush2.bf16.msra.mxu0 %v2644
    %4471 = vmatprep.mubr.bf16.mxu0 %v732
    %4472 = vmatmul.mubr.bf16.gmra.mxu0 %v731
    %v4473 = vpop.f32.mrf.mxu0
    %v4474 = vadd.f32 %v688, %v4473
    %v4475 = vpop.f32.mrf.mxu0
    %v4476 = vadd.f32 %v692, %v4475
    %v4477 = vpop.f32.mrf.mxu0
    %v4478 = vadd.f32 %v688, %v4477
    %v4479 = vpop.f32.mrf.mxu0
    %v4480 = vadd.f32 %v692, %v4479
    %4481 = vdwg.mxu0
    %4482 = vmatprep.subr.bf16.mxu0 %v2765
    %4483 = vmatpush1.bf16.msra.mxu0 %v2764
    %4484 = vmatprep.subr.bf16.mxu0 %v2757
    %4485 = vmatpush1.bf16.msra.mxu0 %v2756
    %4486 = vmatprep.subr.bf16.mxu0 %v2749
    %4487 = vmatpush1.bf16.msra.mxu0 %v2748
    %4488 = vmatprep.subr.bf16.mxu0 %v2741
    %4489 = vmatpush1.bf16.msra.mxu0 %v2740
    %4490 = vmatprep.subr.bf16.mxu0 %v2733
    %4491 = vmatpush1.bf16.msra.mxu0 %v2732
    %4492 = vmatprep.subr.bf16.mxu0 %v2725
    %4493 = vmatpush1.bf16.msra.mxu0 %v2724
    %4494 = vmatprep.subr.bf16.mxu0 %v2717
    %4495 = vmatpush1.bf16.msra.mxu0 %v2716
    %4496 = vmatprep.subr.bf16.mxu0 %v2709
    %4497 = vmatpush1.bf16.msra.mxu0 %v2708
    %4498 = vmatprep.subr.bf16.mxu0 %v2829
    %4499 = vmatpush2.bf16.msra.mxu0 %v2828
    %4500 = vmatprep.subr.bf16.mxu0 %v2821
    %4501 = vmatpush2.bf16.msra.mxu0 %v2820
    %4502 = vmatprep.subr.bf16.mxu0 %v2813
    %4503 = vmatpush2.bf16.msra.mxu0 %v2812
    %4504 = vmatprep.subr.bf16.mxu0 %v2805
    %4505 = vmatpush2.bf16.msra.mxu0 %v2804
    %4506 = vmatprep.subr.bf16.mxu0 %v2797
    %4507 = vmatpush2.bf16.msra.mxu0 %v2796
    %4508 = vmatprep.subr.bf16.mxu0 %v2789
    %4509 = vmatpush2.bf16.msra.mxu0 %v2788
    %4510 = vmatprep.subr.bf16.mxu0 %v2781
    %4511 = vmatpush2.bf16.msra.mxu0 %v2780
    %4512 = vmatprep.subr.bf16.mxu0 %v2773
    %4513 = vmatpush2.bf16.msra.mxu0 %v2772
    %4514 = vmatprep.mubr.bf16.mxu0 %v734
    %4515 = vmatmul.mubr.bf16.gmra.mxu0 %v733
    %v4516 = vpop.f32.mrf.mxu0
    %v4517 = vadd.f32 %v4474, %v4516
    %v4518 = vpop.f32.mrf.mxu0
    %v4519 = vadd.f32 %v4476, %v4518
    %v4520 = vpop.f32.mrf.mxu0
    %v4521 = vadd.f32 %v4478, %v4520
    %v4522 = vpop.f32.mrf.mxu0
    %v4523 = vadd.f32 %v4480, %v4522
    %4524 = vdwg.mxu0
    %4525 = vmatprep.subr.bf16.mxu0 %v2893
    %4526 = vmatpush1.bf16.msra.mxu0 %v2892
    %4527 = vmatprep.subr.bf16.mxu0 %v2885
    %4528 = vmatpush1.bf16.msra.mxu0 %v2884
    %4529 = vmatprep.subr.bf16.mxu0 %v2877
    %4530 = vmatpush1.bf16.msra.mxu0 %v2876
    %4531 = vmatprep.subr.bf16.mxu0 %v2869
    %4532 = vmatpush1.bf16.msra.mxu0 %v2868
    %4533 = vmatprep.subr.bf16.mxu0 %v2861
    %4534 = vmatpush1.bf16.msra.mxu0 %v2860
    %4535 = vmatprep.subr.bf16.mxu0 %v2853
    %4536 = vmatpush1.bf16.msra.mxu0 %v2852
    %4537 = vmatprep.subr.bf16.mxu0 %v2845
    %4538 = vmatpush1.bf16.msra.mxu0 %v2844
    %4539 = vmatprep.subr.bf16.mxu0 %v2837
    %4540 = vmatpush1.bf16.msra.mxu0 %v2836
    %4541 = vmatprep.subr.bf16.mxu0 %v2957
    %4542 = vmatpush2.bf16.msra.mxu0 %v2956
    %4543 = vmatprep.subr.bf16.mxu0 %v2949
    %4544 = vmatpush2.bf16.msra.mxu0 %v2948
    %4545 = vmatprep.subr.bf16.mxu0 %v2941
    %4546 = vmatpush2.bf16.msra.mxu0 %v2940
    %4547 = vmatprep.subr.bf16.mxu0 %v2933
    %4548 = vmatpush2.bf16.msra.mxu0 %v2932
    %4549 = vmatprep.subr.bf16.mxu0 %v2925
    %4550 = vmatpush2.bf16.msra.mxu0 %v2924
    %4551 = vmatprep.subr.bf16.mxu0 %v2917
    %4552 = vmatpush2.bf16.msra.mxu0 %v2916
    %4553 = vmatprep.subr.bf16.mxu0 %v2909
    %4554 = vmatpush2.bf16.msra.mxu0 %v2908
    %4555 = vmatprep.subr.bf16.mxu0 %v2901
    %4556 = vmatpush2.bf16.msra.mxu0 %v2900
    %4557 = vmatprep.mubr.bf16.mxu0 %v736
    %4558 = vmatmul.mubr.bf16.gmra.mxu0 %v735
    %v4559 = vpop.f32.mrf.mxu0
    %v4560 = vadd.f32 %v4517, %v4559
    %v4561 = vpop.f32.mrf.mxu0
    %v4562 = vadd.f32 %v4519, %v4561
    %v4563 = vpop.f32.mrf.mxu0
    %v4564 = vadd.f32 %v4521, %v4563
    %v4565 = vpop.f32.mrf.mxu0
    %v4566 = vadd.f32 %v4523, %v4565
    %4567 = vdwg.mxu0
    %4568 = vmatprep.subr.bf16.mxu0 %v3021
    %4569 = vmatpush1.bf16.msra.mxu0 %v3020
    %4570 = vmatprep.subr.bf16.mxu0 %v3013
    %4571 = vmatpush1.bf16.msra.mxu0 %v3012
    %4572 = vmatprep.subr.bf16.mxu0 %v3005
    %4573 = vmatpush1.bf16.msra.mxu0 %v3004
    %4574 = vmatprep.subr.bf16.mxu0 %v2997
    %4575 = vmatpush1.bf16.msra.mxu0 %v2996
    %4576 = vmatprep.subr.bf16.mxu0 %v2989
    %4577 = vmatpush1.bf16.msra.mxu0 %v2988
    %4578 = vmatprep.subr.bf16.mxu0 %v2981
    %4579 = vmatpush1.bf16.msra.mxu0 %v2980
    %4580 = vmatprep.subr.bf16.mxu0 %v2973
    %4581 = vmatpush1.bf16.msra.mxu0 %v2972
    %4582 = vmatprep.subr.bf16.mxu0 %v2965
    %4583 = vmatpush1.bf16.msra.mxu0 %v2964
    %4584 = vmatprep.subr.bf16.mxu0 %v3085
    %4585 = vmatpush2.bf16.msra.mxu0 %v3084
    %4586 = vmatprep.subr.bf16.mxu0 %v3077
    %4587 = vmatpush2.bf16.msra.mxu0 %v3076
    %4588 = vmatprep.subr.bf16.mxu0 %v3069
    %4589 = vmatpush2.bf16.msra.mxu0 %v3068
    %4590 = vmatprep.subr.bf16.mxu0 %v3061
    %4591 = vmatpush2.bf16.msra.mxu0 %v3060
    %4592 = vmatprep.subr.bf16.mxu0 %v3053
    %4593 = vmatpush2.bf16.msra.mxu0 %v3052
    %4594 = vmatprep.subr.bf16.mxu0 %v3045
    %4595 = vmatpush2.bf16.msra.mxu0 %v3044
    %4596 = vmatprep.subr.bf16.mxu0 %v3037
    %4597 = vmatpush2.bf16.msra.mxu0 %v3036
    %4598 = vmatprep.subr.bf16.mxu0 %v3029
    %4599 = vmatpush2.bf16.msra.mxu0 %v3028
    %4600 = vmatprep.mubr.bf16.mxu0 %v738
    %4601 = vmatmul.mubr.bf16.gmra.mxu0 %v737
    %v4602 = vpop.f32.mrf.mxu0
    %v4603 = vadd.f32 %v4560, %v4602
    %v4604 = vpop.f32.mrf.mxu0
    %v4605 = vadd.f32 %v4562, %v4604
    %v4606 = vpop.f32.mrf.mxu0
    %v4607 = vadd.f32 %v4564, %v4606
    %v4608 = vpop.f32.mrf.mxu0
    %v4609 = vadd.f32 %v4566, %v4608
    %4610 = vdwg.mxu0
    %4611 = vmatprep.subr.bf16.mxu0 %v3149
    %4612 = vmatpush1.bf16.msra.mxu0 %v3148
    %4613 = vmatprep.subr.bf16.mxu0 %v3141
    %4614 = vmatpush1.bf16.msra.mxu0 %v3140
    %4615 = vmatprep.subr.bf16.mxu0 %v3133
    %4616 = vmatpush1.bf16.msra.mxu0 %v3132
    %4617 = vmatprep.subr.bf16.mxu0 %v3125
    %4618 = vmatpush1.bf16.msra.mxu0 %v3124
    %4619 = vmatprep.subr.bf16.mxu0 %v3117
    %4620 = vmatpush1.bf16.msra.mxu0 %v3116
    %4621 = vmatprep.subr.bf16.mxu0 %v3109
    %4622 = vmatpush1.bf16.msra.mxu0 %v3108
    %4623 = vmatprep.subr.bf16.mxu0 %v3101
    %4624 = vmatpush1.bf16.msra.mxu0 %v3100
    %4625 = vmatprep.subr.bf16.mxu0 %v3093
    %4626 = vmatpush1.bf16.msra.mxu0 %v3092
    %4627 = vmatprep.subr.bf16.mxu0 0
    %4628 = vmatpush2.bf16.msra.mxu0 0
    %4629 = vmatprep.subr.bf16.mxu0 0
    %4630 = vmatpush2.bf16.msra.mxu0 0
    %4631 = vmatprep.subr.bf16.mxu0 0
    %4632 = vmatpush2.bf16.msra.mxu0 0
    %4633 = vmatprep.subr.bf16.mxu0 0
    %4634 = vmatpush2.bf16.msra.mxu0 0
    %4635 = vmatprep.subr.bf16.mxu0 %v3181
    %4636 = vmatpush2.bf16.msra.mxu0 %v3180
    %4637 = vmatprep.subr.bf16.mxu0 %v3173
    %4638 = vmatpush2.bf16.msra.mxu0 %v3172
    %4639 = vmatprep.subr.bf16.mxu0 %v3165
    %4640 = vmatpush2.bf16.msra.mxu0 %v3164
    %4641 = vmatprep.subr.bf16.mxu0 %v3157
    %4642 = vmatpush2.bf16.msra.mxu0 %v3156
    %4643 = vmatprep.mubr.bf16.mxu0 %v3792
    %4644 = vmatmul.mubr.bf16.gmra.mxu0 %v739
    %v4645 = vpop.f32.mrf.mxu0
    %v4646 = vadd.f32 %v4603, %v4645
    %v4647 = vpop.f32.mrf.mxu0
    %v4648 = vadd.f32 %v4605, %v4647
    %v4649 = vpop.f32.mrf.mxu0
    %v4650 = vadd.f32 %v4607, %v4649
    %v4651 = vpop.f32.mrf.mxu0
    %v4652 = vadd.f32 %v4609, %v4651
    %4653 = vdwg.mxu0
    %v4654 = vmax.f32 %v4001, 0.0
    %v4655 = vmax.f32 %v4003, 0.0
    %v4656 = vmax.f32 %v4216, 0.0
    %v4657 = vmax.f32 %v4218, 0.0
    %v4658 = vmax.f32 %v4431, 0.0
    %v4659 = vmax.f32 %v4433, 0.0
    %v4660 = vmax.f32 %v4646, 0.0
    %v4661 = vmax.f32 %v4648, 0.0
    %v4662 = vmax.f32 %v4005, 0.0
    %v4663 = vmax.f32 %v4007, 0.0
    %v4664 = vmax.f32 %v4220, 0.0
    %v4665 = vmax.f32 %v4222, 0.0
    %v4666 = vmax.f32 %v4435, 0.0
    %v4667 = vmax.f32 %v4437, 0.0
    %v4668 = vmax.f32 %v4650, 0.0
    %v4669 = vmax.f32 %v4652, 0.0
    %v4670 = vpack.c.bf16 %v4662, %v4654
    %v4671 = vpack.c.bf16 %v4663, %v4655
    %v4672 = vpack.c.bf16 %v4664, %v4656
    %v4673 = vpack.c.bf16 %v4665, %v4657
    %v4674 = vpack.c.bf16 %v4666, %v4658
    %v4675 = vpack.c.bf16 %v4667, %v4659
    %v4676 = vpack.c.bf16 %v4668, %v4660
    %v4677 = vpack.c.bf16 %v4669, %v4661
    %v4678 = vld [vmem:[#allocation2] sm:$0xff]
    %v4679 = vld [vmem:[#allocation2 + $0x8] sm:$0xff]
    %v4680 = vld [vmem:[#allocation2 + $0x10] sm:$0xff]
    %v4681 = vld [vmem:[#allocation2 + $0x18] sm:$0xff]
    %v4682 = vld [vmem:[#allocation2 + $0x20] sm:$0xff]
    %v4683 = vld [vmem:[#allocation2 + $0x28] sm:$0xff]
    %v4684 = vld [vmem:[#allocation2 + $0x30] sm:$0xff]
    %v4685 = vld [vmem:[#allocation2 + $0x38] sm:$0xff]
    %v4686 = vld [vmem:[#allocation2 + $0x40] sm:$0xff]
    %v4687 = vld [vmem:[#allocation2 + $0x48] sm:$0xff]
    %v4688 = vld [vmem:[#allocation2 + $0x50] sm:$0xff]
    %v4689 = vld [vmem:[#allocation2 + $0x58] sm:$0xff]
    %v4690 = vld [vmem:[#allocation2 + $0x60] sm:$0xff]
    %v4691 = vld [vmem:[#allocation2 + $0x68] sm:$0xff]
    %v4692 = vld [vmem:[#allocation2 + $0x70] sm:$0xff]
    %v4693 = vld [vmem:[#allocation2 + $0x78] sm:$0xff]
    %v4694 = vld [vmem:[#allocation2 + $0x80] sm:$0xff]
    %v4695 = vld [vmem:[#allocation2 + $0x88] sm:$0xff]
    %v4696 = vld [vmem:[#allocation2 + $0x90] sm:$0xff]
    %v4697 = vld [vmem:[#allocation2 + $0x98] sm:$0xff]
    %v4698 = vld [vmem:[#allocation2 + $0xa0] sm:$0xff]
    %v4699 = vld [vmem:[#allocation2 + $0xa8] sm:$0xff]
    %v4700 = vld [vmem:[#allocation2 + $0xb0] sm:$0xff]
    %v4701 = vld [vmem:[#allocation2 + $0xb8] sm:$0xff]
    %v4702 = vld [vmem:[#allocation2 + $0xc0] sm:$0xff]
    %v4703 = vld [vmem:[#allocation2 + $0xc8] sm:$0xff]
    %v4704 = vld [vmem:[#allocation2 + $0xd0] sm:$0xff]
    %v4705 = vld [vmem:[#allocation2 + $0xd8] sm:$0xff]
    %v4706 = vld [vmem:[#allocation2 + $0xe0] sm:$0xff]
    %v4707 = vld [vmem:[#allocation2 + $0xe8] sm:$0xff]
    %v4708 = vld [vmem:[#allocation2 + $0xf0] sm:$0xff]
    %v4709 = vld [vmem:[#allocation2 + $0xf8] sm:$0xff]
    %v4710 = vld [vmem:[#allocation2 + $0x100] sm:$0xff]
    %v4711 = vld [vmem:[#allocation2 + $0x108] sm:$0xff]
    %v4712 = vld [vmem:[#allocation2 + $0x110] sm:$0xff]
    %v4713 = vld [vmem:[#allocation2 + $0x118] sm:$0xff]
    %v4714 = vld [vmem:[#allocation2 + $0x120] sm:$0xff]
    %v4715 = vld [vmem:[#allocation2 + $0x128] sm:$0xff]
    %v4716 = vld [vmem:[#allocation2 + $0x130] sm:$0xff]
    %v4717 = vld [vmem:[#allocation2 + $0x138] sm:$0xff]
    %v4718 = vld [vmem:[#allocation2 + $0x140] sm:$0xff]
    %v4719 = vld [vmem:[#allocation2 + $0x148] sm:$0xff]
    %v4720 = vld [vmem:[#allocation2 + $0x150] sm:$0xff]
    %v4721 = vld [vmem:[#allocation2 + $0x158] sm:$0xff]
    %v4722 = vld [vmem:[#allocation2 + $0x160] sm:$0xff]
    %v4723 = vld [vmem:[#allocation2 + $0x168] sm:$0xff]
    %v4724 = vld [vmem:[#allocation2 + $0x170] sm:$0xff]
    %v4725 = vld [vmem:[#allocation2 + $0x178] sm:$0xff]
    %v4726 = vld [vmem:[#allocation2 + $0x180] sm:$0xff]
    %v4727 = vld [vmem:[#allocation2 + $0x188] sm:$0xff]
    %v4728 = vld [vmem:[#allocation2 + $0x190] sm:$0xff]
    %v4729 = vld [vmem:[#allocation2 + $0x198] sm:$0xff]
    %v4730 = vld [vmem:[#allocation2 + $0x1a0] sm:$0xff]
    %v4731 = vld [vmem:[#allocation2 + $0x1a8] sm:$0xff]
    %v4732 = vld [vmem:[#allocation2 + $0x1b0] sm:$0xff]
    %v4733 = vld [vmem:[#allocation2 + $0x1b8] sm:$0xff]
    %v4734 = vld [vmem:[#allocation2 + $0x1c0] sm:$0xff]
    %v4735 = vld [vmem:[#allocation2 + $0x1c8] sm:$0xff]
    %v4736 = vld [vmem:[#allocation2 + $0x1d0] sm:$0xff]
    %v4737 = vld [vmem:[#allocation2 + $0x1d8] sm:$0xff]
    %v4738 = vld [vmem:[#allocation2 + $0x1e0] sm:$0xff]
    %v4739 = vld [vmem:[#allocation2 + $0x1e8] sm:$0xff]
    %v4740 = vld [vmem:[#allocation2 + $0x1f0] sm:$0xff]
    %v4741 = vld [vmem:[#allocation2 + $0x1f8] sm:$0xff]
    %v4742 = vld [vmem:[#allocation2 + $0x200] sm:$0xff]
    %v4743 = vld [vmem:[#allocation2 + $0x208] sm:$0xff]
    %v4744 = vld [vmem:[#allocation2 + $0x210] sm:$0xff]
    %v4745 = vld [vmem:[#allocation2 + $0x218] sm:$0xff]
    %v4746 = vld [vmem:[#allocation2 + $0x220] sm:$0xff]
    %v4747 = vld [vmem:[#allocation2 + $0x228] sm:$0xff]
    %v4748 = vld [vmem:[#allocation2 + $0x230] sm:$0xff]
    %v4749 = vld [vmem:[#allocation2 + $0x238] sm:$0xff]
    %v4750 = vld [vmem:[#allocation2 + $0x240] sm:$0xff]
    %v4751 = vld [vmem:[#allocation2 + $0x248] sm:$0xff]
    %v4752 = vld [vmem:[#allocation2 + $0x250] sm:$0xff]
    %v4753 = vld [vmem:[#allocation2 + $0x258] sm:$0xff]
    %v4754 = vld [vmem:[#allocation2 + $0x260] sm:$0xff]
    %v4755 = vld [vmem:[#allocation2 + $0x268] sm:$0xff]
    %v4756 = vld [vmem:[#allocation2 + $0x270] sm:$0xff]
    %v4757 = vld [vmem:[#allocation2 + $0x278] sm:$0xff]
    %v4758 = vld [vmem:[#allocation2 + $0x280] sm:$0xff]
    %v4759 = vld [vmem:[#allocation2 + $0x288] sm:$0xff]
    %v4760 = vld [vmem:[#allocation2 + $0x290] sm:$0xff]
    %v4761 = vld [vmem:[#allocation2 + $0x298] sm:$0xff]
    %v4762 = vld [vmem:[#allocation2 + $0x2a0] sm:$0xff]
    %v4763 = vld [vmem:[#allocation2 + $0x2a8] sm:$0xff]
    %v4764 = vld [vmem:[#allocation2 + $0x2b0] sm:$0xff]
    %v4765 = vld [vmem:[#allocation2 + $0x2b8] sm:$0xff]
    %v4766 = vld [vmem:[#allocation2 + $0x2c0] sm:$0xff]
    %v4767 = vld [vmem:[#allocation2 + $0x2c8] sm:$0xff]
    %v4768 = vld [vmem:[#allocation2 + $0x2d0] sm:$0xff]
    %v4769 = vld [vmem:[#allocation2 + $0x2d8] sm:$0xff]
    %v4770 = vld [vmem:[#allocation2 + $0x2e0] sm:$0xff]
    %v4771 = vld [vmem:[#allocation2 + $0x2e8] sm:$0xff]
    %v4772 = vld [vmem:[#allocation2 + $0x2f0] sm:$0xff]
    %v4773 = vld [vmem:[#allocation2 + $0x2f8] sm:$0xff]
    %v4774 = vld [vmem:[#allocation2 + $0x300] sm:$0xff]
    %v4775 = vld [vmem:[#allocation2 + $0x308] sm:$0xff]
    %v4776 = vld [vmem:[#allocation2 + $0x310] sm:$0xff]
    %v4777 = vld [vmem:[#allocation2 + $0x318] sm:$0xff]
    %v4778 = vld [vmem:[#allocation2 + $0x320] sm:$0xff]
    %v4779 = vld [vmem:[#allocation2 + $0x328] sm:$0xff]
    %v4780 = vld [vmem:[#allocation2 + $0x330] sm:$0xff]
    %v4781 = vld [vmem:[#allocation2 + $0x338] sm:$0xff]
    %v4782 = vld [vmem:[#allocation2 + $0x340] sm:$0xff]
    %v4783 = vld [vmem:[#allocation2 + $0x348] sm:$0xff]
    %v4784 = vld [vmem:[#allocation2 + $0x350] sm:$0xff]
    %v4785 = vld [vmem:[#allocation2 + $0x358] sm:$0xff]
    %v4786 = vld [vmem:[#allocation2 + $0x360] sm:$0xff]
    %v4787 = vld [vmem:[#allocation2 + $0x368] sm:$0xff]
    %v4788 = vld [vmem:[#allocation2 + $0x370] sm:$0xff]
    %v4789 = vld [vmem:[#allocation2 + $0x378] sm:$0xff]
    %v4790 = vld [vmem:[#allocation2 + $0x380] sm:$0xff]
    %v4791 = vld [vmem:[#allocation2 + $0x388] sm:$0xff]
    %v4792 = vld [vmem:[#allocation2 + $0x390] sm:$0xff]
    %v4793 = vld [vmem:[#allocation2 + $0x398] sm:$0xff]
    %v4794 = vld [vmem:[#allocation2 + $0x3a0] sm:$0xff]
    %v4795 = vld [vmem:[#allocation2 + $0x3a8] sm:$0xff]
    %v4796 = vld [vmem:[#allocation2 + $0x3b0] sm:$0xff]
    %v4797 = vld [vmem:[#allocation2 + $0x3b8] sm:$0xff]
    %v4798 = vld [vmem:[#allocation2 + $0x3c0] sm:$0xff]
    %v4799 = vld [vmem:[#allocation2 + $0x3c8] sm:$0xff]
    %v4800 = vld [vmem:[#allocation2 + $0x3d0] sm:$0xff]
    %v4801 = vld [vmem:[#allocation2 + $0x3d8] sm:$0xff]
    %v4802 = vld [vmem:[#allocation2 + $0x3e0] sm:$0xff]
    %v4803 = vld [vmem:[#allocation2 + $0x3e8] sm:$0xff]
    %v4804 = vld [vmem:[#allocation2 + $0x3f0] sm:$0xff]
    %v4805 = vld [vmem:[#allocation2 + $0x3f8] sm:$0xff]
    %v4806 = vld [vmem:[#allocation2 + $0x400] sm:$0xff]
    %v4807 = vld [vmem:[#allocation2 + $0x408] sm:$0xff]
    %v4808 = vld [vmem:[#allocation2 + $0x410] sm:$0xff]
    %v4809 = vld [vmem:[#allocation2 + $0x418] sm:$0xff]
    %v4810 = vld [vmem:[#allocation2 + $0x420] sm:$0xff]
    %v4811 = vld [vmem:[#allocation2 + $0x428] sm:$0xff]
    %v4812 = vld [vmem:[#allocation2 + $0x430] sm:$0xff]
    %v4813 = vld [vmem:[#allocation2 + $0x438] sm:$0xff]
    %v4814 = vld [vmem:[#allocation2 + $0x440] sm:$0xff]
    %v4815 = vld [vmem:[#allocation2 + $0x448] sm:$0xff]
    %v4816 = vld [vmem:[#allocation2 + $0x450] sm:$0xff]
    %v4817 = vld [vmem:[#allocation2 + $0x458] sm:$0xff]
    %v4818 = vld [vmem:[#allocation2 + $0x460] sm:$0xff]
    %v4819 = vld [vmem:[#allocation2 + $0x468] sm:$0xff]
    %v4820 = vld [vmem:[#allocation2 + $0x470] sm:$0xff]
    %v4821 = vld [vmem:[#allocation2 + $0x478] sm:$0xff]
    %v4822 = vld [vmem:[#allocation2 + $0x480] sm:$0xff]
    %v4823 = vld [vmem:[#allocation2 + $0x488] sm:$0xff]
    %v4824 = vld [vmem:[#allocation2 + $0x490] sm:$0xff]
    %v4825 = vld [vmem:[#allocation2 + $0x498] sm:$0xff]
    %v4826 = vld [vmem:[#allocation2 + $0x4a0] sm:$0xff]
    %v4827 = vld [vmem:[#allocation2 + $0x4a8] sm:$0xff]
    %v4828 = vld [vmem:[#allocation2 + $0x4b0] sm:$0xff]
    %v4829 = vld [vmem:[#allocation2 + $0x4b8] sm:$0xff]
    %v4830 = vld [vmem:[#allocation2 + $0x4c0] sm:$0xff]
    %v4831 = vld [vmem:[#allocation2 + $0x4c8] sm:$0xff]
    %v4832 = vld [vmem:[#allocation2 + $0x4d0] sm:$0xff]
    %v4833 = vld [vmem:[#allocation2 + $0x4d8] sm:$0xff]
    %v4834 = vld [vmem:[#allocation2 + $0x4e0] sm:$0xff]
    %v4835 = vld [vmem:[#allocation2 + $0x4e8] sm:$0xff]
    %v4836 = vld [vmem:[#allocation2 + $0x4f0] sm:$0xff]
    %v4837 = vld [vmem:[#allocation2 + $0x4f8] sm:$0xff]
    %v4838 = vld [vmem:[#allocation2 + $0x500] sm:$0xff]
    %v4839 = vld [vmem:[#allocation2 + $0x508] sm:$0xff]
    %v4840 = vld [vmem:[#allocation2 + $0x510] sm:$0xff]
    %v4841 = vld [vmem:[#allocation2 + $0x518] sm:$0xff]
    %v4842 = vld [vmem:[#allocation2 + $0x520] sm:$0xff]
    %v4843 = vld [vmem:[#allocation2 + $0x528] sm:$0xff]
    %v4844 = vld [vmem:[#allocation2 + $0x530] sm:$0xff]
    %v4845 = vld [vmem:[#allocation2 + $0x538] sm:$0xff]
    %v4846 = vld [vmem:[#allocation2 + $0x540] sm:$0xff]
    %v4847 = vld [vmem:[#allocation2 + $0x548] sm:$0xff]
    %v4848 = vld [vmem:[#allocation2 + $0x550] sm:$0xff]
    %v4849 = vld [vmem:[#allocation2 + $0x558] sm:$0xff]
    %v4850 = vld [vmem:[#allocation2 + $0x560] sm:$0xff]
    %v4851 = vld [vmem:[#allocation2 + $0x568] sm:$0xff]
    %v4852 = vld [vmem:[#allocation2 + $0x570] sm:$0xff]
    %v4853 = vld [vmem:[#allocation2 + $0x578] sm:$0xff]
    %v4854 = vld [vmem:[#allocation2 + $0x580] sm:$0xff]
    %v4855 = vld [vmem:[#allocation2 + $0x588] sm:$0xff]
    %v4856 = vld [vmem:[#allocation2 + $0x590] sm:$0xff]
    %v4857 = vld [vmem:[#allocation2 + $0x598] sm:$0xff]
    %v4858 = vld [vmem:[#allocation2 + $0x5a0] sm:$0xff]
    %v4859 = vld [vmem:[#allocation2 + $0x5a8] sm:$0xff]
    %v4860 = vld [vmem:[#allocation2 + $0x5b0] sm:$0xff]
    %v4861 = vld [vmem:[#allocation2 + $0x5b8] sm:$0xff]
    %v4862 = vld [vmem:[#allocation2 + $0x5c0] sm:$0xff]
    %v4863 = vld [vmem:[#allocation2 + $0x5c8] sm:$0xff]
    %v4864 = vld [vmem:[#allocation2 + $0x5d0] sm:$0xff]
    %v4865 = vld [vmem:[#allocation2 + $0x5d8] sm:$0xff]
    %v4866 = vld [vmem:[#allocation2 + $0x5e0] sm:$0xff]
    %v4867 = vld [vmem:[#allocation2 + $0x5e8] sm:$0xff]
    %v4868 = vld [vmem:[#allocation2 + $0x5f0] sm:$0xff]
    %v4869 = vld [vmem:[#allocation2 + $0x5f8] sm:$0xff]
    %v4870 = vld [vmem:[#allocation2 + $0x600] sm:$0xff]
    %v4871 = vld [vmem:[#allocation2 + $0x608] sm:$0xff]
    %v4872 = vld [vmem:[#allocation2 + $0x610] sm:$0xff]
    %v4873 = vld [vmem:[#allocation2 + $0x618] sm:$0xff]
    %v4874 = vld [vmem:[#allocation2 + $0x620] sm:$0xff]
    %v4875 = vld [vmem:[#allocation2 + $0x628] sm:$0xff]
    %v4876 = vld [vmem:[#allocation2 + $0x630] sm:$0xff]
    %v4877 = vld [vmem:[#allocation2 + $0x638] sm:$0xff]
    %v4878 = vld [vmem:[#allocation2 + $0x640] sm:$0xff]
    %v4879 = vld [vmem:[#allocation2 + $0x648] sm:$0xff]
    %v4880 = vld [vmem:[#allocation2 + $0x650] sm:$0xff]
    %v4881 = vld [vmem:[#allocation2 + $0x658] sm:$0xff]
    %v4882 = vld [vmem:[#allocation2 + $0x660] sm:$0xff]
    %v4883 = vld [vmem:[#allocation2 + $0x668] sm:$0xff]
    %v4884 = vld [vmem:[#allocation2 + $0x670] sm:$0xff]
    %v4885 = vld [vmem:[#allocation2 + $0x678] sm:$0xff]
    %v4886 = vld [vmem:[#allocation2 + $0x680] sm:$0xff]
    %v4887 = vld [vmem:[#allocation2 + $0x688] sm:$0xff]
    %v4888 = vld [vmem:[#allocation2 + $0x690] sm:$0xff]
    %v4889 = vld [vmem:[#allocation2 + $0x698] sm:$0xff]
    %v4890 = vld [vmem:[#allocation2 + $0x6a0] sm:$0xff]
    %v4891 = vld [vmem:[#allocation2 + $0x6a8] sm:$0xff]
    %v4892 = vld [vmem:[#allocation2 + $0x6b0] sm:$0xff]
    %v4893 = vld [vmem:[#allocation2 + $0x6b8] sm:$0xff]
    %v4894 = vld [vmem:[#allocation2 + $0x6c0] sm:$0xff]
    %v4895 = vld [vmem:[#allocation2 + $0x6c8] sm:$0xff]
    %v4896 = vld [vmem:[#allocation2 + $0x6d0] sm:$0xff]
    %v4897 = vld [vmem:[#allocation2 + $0x6d8] sm:$0xff]
    %v4898 = vld [vmem:[#allocation2 + $0x6e0] sm:$0xff]
    %v4899 = vld [vmem:[#allocation2 + $0x6e8] sm:$0xff]
    %v4900 = vld [vmem:[#allocation2 + $0x6f0] sm:$0xff]
    %v4901 = vld [vmem:[#allocation2 + $0x6f8] sm:$0xff]
    %v4902 = vld [vmem:[#allocation2 + $0x700] sm:$0xff]
    %v4903 = vld [vmem:[#allocation2 + $0x708] sm:$0xff]
    %v4904 = vld [vmem:[#allocation2 + $0x710] sm:$0xff]
    %v4905 = vld [vmem:[#allocation2 + $0x718] sm:$0xff]
    %v4906 = vld [vmem:[#allocation2 + $0x720] sm:$0xff]
    %v4907 = vld [vmem:[#allocation2 + $0x728] sm:$0xff]
    %v4908 = vld [vmem:[#allocation2 + $0x730] sm:$0xff]
    %v4909 = vld [vmem:[#allocation2 + $0x738] sm:$0xff]
    %v4910 = vld [vmem:[#allocation2 + $0x740] sm:$0xff]
    %v4911 = vld [vmem:[#allocation2 + $0x748] sm:$0xff]
    %v4912 = vld [vmem:[#allocation2 + $0x750] sm:$0xff]
    %v4913 = vld [vmem:[#allocation2 + $0x758] sm:$0xff]
    %v4914 = vld [vmem:[#allocation2 + $0x760] sm:$0xff]
    %v4915 = vld [vmem:[#allocation2 + $0x768] sm:$0xff]
    %v4916 = vld [vmem:[#allocation2 + $0x770] sm:$0xff]
    %v4917 = vld [vmem:[#allocation2 + $0x778] sm:$0xff]
    %v4918 = vld [vmem:[#allocation2 + $0x780] sm:$0xff]
    %v4919 = vld [vmem:[#allocation2 + $0x788] sm:$0xff]
    %v4920 = vld [vmem:[#allocation2 + $0x790] sm:$0xff]
    %v4921 = vld [vmem:[#allocation2 + $0x798] sm:$0xff]
    %v4922 = vld [vmem:[#allocation2 + $0x7a0] sm:$0xff]
    %v4923 = vld [vmem:[#allocation2 + $0x7a8] sm:$0xff]
    %v4924 = vld [vmem:[#allocation2 + $0x7b0] sm:$0xff]
    %v4925 = vld [vmem:[#allocation2 + $0x7b8] sm:$0xff]
    %v4926 = vld [vmem:[#allocation2 + $0x7c0] sm:$0xff]
    %v4927 = vld [vmem:[#allocation2 + $0x7c8] sm:$0xff]
    %v4928 = vld [vmem:[#allocation2 + $0x7d0] sm:$0xff]
    %v4929 = vld [vmem:[#allocation2 + $0x7d8] sm:$0xff]
    %v4930 = vld [vmem:[#allocation2 + $0x7e0] sm:$0xff]
    %v4931 = vld [vmem:[#allocation2 + $0x7e8] sm:$0xff]
    %v4932 = vld [vmem:[#allocation2 + $0x7f0] sm:$0xff]
    %v4933 = vld [vmem:[#allocation2 + $0x7f8] sm:$0xff]
    %v4934 = vld [vmem:[%s4] sm:$0xf]
    %v4936 = vlaneseq
    %v4937 = vshrl.u32 %v4936, 7
    %v4938 = vsub.s32 0, %v4937
    %v4939 = vrot.slane %v4934, %v4938
    %v4940 = vlaneseq
    %v4941 = vshrl.u32 %v4940, 7
    %v4942 = vsub.s32 1, %v4941
    %v4943 = vrot.slane %v4934, %v4942
    %v4944 = vlaneseq
    %v4945 = vshrl.u32 %v4944, 7
    %v4946 = vsub.s32 2, %v4945
    %v4947 = vrot.slane %v4934, %v4946
    %v4948 = vlaneseq
    %v4949 = vshrl.u32 %v4948, 7
    %v4950 = vsub.s32 3, %v4949
    %v4951 = vrot.slane %v4934, %v4950
    %v5212 = vunpack.c.l.b16 %v4678
    %v5213 = vunpack.c.h.b16 %v4678
    %v5214 = vunpack.c.l.b16 %v4679
    %v5215 = vunpack.c.h.b16 %v4679
    %v5216 = vunpack.c.l.b16 %v4680
    %v5217 = vunpack.c.h.b16 %v4680
    %v5218 = vunpack.c.l.b16 %v4681
    %v5219 = vunpack.c.h.b16 %v4681
    %v5220 = vunpack.c.l.b16 %v4682
    %v5221 = vunpack.c.h.b16 %v4682
    %v5222 = vunpack.c.l.b16 %v4683
    %v5223 = vunpack.c.h.b16 %v4683
    %v5224 = vunpack.c.l.b16 %v4684
    %v5225 = vunpack.c.h.b16 %v4684
    %v5226 = vunpack.c.l.b16 %v4685
    %v5227 = vunpack.c.h.b16 %v4685
    %v5228 = vunpack.c.l.b16 %v4686
    %v5229 = vunpack.c.h.b16 %v4686
    %v5230 = vunpack.c.l.b16 %v4687
    %v5231 = vunpack.c.h.b16 %v4687
    %v5232 = vunpack.c.l.b16 %v4688
    %v5233 = vunpack.c.h.b16 %v4688
    %v5234 = vunpack.c.l.b16 %v4689
    %v5235 = vunpack.c.h.b16 %v4689
    %v5236 = vunpack.c.l.b16 %v4690
    %v5237 = vunpack.c.h.b16 %v4690
    %v5238 = vunpack.c.l.b16 %v4691
    %v5239 = vunpack.c.h.b16 %v4691
    %v5240 = vunpack.c.l.b16 %v4692
    %v5241 = vunpack.c.h.b16 %v4692
    %v5242 = vunpack.c.l.b16 %v4693
    %v5243 = vunpack.c.h.b16 %v4693
    %v5244 = vunpack.c.l.b16 %v4694
    %v5245 = vunpack.c.h.b16 %v4694
    %v5246 = vunpack.c.l.b16 %v4695
    %v5247 = vunpack.c.h.b16 %v4695
    %v5248 = vunpack.c.l.b16 %v4696
    %v5249 = vunpack.c.h.b16 %v4696
    %v5250 = vunpack.c.l.b16 %v4697
    %v5251 = vunpack.c.h.b16 %v4697
    %v5252 = vunpack.c.l.b16 %v4698
    %v5253 = vunpack.c.h.b16 %v4698
    %v5254 = vunpack.c.l.b16 %v4699
    %v5255 = vunpack.c.h.b16 %v4699
    %v5256 = vunpack.c.l.b16 %v4700
    %v5257 = vunpack.c.h.b16 %v4700
    %v5258 = vunpack.c.l.b16 %v4701
    %v5259 = vunpack.c.h.b16 %v4701
    %v5260 = vunpack.c.l.b16 %v4702
    %v5261 = vunpack.c.h.b16 %v4702
    %v5262 = vunpack.c.l.b16 %v4703
    %v5263 = vunpack.c.h.b16 %v4703
    %v5264 = vunpack.c.l.b16 %v4704
    %v5265 = vunpack.c.h.b16 %v4704
    %v5266 = vunpack.c.l.b16 %v4705
    %v5267 = vunpack.c.h.b16 %v4705
    %v5268 = vunpack.c.l.b16 %v4706
    %v5269 = vunpack.c.h.b16 %v4706
    %v5270 = vunpack.c.l.b16 %v4707
    %v5271 = vunpack.c.h.b16 %v4707
    %v5272 = vunpack.c.l.b16 %v4708
    %v5273 = vunpack.c.h.b16 %v4708
    %v5274 = vunpack.c.l.b16 %v4709
    %v5275 = vunpack.c.h.b16 %v4709
    %v5276 = vunpack.c.l.b16 %v4710
    %v5277 = vunpack.c.h.b16 %v4710
    %v5278 = vunpack.c.l.b16 %v4711
    %v5279 = vunpack.c.h.b16 %v4711
    %v5280 = vunpack.c.l.b16 %v4712
    %v5281 = vunpack.c.h.b16 %v4712
    %v5282 = vunpack.c.l.b16 %v4713
    %v5283 = vunpack.c.h.b16 %v4713
    %v5284 = vunpack.c.l.b16 %v4714
    %v5285 = vunpack.c.h.b16 %v4714
    %v5286 = vunpack.c.l.b16 %v4715
    %v5287 = vunpack.c.h.b16 %v4715
    %v5288 = vunpack.c.l.b16 %v4716
    %v5289 = vunpack.c.h.b16 %v4716
    %v5290 = vunpack.c.l.b16 %v4717
    %v5291 = vunpack.c.h.b16 %v4717
    %v5292 = vunpack.c.l.b16 %v4718
    %v5293 = vunpack.c.h.b16 %v4718
    %v5294 = vunpack.c.l.b16 %v4719
    %v5295 = vunpack.c.h.b16 %v4719
    %v5296 = vunpack.c.l.b16 %v4720
    %v5297 = vunpack.c.h.b16 %v4720
    %v5298 = vunpack.c.l.b16 %v4721
    %v5299 = vunpack.c.h.b16 %v4721
    %v5300 = vunpack.c.l.b16 %v4722
    %v5301 = vunpack.c.h.b16 %v4722
    %v5302 = vunpack.c.l.b16 %v4723
    %v5303 = vunpack.c.h.b16 %v4723
    %v5304 = vunpack.c.l.b16 %v4724
    %v5305 = vunpack.c.h.b16 %v4724
    %v5306 = vunpack.c.l.b16 %v4725
    %v5307 = vunpack.c.h.b16 %v4725
    %v5308 = vunpack.c.l.b16 %v4726
    %v5309 = vunpack.c.h.b16 %v4726
    %v5310 = vunpack.c.l.b16 %v4727
    %v5311 = vunpack.c.h.b16 %v4727
    %v5312 = vunpack.c.l.b16 %v4728
    %v5313 = vunpack.c.h.b16 %v4728
    %v5314 = vunpack.c.l.b16 %v4729
    %v5315 = vunpack.c.h.b16 %v4729
    %v5316 = vunpack.c.l.b16 %v4730
    %v5317 = vunpack.c.h.b16 %v4730
    %v5318 = vunpack.c.l.b16 %v4731
    %v5319 = vunpack.c.h.b16 %v4731
    %v5320 = vunpack.c.l.b16 %v4732
    %v5321 = vunpack.c.h.b16 %v4732
    %v5322 = vunpack.c.l.b16 %v4733
    %v5323 = vunpack.c.h.b16 %v4733
    %v5324 = vunpack.c.l.b16 %v4734
    %v5325 = vunpack.c.h.b16 %v4734
    %v5326 = vunpack.c.l.b16 %v4735
    %v5327 = vunpack.c.h.b16 %v4735
    %v5328 = vunpack.c.l.b16 %v4736
    %v5329 = vunpack.c.h.b16 %v4736
    %v5330 = vunpack.c.l.b16 %v4737
    %v5331 = vunpack.c.h.b16 %v4737
    %v5332 = vunpack.c.l.b16 %v4738
    %v5333 = vunpack.c.h.b16 %v4738
    %v5334 = vunpack.c.l.b16 %v4739
    %v5335 = vunpack.c.h.b16 %v4739
    %v5336 = vunpack.c.l.b16 %v4740
    %v5337 = vunpack.c.h.b16 %v4740
    %v5338 = vunpack.c.l.b16 %v4741
    %v5339 = vunpack.c.h.b16 %v4741
    %v5340 = vunpack.c.l.b16 %v4742
    %v5341 = vunpack.c.h.b16 %v4742
    %v5342 = vunpack.c.l.b16 %v4743
    %v5343 = vunpack.c.h.b16 %v4743
    %v5344 = vunpack.c.l.b16 %v4744
    %v5345 = vunpack.c.h.b16 %v4744
    %v5346 = vunpack.c.l.b16 %v4745
    %v5347 = vunpack.c.h.b16 %v4745
    %v5348 = vunpack.c.l.b16 %v4746
    %v5349 = vunpack.c.h.b16 %v4746
    %v5350 = vunpack.c.l.b16 %v4747
    %v5351 = vunpack.c.h.b16 %v4747
    %v5352 = vunpack.c.l.b16 %v4748
    %v5353 = vunpack.c.h.b16 %v4748
    %v5354 = vunpack.c.l.b16 %v4749
    %v5355 = vunpack.c.h.b16 %v4749
    %v5356 = vunpack.c.l.b16 %v4750
    %v5357 = vunpack.c.h.b16 %v4750
    %v5358 = vunpack.c.l.b16 %v4751
    %v5359 = vunpack.c.h.b16 %v4751
    %v5360 = vunpack.c.l.b16 %v4752
    %v5361 = vunpack.c.h.b16 %v4752
    %v5362 = vunpack.c.l.b16 %v4753
    %v5363 = vunpack.c.h.b16 %v4753
    %v5364 = vunpack.c.l.b16 %v4754
    %v5365 = vunpack.c.h.b16 %v4754
    %v5366 = vunpack.c.l.b16 %v4755
    %v5367 = vunpack.c.h.b16 %v4755
    %v5368 = vunpack.c.l.b16 %v4756
    %v5369 = vunpack.c.h.b16 %v4756
    %v5370 = vunpack.c.l.b16 %v4757
    %v5371 = vunpack.c.h.b16 %v4757
    %v5372 = vunpack.c.l.b16 %v4758
    %v5373 = vunpack.c.h.b16 %v4758
    %v5374 = vunpack.c.l.b16 %v4759
    %v5375 = vunpack.c.h.b16 %v4759
    %v5376 = vunpack.c.l.b16 %v4760
    %v5377 = vunpack.c.h.b16 %v4760
    %v5378 = vunpack.c.l.b16 %v4761
    %v5379 = vunpack.c.h.b16 %v4761
    %v5380 = vunpack.c.l.b16 %v4762
    %v5381 = vunpack.c.h.b16 %v4762
    %v5382 = vunpack.c.l.b16 %v4763
    %v5383 = vunpack.c.h.b16 %v4763
    %v5384 = vunpack.c.l.b16 %v4764
    %v5385 = vunpack.c.h.b16 %v4764
    %v5386 = vunpack.c.l.b16 %v4765
    %v5387 = vunpack.c.h.b16 %v4765
    %v5388 = vunpack.c.l.b16 %v4766
    %v5389 = vunpack.c.h.b16 %v4766
    %v5390 = vunpack.c.l.b16 %v4767
    %v5391 = vunpack.c.h.b16 %v4767
    %v5392 = vunpack.c.l.b16 %v4768
    %v5393 = vunpack.c.h.b16 %v4768
    %v5394 = vunpack.c.l.b16 %v4769
    %v5395 = vunpack.c.h.b16 %v4769
    %v5396 = vunpack.c.l.b16 %v4770
    %v5397 = vunpack.c.h.b16 %v4770
    %v5398 = vunpack.c.l.b16 %v4771
    %v5399 = vunpack.c.h.b16 %v4771
    %v5400 = vunpack.c.l.b16 %v4772
    %v5401 = vunpack.c.h.b16 %v4772
    %v5402 = vunpack.c.l.b16 %v4773
    %v5403 = vunpack.c.h.b16 %v4773
    %v5404 = vunpack.c.l.b16 %v4774
    %v5405 = vunpack.c.h.b16 %v4774
    %v5406 = vunpack.c.l.b16 %v4775
    %v5407 = vunpack.c.h.b16 %v4775
    %v5408 = vunpack.c.l.b16 %v4776
    %v5409 = vunpack.c.h.b16 %v4776
    %v5410 = vunpack.c.l.b16 %v4777
    %v5411 = vunpack.c.h.b16 %v4777
    %v5412 = vunpack.c.l.b16 %v4778
    %v5413 = vunpack.c.h.b16 %v4778
    %v5414 = vunpack.c.l.b16 %v4779
    %v5415 = vunpack.c.h.b16 %v4779
    %v5416 = vunpack.c.l.b16 %v4780
    %v5417 = vunpack.c.h.b16 %v4780
    %v5418 = vunpack.c.l.b16 %v4781
    %v5419 = vunpack.c.h.b16 %v4781
    %v5420 = vunpack.c.l.b16 %v4782
    %v5421 = vunpack.c.h.b16 %v4782
    %v5422 = vunpack.c.l.b16 %v4783
    %v5423 = vunpack.c.h.b16 %v4783
    %v5424 = vunpack.c.l.b16 %v4784
    %v5425 = vunpack.c.h.b16 %v4784
    %v5426 = vunpack.c.l.b16 %v4785
    %v5427 = vunpack.c.h.b16 %v4785
    %v5428 = vunpack.c.l.b16 %v4786
    %v5429 = vunpack.c.h.b16 %v4786
    %v5430 = vunpack.c.l.b16 %v4787
    %v5431 = vunpack.c.h.b16 %v4787
    %v5432 = vunpack.c.l.b16 %v4788
    %v5433 = vunpack.c.h.b16 %v4788
    %v5434 = vunpack.c.l.b16 %v4789
    %v5435 = vunpack.c.h.b16 %v4789
    %v5436 = vunpack.c.l.b16 %v4790
    %v5437 = vunpack.c.h.b16 %v4790
    %v5438 = vunpack.c.l.b16 %v4791
    %v5439 = vunpack.c.h.b16 %v4791
    %v5440 = vunpack.c.l.b16 %v4792
    %v5441 = vunpack.c.h.b16 %v4792
    %v5442 = vunpack.c.l.b16 %v4793
    %v5443 = vunpack.c.h.b16 %v4793
    %v5444 = vunpack.c.l.b16 %v4794
    %v5445 = vunpack.c.h.b16 %v4794
    %v5446 = vunpack.c.l.b16 %v4795
    %v5447 = vunpack.c.h.b16 %v4795
    %v5448 = vunpack.c.l.b16 %v4796
    %v5449 = vunpack.c.h.b16 %v4796
    %v5450 = vunpack.c.l.b16 %v4797
    %v5451 = vunpack.c.h.b16 %v4797
    %v5452 = vunpack.c.l.b16 %v4798
    %v5453 = vunpack.c.h.b16 %v4798
    %v5454 = vunpack.c.l.b16 %v4799
    %v5455 = vunpack.c.h.b16 %v4799
    %v5456 = vunpack.c.l.b16 %v4800
    %v5457 = vunpack.c.h.b16 %v4800
    %v5458 = vunpack.c.l.b16 %v4801
    %v5459 = vunpack.c.h.b16 %v4801
    %v5460 = vunpack.c.l.b16 %v4802
    %v5461 = vunpack.c.h.b16 %v4802
    %v5462 = vunpack.c.l.b16 %v4803
    %v5463 = vunpack.c.h.b16 %v4803
    %v5464 = vunpack.c.l.b16 %v4804
    %v5465 = vunpack.c.h.b16 %v4804
    %v5466 = vunpack.c.l.b16 %v4805
    %v5467 = vunpack.c.h.b16 %v4805
    %v5468 = vunpack.c.l.b16 %v4806
    %v5469 = vunpack.c.h.b16 %v4806
    %v5470 = vunpack.c.l.b16 %v4807
    %v5471 = vunpack.c.h.b16 %v4807
    %v5472 = vunpack.c.l.b16 %v4808
    %v5473 = vunpack.c.h.b16 %v4808
    %v5474 = vunpack.c.l.b16 %v4809
    %v5475 = vunpack.c.h.b16 %v4809
    %v5476 = vunpack.c.l.b16 %v4810
    %v5477 = vunpack.c.h.b16 %v4810
    %v5478 = vunpack.c.l.b16 %v4811
    %v5479 = vunpack.c.h.b16 %v4811
    %v5480 = vunpack.c.l.b16 %v4812
    %v5481 = vunpack.c.h.b16 %v4812
    %v5482 = vunpack.c.l.b16 %v4813
    %v5483 = vunpack.c.h.b16 %v4813
    %v5484 = vunpack.c.l.b16 %v4814
    %v5485 = vunpack.c.h.b16 %v4814
    %v5486 = vunpack.c.l.b16 %v4815
    %v5487 = vunpack.c.h.b16 %v4815
    %v5488 = vunpack.c.l.b16 %v4816
    %v5489 = vunpack.c.h.b16 %v4816
    %v5490 = vunpack.c.l.b16 %v4817
    %v5491 = vunpack.c.h.b16 %v4817
    %v5492 = vunpack.c.l.b16 %v4818
    %v5493 = vunpack.c.h.b16 %v4818
    %v5494 = vunpack.c.l.b16 %v4819
    %v5495 = vunpack.c.h.b16 %v4819
    %v5496 = vunpack.c.l.b16 %v4820
    %v5497 = vunpack.c.h.b16 %v4820
    %v5498 = vunpack.c.l.b16 %v4821
    %v5499 = vunpack.c.h.b16 %v4821
    %v5500 = vunpack.c.l.b16 %v4822
    %v5501 = vunpack.c.h.b16 %v4822
    %v5502 = vunpack.c.l.b16 %v4823
    %v5503 = vunpack.c.h.b16 %v4823
    %v5504 = vunpack.c.l.b16 %v4824
    %v5505 = vunpack.c.h.b16 %v4824
    %v5506 = vunpack.c.l.b16 %v4825
    %v5507 = vunpack.c.h.b16 %v4825
    %v5508 = vunpack.c.l.b16 %v4826
    %v5509 = vunpack.c.h.b16 %v4826
    %v5510 = vunpack.c.l.b16 %v4827
    %v5511 = vunpack.c.h.b16 %v4827
    %v5512 = vunpack.c.l.b16 %v4828
    %v5513 = vunpack.c.h.b16 %v4828
    %v5514 = vunpack.c.l.b16 %v4829
    %v5515 = vunpack.c.h.b16 %v4829
    %v5516 = vunpack.c.l.b16 %v4830
    %v5517 = vunpack.c.h.b16 %v4830
    %v5518 = vunpack.c.l.b16 %v4831
    %v5519 = vunpack.c.h.b16 %v4831
    %v5520 = vunpack.c.l.b16 %v4832
    %v5521 = vunpack.c.h.b16 %v4832
    %v5522 = vunpack.c.l.b16 %v4833
    %v5523 = vunpack.c.h.b16 %v4833
    %v5524 = vunpack.c.l.b16 %v4834
    %v5525 = vunpack.c.h.b16 %v4834
    %v5526 = vunpack.c.l.b16 %v4835
    %v5527 = vunpack.c.h.b16 %v4835
    %v5528 = vunpack.c.l.b16 %v4836
    %v5529 = vunpack.c.h.b16 %v4836
    %v5530 = vunpack.c.l.b16 %v4837
    %v5531 = vunpack.c.h.b16 %v4837
    %v5532 = vunpack.c.l.b16 %v4838
    %v5533 = vunpack.c.h.b16 %v4838
    %v5534 = vunpack.c.l.b16 %v4839
    %v5535 = vunpack.c.h.b16 %v4839
    %v5536 = vunpack.c.l.b16 %v4840
    %v5537 = vunpack.c.h.b16 %v4840
    %v5538 = vunpack.c.l.b16 %v4841
    %v5539 = vunpack.c.h.b16 %v4841
    %v5540 = vunpack.c.l.b16 %v4842
    %v5541 = vunpack.c.h.b16 %v4842
    %v5542 = vunpack.c.l.b16 %v4843
    %v5543 = vunpack.c.h.b16 %v4843
    %v5544 = vunpack.c.l.b16 %v4844
    %v5545 = vunpack.c.h.b16 %v4844
    %v5546 = vunpack.c.l.b16 %v4845
    %v5547 = vunpack.c.h.b16 %v4845
    %v5548 = vunpack.c.l.b16 %v4846
    %v5549 = vunpack.c.h.b16 %v4846
    %v5550 = vunpack.c.l.b16 %v4847
    %v5551 = vunpack.c.h.b16 %v4847
    %v5552 = vunpack.c.l.b16 %v4848
    %v5553 = vunpack.c.h.b16 %v4848
    %v5554 = vunpack.c.l.b16 %v4849
    %v5555 = vunpack.c.h.b16 %v4849
    %v5556 = vunpack.c.l.b16 %v4850
    %v5557 = vunpack.c.h.b16 %v4850
    %v5558 = vunpack.c.l.b16 %v4851
    %v5559 = vunpack.c.h.b16 %v4851
    %v5560 = vunpack.c.l.b16 %v4852
    %v5561 = vunpack.c.h.b16 %v4852
    %v5562 = vunpack.c.l.b16 %v4853
    %v5563 = vunpack.c.h.b16 %v4853
    %v5564 = vunpack.c.l.b16 %v4854
    %v5565 = vunpack.c.h.b16 %v4854
    %v5566 = vunpack.c.l.b16 %v4855
    %v5567 = vunpack.c.h.b16 %v4855
    %v5568 = vunpack.c.l.b16 %v4856
    %v5569 = vunpack.c.h.b16 %v4856
    %v5570 = vunpack.c.l.b16 %v4857
    %v5571 = vunpack.c.h.b16 %v4857
    %v5572 = vunpack.c.l.b16 %v4858
    %v5573 = vunpack.c.h.b16 %v4858
    %v5574 = vunpack.c.l.b16 %v4859
    %v5575 = vunpack.c.h.b16 %v4859
    %v5576 = vunpack.c.l.b16 %v4860
    %v5577 = vunpack.c.h.b16 %v4860
    %v5578 = vunpack.c.l.b16 %v4861
    %v5579 = vunpack.c.h.b16 %v4861
    %v5580 = vunpack.c.l.b16 %v4862
    %v5581 = vunpack.c.h.b16 %v4862
    %v5582 = vunpack.c.l.b16 %v4863
    %v5583 = vunpack.c.h.b16 %v4863
    %v5584 = vunpack.c.l.b16 %v4864
    %v5585 = vunpack.c.h.b16 %v4864
    %v5586 = vunpack.c.l.b16 %v4865
    %v5587 = vunpack.c.h.b16 %v4865
    %v5588 = vunpack.c.l.b16 %v4866
    %v5589 = vunpack.c.h.b16 %v4866
    %v5590 = vunpack.c.l.b16 %v4867
    %v5591 = vunpack.c.h.b16 %v4867
    %v5592 = vunpack.c.l.b16 %v4868
    %v5593 = vunpack.c.h.b16 %v4868
    %v5594 = vunpack.c.l.b16 %v4869
    %v5595 = vunpack.c.h.b16 %v4869
    %v5596 = vunpack.c.l.b16 %v4870
    %v5597 = vunpack.c.h.b16 %v4870
    %v5598 = vunpack.c.l.b16 %v4871
    %v5599 = vunpack.c.h.b16 %v4871
    %v5600 = vunpack.c.l.b16 %v4872
    %v5601 = vunpack.c.h.b16 %v4872
    %v5602 = vunpack.c.l.b16 %v4873
    %v5603 = vunpack.c.h.b16 %v4873
    %v5604 = vunpack.c.l.b16 %v4874
    %v5605 = vunpack.c.h.b16 %v4874
    %v5606 = vunpack.c.l.b16 %v4875
    %v5607 = vunpack.c.h.b16 %v4875
    %v5608 = vunpack.c.l.b16 %v4876
    %v5609 = vunpack.c.h.b16 %v4876
    %v5610 = vunpack.c.l.b16 %v4877
    %v5611 = vunpack.c.h.b16 %v4877
    %v5612 = vunpack.c.l.b16 %v4878
    %v5613 = vunpack.c.h.b16 %v4878
    %v5614 = vunpack.c.l.b16 %v4879
    %v5615 = vunpack.c.h.b16 %v4879
    %v5616 = vunpack.c.l.b16 %v4880
    %v5617 = vunpack.c.h.b16 %v4880
    %v5618 = vunpack.c.l.b16 %v4881
    %v5619 = vunpack.c.h.b16 %v4881
    %v5620 = vunpack.c.l.b16 %v4882
    %v5621 = vunpack.c.h.b16 %v4882
    %v5622 = vunpack.c.l.b16 %v4883
    %v5623 = vunpack.c.h.b16 %v4883
    %v5624 = vunpack.c.l.b16 %v4884
    %v5625 = vunpack.c.h.b16 %v4884
    %v5626 = vunpack.c.l.b16 %v4885
    %v5627 = vunpack.c.h.b16 %v4885
    %v5628 = vunpack.c.l.b16 %v4886
    %v5629 = vunpack.c.h.b16 %v4886
    %v5630 = vunpack.c.l.b16 %v4887
    %v5631 = vunpack.c.h.b16 %v4887
    %v5632 = vunpack.c.l.b16 %v4888
    %v5633 = vunpack.c.h.b16 %v4888
    %v5634 = vunpack.c.l.b16 %v4889
    %v5635 = vunpack.c.h.b16 %v4889
    %v5636 = vunpack.c.l.b16 %v4890
    %v5637 = vunpack.c.h.b16 %v4890
    %v5638 = vunpack.c.l.b16 %v4891
    %v5639 = vunpack.c.h.b16 %v4891
    %v5640 = vunpack.c.l.b16 %v4892
    %v5641 = vunpack.c.h.b16 %v4892
    %v5642 = vunpack.c.l.b16 %v4893
    %v5643 = vunpack.c.h.b16 %v4893
    %v5644 = vunpack.c.l.b16 %v4894
    %v5645 = vunpack.c.h.b16 %v4894
    %v5646 = vunpack.c.l.b16 %v4895
    %v5647 = vunpack.c.h.b16 %v4895
    %v5648 = vunpack.c.l.b16 %v4896
    %v5649 = vunpack.c.h.b16 %v4896
    %v5650 = vunpack.c.l.b16 %v4897
    %v5651 = vunpack.c.h.b16 %v4897
    %v5652 = vunpack.c.l.b16 %v4898
    %v5653 = vunpack.c.h.b16 %v4898
    %v5654 = vunpack.c.l.b16 %v4899
    %v5655 = vunpack.c.h.b16 %v4899
    %v5656 = vunpack.c.l.b16 %v4900
    %v5657 = vunpack.c.h.b16 %v4900
    %v5658 = vunpack.c.l.b16 %v4901
    %v5659 = vunpack.c.h.b16 %v4901
    %v5660 = vunpack.c.l.b16 %v4902
    %v5661 = vunpack.c.h.b16 %v4902
    %v5662 = vunpack.c.l.b16 %v4903
    %v5663 = vunpack.c.h.b16 %v4903
    %v5664 = vunpack.c.l.b16 %v4904
    %v5665 = vunpack.c.h.b16 %v4904
    %v5666 = vunpack.c.l.b16 %v4905
    %v5667 = vunpack.c.h.b16 %v4905
    %v5668 = vunpack.c.l.b16 %v4906
    %v5669 = vunpack.c.h.b16 %v4906
    %v5670 = vunpack.c.l.b16 %v4907
    %v5671 = vunpack.c.h.b16 %v4907
    %v5672 = vunpack.c.l.b16 %v4908
    %v5673 = vunpack.c.h.b16 %v4908
    %v5674 = vunpack.c.l.b16 %v4909
    %v5675 = vunpack.c.h.b16 %v4909
    %v5676 = vunpack.c.l.b16 %v4910
    %v5677 = vunpack.c.h.b16 %v4910
    %v5678 = vunpack.c.l.b16 %v4911
    %v5679 = vunpack.c.h.b16 %v4911
    %v5680 = vunpack.c.l.b16 %v4912
    %v5681 = vunpack.c.h.b16 %v4912
    %v5682 = vunpack.c.l.b16 %v4913
    %v5683 = vunpack.c.h.b16 %v4913
    %v5684 = vunpack.c.l.b16 %v4914
    %v5685 = vunpack.c.h.b16 %v4914
    %v5686 = vunpack.c.l.b16 %v4915
    %v5687 = vunpack.c.h.b16 %v4915
    %v5688 = vunpack.c.l.b16 %v4916
    %v5689 = vunpack.c.h.b16 %v4916
    %v5690 = vunpack.c.l.b16 %v4917
    %v5691 = vunpack.c.h.b16 %v4917
    %v5692 = vunpack.c.l.b16 %v4918
    %v5693 = vunpack.c.h.b16 %v4918
    %v5694 = vunpack.c.l.b16 %v4919
    %v5695 = vunpack.c.h.b16 %v4919
    %v5696 = vunpack.c.l.b16 %v4920
    %v5697 = vunpack.c.h.b16 %v4920
    %v5698 = vunpack.c.l.b16 %v4921
    %v5699 = vunpack.c.h.b16 %v4921
    %v5700 = vunpack.c.l.b16 %v4922
    %v5701 = vunpack.c.h.b16 %v4922
    %v5702 = vunpack.c.l.b16 %v4923
    %v5703 = vunpack.c.h.b16 %v4923
    %v5704 = vunpack.c.l.b16 %v4924
    %v5705 = vunpack.c.h.b16 %v4924
    %v5706 = vunpack.c.l.b16 %v4925
    %v5707 = vunpack.c.h.b16 %v4925
    %v5708 = vunpack.c.l.b16 %v4926
    %v5709 = vunpack.c.h.b16 %v4926
    %v5710 = vunpack.c.l.b16 %v4927
    %v5711 = vunpack.c.h.b16 %v4927
    %v5712 = vunpack.c.l.b16 %v4928
    %v5713 = vunpack.c.h.b16 %v4928
    %v5714 = vunpack.c.l.b16 %v4929
    %v5715 = vunpack.c.h.b16 %v4929
    %v5716 = vunpack.c.l.b16 %v4930
    %v5717 = vunpack.c.h.b16 %v4930
    %v5718 = vunpack.c.l.b16 %v4931
    %v5719 = vunpack.c.h.b16 %v4931
    %v5720 = vunpack.c.l.b16 %v4932
    %v5721 = vunpack.c.h.b16 %v4932
    %v5722 = vunpack.c.l.b16 %v4933
    %v5723 = vunpack.c.h.b16 %v4933
    %v5724 = vpack.c.b16 %v5216, %v5212
    %v5725 = vpack.c.b16 %v5217, %v5213
    %v5726 = vpack.c.b16 %v5218, %v5214
    %v5727 = vpack.c.b16 %v5219, %v5215
    %v5728 = vpack.c.b16 %v5224, %v5220
    %v5729 = vpack.c.b16 %v5225, %v5221
    %v5730 = vpack.c.b16 %v5226, %v5222
    %v5731 = vpack.c.b16 %v5227, %v5223
    %v5732 = vpack.c.b16 %v5232, %v5228
    %v5733 = vpack.c.b16 %v5233, %v5229
    %v5734 = vpack.c.b16 %v5234, %v5230
    %v5735 = vpack.c.b16 %v5235, %v5231
    %v5736 = vpack.c.b16 %v5240, %v5236
    %v5737 = vpack.c.b16 %v5241, %v5237
    %v5738 = vpack.c.b16 %v5242, %v5238
    %v5739 = vpack.c.b16 %v5243, %v5239
    %v5740 = vpack.c.b16 %v5248, %v5244
    %v5741 = vpack.c.b16 %v5249, %v5245
    %v5742 = vpack.c.b16 %v5250, %v5246
    %v5743 = vpack.c.b16 %v5251, %v5247
    %v5744 = vpack.c.b16 %v5256, %v5252
    %v5745 = vpack.c.b16 %v5257, %v5253
    %v5746 = vpack.c.b16 %v5258, %v5254
    %v5747 = vpack.c.b16 %v5259, %v5255
    %v5748 = vpack.c.b16 %v5264, %v5260
    %v5749 = vpack.c.b16 %v5265, %v5261
    %v5750 = vpack.c.b16 %v5266, %v5262
    %v5751 = vpack.c.b16 %v5267, %v5263
    %v5752 = vpack.c.b16 %v5272, %v5268
    %v5753 = vpack.c.b16 %v5273, %v5269
    %v5754 = vpack.c.b16 %v5274, %v5270
    %v5755 = vpack.c.b16 %v5275, %v5271
    %v5756 = vpack.c.b16 %v5280, %v5276
    %v5757 = vpack.c.b16 %v5281, %v5277
    %v5758 = vpack.c.b16 %v5282, %v5278
    %v5759 = vpack.c.b16 %v5283, %v5279
    %v5760 = vpack.c.b16 %v5288, %v5284
    %v5761 = vpack.c.b16 %v5289, %v5285
    %v5762 = vpack.c.b16 %v5290, %v5286
    %v5763 = vpack.c.b16 %v5291, %v5287
    %v5764 = vpack.c.b16 %v5296, %v5292
    %v5765 = vpack.c.b16 %v5297, %v5293
    %v5766 = vpack.c.b16 %v5298, %v5294
    %v5767 = vpack.c.b16 %v5299, %v5295
    %v5768 = vpack.c.b16 %v5304, %v5300
    %v5769 = vpack.c.b16 %v5305, %v5301
    %v5770 = vpack.c.b16 %v5306, %v5302
    %v5771 = vpack.c.b16 %v5307, %v5303
    %v5772 = vpack.c.b16 %v5312, %v5308
    %v5773 = vpack.c.b16 %v5313, %v5309
    %v5774 = vpack.c.b16 %v5314, %v5310
    %v5775 = vpack.c.b16 %v5315, %v5311
    %v5776 = vpack.c.b16 %v5320, %v5316
    %v5777 = vpack.c.b16 %v5321, %v5317
    %v5778 = vpack.c.b16 %v5322, %v5318
    %v5779 = vpack.c.b16 %v5323, %v5319
    %v5780 = vpack.c.b16 %v5328, %v5324
    %v5781 = vpack.c.b16 %v5329, %v5325
    %v5782 = vpack.c.b16 %v5330, %v5326
    %v5783 = vpack.c.b16 %v5331, %v5327
    %v5784 = vpack.c.b16 %v5336, %v5332
    %v5785 = vpack.c.b16 %v5337, %v5333
    %v5786 = vpack.c.b16 %v5338, %v5334
    %v5787 = vpack.c.b16 %v5339, %v5335
    %v5788 = vpack.c.b16 %v5344, %v5340
    %v5789 = vpack.c.b16 %v5345, %v5341
    %v5790 = vpack.c.b16 %v5346, %v5342
    %v5791 = vpack.c.b16 %v5347, %v5343
    %v5792 = vpack.c.b16 %v5352, %v5348
    %v5793 = vpack.c.b16 %v5353, %v5349
    %v5794 = vpack.c.b16 %v5354, %v5350
    %v5795 = vpack.c.b16 %v5355, %v5351
    %v5796 = vpack.c.b16 %v5360, %v5356
    %v5797 = vpack.c.b16 %v5361, %v5357
    %v5798 = vpack.c.b16 %v5362, %v5358
    %v5799 = vpack.c.b16 %v5363, %v5359
    %v5800 = vpack.c.b16 %v5368, %v5364
    %v5801 = vpack.c.b16 %v5369, %v5365
    %v5802 = vpack.c.b16 %v5370, %v5366
    %v5803 = vpack.c.b16 %v5371, %v5367
    %v5804 = vpack.c.b16 %v5376, %v5372
    %v5805 = vpack.c.b16 %v5377, %v5373
    %v5806 = vpack.c.b16 %v5378, %v5374
    %v5807 = vpack.c.b16 %v5379, %v5375
    %v5808 = vpack.c.b16 %v5384, %v5380
    %v5809 = vpack.c.b16 %v5385, %v5381
    %v5810 = vpack.c.b16 %v5386, %v5382
    %v5811 = vpack.c.b16 %v5387, %v5383
    %v5812 = vpack.c.b16 %v5392, %v5388
    %v5813 = vpack.c.b16 %v5393, %v5389
    %v5814 = vpack.c.b16 %v5394, %v5390
    %v5815 = vpack.c.b16 %v5395, %v5391
    %v5816 = vpack.c.b16 %v5400, %v5396
    %v5817 = vpack.c.b16 %v5401, %v5397
    %v5818 = vpack.c.b16 %v5402, %v5398
    %v5819 = vpack.c.b16 %v5403, %v5399
    %v5820 = vpack.c.b16 %v5408, %v5404
    %v5821 = vpack.c.b16 %v5409, %v5405
    %v5822 = vpack.c.b16 %v5410, %v5406
    %v5823 = vpack.c.b16 %v5411, %v5407
    %v5824 = vpack.c.b16 %v5416, %v5412
    %v5825 = vpack.c.b16 %v5417, %v5413
    %v5826 = vpack.c.b16 %v5418, %v5414
    %v5827 = vpack.c.b16 %v5419, %v5415
    %v5828 = vpack.c.b16 %v5424, %v5420
    %v5829 = vpack.c.b16 %v5425, %v5421
    %v5830 = vpack.c.b16 %v5426, %v5422
    %v5831 = vpack.c.b16 %v5427, %v5423
    %v5832 = vpack.c.b16 %v5432, %v5428
    %v5833 = vpack.c.b16 %v5433, %v5429
    %v5834 = vpack.c.b16 %v5434, %v5430
    %v5835 = vpack.c.b16 %v5435, %v5431
    %v5836 = vpack.c.b16 %v5440, %v5436
    %v5837 = vpack.c.b16 %v5441, %v5437
    %v5838 = vpack.c.b16 %v5442, %v5438
    %v5839 = vpack.c.b16 %v5443, %v5439
    %v5840 = vpack.c.b16 %v5448, %v5444
    %v5841 = vpack.c.b16 %v5449, %v5445
    %v5842 = vpack.c.b16 %v5450, %v5446
    %v5843 = vpack.c.b16 %v5451, %v5447
    %v5844 = vpack.c.b16 %v5456, %v5452
    %v5845 = vpack.c.b16 %v5457, %v5453
    %v5846 = vpack.c.b16 %v5458, %v5454
    %v5847 = vpack.c.b16 %v5459, %v5455
    %v5848 = vpack.c.b16 %v5464, %v5460
    %v5849 = vpack.c.b16 %v5465, %v5461
    %v5850 = vpack.c.b16 %v5466, %v5462
    %v5851 = vpack.c.b16 %v5467, %v5463
    %v5852 = vpack.c.b16 %v5472, %v5468
    %v5853 = vpack.c.b16 %v5473, %v5469
    %v5854 = vpack.c.b16 %v5474, %v5470
    %v5855 = vpack.c.b16 %v5475, %v5471
    %v5856 = vpack.c.b16 %v5480, %v5476
    %v5857 = vpack.c.b16 %v5481, %v5477
    %v5858 = vpack.c.b16 %v5482, %v5478
    %v5859 = vpack.c.b16 %v5483, %v5479
    %v5860 = vpack.c.b16 %v5488, %v5484
    %v5861 = vpack.c.b16 %v5489, %v5485
    %v5862 = vpack.c.b16 %v5490, %v5486
    %v5863 = vpack.c.b16 %v5491, %v5487
    %v5864 = vpack.c.b16 %v5496, %v5492
    %v5865 = vpack.c.b16 %v5497, %v5493
    %v5866 = vpack.c.b16 %v5498, %v5494
    %v5867 = vpack.c.b16 %v5499, %v5495
    %v5868 = vpack.c.b16 %v5504, %v5500
    %v5869 = vpack.c.b16 %v5505, %v5501
    %v5870 = vpack.c.b16 %v5506, %v5502
    %v5871 = vpack.c.b16 %v5507, %v5503
    %v5872 = vpack.c.b16 %v5512, %v5508
    %v5873 = vpack.c.b16 %v5513, %v5509
    %v5874 = vpack.c.b16 %v5514, %v5510
    %v5875 = vpack.c.b16 %v5515, %v5511
    %v5876 = vpack.c.b16 %v5520, %v5516
    %v5877 = vpack.c.b16 %v5521, %v5517
    %v5878 = vpack.c.b16 %v5522, %v5518
    %v5879 = vpack.c.b16 %v5523, %v5519
    %v5880 = vpack.c.b16 %v5528, %v5524
    %v5881 = vpack.c.b16 %v5529, %v5525
    %v5882 = vpack.c.b16 %v5530, %v5526
    %v5883 = vpack.c.b16 %v5531, %v5527
    %v5884 = vpack.c.b16 %v5536, %v5532
    %v5885 = vpack.c.b16 %v5537, %v5533
    %v5886 = vpack.c.b16 %v5538, %v5534
    %v5887 = vpack.c.b16 %v5539, %v5535
    %v5888 = vpack.c.b16 %v5544, %v5540
    %v5889 = vpack.c.b16 %v5545, %v5541
    %v5890 = vpack.c.b16 %v5546, %v5542
    %v5891 = vpack.c.b16 %v5547, %v5543
    %v5892 = vpack.c.b16 %v5552, %v5548
    %v5893 = vpack.c.b16 %v5553, %v5549
    %v5894 = vpack.c.b16 %v5554, %v5550
    %v5895 = vpack.c.b16 %v5555, %v5551
    %v5896 = vpack.c.b16 %v5560, %v5556
    %v5897 = vpack.c.b16 %v5561, %v5557
    %v5898 = vpack.c.b16 %v5562, %v5558
    %v5899 = vpack.c.b16 %v5563, %v5559
    %v5900 = vpack.c.b16 %v5568, %v5564
    %v5901 = vpack.c.b16 %v5569, %v5565
    %v5902 = vpack.c.b16 %v5570, %v5566
    %v5903 = vpack.c.b16 %v5571, %v5567
    %v5904 = vpack.c.b16 %v5576, %v5572
    %v5905 = vpack.c.b16 %v5577, %v5573
    %v5906 = vpack.c.b16 %v5578, %v5574
    %v5907 = vpack.c.b16 %v5579, %v5575
    %v5908 = vpack.c.b16 %v5584, %v5580
    %v5909 = vpack.c.b16 %v5585, %v5581
    %v5910 = vpack.c.b16 %v5586, %v5582
    %v5911 = vpack.c.b16 %v5587, %v5583
    %v5912 = vpack.c.b16 %v5592, %v5588
    %v5913 = vpack.c.b16 %v5593, %v5589
    %v5914 = vpack.c.b16 %v5594, %v5590
    %v5915 = vpack.c.b16 %v5595, %v5591
    %v5916 = vpack.c.b16 %v5600, %v5596
    %v5917 = vpack.c.b16 %v5601, %v5597
    %v5918 = vpack.c.b16 %v5602, %v5598
    %v5919 = vpack.c.b16 %v5603, %v5599
    %v5920 = vpack.c.b16 %v5608, %v5604
    %v5921 = vpack.c.b16 %v5609, %v5605
    %v5922 = vpack.c.b16 %v5610, %v5606
    %v5923 = vpack.c.b16 %v5611, %v5607
    %v5924 = vpack.c.b16 %v5616, %v5612
    %v5925 = vpack.c.b16 %v5617, %v5613
    %v5926 = vpack.c.b16 %v5618, %v5614
    %v5927 = vpack.c.b16 %v5619, %v5615
    %v5928 = vpack.c.b16 %v5624, %v5620
    %v5929 = vpack.c.b16 %v5625, %v5621
    %v5930 = vpack.c.b16 %v5626, %v5622
    %v5931 = vpack.c.b16 %v5627, %v5623
    %v5932 = vpack.c.b16 %v5632, %v5628
    %v5933 = vpack.c.b16 %v5633, %v5629
    %v5934 = vpack.c.b16 %v5634, %v5630
    %v5935 = vpack.c.b16 %v5635, %v5631
    %v5936 = vpack.c.b16 %v5640, %v5636
    %v5937 = vpack.c.b16 %v5641, %v5637
    %v5938 = vpack.c.b16 %v5642, %v5638
    %v5939 = vpack.c.b16 %v5643, %v5639
    %v5940 = vpack.c.b16 %v5648, %v5644
    %v5941 = vpack.c.b16 %v5649, %v5645
    %v5942 = vpack.c.b16 %v5650, %v5646
    %v5943 = vpack.c.b16 %v5651, %v5647
    %v5944 = vpack.c.b16 %v5656, %v5652
    %v5945 = vpack.c.b16 %v5657, %v5653
    %v5946 = vpack.c.b16 %v5658, %v5654
    %v5947 = vpack.c.b16 %v5659, %v5655
    %v5948 = vpack.c.b16 %v5664, %v5660
    %v5949 = vpack.c.b16 %v5665, %v5661
    %v5950 = vpack.c.b16 %v5666, %v5662
    %v5951 = vpack.c.b16 %v5667, %v5663
    %v5952 = vpack.c.b16 %v5672, %v5668
    %v5953 = vpack.c.b16 %v5673, %v5669
    %v5954 = vpack.c.b16 %v5674, %v5670
    %v5955 = vpack.c.b16 %v5675, %v5671
    %v5956 = vpack.c.b16 %v5680, %v5676
    %v5957 = vpack.c.b16 %v5681, %v5677
    %v5958 = vpack.c.b16 %v5682, %v5678
    %v5959 = vpack.c.b16 %v5683, %v5679
    %v5960 = vpack.c.b16 %v5688, %v5684
    %v5961 = vpack.c.b16 %v5689, %v5685
    %v5962 = vpack.c.b16 %v5690, %v5686
    %v5963 = vpack.c.b16 %v5691, %v5687
    %v5964 = vpack.c.b16 %v5696, %v5692
    %v5965 = vpack.c.b16 %v5697, %v5693
    %v5966 = vpack.c.b16 %v5698, %v5694
    %v5967 = vpack.c.b16 %v5699, %v5695
    %v5968 = vpack.c.b16 %v5704, %v5700
    %v5969 = vpack.c.b16 %v5705, %v5701
    %v5970 = vpack.c.b16 %v5706, %v5702
    %v5971 = vpack.c.b16 %v5707, %v5703
    %v5972 = vpack.c.b16 %v5712, %v5708
    %v5973 = vpack.c.b16 %v5713, %v5709
    %v5974 = vpack.c.b16 %v5714, %v5710
    %v5975 = vpack.c.b16 %v5715, %v5711
    %v5976 = vpack.c.b16 %v5720, %v5716
    %v5977 = vpack.c.b16 %v5721, %v5717
    %v5978 = vpack.c.b16 %v5722, %v5718
    %v5979 = vpack.c.b16 %v5723, %v5719
    %6236 = vmatprep.subr.bf16.mxu0 %v5753
    %6237 = vmatpush1.bf16.msra.mxu0 %v5752
    %6238 = vmatprep.subr.bf16.mxu0 %v5749
    %6239 = vmatpush1.bf16.msra.mxu0 %v5748
    %6240 = vmatprep.subr.bf16.mxu0 %v5745
    %6241 = vmatpush1.bf16.msra.mxu0 %v5744
    %6242 = vmatprep.subr.bf16.mxu0 %v5741
    %6243 = vmatpush1.bf16.msra.mxu0 %v5740
    %6244 = vmatprep.subr.bf16.mxu0 %v5737
    %6245 = vmatpush1.bf16.msra.mxu0 %v5736
    %6246 = vmatprep.subr.bf16.mxu0 %v5733
    %6247 = vmatpush1.bf16.msra.mxu0 %v5732
    %6248 = vmatprep.subr.bf16.mxu0 %v5729
    %6249 = vmatpush1.bf16.msra.mxu0 %v5728
    %6250 = vmatprep.subr.bf16.mxu0 %v5725
    %6251 = vmatpush1.bf16.msra.mxu0 %v5724
    %6252 = vmatprep.subr.bf16.mxu0 %v5785
    %6253 = vmatpush2.bf16.msra.mxu0 %v5784
    %6254 = vmatprep.subr.bf16.mxu0 %v5781
    %6255 = vmatpush2.bf16.msra.mxu0 %v5780
    %6256 = vmatprep.subr.bf16.mxu0 %v5777
    %6257 = vmatpush2.bf16.msra.mxu0 %v5776
    %6258 = vmatprep.subr.bf16.mxu0 %v5773
    %6259 = vmatpush2.bf16.msra.mxu0 %v5772
    %6260 = vmatprep.subr.bf16.mxu0 %v5769
    %6261 = vmatpush2.bf16.msra.mxu0 %v5768
    %6262 = vmatprep.subr.bf16.mxu0 %v5765
    %6263 = vmatpush2.bf16.msra.mxu0 %v5764
    %6264 = vmatprep.subr.bf16.mxu0 %v5761
    %6265 = vmatpush2.bf16.msra.mxu0 %v5760
    %6266 = vmatprep.subr.bf16.mxu0 %v5757
    %6267 = vmatpush2.bf16.msra.mxu0 %v5756
    %6268 = vmatprep.mubr.bf16.mxu0 %v4671
    %6269 = vmatmul.mubr.bf16.gmra.mxu0 %v4670
    %v6270 = vpop.f32.mrf.mxu0
    %v6271 = vadd.f32 %v4939, %v6270
    %v6272 = vpop.f32.mrf.mxu0
    %v6273 = vadd.f32 %v4943, %v6272
    %v6274 = vpop.f32.mrf.mxu0
    %v6275 = vadd.f32 %v4939, %v6274
    %v6276 = vpop.f32.mrf.mxu0
    %v6277 = vadd.f32 %v4943, %v6276
    %6278 = vdwg.mxu0
    %6279 = vmatprep.subr.bf16.mxu0 %v5817
    %6280 = vmatpush1.bf16.msra.mxu0 %v5816
    %6281 = vmatprep.subr.bf16.mxu0 %v5813
    %6282 = vmatpush1.bf16.msra.mxu0 %v5812
    %6283 = vmatprep.subr.bf16.mxu0 %v5809
    %6284 = vmatpush1.bf16.msra.mxu0 %v5808
    %6285 = vmatprep.subr.bf16.mxu0 %v5805
    %6286 = vmatpush1.bf16.msra.mxu0 %v5804
    %6287 = vmatprep.subr.bf16.mxu0 %v5801
    %6288 = vmatpush1.bf16.msra.mxu0 %v5800
    %6289 = vmatprep.subr.bf16.mxu0 %v5797
    %6290 = vmatpush1.bf16.msra.mxu0 %v5796
    %6291 = vmatprep.subr.bf16.mxu0 %v5793
    %6292 = vmatpush1.bf16.msra.mxu0 %v5792
    %6293 = vmatprep.subr.bf16.mxu0 %v5789
    %6294 = vmatpush1.bf16.msra.mxu0 %v5788
    %6295 = vmatprep.subr.bf16.mxu0 %v5849
    %6296 = vmatpush2.bf16.msra.mxu0 %v5848
    %6297 = vmatprep.subr.bf16.mxu0 %v5845
    %6298 = vmatpush2.bf16.msra.mxu0 %v5844
    %6299 = vmatprep.subr.bf16.mxu0 %v5841
    %6300 = vmatpush2.bf16.msra.mxu0 %v5840
    %6301 = vmatprep.subr.bf16.mxu0 %v5837
    %6302 = vmatpush2.bf16.msra.mxu0 %v5836
    %6303 = vmatprep.subr.bf16.mxu0 %v5833
    %6304 = vmatpush2.bf16.msra.mxu0 %v5832
    %6305 = vmatprep.subr.bf16.mxu0 %v5829
    %6306 = vmatpush2.bf16.msra.mxu0 %v5828
    %6307 = vmatprep.subr.bf16.mxu0 %v5825
    %6308 = vmatpush2.bf16.msra.mxu0 %v5824
    %6309 = vmatprep.subr.bf16.mxu0 %v5821
    %6310 = vmatpush2.bf16.msra.mxu0 %v5820
    %6311 = vmatprep.mubr.bf16.mxu0 %v4673
    %6312 = vmatmul.mubr.bf16.gmra.mxu0 %v4672
    %v6313 = vpop.f32.mrf.mxu0
    %v6314 = vadd.f32 %v6271, %v6313
    %v6315 = vpop.f32.mrf.mxu0
    %v6316 = vadd.f32 %v6273, %v6315
    %v6317 = vpop.f32.mrf.mxu0
    %v6318 = vadd.f32 %v6275, %v6317
    %v6319 = vpop.f32.mrf.mxu0
    %v6320 = vadd.f32 %v6277, %v6319
    %6321 = vdwg.mxu0
    %6322 = vmatprep.subr.bf16.mxu0 %v5881
    %6323 = vmatpush1.bf16.msra.mxu0 %v5880
    %6324 = vmatprep.subr.bf16.mxu0 %v5877
    %6325 = vmatpush1.bf16.msra.mxu0 %v5876
    %6326 = vmatprep.subr.bf16.mxu0 %v5873
    %6327 = vmatpush1.bf16.msra.mxu0 %v5872
    %6328 = vmatprep.subr.bf16.mxu0 %v5869
    %6329 = vmatpush1.bf16.msra.mxu0 %v5868
    %6330 = vmatprep.subr.bf16.mxu0 %v5865
    %6331 = vmatpush1.bf16.msra.mxu0 %v5864
    %6332 = vmatprep.subr.bf16.mxu0 %v5861
    %6333 = vmatpush1.bf16.msra.mxu0 %v5860
    %6334 = vmatprep.subr.bf16.mxu0 %v5857
    %6335 = vmatpush1.bf16.msra.mxu0 %v5856
    %6336 = vmatprep.subr.bf16.mxu0 %v5853
    %6337 = vmatpush1.bf16.msra.mxu0 %v5852
    %6338 = vmatprep.subr.bf16.mxu0 %v5913
    %6339 = vmatpush2.bf16.msra.mxu0 %v5912
    %6340 = vmatprep.subr.bf16.mxu0 %v5909
    %6341 = vmatpush2.bf16.msra.mxu0 %v5908
    %6342 = vmatprep.subr.bf16.mxu0 %v5905
    %6343 = vmatpush2.bf16.msra.mxu0 %v5904
    %6344 = vmatprep.subr.bf16.mxu0 %v5901
    %6345 = vmatpush2.bf16.msra.mxu0 %v5900
    %6346 = vmatprep.subr.bf16.mxu0 %v5897
    %6347 = vmatpush2.bf16.msra.mxu0 %v5896
    %6348 = vmatprep.subr.bf16.mxu0 %v5893
    %6349 = vmatpush2.bf16.msra.mxu0 %v5892
    %6350 = vmatprep.subr.bf16.mxu0 %v5889
    %6351 = vmatpush2.bf16.msra.mxu0 %v5888
    %6352 = vmatprep.subr.bf16.mxu0 %v5885
    %6353 = vmatpush2.bf16.msra.mxu0 %v5884
    %6354 = vmatprep.mubr.bf16.mxu0 %v4675
    %6355 = vmatmul.mubr.bf16.gmra.mxu0 %v4674
    %v6356 = vpop.f32.mrf.mxu0
    %v6357 = vadd.f32 %v6314, %v6356
    %v6358 = vpop.f32.mrf.mxu0
    %v6359 = vadd.f32 %v6316, %v6358
    %v6360 = vpop.f32.mrf.mxu0
    %v6361 = vadd.f32 %v6318, %v6360
    %v6362 = vpop.f32.mrf.mxu0
    %v6363 = vadd.f32 %v6320, %v6362
    %6364 = vdwg.mxu0
    %6365 = vmatprep.subr.bf16.mxu0 %v5945
    %6366 = vmatpush1.bf16.msra.mxu0 %v5944
    %6367 = vmatprep.subr.bf16.mxu0 %v5941
    %6368 = vmatpush1.bf16.msra.mxu0 %v5940
    %6369 = vmatprep.subr.bf16.mxu0 %v5937
    %6370 = vmatpush1.bf16.msra.mxu0 %v5936
    %6371 = vmatprep.subr.bf16.mxu0 %v5933
    %6372 = vmatpush1.bf16.msra.mxu0 %v5932
    %6373 = vmatprep.subr.bf16.mxu0 %v5929
    %6374 = vmatpush1.bf16.msra.mxu0 %v5928
    %6375 = vmatprep.subr.bf16.mxu0 %v5925
    %6376 = vmatpush1.bf16.msra.mxu0 %v5924
    %6377 = vmatprep.subr.bf16.mxu0 %v5921
    %6378 = vmatpush1.bf16.msra.mxu0 %v5920
    %6379 = vmatprep.subr.bf16.mxu0 %v5917
    %6380 = vmatpush1.bf16.msra.mxu0 %v5916
    %6381 = vmatprep.subr.bf16.mxu0 %v5977
    %6382 = vmatpush2.bf16.msra.mxu0 %v5976
    %6383 = vmatprep.subr.bf16.mxu0 %v5973
    %6384 = vmatpush2.bf16.msra.mxu0 %v5972
    %6385 = vmatprep.subr.bf16.mxu0 %v5969
    %6386 = vmatpush2.bf16.msra.mxu0 %v5968
    %6387 = vmatprep.subr.bf16.mxu0 %v5965
    %6388 = vmatpush2.bf16.msra.mxu0 %v5964
    %6389 = vmatprep.subr.bf16.mxu0 %v5961
    %6390 = vmatpush2.bf16.msra.mxu0 %v5960
    %6391 = vmatprep.subr.bf16.mxu0 %v5957
    %6392 = vmatpush2.bf16.msra.mxu0 %v5956
    %6393 = vmatprep.subr.bf16.mxu0 %v5953
    %6394 = vmatpush2.bf16.msra.mxu0 %v5952
    %6395 = vmatprep.subr.bf16.mxu0 %v5949
    %6396 = vmatpush2.bf16.msra.mxu0 %v5948
    %6397 = vmatprep.mubr.bf16.mxu0 %v4677
    %6398 = vmatmul.mubr.bf16.gmra.mxu0 %v4676
    %v6399 = vpop.f32.mrf.mxu0
    %v6400 = vadd.f32 %v6357, %v6399
    %v6401 = vpop.f32.mrf.mxu0
    %v6402 = vadd.f32 %v6359, %v6401
    %v6403 = vpop.f32.mrf.mxu0
    %v6404 = vadd.f32 %v6361, %v6403
    %v6405 = vpop.f32.mrf.mxu0
    %v6406 = vadd.f32 %v6363, %v6405
    %6407 = vdwg.mxu0
    %6408 = vmatprep.subr.bf16.mxu0 %v5755
    %6409 = vmatpush1.bf16.msra.mxu0 %v5754
    %6410 = vmatprep.subr.bf16.mxu0 %v5751
    %6411 = vmatpush1.bf16.msra.mxu0 %v5750
    %6412 = vmatprep.subr.bf16.mxu0 %v5747
    %6413 = vmatpush1.bf16.msra.mxu0 %v5746
    %6414 = vmatprep.subr.bf16.mxu0 %v5743
    %6415 = vmatpush1.bf16.msra.mxu0 %v5742
    %6416 = vmatprep.subr.bf16.mxu0 %v5739
    %6417 = vmatpush1.bf16.msra.mxu0 %v5738
    %6418 = vmatprep.subr.bf16.mxu0 %v5735
    %6419 = vmatpush1.bf16.msra.mxu0 %v5734
    %6420 = vmatprep.subr.bf16.mxu0 %v5731
    %6421 = vmatpush1.bf16.msra.mxu0 %v5730
    %6422 = vmatprep.subr.bf16.mxu0 %v5727
    %6423 = vmatpush1.bf16.msra.mxu0 %v5726
    %6424 = vmatprep.subr.bf16.mxu0 %v5787
    %6425 = vmatpush2.bf16.msra.mxu0 %v5786
    %6426 = vmatprep.subr.bf16.mxu0 %v5783
    %6427 = vmatpush2.bf16.msra.mxu0 %v5782
    %6428 = vmatprep.subr.bf16.mxu0 %v5779
    %6429 = vmatpush2.bf16.msra.mxu0 %v5778
    %6430 = vmatprep.subr.bf16.mxu0 %v5775
    %6431 = vmatpush2.bf16.msra.mxu0 %v5774
    %6432 = vmatprep.subr.bf16.mxu0 %v5771
    %6433 = vmatpush2.bf16.msra.mxu0 %v5770
    %6434 = vmatprep.subr.bf16.mxu0 %v5767
    %6435 = vmatpush2.bf16.msra.mxu0 %v5766
    %6436 = vmatprep.subr.bf16.mxu0 %v5763
    %6437 = vmatpush2.bf16.msra.mxu0 %v5762
    %6438 = vmatprep.subr.bf16.mxu0 %v5759
    %6439 = vmatpush2.bf16.msra.mxu0 %v5758
    %6440 = vmatprep.mubr.bf16.mxu0 %v4671
    %6441 = vmatmul.mubr.bf16.gmra.mxu0 %v4670
    %v6442 = vpop.f32.mrf.mxu0
    %v6443 = vadd.f32 %v4947, %v6442
    %v6444 = vpop.f32.mrf.mxu0
    %v6445 = vadd.f32 %v4951, %v6444
    %v6446 = vpop.f32.mrf.mxu0
    %v6447 = vadd.f32 %v4947, %v6446
    %v6448 = vpop.f32.mrf.mxu0
    %v6449 = vadd.f32 %v4951, %v6448
    %6450 = vdwg.mxu0
    %6451 = vmatprep.subr.bf16.mxu0 %v5819
    %6452 = vmatpush1.bf16.msra.mxu0 %v5818
    %6453 = vmatprep.subr.bf16.mxu0 %v5815
    %6454 = vmatpush1.bf16.msra.mxu0 %v5814
    %6455 = vmatprep.subr.bf16.mxu0 %v5811
    %6456 = vmatpush1.bf16.msra.mxu0 %v5810
    %6457 = vmatprep.subr.bf16.mxu0 %v5807
    %6458 = vmatpush1.bf16.msra.mxu0 %v5806
    %6459 = vmatprep.subr.bf16.mxu0 %v5803
    %6460 = vmatpush1.bf16.msra.mxu0 %v5802
    %6461 = vmatprep.subr.bf16.mxu0 %v5799
    %6462 = vmatpush1.bf16.msra.mxu0 %v5798
    %6463 = vmatprep.subr.bf16.mxu0 %v5795
    %6464 = vmatpush1.bf16.msra.mxu0 %v5794
    %6465 = vmatprep.subr.bf16.mxu0 %v5791
    %6466 = vmatpush1.bf16.msra.mxu0 %v5790
    %6467 = vmatprep.subr.bf16.mxu0 %v5851
    %6468 = vmatpush2.bf16.msra.mxu0 %v5850
    %6469 = vmatprep.subr.bf16.mxu0 %v5847
    %6470 = vmatpush2.bf16.msra.mxu0 %v5846
    %6471 = vmatprep.subr.bf16.mxu0 %v5843
    %6472 = vmatpush2.bf16.msra.mxu0 %v5842
    %6473 = vmatprep.subr.bf16.mxu0 %v5839
    %6474 = vmatpush2.bf16.msra.mxu0 %v5838
    %6475 = vmatprep.subr.bf16.mxu0 %v5835
    %6476 = vmatpush2.bf16.msra.mxu0 %v5834
    %6477 = vmatprep.subr.bf16.mxu0 %v5831
    %6478 = vmatpush2.bf16.msra.mxu0 %v5830
    %6479 = vmatprep.subr.bf16.mxu0 %v5827
    %6480 = vmatpush2.bf16.msra.mxu0 %v5826
    %6481 = vmatprep.subr.bf16.mxu0 %v5823
    %6482 = vmatpush2.bf16.msra.mxu0 %v5822
    %6483 = vmatprep.mubr.bf16.mxu0 %v4673
    %6484 = vmatmul.mubr.bf16.gmra.mxu0 %v4672
    %v6485 = vpop.f32.mrf.mxu0
    %v6486 = vadd.f32 %v6443, %v6485
    %v6487 = vpop.f32.mrf.mxu0
    %v6488 = vadd.f32 %v6445, %v6487
    %v6489 = vpop.f32.mrf.mxu0
    %v6490 = vadd.f32 %v6447, %v6489
    %v6491 = vpop.f32.mrf.mxu0
    %v6492 = vadd.f32 %v6449, %v6491
    %6493 = vdwg.mxu0
    %6494 = vmatprep.subr.bf16.mxu0 %v5883
    %6495 = vmatpush1.bf16.msra.mxu0 %v5882
    %6496 = vmatprep.subr.bf16.mxu0 %v5879
    %6497 = vmatpush1.bf16.msra.mxu0 %v5878
    %6498 = vmatprep.subr.bf16.mxu0 %v5875
    %6499 = vmatpush1.bf16.msra.mxu0 %v5874
    %6500 = vmatprep.subr.bf16.mxu0 %v5871
    %6501 = vmatpush1.bf16.msra.mxu0 %v5870
    %6502 = vmatprep.subr.bf16.mxu0 %v5867
    %6503 = vmatpush1.bf16.msra.mxu0 %v5866
    %6504 = vmatprep.subr.bf16.mxu0 %v5863
    %6505 = vmatpush1.bf16.msra.mxu0 %v5862
    %6506 = vmatprep.subr.bf16.mxu0 %v5859
    %6507 = vmatpush1.bf16.msra.mxu0 %v5858
    %6508 = vmatprep.subr.bf16.mxu0 %v5855
    %6509 = vmatpush1.bf16.msra.mxu0 %v5854
    %6510 = vmatprep.subr.bf16.mxu0 %v5915
    %6511 = vmatpush2.bf16.msra.mxu0 %v5914
    %6512 = vmatprep.subr.bf16.mxu0 %v5911
    %6513 = vmatpush2.bf16.msra.mxu0 %v5910
    %6514 = vmatprep.subr.bf16.mxu0 %v5907
    %6515 = vmatpush2.bf16.msra.mxu0 %v5906
    %6516 = vmatprep.subr.bf16.mxu0 %v5903
    %6517 = vmatpush2.bf16.msra.mxu0 %v5902
    %6518 = vmatprep.subr.bf16.mxu0 %v5899
    %6519 = vmatpush2.bf16.msra.mxu0 %v5898
    %6520 = vmatprep.subr.bf16.mxu0 %v5895
    %6521 = vmatpush2.bf16.msra.mxu0 %v5894
    %6522 = vmatprep.subr.bf16.mxu0 %v5891
    %6523 = vmatpush2.bf16.msra.mxu0 %v5890
    %6524 = vmatprep.subr.bf16.mxu0 %v5887
    %6525 = vmatpush2.bf16.msra.mxu0 %v5886
    %6526 = vmatprep.mubr.bf16.mxu0 %v4675
    %6527 = vmatmul.mubr.bf16.gmra.mxu0 %v4674
    %v6528 = vpop.f32.mrf.mxu0
    %v6529 = vadd.f32 %v6486, %v6528
    %v6530 = vpop.f32.mrf.mxu0
    %v6531 = vadd.f32 %v6488, %v6530
    %v6532 = vpop.f32.mrf.mxu0
    %v6533 = vadd.f32 %v6490, %v6532
    %v6534 = vpop.f32.mrf.mxu0
    %v6535 = vadd.f32 %v6492, %v6534
    %6536 = vdwg.mxu0
    %6537 = vmatprep.subr.bf16.mxu0 %v5947
    %6538 = vmatpush1.bf16.msra.mxu0 %v5946
    %6539 = vmatprep.subr.bf16.mxu0 %v5943
    %6540 = vmatpush1.bf16.msra.mxu0 %v5942
    %6541 = vmatprep.subr.bf16.mxu0 %v5939
    %6542 = vmatpush1.bf16.msra.mxu0 %v5938
    %6543 = vmatprep.subr.bf16.mxu0 %v5935
    %6544 = vmatpush1.bf16.msra.mxu0 %v5934
    %6545 = vmatprep.subr.bf16.mxu0 %v5931
    %6546 = vmatpush1.bf16.msra.mxu0 %v5930
    %6547 = vmatprep.subr.bf16.mxu0 %v5927
    %6548 = vmatpush1.bf16.msra.mxu0 %v5926
    %6549 = vmatprep.subr.bf16.mxu0 %v5923
    %6550 = vmatpush1.bf16.msra.mxu0 %v5922
    %6551 = vmatprep.subr.bf16.mxu0 %v5919
    %6552 = vmatpush1.bf16.msra.mxu0 %v5918
    %6553 = vmatprep.subr.bf16.mxu0 %v5979
    %6554 = vmatpush2.bf16.msra.mxu0 %v5978
    %6555 = vmatprep.subr.bf16.mxu0 %v5975
    %6556 = vmatpush2.bf16.msra.mxu0 %v5974
    %6557 = vmatprep.subr.bf16.mxu0 %v5971
    %6558 = vmatpush2.bf16.msra.mxu0 %v5970
    %6559 = vmatprep.subr.bf16.mxu0 %v5967
    %6560 = vmatpush2.bf16.msra.mxu0 %v5966
    %6561 = vmatprep.subr.bf16.mxu0 %v5963
    %6562 = vmatpush2.bf16.msra.mxu0 %v5962
    %6563 = vmatprep.subr.bf16.mxu0 %v5959
    %6564 = vmatpush2.bf16.msra.mxu0 %v5958
    %6565 = vmatprep.subr.bf16.mxu0 %v5955
    %6566 = vmatpush2.bf16.msra.mxu0 %v5954
    %6567 = vmatprep.subr.bf16.mxu0 %v5951
    %6568 = vmatpush2.bf16.msra.mxu0 %v5950
    %6569 = vmatprep.mubr.bf16.mxu0 %v4677
    %6570 = vmatmul.mubr.bf16.gmra.mxu0 %v4676
    %v6571 = vpop.f32.mrf.mxu0
    %v6572 = vadd.f32 %v6529, %v6571
    %v6573 = vpop.f32.mrf.mxu0
    %v6574 = vadd.f32 %v6531, %v6573
    %v6575 = vpop.f32.mrf.mxu0
    %v6576 = vadd.f32 %v6533, %v6575
    %v6577 = vpop.f32.mrf.mxu0
    %v6578 = vadd.f32 %v6535, %v6577
    %6579 = vdwg.mxu0
    %v6580 = vmax.f32 %v6400, 0.0
    %v6581 = vmax.f32 %v6402, 0.0
    %v6582 = vmax.f32 %v6572, 0.0
    %v6583 = vmax.f32 %v6574, 0.0
    %v6584 = vmax.f32 %v6404, 0.0
    %v6585 = vmax.f32 %v6406, 0.0
    %v6586 = vmax.f32 %v6576, 0.0
    %v6587 = vmax.f32 %v6578, 0.0
    %v6588 = vpack.c.bf16 %v6584, %v6580
    %v6589 = vpack.c.bf16 %v6585, %v6581
    %v6590 = vpack.c.bf16 %v6586, %v6582
    %v6591 = vpack.c.bf16 %v6587, %v6583
    %v6592 = vld [vmem:[%s5] sm:$0xf]
    %v6593 = vld [vmem:[%s5 + $0x4] sm:$0xf]
    %v6594 = vld [vmem:[%s5 + $0x8] sm:$0xf]
    %v6595 = vld [vmem:[%s5 + $0xc] sm:$0xf]
    %v6596 = vld [vmem:[%s5 + $0x10] sm:$0xf]
    %v6597 = vld [vmem:[%s5 + $0x14] sm:$0xf]
    %v6598 = vld [vmem:[%s5 + $0x18] sm:$0xf]
    %v6599 = vld [vmem:[%s5 + $0x1c] sm:$0xf]
    %v6600 = vld [vmem:[%s5 + $0x20] sm:$0xf]
    %v6601 = vld [vmem:[%s5 + $0x24] sm:$0xf]
    %v6602 = vld [vmem:[%s5 + $0x28] sm:$0xf]
    %v6603 = vld [vmem:[%s5 + $0x2c] sm:$0xf]
    %v6604 = vld [vmem:[%s5 + $0x30] sm:$0xf]
    %v6605 = vld [vmem:[%s5 + $0x34] sm:$0xf]
    %v6606 = vld [vmem:[%s5 + $0x38] sm:$0xf]
    %v6607 = vld [vmem:[%s5 + $0x3c] sm:$0xf]
    %v6608 = vld [vmem:[%s5 + $0x40] sm:$0xf]
    %v6609 = vld [vmem:[%s5 + $0x44] sm:$0xf]
    %v6610 = vld [vmem:[%s5 + $0x48] sm:$0xf]
    %v6611 = vld [vmem:[%s5 + $0x4c] sm:$0xf]
    %v6612 = vld [vmem:[%s5 + $0x50] sm:$0xf]
    %v6613 = vld [vmem:[%s5 + $0x54] sm:$0xf]
    %v6614 = vld [vmem:[%s5 + $0x58] sm:$0xf]
    %v6615 = vld [vmem:[%s5 + $0x5c] sm:$0xf]
    %v6616 = vld [vmem:[%s5 + $0x60] sm:$0xf]
    %v6617 = vld [vmem:[%s5 + $0x64] sm:$0xf]
    %v6618 = vld [vmem:[%s5 + $0x68] sm:$0xf]
    %v6619 = vld [vmem:[%s5 + $0x6c] sm:$0xf]
    %v6620 = vld [vmem:[%s5 + $0x70] sm:$0xf]
    %v6621 = vld [vmem:[%s5 + $0x74] sm:$0xf]
    %v6622 = vld [vmem:[%s5 + $0x78] sm:$0xf]
    %v6623 = vld [vmem:[%s5 + $0x7c] sm:$0xf]
    %v6624 = vld [vmem:[%s5 + $0x80] sm:$0xf]
    %v6625 = vld [vmem:[%s5 + $0x84] sm:$0xf]
    %v6626 = vld [vmem:[%s5 + $0x88] sm:$0xf]
    %v6627 = vld [vmem:[%s5 + $0x8c] sm:$0xf]
    %v6628 = vld [vmem:[%s5 + $0x90] sm:$0xf]
    %v6629 = vld [vmem:[%s5 + $0x94] sm:$0xf]
    %v6630 = vld [vmem:[%s5 + $0x98] sm:$0xf]
    %v6631 = vld [vmem:[%s5 + $0x9c] sm:$0xf]
    %v6632 = vld [vmem:[%s5 + $0xa0] sm:$0xf]
    %v6633 = vld [vmem:[%s5 + $0xa4] sm:$0xf]
    %v6634 = vld [vmem:[%s5 + $0xa8] sm:$0xf]
    %v6635 = vld [vmem:[%s5 + $0xac] sm:$0xf]
    %v6636 = vld [vmem:[%s5 + $0xb0] sm:$0xf]
    %v6637 = vld [vmem:[%s5 + $0xb4] sm:$0xf]
    %v6638 = vld [vmem:[%s5 + $0xb8] sm:$0xf]
    %v6639 = vld [vmem:[%s5 + $0xbc] sm:$0xf]
    %v6640 = vld [vmem:[%s5 + $0xc0] sm:$0xf]
    %v6641 = vld [vmem:[%s5 + $0xc4] sm:$0xf]
    %v6642 = vld [vmem:[%s5 + $0xc8] sm:$0xf]
    %v6643 = vld [vmem:[%s5 + $0xcc] sm:$0xf]
    %v6644 = vld [vmem:[%s5 + $0xd0] sm:$0xf]
    %v6645 = vld [vmem:[%s5 + $0xd4] sm:$0xf]
    %v6646 = vld [vmem:[%s5 + $0xd8] sm:$0xf]
    %v6647 = vld [vmem:[%s5 + $0xdc] sm:$0xf]
    %v6648 = vld [vmem:[%s5 + $0xe0] sm:$0xf]
    %v6649 = vld [vmem:[%s5 + $0xe4] sm:$0xf]
    %v6650 = vld [vmem:[%s5 + $0xe8] sm:$0xf]
    %v6651 = vld [vmem:[%s5 + $0xec] sm:$0xf]
    %v6652 = vld [vmem:[%s5 + $0xf0] sm:$0xf]
    %v6653 = vld [vmem:[%s5 + $0xf4] sm:$0xf]
    %v6654 = vld [vmem:[%s5 + $0xf8] sm:$0xf]
    %v6655 = vld [vmem:[%s5 + $0xfc] sm:$0xf]
    %v6656 = vld [vmem:[%s6] sm:$0x1]
    %v6658 = vlaneseq
    %v6659 = vshrl.u32 %v6658, 7
    %v6660 = vsub.s32 0, %v6659
    %v6661 = vrot.slane %v6656, %v6660
    %v6727 = vunpack.c.l.b16 %v6592
    %v6728 = vunpack.c.l.b16 %v6593
    %v6729 = vunpack.c.l.b16 %v6594
    %v6730 = vunpack.c.l.b16 %v6595
    %v6731 = vunpack.c.l.b16 %v6596
    %v6732 = vunpack.c.l.b16 %v6597
    %v6733 = vunpack.c.l.b16 %v6598
    %v6734 = vunpack.c.l.b16 %v6599
    %v6735 = vunpack.c.l.b16 %v6600
    %v6736 = vunpack.c.l.b16 %v6601
    %v6737 = vunpack.c.l.b16 %v6602
    %v6738 = vunpack.c.l.b16 %v6603
    %v6739 = vunpack.c.l.b16 %v6604
    %v6740 = vunpack.c.l.b16 %v6605
    %v6741 = vunpack.c.l.b16 %v6606
    %v6742 = vunpack.c.l.b16 %v6607
    %v6743 = vunpack.c.l.b16 %v6608
    %v6744 = vunpack.c.l.b16 %v6609
    %v6745 = vunpack.c.l.b16 %v6610
    %v6746 = vunpack.c.l.b16 %v6611
    %v6747 = vunpack.c.l.b16 %v6612
    %v6748 = vunpack.c.l.b16 %v6613
    %v6749 = vunpack.c.l.b16 %v6614
    %v6750 = vunpack.c.l.b16 %v6615
    %v6751 = vunpack.c.l.b16 %v6616
    %v6752 = vunpack.c.l.b16 %v6617
    %v6753 = vunpack.c.l.b16 %v6618
    %v6754 = vunpack.c.l.b16 %v6619
    %v6755 = vunpack.c.l.b16 %v6620
    %v6756 = vunpack.c.l.b16 %v6621
    %v6757 = vunpack.c.l.b16 %v6622
    %v6758 = vunpack.c.l.b16 %v6623
    %v6759 = vunpack.c.l.b16 %v6624
    %v6760 = vunpack.c.l.b16 %v6625
    %v6761 = vunpack.c.l.b16 %v6626
    %v6762 = vunpack.c.l.b16 %v6627
    %v6763 = vunpack.c.l.b16 %v6628
    %v6764 = vunpack.c.l.b16 %v6629
    %v6765 = vunpack.c.l.b16 %v6630
    %v6766 = vunpack.c.l.b16 %v6631
    %v6767 = vunpack.c.l.b16 %v6632
    %v6768 = vunpack.c.l.b16 %v6633
    %v6769 = vunpack.c.l.b16 %v6634
    %v6770 = vunpack.c.l.b16 %v6635
    %v6771 = vunpack.c.l.b16 %v6636
    %v6772 = vunpack.c.l.b16 %v6637
    %v6773 = vunpack.c.l.b16 %v6638
    %v6774 = vunpack.c.l.b16 %v6639
    %v6775 = vunpack.c.l.b16 %v6640
    %v6776 = vunpack.c.l.b16 %v6641
    %v6777 = vunpack.c.l.b16 %v6642
    %v6778 = vunpack.c.l.b16 %v6643
    %v6779 = vunpack.c.l.b16 %v6644
    %v6780 = vunpack.c.l.b16 %v6645
    %v6781 = vunpack.c.l.b16 %v6646
    %v6782 = vunpack.c.l.b16 %v6647
    %v6783 = vunpack.c.l.b16 %v6648
    %v6784 = vunpack.c.l.b16 %v6649
    %v6785 = vunpack.c.l.b16 %v6650
    %v6786 = vunpack.c.l.b16 %v6651
    %v6787 = vunpack.c.l.b16 %v6652
    %v6788 = vunpack.c.l.b16 %v6653
    %v6789 = vunpack.c.l.b16 %v6654
    %v6790 = vunpack.c.l.b16 %v6655
    %v6791 = vpack.c.b16 %v6728, %v6727
    %v6792 = vpack.c.b16 %v6730, %v6729
    %v6793 = vpack.c.b16 %v6732, %v6731
    %v6794 = vpack.c.b16 %v6734, %v6733
    %v6795 = vpack.c.b16 %v6736, %v6735
    %v6796 = vpack.c.b16 %v6738, %v6737
    %v6797 = vpack.c.b16 %v6740, %v6739
    %v6798 = vpack.c.b16 %v6742, %v6741
    %v6799 = vpack.c.b16 %v6744, %v6743
    %v6800 = vpack.c.b16 %v6746, %v6745
    %v6801 = vpack.c.b16 %v6748, %v6747
    %v6802 = vpack.c.b16 %v6750, %v6749
    %v6803 = vpack.c.b16 %v6752, %v6751
    %v6804 = vpack.c.b16 %v6754, %v6753
    %v6805 = vpack.c.b16 %v6756, %v6755
    %v6806 = vpack.c.b16 %v6758, %v6757
    %v6807 = vpack.c.b16 %v6760, %v6759
    %v6808 = vpack.c.b16 %v6762, %v6761
    %v6809 = vpack.c.b16 %v6764, %v6763
    %v6810 = vpack.c.b16 %v6766, %v6765
    %v6811 = vpack.c.b16 %v6768, %v6767
    %v6812 = vpack.c.b16 %v6770, %v6769
    %v6813 = vpack.c.b16 %v6772, %v6771
    %v6814 = vpack.c.b16 %v6774, %v6773
    %v6815 = vpack.c.b16 %v6776, %v6775
    %v6816 = vpack.c.b16 %v6778, %v6777
    %v6817 = vpack.c.b16 %v6780, %v6779
    %v6818 = vpack.c.b16 %v6782, %v6781
    %v6819 = vpack.c.b16 %v6784, %v6783
    %v6820 = vpack.c.b16 %v6786, %v6785
    %v6821 = vpack.c.b16 %v6788, %v6787
    %v6822 = vpack.c.b16 %v6790, %v6789
    %6855 = vmatprep.subr.bf16.mxu0 0
    %6856 = vmatpush1.bf16.msra.mxu0 %v6798
    %6857 = vmatprep.subr.bf16.mxu0 0
    %6858 = vmatpush1.bf16.msra.mxu0 %v6797
    %6859 = vmatprep.subr.bf16.mxu0 0
    %6860 = vmatpush1.bf16.msra.mxu0 %v6796
    %6861 = vmatprep.subr.bf16.mxu0 0
    %6862 = vmatpush1.bf16.msra.mxu0 %v6795
    %6863 = vmatprep.subr.bf16.mxu0 0
    %6864 = vmatpush1.bf16.msra.mxu0 %v6794
    %6865 = vmatprep.subr.bf16.mxu0 0
    %6866 = vmatpush1.bf16.msra.mxu0 %v6793
    %6867 = vmatprep.subr.bf16.mxu0 0
    %6868 = vmatpush1.bf16.msra.mxu0 %v6792
    %6869 = vmatprep.subr.bf16.mxu0 0
    %6870 = vmatpush1.bf16.msra.mxu0 %v6791
    %6871 = vmatprep.subr.bf16.mxu0 0
    %6872 = vmatpush2.bf16.msra.mxu0 %v6806
    %6873 = vmatprep.subr.bf16.mxu0 0
    %6874 = vmatpush2.bf16.msra.mxu0 %v6805
    %6875 = vmatprep.subr.bf16.mxu0 0
    %6876 = vmatpush2.bf16.msra.mxu0 %v6804
    %6877 = vmatprep.subr.bf16.mxu0 0
    %6878 = vmatpush2.bf16.msra.mxu0 %v6803
    %6879 = vmatprep.subr.bf16.mxu0 0
    %6880 = vmatpush2.bf16.msra.mxu0 %v6802
    %6881 = vmatprep.subr.bf16.mxu0 0
    %6882 = vmatpush2.bf16.msra.mxu0 %v6801
    %6883 = vmatprep.subr.bf16.mxu0 0
    %6884 = vmatpush2.bf16.msra.mxu0 %v6800
    %6885 = vmatprep.subr.bf16.mxu0 0
    %6886 = vmatpush2.bf16.msra.mxu0 %v6799
    %6887 = vmatprep.mubr.bf16.mxu0 %v6589
    %6888 = vmatmul.mubr.bf16.gmra.mxu0 %v6588
    %v6889 = vpop.f32.mrf.mxu0
    %v6890 = vadd.f32 %v6661, %v6889
    %v6891 = vpop.f32.mrf.mxu0
    %v6892 = vpop.f32.mrf.mxu0
    %v6893 = vadd.f32 %v6661, %v6892
    %v6894 = vpop.f32.mrf.mxu0
    %6895 = vdwg.mxu0
    %6896 = vmatprep.subr.bf16.mxu0 0
    %6897 = vmatpush1.bf16.msra.mxu0 %v6814
    %6898 = vmatprep.subr.bf16.mxu0 0
    %6899 = vmatpush1.bf16.msra.mxu0 %v6813
    %6900 = vmatprep.subr.bf16.mxu0 0
    %6901 = vmatpush1.bf16.msra.mxu0 %v6812
    %6902 = vmatprep.subr.bf16.mxu0 0
    %6903 = vmatpush1.bf16.msra.mxu0 %v6811
    %6904 = vmatprep.subr.bf16.mxu0 0
    %6905 = vmatpush1.bf16.msra.mxu0 %v6810
    %6906 = vmatprep.subr.bf16.mxu0 0
    %6907 = vmatpush1.bf16.msra.mxu0 %v6809
    %6908 = vmatprep.subr.bf16.mxu0 0
    %6909 = vmatpush1.bf16.msra.mxu0 %v6808
    %6910 = vmatprep.subr.bf16.mxu0 0
    %6911 = vmatpush1.bf16.msra.mxu0 %v6807
    %6912 = vmatprep.subr.bf16.mxu0 0
    %6913 = vmatpush2.bf16.msra.mxu0 %v6822
    %6914 = vmatprep.subr.bf16.mxu0 0
    %6915 = vmatpush2.bf16.msra.mxu0 %v6821
    %6916 = vmatprep.subr.bf16.mxu0 0
    %6917 = vmatpush2.bf16.msra.mxu0 %v6820
    %6918 = vmatprep.subr.bf16.mxu0 0
    %6919 = vmatpush2.bf16.msra.mxu0 %v6819
    %6920 = vmatprep.subr.bf16.mxu0 0
    %6921 = vmatpush2.bf16.msra.mxu0 %v6818
    %6922 = vmatprep.subr.bf16.mxu0 0
    %6923 = vmatpush2.bf16.msra.mxu0 %v6817
    %6924 = vmatprep.subr.bf16.mxu0 0
    %6925 = vmatpush2.bf16.msra.mxu0 %v6816
    %6926 = vmatprep.subr.bf16.mxu0 0
    %6927 = vmatpush2.bf16.msra.mxu0 %v6815
    %6928 = vmatprep.mubr.bf16.mxu0 %v6591
    %6929 = vmatmul.mubr.bf16.gmra.mxu0 %v6590
    %v6930 = vpop.f32.mrf.mxu0
    %v6931 = vadd.f32 %v6890, %v6930
    %v6932 = vpop.f32.mrf.mxu0
    %v6933 = vpop.f32.mrf.mxu0
    %v6934 = vadd.f32 %v6893, %v6933
    %v6935 = vpop.f32.mrf.mxu0
    %6936 = vdwg.mxu0
    %6937 = vst [vmem:[%s7] sm:$0xff] %v6931
    %6938 = vst [vmem:[%s7 + $0x8] sm:$0xff] %v6934
    // Predicated region
    $region34: #{forward.3} parent=1 // pred_check
      _
    $region35: #{forward.3} parent=1 // pred_check_branch
      %6940 = sbr.rel (0) target = $region37
    $region36: #{forward.3} parent=1 // pred_region
      _
    $region37: #{forward.3} parent=1 // pred_fallthru
      _
    // Predicated region
    $region38: #{forward.3} parent=1 // pred_check
      _
    $region39: #{forward.3} parent=1 // pred_check_branch
      %6942 = sbr.rel (0) target = $region41
    $region40: #{forward.3} parent=1 // pred_region
      _
    $region41: #{forward.3} parent=1 // pred_fallthru
      _
    %6943 = vsyncpa [#allocation3], 1

</llo_original>
